<compile_context>
chip_gen: v7x
topology: tpu7x:2x2x1
jax: 0.10.0
libtpu: 0.0.40
codegen_flags: <defaults>
</compile_context>

<pallas_src>
import functools

import jax
import jax.numpy as jnp
from jax.experimental import pallas as pl
from jax.experimental.pallas import tpu as pltpu

WIDTHS = (8, 16, 32, 64)     # scaled-down resnet18 widths (64,128,256,512)
BLOCKS = (2, 2, 2, 2)        # resnet18 basic-block counts
N_CLASSES = 10               # synthetic n_classes


# ---------------------------------------------------------------------------
# Pallas kernels (all matmuls: bf16 operands, f32 accumulation, fused epilogue)
# ---------------------------------------------------------------------------

def _mm_bias_kernel(a_ref, w_ref, b_ref, o_ref, *, relu):
    # (tm, K) @ (K, N) + bias[N]  (BN scale pre-folded into w), optional ReLU.
    acc = jnp.dot(a_ref[...], w_ref[...], preferred_element_type=jnp.float32)
    y = acc + b_ref[...]
    if relu:
        y = jnp.maximum(y, 0.0)
    o_ref[...] = y.astype(o_ref.dtype)


def _mm_bias_residual_kernel(a_ref, w_ref, b_ref, id_ref, o_ref):
    # conv2 of a basic block: matmul + bias + residual identity + ReLU, fused.
    acc = jnp.dot(a_ref[...], w_ref[...], preferred_element_type=jnp.float32)
    y = acc + b_ref[...] + id_ref[...].astype(jnp.float32)
    o_ref[...] = jnp.maximum(y, 0.0).astype(o_ref.dtype)


def _mm_bias_downsample_kernel(a_ref, w_ref, b_ref, idp_ref, wd_ref, bd_ref,
                               o_ref):
    # conv2 of a transition block: main matmul + 1x1/stride-2 downsample matmul
    # (the identity path) + bias adds + residual add + ReLU, all in one kernel.
    acc = jnp.dot(a_ref[...], w_ref[...], preferred_element_type=jnp.float32)
    idv = jnp.dot(idp_ref[...], wd_ref[...],
                  preferred_element_type=jnp.float32) + bd_ref[...]
    y = acc + b_ref[...] + idv
    o_ref[...] = jnp.maximum(y, 0.0).astype(o_ref.dtype)


def _max_taps_kernel(x_ref, o_ref, *, n_taps):
    # Max over the leading "window tap" axis: (T, M, C) -> (M, C).
    m = x_ref[0]
    for t in range(1, n_taps):
        m = jnp.maximum(m, x_ref[t])
    o_ref[...] = m


# ---------------------------------------------------------------------------
# Fused matmul wrapper
# ---------------------------------------------------------------------------

def _pick_tm(m):
    # >=2 grid steps when possible (v7x megacore), keep tiles multiple-of-16.
    return m if m <= 16 else min(256, m // 2)


def fused_matmul(a, w, bias, *, relu, identity=None, down=None,
                 out_dtype=jnp.bfloat16):
    """y = a @ w + bias (+ identity | + (idp @ wd + bd)), optional ReLU.

    a: (M, K) bf16, w: (K, N) bf16, bias: (N,) f32.  No operand padding: K/N
    blocks equal the full array dims; M is tiled with tm | M (M is a mult. of 8).
    """
    M, K = a.shape
    K2, N = w.shape
    assert K == K2
    tm = _pick_tm(M)
    assert M % tm == 0
    grid = (M // tm,)
    bias2 = bias.reshape(1, N).astype(jnp.float32)

    in_specs = [
        pl.BlockSpec((tm, K), lambda i: (i, 0)),
        pl.BlockSpec((K, N), lambda i: (0, 0)),
        pl.BlockSpec((1, N), lambda i: (0, 0)),
    ]
    args = [a, w, bias2]

    if down is not None:
        idp, wd, bd = down
        Kd = idp.shape[1]
        kern = _mm_bias_downsample_kernel
        in_specs += [
            pl.BlockSpec((tm, Kd), lambda i: (i, 0)),
            pl.BlockSpec((Kd, N), lambda i: (0, 0)),
            pl.BlockSpec((1, N), lambda i: (0, 0)),
        ]
        args += [idp, wd, bd.reshape(1, N).astype(jnp.float32)]
    elif identity is not None:
        kern = _mm_bias_residual_kernel
        in_specs += [pl.BlockSpec((tm, N), lambda i: (i, 0))]
        args += [identity]
    else:
        kern = functools.partial(_mm_bias_kernel, relu=relu)

    return pl.pallas_call(
        kern,
        out_shape=jax.ShapeDtypeStruct((M, N), out_dtype),
        grid_spec=pltpu.PrefetchScalarGridSpec(
            num_scalar_prefetch=0,
            grid=grid,
            in_specs=in_specs,
            out_specs=pl.BlockSpec((tm, N), lambda i: (i, 0)),
        ),
        compiler_params=pltpu.CompilerParams(
            dimension_semantics=("parallel",)),
    )(*args)


# ---------------------------------------------------------------------------
# Layer helpers (window extraction in XLA, all math in Pallas)
# ---------------------------------------------------------------------------

def _im2col(x, kh, kw, stride, padding, pad_value=0.0):
    """x: (B,H,W,C) NHWC -> list of kh*kw shifted window views, plus out dims."""
    B, H, W, C = x.shape
    xp = jnp.pad(x, ((0, 0), (padding, padding), (padding, padding), (0, 0)),
                 constant_values=pad_value)
    Ho = (H + 2 * padding - kh) // stride + 1
    Wo = (W + 2 * padding - kw) // stride + 1
    cols = [xp[:, i:i + stride * Ho:stride, j:j + stride * Wo:stride, :]
            for i in range(kh) for j in range(kw)]
    return cols, (B, Ho, Wo)


def conv2d(x, w4, bias, *, stride, padding, relu=True, identity=None, down=None):
    """Conv2d(bias=False) + folded BN (+ residual / downsample / ReLU) fused."""
    kh, kw, cin, cout = w4.shape
    cols, (B, Ho, Wo) = _im2col(x, kh, kw, stride, padding)
    patches = jnp.concatenate(cols, axis=-1).reshape(B * Ho * Wo, kh * kw * cin)
    wm = w4.reshape(kh * kw * cin, cout)
    out = fused_matmul(patches, wm, bias, relu=relu,
                       identity=identity, down=down)
    return out.reshape(B, Ho, Wo, cout)


def max_pool(x, k=3, stride=2, padding=1):
    """MaxPool2d(k, stride, padding): one Pallas kernel maxing over the k*k taps."""
    cols, (B, Ho, Wo) = _im2col(x, k, k, stride, padding, pad_value=-jnp.inf)
    C = x.shape[-1]
    stacked = jnp.stack([c.reshape(B * Ho * Wo, C) for c in cols], axis=0)
    out = pl.pallas_call(
        functools.partial(_max_taps_kernel, n_taps=k * k),
        out_shape=jax.ShapeDtypeStruct((B * Ho * Wo, C), x.dtype),
    )(stacked)
    return out.reshape(B, Ho, Wo, C)


def basic_block(x, bp):
    s = bp['stride']
    B, H, W, Cin = x.shape
    out1 = conv2d(x, bp['conv1_w'], bp['bn1_b'], stride=s, padding=1, relu=True)
    Bo, Ho, Wo, cout = out1.shape[0], out1.shape[1], out1.shape[2], \
        bp['conv2_w'].shape[-1]
    M = Bo * Ho * Wo
    if 'down_w' in bp:
        # 1x1 stride-s downsample: its "patches" are just the strided input.
        idp = x[:, ::s, ::s, :].reshape(M, Cin)
        down = (idp, bp['down_w'].reshape(Cin, cout), bp['down_b'])
        return conv2d(out1, bp['conv2_w'], bp['bn2_b'], stride=1, padding=1,
                      relu=True, down=down)
    identity = x.reshape(M, cout)
    return conv2d(out1, bp['conv2_w'], bp['bn2_b'], stride=1, padding=1,
                  relu=True, identity=identity)


# ---------------------------------------------------------------------------
# Deterministic parameter init (synthetic — no checkpoint loading)
# BN scale is folded into the conv weights; weights stored in bf16.
# ---------------------------------------------------------------------------

def _init_conv_bn(key, kh, kw, cin, cout):
    k_w, k1, k2, k3, k4 = jax.random.split(key, 5)
    fan_in = kh * kw * cin
    w = (jax.random.normal(k_w, (kh, kw, cin, cout), jnp.float32)
         * (2.0 / fan_in) ** 0.5)
    gamma = 1.0 + 0.1 * jax.random.normal(k1, (cout,), jnp.float32)
    beta = 0.1 * jax.random.normal(k2, (cout,), jnp.float32)
    mean = 0.1 * jax.random.normal(k3, (cout,), jnp.float32)
    var = jnp.abs(1.0 + 0.1 * jax.random.normal(k4, (cout,), jnp.float32))
    scale = gamma / jnp.sqrt(var + 1e-5)          # inference BN -> affine
    shift = beta - mean * scale
    w_folded = (w * scale).astype(jnp.bfloat16)   # fold BN scale into weights
    return w_folded, shift.astype(jnp.float32)


def init_params(key):
    keys = iter(jax.random.split(key, 64))
    p = {}
    p['conv1_w'], p['bn1_b'] = _init_conv_bn(next(keys), 7, 7, 1, WIDTHS[0])

    inplanes = WIDTHS[0]
    layers = []
    for li, (planes, nblocks) in enumerate(zip(WIDTHS, BLOCKS)):
        layer_stride = 1 if li == 0 else 2
        blocks = []
        for bi in range(nblocks):
            s = layer_stride if bi == 0 else 1
            w1, b1 = _init_conv_bn(next(keys), 3, 3, inplanes, planes)
            w2, b2 = _init_conv_bn(next(keys), 3, 3, planes, planes)
            bp = {'stride': s, 'conv1_w': w1, 'bn1_b': b1,
                  'conv2_w': w2, 'bn2_b': b2}
            if s != 1 or inplanes != planes:
                wd, bd = _init_conv_bn(next(keys), 1, 1, inplanes, planes)
                bp['down_w'] = wd
                bp['down_b'] = bd
            blocks.append(bp)
            inplanes = planes
        layers.append(blocks)
    p['layers'] = layers

    feat_dim = WIDTHS[-1]
    kf = jax.random.split(next(keys), 4)
    p['fc1_w'] = 0.1 * jax.random.normal(kf[0], (feat_dim, N_CLASSES), jnp.float32)
    p['fc1_b'] = 0.01 * jax.random.normal(kf[1], (N_CLASSES,), jnp.float32)
    p['fc2_w'] = 0.1 * jax.random.normal(kf[2], (feat_dim, N_CLASSES), jnp.float32)
    p['fc2_b'] = 0.01 * jax.random.normal(kf[3], (N_CLASSES,), jnp.float32)
    return p


# ---------------------------------------------------------------------------
# AVENet forward:  aud, feat, feat2 = audnet(audio);  class1 = audnet.fc2(feat)
# ---------------------------------------------------------------------------

def avenet_forward(params, audio_nchw):
    x = jnp.transpose(audio_nchw, (0, 2, 3, 1)).astype(jnp.bfloat16)  # NCHW->NHWC

    # stem: conv7x7/2 + folded BN + ReLU, then maxpool3x3/2 (single kernel)
    x = conv2d(x, params['conv1_w'], params['bn1_b'],
               stride=2, padding=3, relu=True)
    x = max_pool(x, k=3, stride=2, padding=1)

    # layer1..layer4 (residual / downsample fused into each block's conv2 kernel)
    for blocks in params['layers']:
        for bp in blocks:
            x = basic_block(x, bp)

    feat2 = jnp.transpose(x, (0, 3, 1, 2)).astype(jnp.float32)  # NCHW like torch

    # Fused head: avgpool folded into the concatenated (fc1|fc2) weight matrix,
    # so avgpool + fc1 + fc2 = one matmul+bias Pallas kernel.
    B, H, W, C = x.shape
    hw = H * W
    wcat = jnp.concatenate([params['fc1_w'], params['fc2_w']], axis=1)  # (C, 2n)
    whead = jnp.tile(wcat / hw, (hw, 1)).astype(jnp.bfloat16)           # (hw*C, 2n)
    bcat = jnp.concatenate([params['fc1_b'], params['fc2_b']], axis=0)
    logits = fused_matmul(x.reshape(B, hw * C), whead, bcat, relu=False,
                          out_dtype=jnp.float32)                        # (B, 2n)
    aud = logits[:, :N_CLASSES]
    class1 = logits[:, N_CLASSES:]
    return aud, class1, feat2


if __name__ == "__main__":
    key = jax.random.PRNGKey(0)
    pk, xk = jax.random.split(key)
    params = init_params(pk)

    # PyTorch-style NCHW audio spectrogram input: (batch=2, channels=1, 64, 64)
    audio = jax.random.normal(xk, (2, 1, 64, 64), jnp.float32)

    fwd = jax.jit(functools.partial(avenet_forward, params))
    aud, class1, feat2 = fwd(audio)
    jax.block_until_ready((aud, class1, feat2))

    assert aud.shape == (2, N_CLASSES)
    assert class1.shape == (2, N_CLASSES)
    assert feat2.shape == (2, WIDTHS[-1], 2, 2)   # NCHW, matches PyTorch layout
    print("KERNEL_OK")
</pallas_src>

<mosaic_0001>
module attributes {stable_mosaic.version = 11 : i64} {
  func.func @_mm_bias_kernel(%arg0: i32, %arg1: memref<256x49xbf16, #tpu.memory_space<vmem>>, %arg2: memref<49x8xbf16, #tpu.memory_space<vmem>>, %arg3: memref<1x8xf32, #tpu.memory_space<vmem>>, %arg4: memref<256x8xbf16, #tpu.memory_space<vmem>>) attributes {dimension_semantics = [#tpu.dimension_semantics<parallel>], iteration_bounds = array<i64: 8>, scalar_prefetch = 0 : i64, scratch_operands = 0 : i64, tpu.core_type = #tpu.core_type<tc>, window_params = [{transform_indices = @transform_0, window_bounds = array<i64: 256, 49>}, {pipeline_mode = #tpu.pipeline_mode<synchronous>, transform_indices = @transform_1, window_bounds = array<i64: 49, 8>}, {pipeline_mode = #tpu.pipeline_mode<synchronous>, transform_indices = @transform_2, window_bounds = array<i64: 1, 8>}, {transform_indices = @transform_3, window_bounds = array<i64: 256, 8>}]} {
    %c0 = arith.constant 0 : index
    %c0_0 = arith.constant 0 : index
    %0 = vector.load %arg1[%c0, %c0_0] : memref<256x49xbf16, #tpu.memory_space<vmem>>, vector<256x49xbf16>
    %c0_1 = arith.constant 0 : index
    %c0_2 = arith.constant 0 : index
    %1 = vector.load %arg2[%c0_1, %c0_2] : memref<49x8xbf16, #tpu.memory_space<vmem>>, vector<49x8xbf16>
    %cst = arith.constant dense<0.000000e+00> : vector<256x8xf32>
    %2 = tpu.matmul %0, %1, %cst {dimension_numbers = #tpu.dot_dimension_numbers<[1], [0], [0], [1], [0, 0, 1, 1], [], []>} : vector<256x49xbf16>, vector<49x8xbf16>, vector<256x8xf32> -> vector<256x8xf32>
    %c0_3 = arith.constant 0 : index
    %c0_4 = arith.constant 0 : index
    %3 = vector.load %arg3[%c0_3, %c0_4] : memref<1x8xf32, #tpu.memory_space<vmem>>, vector<1x8xf32>
    %4 = vector.broadcast %3 : vector<1x8xf32> to vector<256x8xf32>
    %5 = arith.addf %2, %4 : vector<256x8xf32>
    %cst_5 = arith.constant 0.000000e+00 : f32
    %6 = vector.broadcast %cst_5 : f32 to vector<256x8xf32>
    %7 = arith.maximumf %5, %6 : vector<256x8xf32>
    %8 = arith.truncf %7 : vector<256x8xf32> to vector<256x8xbf16>
    %c0_6 = arith.constant 0 : index
    %c0_7 = arith.constant 0 : index
    %9 = vector.load %arg4[%c0_6, %c0_7] : memref<256x8xbf16, #tpu.memory_space<vmem>>, vector<256x8xbf16>
    tpu.vector_store %arg4[%c0_6, %c0_7], %8 {strides = array<i32>} : memref<256x8xbf16, #tpu.memory_space<vmem>>, vector<256x8xbf16>,
    return
  }
  func.func @transform_0(%arg0: i32) -> (i32, i32) {
    %c0_i32 = arith.constant 0 : i32
    %c0_i32_0 = arith.constant 0 : i32
    return %arg0, %c0_i32 : i32, i32
  }
  func.func @transform_1(%arg0: i32) -> (i32, i32) {
    %c0_i32 = arith.constant 0 : i32
    %c0_i32_0 = arith.constant 0 : i32
    %c0_i32_1 = arith.constant 0 : i32
    return %c0_i32, %c0_i32_0 : i32, i32
  }
  func.func @transform_2(%arg0: i32) -> (i32, i32) {
    %c0_i32 = arith.constant 0 : i32
    %c0_i32_0 = arith.constant 0 : i32
    %c0_i32_1 = arith.constant 0 : i32
    return %c0_i32, %c0_i32_0 : i32, i32
  }
  func.func @transform_3(%arg0: i32) -> (i32, i32) {
    %c0_i32 = arith.constant 0 : i32
    %c0_i32_0 = arith.constant 0 : i32
    return %arg0, %c0_i32 : i32, i32
  }
}

module attributes {stable_mosaic.version = 11 : i64} {
  func.func @_max_taps_kernel(%arg0: memref<9x512x8xbf16, #tpu.memory_space<vmem>>, %arg1: memref<512x8xbf16, #tpu.memory_space<vmem>>) attributes {dimension_semantics = [], scalar_prefetch = 0 : i64, scratch_operands = 0 : i64, tpu.core_type = #tpu.core_type<tc>} {
    %c0 = arith.constant 0 : index
    %c0_0 = arith.constant 0 : index
    %c0_1 = arith.constant 0 : index
    %0 = vector.load %arg0[%c0, %c0_0, %c0_1] : memref<9x512x8xbf16, #tpu.memory_space<vmem>>, vector<1x512x8xbf16>
    %1 = vector.shape_cast %0 : vector<1x512x8xbf16> to vector<512x8xbf16>
    %c1 = arith.constant 1 : index
    %c0_2 = arith.constant 0 : index
    %c0_3 = arith.constant 0 : index
    %2 = vector.load %arg0[%c1, %c0_2, %c0_3] : memref<9x512x8xbf16, #tpu.memory_space<vmem>>, vector<1x512x8xbf16>
    %3 = vector.shape_cast %2 : vector<1x512x8xbf16> to vector<512x8xbf16>
    %4 = arith.maximumf %1, %3 : vector<512x8xbf16>
    %c2 = arith.constant 2 : index
    %c0_4 = arith.constant 0 : index
    %c0_5 = arith.constant 0 : index
    %5 = vector.load %arg0[%c2, %c0_4, %c0_5] : memref<9x512x8xbf16, #tpu.memory_space<vmem>>, vector<1x512x8xbf16>
    %6 = vector.shape_cast %5 : vector<1x512x8xbf16> to vector<512x8xbf16>
    %7 = arith.maximumf %4, %6 : vector<512x8xbf16>
    %c3 = arith.constant 3 : index
    %c0_6 = arith.constant 0 : index
    %c0_7 = arith.constant 0 : index
    %8 = vector.load %arg0[%c3, %c0_6, %c0_7] : memref<9x512x8xbf16, #tpu.memory_space<vmem>>, vector<1x512x8xbf16>
    %9 = vector.shape_cast %8 : vector<1x512x8xbf16> to vector<512x8xbf16>
    %10 = arith.maximumf %7, %9 : vector<512x8xbf16>
    %c4 = arith.constant 4 : index
    %c0_8 = arith.constant 0 : index
    %c0_9 = arith.constant 0 : index
    %11 = vector.load %arg0[%c4, %c0_8, %c0_9] : memref<9x512x8xbf16, #tpu.memory_space<vmem>>, vector<1x512x8xbf16>
    %12 = vector.shape_cast %11 : vector<1x512x8xbf16> to vector<512x8xbf16>
    %13 = arith.maximumf %10, %12 : vector<512x8xbf16>
    %c5 = arith.constant 5 : index
    %c0_10 = arith.constant 0 : index
    %c0_11 = arith.constant 0 : index
    %14 = vector.load %arg0[%c5, %c0_10, %c0_11] : memref<9x512x8xbf16, #tpu.memory_space<vmem>>, vector<1x512x8xbf16>
    %15 = vector.shape_cast %14 : vector<1x512x8xbf16> to vector<512x8xbf16>
    %16 = arith.maximumf %13, %15 : vector<512x8xbf16>
    %c6 = arith.constant 6 : index
    %c0_12 = arith.constant 0 : index
    %c0_13 = arith.constant 0 : index
    %17 = vector.load %arg0[%c6, %c0_12, %c0_13] : memref<9x512x8xbf16, #tpu.memory_space<vmem>>, vector<1x512x8xbf16>
    %18 = vector.shape_cast %17 : vector<1x512x8xbf16> to vector<512x8xbf16>
    %19 = arith.maximumf %16, %18 : vector<512x8xbf16>
    %c7 = arith.constant 7 : index
    %c0_14 = arith.constant 0 : index
    %c0_15 = arith.constant 0 : index
    %20 = vector.load %arg0[%c7, %c0_14, %c0_15] : memref<9x512x8xbf16, #tpu.memory_space<vmem>>, vector<1x512x8xbf16>
    %21 = vector.shape_cast %20 : vector<1x512x8xbf16> to vector<512x8xbf16>
    %22 = arith.maximumf %19, %21 : vector<512x8xbf16>
    %c8 = arith.constant 8 : index
    %c0_16 = arith.constant 0 : index
    %c0_17 = arith.constant 0 : index
    %23 = vector.load %arg0[%c8, %c0_16, %c0_17] : memref<9x512x8xbf16, #tpu.memory_space<vmem>>, vector<1x512x8xbf16>
    %24 = vector.shape_cast %23 : vector<1x512x8xbf16> to vector<512x8xbf16>
    %25 = arith.maximumf %22, %24 : vector<512x8xbf16>
    %c0_18 = arith.constant 0 : index
    %c0_19 = arith.constant 0 : index
    %26 = vector.load %arg1[%c0_18, %c0_19] : memref<512x8xbf16, #tpu.memory_space<vmem>>, vector<512x8xbf16>
    tpu.vector_store %arg1[%c0_18, %c0_19], %25 {strides = array<i32>} : memref<512x8xbf16, #tpu.memory_space<vmem>>, vector<512x8xbf16>,
    return
  }
}

module attributes {stable_mosaic.version = 11 : i64} {
  func.func @_mm_bias_kernel(%arg0: i32, %arg1: memref<256x72xbf16, #tpu.memory_space<vmem>>, %arg2: memref<72x8xbf16, #tpu.memory_space<vmem>>, %arg3: memref<1x8xf32, #tpu.memory_space<vmem>>, %arg4: memref<256x8xbf16, #tpu.memory_space<vmem>>) attributes {dimension_semantics = [#tpu.dimension_semantics<parallel>], iteration_bounds = array<i64: 2>, scalar_prefetch = 0 : i64, scratch_operands = 0 : i64, tpu.core_type = #tpu.core_type<tc>, window_params = [{transform_indices = @transform_0, window_bounds = array<i64: 256, 72>}, {pipeline_mode = #tpu.pipeline_mode<synchronous>, transform_indices = @transform_1, window_bounds = array<i64: 72, 8>}, {pipeline_mode = #tpu.pipeline_mode<synchronous>, transform_indices = @transform_2, window_bounds = array<i64: 1, 8>}, {transform_indices = @transform_3, window_bounds = array<i64: 256, 8>}]} {
    %c0 = arith.constant 0 : index
    %c0_0 = arith.constant 0 : index
    %0 = vector.load %arg1[%c0, %c0_0] : memref<256x72xbf16, #tpu.memory_space<vmem>>, vector<256x72xbf16>
    %c0_1 = arith.constant 0 : index
    %c0_2 = arith.constant 0 : index
    %1 = vector.load %arg2[%c0_1, %c0_2] : memref<72x8xbf16, #tpu.memory_space<vmem>>, vector<72x8xbf16>
    %cst = arith.constant dense<0.000000e+00> : vector<256x8xf32>
    %2 = tpu.matmul %0, %1, %cst {dimension_numbers = #tpu.dot_dimension_numbers<[1], [0], [0], [1], [0, 0, 1, 1], [], []>} : vector<256x72xbf16>, vector<72x8xbf16>, vector<256x8xf32> -> vector<256x8xf32>
    %c0_3 = arith.constant 0 : index
    %c0_4 = arith.constant 0 : index
    %3 = vector.load %arg3[%c0_3, %c0_4] : memref<1x8xf32, #tpu.memory_space<vmem>>, vector<1x8xf32>
    %4 = vector.broadcast %3 : vector<1x8xf32> to vector<256x8xf32>
    %5 = arith.addf %2, %4 : vector<256x8xf32>
    %cst_5 = arith.constant 0.000000e+00 : f32
    %6 = vector.broadcast %cst_5 : f32 to vector<256x8xf32>
    %7 = arith.maximumf %5, %6 : vector<256x8xf32>
    %8 = arith.truncf %7 : vector<256x8xf32> to vector<256x8xbf16>
    %c0_6 = arith.constant 0 : index
    %c0_7 = arith.constant 0 : index
    %9 = vector.load %arg4[%c0_6, %c0_7] : memref<256x8xbf16, #tpu.memory_space<vmem>>, vector<256x8xbf16>
    tpu.vector_store %arg4[%c0_6, %c0_7], %8 {strides = array<i32>} : memref<256x8xbf16, #tpu.memory_space<vmem>>, vector<256x8xbf16>,
    return
  }
  func.func @transform_0(%arg0: i32) -> (i32, i32) {
    %c0_i32 = arith.constant 0 : i32
    %c0_i32_0 = arith.constant 0 : i32
    return %arg0, %c0_i32 : i32, i32
  }
  func.func @transform_1(%arg0: i32) -> (i32, i32) {
    %c0_i32 = arith.constant 0 : i32
    %c0_i32_0 = arith.constant 0 : i32
    %c0_i32_1 = arith.constant 0 : i32
    return %c0_i32, %c0_i32_0 : i32, i32
  }
  func.func @transform_2(%arg0: i32) -> (i32, i32) {
    %c0_i32 = arith.constant 0 : i32
    %c0_i32_0 = arith.constant 0 : i32
    %c0_i32_1 = arith.constant 0 : i32
    return %c0_i32, %c0_i32_0 : i32, i32
  }
  func.func @transform_3(%arg0: i32) -> (i32, i32) {
    %c0_i32 = arith.constant 0 : i32
    %c0_i32_0 = arith.constant 0 : i32
    return %arg0, %c0_i32 : i32, i32
  }
}

module attributes {stable_mosaic.version = 11 : i64} {
  func.func @_mm_bias_residual_kernel(%arg0: i32, %arg1: memref<256x72xbf16, #tpu.memory_space<vmem>>, %arg2: memref<72x8xbf16, #tpu.memory_space<vmem>>, %arg3: memref<1x8xf32, #tpu.memory_space<vmem>>, %arg4: memref<256x8xbf16, #tpu.memory_space<vmem>>, %arg5: memref<256x8xbf16, #tpu.memory_space<vmem>>) attributes {dimension_semantics = [#tpu.dimension_semantics<parallel>], iteration_bounds = array<i64: 2>, scalar_prefetch = 0 : i64, scratch_operands = 0 : i64, tpu.core_type = #tpu.core_type<tc>, window_params = [{transform_indices = @transform_0, window_bounds = array<i64: 256, 72>}, {pipeline_mode = #tpu.pipeline_mode<synchronous>, transform_indices = @transform_1, window_bounds = array<i64: 72, 8>}, {pipeline_mode = #tpu.pipeline_mode<synchronous>, transform_indices = @transform_2, window_bounds = array<i64: 1, 8>}, {transform_indices = @transform_3, window_bounds = array<i64: 256, 8>}, {transform_indices = @transform_4, window_bounds = array<i64: 256, 8>}]} {
    %c0 = arith.constant 0 : index
    %c0_0 = arith.constant 0 : index
    %0 = vector.load %arg1[%c0, %c0_0] : memref<256x72xbf16, #tpu.memory_space<vmem>>, vector<256x72xbf16>
    %c0_1 = arith.constant 0 : index
    %c0_2 = arith.constant 0 : index
    %1 = vector.load %arg2[%c0_1, %c0_2] : memref<72x8xbf16, #tpu.memory_space<vmem>>, vector<72x8xbf16>
    %cst = arith.constant dense<0.000000e+00> : vector<256x8xf32>
    %2 = tpu.matmul %0, %1, %cst {dimension_numbers = #tpu.dot_dimension_numbers<[1], [0], [0], [1], [0, 0, 1, 1], [], []>} : vector<256x72xbf16>, vector<72x8xbf16>, vector<256x8xf32> -> vector<256x8xf32>
    %c0_3 = arith.constant 0 : index
    %c0_4 = arith.constant 0 : index
    %3 = vector.load %arg3[%c0_3, %c0_4] : memref<1x8xf32, #tpu.memory_space<vmem>>, vector<1x8xf32>
    %4 = vector.broadcast %3 : vector<1x8xf32> to vector<256x8xf32>
    %5 = arith.addf %2, %4 : vector<256x8xf32>
    %c0_5 = arith.constant 0 : index
    %c0_6 = arith.constant 0 : index
    %6 = vector.load %arg4[%c0_5, %c0_6] : memref<256x8xbf16, #tpu.memory_space<vmem>>, vector<256x8xbf16>
    %7 = arith.extf %6 : vector<256x8xbf16> to vector<256x8xf32>
    %8 = arith.addf %5, %7 : vector<256x8xf32>
    %cst_7 = arith.constant 0.000000e+00 : f32
    %9 = vector.broadcast %cst_7 : f32 to vector<256x8xf32>
    %10 = arith.maximumf %8, %9 : vector<256x8xf32>
    %11 = arith.truncf %10 : vector<256x8xf32> to vector<256x8xbf16>
    %c0_8 = arith.constant 0 : index
    %c0_9 = arith.constant 0 : index
    %12 = vector.load %arg5[%c0_8, %c0_9] : memref<256x8xbf16, #tpu.memory_space<vmem>>, vector<256x8xbf16>
    tpu.vector_store %arg5[%c0_8, %c0_9], %11 {strides = array<i32>} : memref<256x8xbf16, #tpu.memory_space<vmem>>, vector<256x8xbf16>,
    return
  }
  func.func @transform_0(%arg0: i32) -> (i32, i32) {
    %c0_i32 = arith.constant 0 : i32
    %c0_i32_0 = arith.constant 0 : i32
    return %arg0, %c0_i32 : i32, i32
  }
  func.func @transform_1(%arg0: i32) -> (i32, i32) {
    %c0_i32 = arith.constant 0 : i32
    %c0_i32_0 = arith.constant 0 : i32
    %c0_i32_1 = arith.constant 0 : i32
    return %c0_i32, %c0_i32_0 : i32, i32
  }
  func.func @transform_2(%arg0: i32) -> (i32, i32) {
    %c0_i32 = arith.constant 0 : i32
    %c0_i32_0 = arith.constant 0 : i32
    %c0_i32_1 = arith.constant 0 : i32
    return %c0_i32, %c0_i32_0 : i32, i32
  }
  func.func @transform_3(%arg0: i32) -> (i32, i32) {
    %c0_i32 = arith.constant 0 : i32
    %c0_i32_0 = arith.constant 0 : i32
    return %arg0, %c0_i32 : i32, i32
  }
  func.func @transform_4(%arg0: i32) -> (i32, i32) {
    %c0_i32 = arith.constant 0 : i32
    %c0_i32_0 = arith.constant 0 : i32
    return %arg0, %c0_i32 : i32, i32
  }
}

module attributes {stable_mosaic.version = 11 : i64} {
  func.func @_mm_bias_kernel(%arg0: i32, %arg1: memref<64x72xbf16, #tpu.memory_space<vmem>>, %arg2: memref<72x16xbf16, #tpu.memory_space<vmem>>, %arg3: memref<1x16xf32, #tpu.memory_space<vmem>>, %arg4: memref<64x16xbf16, #tpu.memory_space<vmem>>) attributes {dimension_semantics = [#tpu.dimension_semantics<parallel>], iteration_bounds = array<i64: 2>, scalar_prefetch = 0 : i64, scratch_operands = 0 : i64, tpu.core_type = #tpu.core_type<tc>, window_params = [{transform_indices = @transform_0, window_bounds = array<i64: 64, 72>}, {pipeline_mode = #tpu.pipeline_mode<synchronous>, transform_indices = @transform_1, window_bounds = array<i64: 72, 16>}, {pipeline_mode = #tpu.pipeline_mode<synchronous>, transform_indices = @transform_2, window_bounds = array<i64: 1, 16>}, {transform_indices = @transform_3, window_bounds = array<i64: 64, 16>}]} {
    %c0 = arith.constant 0 : index
    %c0_0 = arith.constant 0 : index
    %0 = vector.load %arg1[%c0, %c0_0] : memref<64x72xbf16, #tpu.memory_space<vmem>>, vector<64x72xbf16>
    %c0_1 = arith.constant 0 : index
    %c0_2 = arith.constant 0 : index
    %1 = vector.load %arg2[%c0_1, %c0_2] : memref<72x16xbf16, #tpu.memory_space<vmem>>, vector<72x16xbf16>
    %cst = arith.constant dense<0.000000e+00> : vector<64x16xf32>
    %2 = tpu.matmul %0, %1, %cst {dimension_numbers = #tpu.dot_dimension_numbers<[1], [0], [0], [1], [0, 0, 1, 1], [], []>} : vector<64x72xbf16>, vector<72x16xbf16>, vector<64x16xf32> -> vector<64x16xf32>
    %c0_3 = arith.constant 0 : index
    %c0_4 = arith.constant 0 : index
    %3 = vector.load %arg3[%c0_3, %c0_4] : memref<1x16xf32, #tpu.memory_space<vmem>>, vector<1x16xf32>
    %4 = vector.broadcast %3 : vector<1x16xf32> to vector<64x16xf32>
    %5 = arith.addf %2, %4 : vector<64x16xf32>
    %cst_5 = arith.constant 0.000000e+00 : f32
    %6 = vector.broadcast %cst_5 : f32 to vector<64x16xf32>
    %7 = arith.maximumf %5, %6 : vector<64x16xf32>
    %8 = arith.truncf %7 : vector<64x16xf32> to vector<64x16xbf16>
    %c0_6 = arith.constant 0 : index
    %c0_7 = arith.constant 0 : index
    %9 = vector.load %arg4[%c0_6, %c0_7] : memref<64x16xbf16, #tpu.memory_space<vmem>>, vector<64x16xbf16>
    tpu.vector_store %arg4[%c0_6, %c0_7], %8 {strides = array<i32>} : memref<64x16xbf16, #tpu.memory_space<vmem>>, vector<64x16xbf16>,
    return
  }
  func.func @transform_0(%arg0: i32) -> (i32, i32) {
    %c0_i32 = arith.constant 0 : i32
    %c0_i32_0 = arith.constant 0 : i32
    return %arg0, %c0_i32 : i32, i32
  }
  func.func @transform_1(%arg0: i32) -> (i32, i32) {
    %c0_i32 = arith.constant 0 : i32
    %c0_i32_0 = arith.constant 0 : i32
    %c0_i32_1 = arith.constant 0 : i32
    return %c0_i32, %c0_i32_0 : i32, i32
  }
  func.func @transform_2(%arg0: i32) -> (i32, i32) {
    %c0_i32 = arith.constant 0 : i32
    %c0_i32_0 = arith.constant 0 : i32
    %c0_i32_1 = arith.constant 0 : i32
    return %c0_i32, %c0_i32_0 : i32, i32
  }
  func.func @transform_3(%arg0: i32) -> (i32, i32) {
    %c0_i32 = arith.constant 0 : i32
    %c0_i32_0 = arith.constant 0 : i32
    return %arg0, %c0_i32 : i32, i32
  }
}

module attributes {stable_mosaic.version = 11 : i64} {
  func.func @_mm_bias_downsample_kernel(%arg0: i32, %arg1: memref<64x144xbf16, #tpu.memory_space<vmem>>, %arg2: memref<144x16xbf16, #tpu.memory_space<vmem>>, %arg3: memref<1x16xf32, #tpu.memory_space<vmem>>, %arg4: memref<64x8xbf16, #tpu.memory_space<vmem>>, %arg5: memref<8x16xbf16, #tpu.memory_space<vmem>>, %arg6: memref<1x16xf32, #tpu.memory_space<vmem>>, %arg7: memref<64x16xbf16, #tpu.memory_space<vmem>>) attributes {dimension_semantics = [#tpu.dimension_semantics<parallel>], iteration_bounds = array<i64: 2>, scalar_prefetch = 0 : i64, scratch_operands = 0 : i64, tpu.core_type = #tpu.core_type<tc>, window_params = [{transform_indices = @transform_0, window_bounds = array<i64: 64, 144>}, {pipeline_mode = #tpu.pipeline_mode<synchronous>, transform_indices = @transform_1, window_bounds = array<i64: 144, 16>}, {pipeline_mode = #tpu.pipeline_mode<synchronous>, transform_indices = @transform_2, window_bounds = array<i64: 1, 16>}, {transform_indices = @transform_3, window_bounds = array<i64: 64, 8>}, {pipeline_mode = #tpu.pipeline_mode<synchronous>, transform_indices = @transform_4, window_bounds = array<i64: 8, 16>}, {pipeline_mode = #tpu.pipeline_mode<synchronous>, transform_indices = @transform_5, window_bounds = array<i64: 1, 16>}, {transform_indices = @transform_6, window_bounds = array<i64: 64, 16>}]} {
    %c0 = arith.constant 0 : index
    %c0_0 = arith.constant 0 : index
    %0 = vector.load %arg1[%c0, %c0_0] : memref<64x144xbf16, #tpu.memory_space<vmem>>, vector<64x144xbf16>
    %c0_1 = arith.constant 0 : index
    %c0_2 = arith.constant 0 : index
    %1 = vector.load %arg2[%c0_1, %c0_2] : memref<144x16xbf16, #tpu.memory_space<vmem>>, vector<144x16xbf16>
    %cst = arith.constant dense<0.000000e+00> : vector<64x16xf32>
    %2 = tpu.matmul %0, %1, %cst {dimension_numbers = #tpu.dot_dimension_numbers<[1], [0], [0], [1], [0, 0, 1, 1], [], []>} : vector<64x144xbf16>, vector<144x16xbf16>, vector<64x16xf32> -> vector<64x16xf32>
    %c0_3 = arith.constant 0 : index
    %c0_4 = arith.constant 0 : index
    %3 = vector.load %arg4[%c0_3, %c0_4] : memref<64x8xbf16, #tpu.memory_space<vmem>>, vector<64x8xbf16>
    %c0_5 = arith.constant 0 : index
    %c0_6 = arith.constant 0 : index
    %4 = vector.load %arg5[%c0_5, %c0_6] : memref<8x16xbf16, #tpu.memory_space<vmem>>, vector<8x16xbf16>
    %cst_7 = arith.constant dense<0.000000e+00> : vector<64x16xf32>
    %5 = tpu.matmul %3, %4, %cst_7 {dimension_numbers = #tpu.dot_dimension_numbers<[1], [0], [0], [1], [0, 0, 1, 1], [], []>} : vector<64x8xbf16>, vector<8x16xbf16>, vector<64x16xf32> -> vector<64x16xf32>
    %c0_8 = arith.constant 0 : index
    %c0_9 = arith.constant 0 : index
    %6 = vector.load %arg6[%c0_8, %c0_9] : memref<1x16xf32, #tpu.memory_space<vmem>>, vector<1x16xf32>
    %7 = vector.broadcast %6 : vector<1x16xf32> to vector<64x16xf32>
    %8 = arith.addf %5, %7 : vector<64x16xf32>
    %c0_10 = arith.constant 0 : index
    %c0_11 = arith.constant 0 : index
    %9 = vector.load %arg3[%c0_10, %c0_11] : memref<1x16xf32, #tpu.memory_space<vmem>>, vector<1x16xf32>
    %10 = vector.broadcast %9 : vector<1x16xf32> to vector<64x16xf32>
    %11 = arith.addf %2, %10 : vector<64x16xf32>
    %12 = arith.addf %11, %8 : vector<64x16xf32>
    %cst_12 = arith.constant 0.000000e+00 : f32
    %13 = vector.broadcast %cst_12 : f32 to vector<64x16xf32>
    %14 = arith.maximumf %12, %13 : vector<64x16xf32>
    %15 = arith.truncf %14 : vector<64x16xf32> to vector<64x16xbf16>
    %c0_13 = arith.constant 0 : index
    %c0_14 = arith.constant 0 : index
    %16 = vector.load %arg7[%c0_13, %c0_14] : memref<64x16xbf16, #tpu.memory_space<vmem>>, vector<64x16xbf16>
    tpu.vector_store %arg7[%c0_13, %c0_14], %15 {strides = array<i32>} : memref<64x16xbf16, #tpu.memory_space<vmem>>, vector<64x16xbf16>,
    return
  }
  func.func @transform_0(%arg0: i32) -> (i32, i32) {
    %c0_i32 = arith.constant 0 : i32
    %c0_i32_0 = arith.constant 0 : i32
    return %arg0, %c0_i32 : i32, i32
  }
  func.func @transform_1(%arg0: i32) -> (i32, i32) {
    %c0_i32 = arith.constant 0 : i32
    %c0_i32_0 = arith.constant 0 : i32
    %c0_i32_1 = arith.constant 0 : i32
    return %c0_i32, %c0_i32_0 : i32, i32
  }
  func.func @transform_2(%arg0: i32) -> (i32, i32) {
    %c0_i32 = arith.constant 0 : i32
    %c0_i32_0 = arith.constant 0 : i32
    %c0_i32_1 = arith.constant 0 : i32
    return %c0_i32, %c0_i32_0 : i32, i32
  }
  func.func @transform_3(%arg0: i32) -> (i32, i32) {
    %c0_i32 = arith.constant 0 : i32
    %c0_i32_0 = arith.constant 0 : i32
    return %arg0, %c0_i32 : i32, i32
  }
  func.func @transform_4(%arg0: i32) -> (i32, i32) {
    %c0_i32 = arith.constant 0 : i32
    %c0_i32_0 = arith.constant 0 : i32
    %c0_i32_1 = arith.constant 0 : i32
    return %c0_i32, %c0_i32_0 : i32, i32
  }
  func.func @transform_5(%arg0: i32) -> (i32, i32) {
    %c0_i32 = arith.constant 0 : i32
    %c0_i32_0 = arith.constant 0 : i32
    %c0_i32_1 = arith.constant 0 : i32
    return %c0_i32, %c0_i32_0 : i32, i32
  }
  func.func @transform_6(%arg0: i32) -> (i32, i32) {
    %c0_i32 = arith.constant 0 : i32
    %c0_i32_0 = arith.constant 0 : i32
    return %arg0, %c0_i32 : i32, i32
  }
}

module attributes {stable_mosaic.version = 11 : i64} {
  func.func @_mm_bias_kernel(%arg0: i32, %arg1: memref<64x144xbf16, #tpu.memory_space<vmem>>, %arg2: memref<144x16xbf16, #tpu.memory_space<vmem>>, %arg3: memref<1x16xf32, #tpu.memory_space<vmem>>, %arg4: memref<64x16xbf16, #tpu.memory_space<vmem>>) attributes {dimension_semantics = [#tpu.dimension_semantics<parallel>], iteration_bounds = array<i64: 2>, scalar_prefetch = 0 : i64, scratch_operands = 0 : i64, tpu.core_type = #tpu.core_type<tc>, window_params = [{transform_indices = @transform_0, window_bounds = array<i64: 64, 144>}, {pipeline_mode = #tpu.pipeline_mode<synchronous>, transform_indices = @transform_1, window_bounds = array<i64: 144, 16>}, {pipeline_mode = #tpu.pipeline_mode<synchronous>, transform_indices = @transform_2, window_bounds = array<i64: 1, 16>}, {transform_indices = @transform_3, window_bounds = array<i64: 64, 16>}]} {
    %c0 = arith.constant 0 : index
    %c0_0 = arith.constant 0 : index
    %0 = vector.load %arg1[%c0, %c0_0] : memref<64x144xbf16, #tpu.memory_space<vmem>>, vector<64x144xbf16>
    %c0_1 = arith.constant 0 : index
    %c0_2 = arith.constant 0 : index
    %1 = vector.load %arg2[%c0_1, %c0_2] : memref<144x16xbf16, #tpu.memory_space<vmem>>, vector<144x16xbf16>
    %cst = arith.constant dense<0.000000e+00> : vector<64x16xf32>
    %2 = tpu.matmul %0, %1, %cst {dimension_numbers = #tpu.dot_dimension_numbers<[1], [0], [0], [1], [0, 0, 1, 1], [], []>} : vector<64x144xbf16>, vector<144x16xbf16>, vector<64x16xf32> -> vector<64x16xf32>
    %c0_3 = arith.constant 0 : index
    %c0_4 = arith.constant 0 : index
    %3 = vector.load %arg3[%c0_3, %c0_4] : memref<1x16xf32, #tpu.memory_space<vmem>>, vector<1x16xf32>
    %4 = vector.broadcast %3 : vector<1x16xf32> to vector<64x16xf32>
    %5 = arith.addf %2, %4 : vector<64x16xf32>
    %cst_5 = arith.constant 0.000000e+00 : f32
    %6 = vector.broadcast %cst_5 : f32 to vector<64x16xf32>
    %7 = arith.maximumf %5, %6 : vector<64x16xf32>
    %8 = arith.truncf %7 : vector<64x16xf32> to vector<64x16xbf16>
    %c0_6 = arith.constant 0 : index
    %c0_7 = arith.constant 0 : index
    %9 = vector.load %arg4[%c0_6, %c0_7] : memref<64x16xbf16, #tpu.memory_space<vmem>>, vector<64x16xbf16>
    tpu.vector_store %arg4[%c0_6, %c0_7], %8 {strides = array<i32>} : memref<64x16xbf16, #tpu.memory_space<vmem>>, vector<64x16xbf16>,
    return
  }
  func.func @transform_0(%arg0: i32) -> (i32, i32) {
    %c0_i32 = arith.constant 0 : i32
    %c0_i32_0 = arith.constant 0 : i32
    return %arg0, %c0_i32 : i32, i32
  }
  func.func @transform_1(%arg0: i32) -> (i32, i32) {
    %c0_i32 = arith.constant 0 : i32
    %c0_i32_0 = arith.constant 0 : i32
    %c0_i32_1 = arith.constant 0 : i32
    return %c0_i32, %c0_i32_0 : i32, i32
  }
  func.func @transform_2(%arg0: i32) -> (i32, i32) {
    %c0_i32 = arith.constant 0 : i32
    %c0_i32_0 = arith.constant 0 : i32
    %c0_i32_1 = arith.constant 0 : i32
    return %c0_i32, %c0_i32_0 : i32, i32
  }
  func.func @transform_3(%arg0: i32) -> (i32, i32) {
    %c0_i32 = arith.constant 0 : i32
    %c0_i32_0 = arith.constant 0 : i32
    return %arg0, %c0_i32 : i32, i32
  }
}

module attributes {stable_mosaic.version = 11 : i64} {
  func.func @_mm_bias_residual_kernel(%arg0: i32, %arg1: memref<64x144xbf16, #tpu.memory_space<vmem>>, %arg2: memref<144x16xbf16, #tpu.memory_space<vmem>>, %arg3: memref<1x16xf32, #tpu.memory_space<vmem>>, %arg4: memref<64x16xbf16, #tpu.memory_space<vmem>>, %arg5: memref<64x16xbf16, #tpu.memory_space<vmem>>) attributes {dimension_semantics = [#tpu.dimension_semantics<parallel>], iteration_bounds = array<i64: 2>, scalar_prefetch = 0 : i64, scratch_operands = 0 : i64, tpu.core_type = #tpu.core_type<tc>, window_params = [{transform_indices = @transform_0, window_bounds = array<i64: 64, 144>}, {pipeline_mode = #tpu.pipeline_mode<synchronous>, transform_indices = @transform_1, window_bounds = array<i64: 144, 16>}, {pipeline_mode = #tpu.pipeline_mode<synchronous>, transform_indices = @transform_2, window_bounds = array<i64: 1, 16>}, {transform_indices = @transform_3, window_bounds = array<i64: 64, 16>}, {transform_indices = @transform_4, window_bounds = array<i64: 64, 16>}]} {
    %c0 = arith.constant 0 : index
    %c0_0 = arith.constant 0 : index
    %0 = vector.load %arg1[%c0, %c0_0] : memref<64x144xbf16, #tpu.memory_space<vmem>>, vector<64x144xbf16>
    %c0_1 = arith.constant 0 : index
    %c0_2 = arith.constant 0 : index
    %1 = vector.load %arg2[%c0_1, %c0_2] : memref<144x16xbf16, #tpu.memory_space<vmem>>, vector<144x16xbf16>
    %cst = arith.constant dense<0.000000e+00> : vector<64x16xf32>
    %2 = tpu.matmul %0, %1, %cst {dimension_numbers = #tpu.dot_dimension_numbers<[1], [0], [0], [1], [0, 0, 1, 1], [], []>} : vector<64x144xbf16>, vector<144x16xbf16>, vector<64x16xf32> -> vector<64x16xf32>
    %c0_3 = arith.constant 0 : index
    %c0_4 = arith.constant 0 : index
    %3 = vector.load %arg3[%c0_3, %c0_4] : memref<1x16xf32, #tpu.memory_space<vmem>>, vector<1x16xf32>
    %4 = vector.broadcast %3 : vector<1x16xf32> to vector<64x16xf32>
    %5 = arith.addf %2, %4 : vector<64x16xf32>
    %c0_5 = arith.constant 0 : index
    %c0_6 = arith.constant 0 : index
    %6 = vector.load %arg4[%c0_5, %c0_6] : memref<64x16xbf16, #tpu.memory_space<vmem>>, vector<64x16xbf16>
    %7 = arith.extf %6 : vector<64x16xbf16> to vector<64x16xf32>
    %8 = arith.addf %5, %7 : vector<64x16xf32>
    %cst_7 = arith.constant 0.000000e+00 : f32
    %9 = vector.broadcast %cst_7 : f32 to vector<64x16xf32>
    %10 = arith.maximumf %8, %9 : vector<64x16xf32>
    %11 = arith.truncf %10 : vector<64x16xf32> to vector<64x16xbf16>
    %c0_8 = arith.constant 0 : index
    %c0_9 = arith.constant 0 : index
    %12 = vector.load %arg5[%c0_8, %c0_9] : memref<64x16xbf16, #tpu.memory_space<vmem>>, vector<64x16xbf16>
    tpu.vector_store %arg5[%c0_8, %c0_9], %11 {strides = array<i32>} : memref<64x16xbf16, #tpu.memory_space<vmem>>, vector<64x16xbf16>,
    return
  }
  func.func @transform_0(%arg0: i32) -> (i32, i32) {
    %c0_i32 = arith.constant 0 : i32
    %c0_i32_0 = arith.constant 0 : i32
    return %arg0, %c0_i32 : i32, i32
  }
  func.func @transform_1(%arg0: i32) -> (i32, i32) {
    %c0_i32 = arith.constant 0 : i32
    %c0_i32_0 = arith.constant 0 : i32
    %c0_i32_1 = arith.constant 0 : i32
    return %c0_i32, %c0_i32_0 : i32, i32
  }
  func.func @transform_2(%arg0: i32) -> (i32, i32) {
    %c0_i32 = arith.constant 0 : i32
    %c0_i32_0 = arith.constant 0 : i32
    %c0_i32_1 = arith.constant 0 : i32
    return %c0_i32, %c0_i32_0 : i32, i32
  }
  func.func @transform_3(%arg0: i32) -> (i32, i32) {
    %c0_i32 = arith.constant 0 : i32
    %c0_i32_0 = arith.constant 0 : i32
    return %arg0, %c0_i32 : i32, i32
  }
  func.func @transform_4(%arg0: i32) -> (i32, i32) {
    %c0_i32 = arith.constant 0 : i32
    %c0_i32_0 = arith.constant 0 : i32
    return %arg0, %c0_i32 : i32, i32
  }
}

module attributes {stable_mosaic.version = 11 : i64} {
  func.func @_mm_bias_kernel(%arg0: i32, %arg1: memref<16x144xbf16, #tpu.memory_space<vmem>>, %arg2: memref<144x32xbf16, #tpu.memory_space<vmem>>, %arg3: memref<1x32xf32, #tpu.memory_space<vmem>>, %arg4: memref<16x32xbf16, #tpu.memory_space<vmem>>) attributes {dimension_semantics = [#tpu.dimension_semantics<parallel>], iteration_bounds = array<i64: 2>, scalar_prefetch = 0 : i64, scratch_operands = 0 : i64, tpu.core_type = #tpu.core_type<tc>, window_params = [{transform_indices = @transform_0, window_bounds = array<i64: 16, 144>}, {pipeline_mode = #tpu.pipeline_mode<synchronous>, transform_indices = @transform_1, window_bounds = array<i64: 144, 32>}, {pipeline_mode = #tpu.pipeline_mode<synchronous>, transform_indices = @transform_2, window_bounds = array<i64: 1, 32>}, {transform_indices = @transform_3, window_bounds = array<i64: 16, 32>}]} {
    %c0 = arith.constant 0 : index
    %c0_0 = arith.constant 0 : index
    %0 = vector.load %arg1[%c0, %c0_0] : memref<16x144xbf16, #tpu.memory_space<vmem>>, vector<16x144xbf16>
    %c0_1 = arith.constant 0 : index
    %c0_2 = arith.constant 0 : index
    %1 = vector.load %arg2[%c0_1, %c0_2] : memref<144x32xbf16, #tpu.memory_space<vmem>>, vector<144x32xbf16>
    %cst = arith.constant dense<0.000000e+00> : vector<16x32xf32>
    %2 = tpu.matmul %0, %1, %cst {dimension_numbers = #tpu.dot_dimension_numbers<[1], [0], [0], [1], [0, 0, 1, 1], [], []>} : vector<16x144xbf16>, vector<144x32xbf16>, vector<16x32xf32> -> vector<16x32xf32>
    %c0_3 = arith.constant 0 : index
    %c0_4 = arith.constant 0 : index
    %3 = vector.load %arg3[%c0_3, %c0_4] : memref<1x32xf32, #tpu.memory_space<vmem>>, vector<1x32xf32>
    %4 = vector.broadcast %3 : vector<1x32xf32> to vector<16x32xf32>
    %5 = arith.addf %2, %4 : vector<16x32xf32>
    %cst_5 = arith.constant 0.000000e+00 : f32
    %6 = vector.broadcast %cst_5 : f32 to vector<16x32xf32>
    %7 = arith.maximumf %5, %6 : vector<16x32xf32>
    %8 = arith.truncf %7 : vector<16x32xf32> to vector<16x32xbf16>
    %c0_6 = arith.constant 0 : index
    %c0_7 = arith.constant 0 : index
    %9 = vector.load %arg4[%c0_6, %c0_7] : memref<16x32xbf16, #tpu.memory_space<vmem>>, vector<16x32xbf16>
    tpu.vector_store %arg4[%c0_6, %c0_7], %8 {strides = array<i32>} : memref<16x32xbf16, #tpu.memory_space<vmem>>, vector<16x32xbf16>,
    return
  }
  func.func @transform_0(%arg0: i32) -> (i32, i32) {
    %c0_i32 = arith.constant 0 : i32
    %c0_i32_0 = arith.constant 0 : i32
    return %arg0, %c0_i32 : i32, i32
  }
  func.func @transform_1(%arg0: i32) -> (i32, i32) {
    %c0_i32 = arith.constant 0 : i32
    %c0_i32_0 = arith.constant 0 : i32
    %c0_i32_1 = arith.constant 0 : i32
    return %c0_i32, %c0_i32_0 : i32, i32
  }
  func.func @transform_2(%arg0: i32) -> (i32, i32) {
    %c0_i32 = arith.constant 0 : i32
    %c0_i32_0 = arith.constant 0 : i32
    %c0_i32_1 = arith.constant 0 : i32
    return %c0_i32, %c0_i32_0 : i32, i32
  }
  func.func @transform_3(%arg0: i32) -> (i32, i32) {
    %c0_i32 = arith.constant 0 : i32
    %c0_i32_0 = arith.constant 0 : i32
    return %arg0, %c0_i32 : i32, i32
  }
}

module attributes {stable_mosaic.version = 11 : i64} {
  func.func @_mm_bias_downsample_kernel(%arg0: i32, %arg1: memref<16x288xbf16, #tpu.memory_space<vmem>>, %arg2: memref<288x32xbf16, #tpu.memory_space<vmem>>, %arg3: memref<1x32xf32, #tpu.memory_space<vmem>>, %arg4: memref<16x16xbf16, #tpu.memory_space<vmem>>, %arg5: memref<16x32xbf16, #tpu.memory_space<vmem>>, %arg6: memref<1x32xf32, #tpu.memory_space<vmem>>, %arg7: memref<16x32xbf16, #tpu.memory_space<vmem>>) attributes {dimension_semantics = [#tpu.dimension_semantics<parallel>], iteration_bounds = array<i64: 2>, scalar_prefetch = 0 : i64, scratch_operands = 0 : i64, tpu.core_type = #tpu.core_type<tc>, window_params = [{transform_indices = @transform_0, window_bounds = array<i64: 16, 288>}, {pipeline_mode = #tpu.pipeline_mode<synchronous>, transform_indices = @transform_1, window_bounds = array<i64: 288, 32>}, {pipeline_mode = #tpu.pipeline_mode<synchronous>, transform_indices = @transform_2, window_bounds = array<i64: 1, 32>}, {transform_indices = @transform_3, window_bounds = array<i64: 16, 16>}, {pipeline_mode = #tpu.pipeline_mode<synchronous>, transform_indices = @transform_4, window_bounds = array<i64: 16, 32>}, {pipeline_mode = #tpu.pipeline_mode<synchronous>, transform_indices = @transform_5, window_bounds = array<i64: 1, 32>}, {transform_indices = @transform_6, window_bounds = array<i64: 16, 32>}]} {
    %c0 = arith.constant 0 : index
    %c0_0 = arith.constant 0 : index
    %0 = vector.load %arg1[%c0, %c0_0] : memref<16x288xbf16, #tpu.memory_space<vmem>>, vector<16x288xbf16>
    %c0_1 = arith.constant 0 : index
    %c0_2 = arith.constant 0 : index
    %1 = vector.load %arg2[%c0_1, %c0_2] : memref<288x32xbf16, #tpu.memory_space<vmem>>, vector<288x32xbf16>
    %cst = arith.constant dense<0.000000e+00> : vector<16x32xf32>
    %2 = tpu.matmul %0, %1, %cst {dimension_numbers = #tpu.dot_dimension_numbers<[1], [0], [0], [1], [0, 0, 1, 1], [], []>} : vector<16x288xbf16>, vector<288x32xbf16>, vector<16x32xf32> -> vector<16x32xf32>
    %c0_3 = arith.constant 0 : index
    %c0_4 = arith.constant 0 : index
    %3 = vector.load %arg4[%c0_3, %c0_4] : memref<16x16xbf16, #tpu.memory_space<vmem>>, vector<16x16xbf16>
    %c0_5 = arith.constant 0 : index
    %c0_6 = arith.constant 0 : index
    %4 = vector.load %arg5[%c0_5, %c0_6] : memref<16x32xbf16, #tpu.memory_space<vmem>>, vector<16x32xbf16>
    %cst_7 = arith.constant dense<0.000000e+00> : vector<16x32xf32>
    %5 = tpu.matmul %3, %4, %cst_7 {dimension_numbers = #tpu.dot_dimension_numbers<[1], [0], [0], [1], [0, 0, 1, 1], [], []>} : vector<16x16xbf16>, vector<16x32xbf16>, vector<16x32xf32> -> vector<16x32xf32>
    %c0_8 = arith.constant 0 : index
    %c0_9 = arith.constant 0 : index
    %6 = vector.load %arg6[%c0_8, %c0_9] : memref<1x32xf32, #tpu.memory_space<vmem>>, vector<1x32xf32>
    %7 = vector.broadcast %6 : vector<1x32xf32> to vector<16x32xf32>
    %8 = arith.addf %5, %7 : vector<16x32xf32>
    %c0_10 = arith.constant 0 : index
    %c0_11 = arith.constant 0 : index
    %9 = vector.load %arg3[%c0_10, %c0_11] : memref<1x32xf32, #tpu.memory_space<vmem>>, vector<1x32xf32>
    %10 = vector.broadcast %9 : vector<1x32xf32> to vector<16x32xf32>
    %11 = arith.addf %2, %10 : vector<16x32xf32>
    %12 = arith.addf %11, %8 : vector<16x32xf32>
    %cst_12 = arith.constant 0.000000e+00 : f32
    %13 = vector.broadcast %cst_12 : f32 to vector<16x32xf32>
    %14 = arith.maximumf %12, %13 : vector<16x32xf32>
    %15 = arith.truncf %14 : vector<16x32xf32> to vector<16x32xbf16>
    %c0_13 = arith.constant 0 : index
    %c0_14 = arith.constant 0 : index
    %16 = vector.load %arg7[%c0_13, %c0_14] : memref<16x32xbf16, #tpu.memory_space<vmem>>, vector<16x32xbf16>
    tpu.vector_store %arg7[%c0_13, %c0_14], %15 {strides = array<i32>} : memref<16x32xbf16, #tpu.memory_space<vmem>>, vector<16x32xbf16>,
    return
  }
  func.func @transform_0(%arg0: i32) -> (i32, i32) {
    %c0_i32 = arith.constant 0 : i32
    %c0_i32_0 = arith.constant 0 : i32
    return %arg0, %c0_i32 : i32, i32
  }
  func.func @transform_1(%arg0: i32) -> (i32, i32) {
    %c0_i32 = arith.constant 0 : i32
    %c0_i32_0 = arith.constant 0 : i32
    %c0_i32_1 = arith.constant 0 : i32
    return %c0_i32, %c0_i32_0 : i32, i32
  }
  func.func @transform_2(%arg0: i32) -> (i32, i32) {
    %c0_i32 = arith.constant 0 : i32
    %c0_i32_0 = arith.constant 0 : i32
    %c0_i32_1 = arith.constant 0 : i32
    return %c0_i32, %c0_i32_0 : i32, i32
  }
  func.func @transform_3(%arg0: i32) -> (i32, i32) {
    %c0_i32 = arith.constant 0 : i32
    %c0_i32_0 = arith.constant 0 : i32
    return %arg0, %c0_i32 : i32, i32
  }
  func.func @transform_4(%arg0: i32) -> (i32, i32) {
    %c0_i32 = arith.constant 0 : i32
    %c0_i32_0 = arith.constant 0 : i32
    %c0_i32_1 = arith.constant 0 : i32
    return %c0_i32, %c0_i32_0 : i32, i32
  }
  func.func @transform_5(%arg0: i32) -> (i32, i32) {
    %c0_i32 = arith.constant 0 : i32
    %c0_i32_0 = arith.constant 0 : i32
    %c0_i32_1 = arith.constant 0 : i32
    return %c0_i32, %c0_i32_0 : i32, i32
  }
  func.func @transform_6(%arg0: i32) -> (i32, i32) {
    %c0_i32 = arith.constant 0 : i32
    %c0_i32_0 = arith.constant 0 : i32
    return %arg0, %c0_i32 : i32, i32
  }
}

module attributes {stable_mosaic.version = 11 : i64} {
  func.func @_mm_bias_kernel(%arg0: i32, %arg1: memref<16x288xbf16, #tpu.memory_space<vmem>>, %arg2: memref<288x32xbf16, #tpu.memory_space<vmem>>, %arg3: memref<1x32xf32, #tpu.memory_space<vmem>>, %arg4: memref<16x32xbf16, #tpu.memory_space<vmem>>) attributes {dimension_semantics = [#tpu.dimension_semantics<parallel>], iteration_bounds = array<i64: 2>, scalar_prefetch = 0 : i64, scratch_operands = 0 : i64, tpu.core_type = #tpu.core_type<tc>, window_params = [{transform_indices = @transform_0, window_bounds = array<i64: 16, 288>}, {pipeline_mode = #tpu.pipeline_mode<synchronous>, transform_indices = @transform_1, window_bounds = array<i64: 288, 32>}, {pipeline_mode = #tpu.pipeline_mode<synchronous>, transform_indices = @transform_2, window_bounds = array<i64: 1, 32>}, {transform_indices = @transform_3, window_bounds = array<i64: 16, 32>}]} {
    %c0 = arith.constant 0 : index
    %c0_0 = arith.constant 0 : index
    %0 = vector.load %arg1[%c0, %c0_0] : memref<16x288xbf16, #tpu.memory_space<vmem>>, vector<16x288xbf16>
    %c0_1 = arith.constant 0 : index
    %c0_2 = arith.constant 0 : index
    %1 = vector.load %arg2[%c0_1, %c0_2] : memref<288x32xbf16, #tpu.memory_space<vmem>>, vector<288x32xbf16>
    %cst = arith.constant dense<0.000000e+00> : vector<16x32xf32>
    %2 = tpu.matmul %0, %1, %cst {dimension_numbers = #tpu.dot_dimension_numbers<[1], [0], [0], [1], [0, 0, 1, 1], [], []>} : vector<16x288xbf16>, vector<288x32xbf16>, vector<16x32xf32> -> vector<16x32xf32>
    %c0_3 = arith.constant 0 : index
    %c0_4 = arith.constant 0 : index
    %3 = vector.load %arg3[%c0_3, %c0_4] : memref<1x32xf32, #tpu.memory_space<vmem>>, vector<1x32xf32>
    %4 = vector.broadcast %3 : vector<1x32xf32> to vector<16x32xf32>
    %5 = arith.addf %2, %4 : vector<16x32xf32>
    %cst_5 = arith.constant 0.000000e+00 : f32
    %6 = vector.broadcast %cst_5 : f32 to vector<16x32xf32>
    %7 = arith.maximumf %5, %6 : vector<16x32xf32>
    %8 = arith.truncf %7 : vector<16x32xf32> to vector<16x32xbf16>
    %c0_6 = arith.constant 0 : index
    %c0_7 = arith.constant 0 : index
    %9 = vector.load %arg4[%c0_6, %c0_7] : memref<16x32xbf16, #tpu.memory_space<vmem>>, vector<16x32xbf16>
    tpu.vector_store %arg4[%c0_6, %c0_7], %8 {strides = array<i32>} : memref<16x32xbf16, #tpu.memory_space<vmem>>, vector<16x32xbf16>,
    return
  }
  func.func @transform_0(%arg0: i32) -> (i32, i32) {
    %c0_i32 = arith.constant 0 : i32
    %c0_i32_0 = arith.constant 0 : i32
    return %arg0, %c0_i32 : i32, i32
  }
  func.func @transform_1(%arg0: i32) -> (i32, i32) {
    %c0_i32 = arith.constant 0 : i32
    %c0_i32_0 = arith.constant 0 : i32
    %c0_i32_1 = arith.constant 0 : i32
    return %c0_i32, %c0_i32_0 : i32, i32
  }
  func.func @transform_2(%arg0: i32) -> (i32, i32) {
    %c0_i32 = arith.constant 0 : i32
    %c0_i32_0 = arith.constant 0 : i32
    %c0_i32_1 = arith.constant 0 : i32
    return %c0_i32, %c0_i32_0 : i32, i32
  }
  func.func @transform_3(%arg0: i32) -> (i32, i32) {
    %c0_i32 = arith.constant 0 : i32
    %c0_i32_0 = arith.constant 0 : i32
    return %arg0, %c0_i32 : i32, i32
  }
}

module attributes {stable_mosaic.version = 11 : i64} {
  func.func @_mm_bias_residual_kernel(%arg0: i32, %arg1: memref<16x288xbf16, #tpu.memory_space<vmem>>, %arg2: memref<288x32xbf16, #tpu.memory_space<vmem>>, %arg3: memref<1x32xf32, #tpu.memory_space<vmem>>, %arg4: memref<16x32xbf16, #tpu.memory_space<vmem>>, %arg5: memref<16x32xbf16, #tpu.memory_space<vmem>>) attributes {dimension_semantics = [#tpu.dimension_semantics<parallel>], iteration_bounds = array<i64: 2>, scalar_prefetch = 0 : i64, scratch_operands = 0 : i64, tpu.core_type = #tpu.core_type<tc>, window_params = [{transform_indices = @transform_0, window_bounds = array<i64: 16, 288>}, {pipeline_mode = #tpu.pipeline_mode<synchronous>, transform_indices = @transform_1, window_bounds = array<i64: 288, 32>}, {pipeline_mode = #tpu.pipeline_mode<synchronous>, transform_indices = @transform_2, window_bounds = array<i64: 1, 32>}, {transform_indices = @transform_3, window_bounds = array<i64: 16, 32>}, {transform_indices = @transform_4, window_bounds = array<i64: 16, 32>}]} {
    %c0 = arith.constant 0 : index
    %c0_0 = arith.constant 0 : index
    %0 = vector.load %arg1[%c0, %c0_0] : memref<16x288xbf16, #tpu.memory_space<vmem>>, vector<16x288xbf16>
    %c0_1 = arith.constant 0 : index
    %c0_2 = arith.constant 0 : index
    %1 = vector.load %arg2[%c0_1, %c0_2] : memref<288x32xbf16, #tpu.memory_space<vmem>>, vector<288x32xbf16>
    %cst = arith.constant dense<0.000000e+00> : vector<16x32xf32>
    %2 = tpu.matmul %0, %1, %cst {dimension_numbers = #tpu.dot_dimension_numbers<[1], [0], [0], [1], [0, 0, 1, 1], [], []>} : vector<16x288xbf16>, vector<288x32xbf16>, vector<16x32xf32> -> vector<16x32xf32>
    %c0_3 = arith.constant 0 : index
    %c0_4 = arith.constant 0 : index
    %3 = vector.load %arg3[%c0_3, %c0_4] : memref<1x32xf32, #tpu.memory_space<vmem>>, vector<1x32xf32>
    %4 = vector.broadcast %3 : vector<1x32xf32> to vector<16x32xf32>
    %5 = arith.addf %2, %4 : vector<16x32xf32>
    %c0_5 = arith.constant 0 : index
    %c0_6 = arith.constant 0 : index
    %6 = vector.load %arg4[%c0_5, %c0_6] : memref<16x32xbf16, #tpu.memory_space<vmem>>, vector<16x32xbf16>
    %7 = arith.extf %6 : vector<16x32xbf16> to vector<16x32xf32>
    %8 = arith.addf %5, %7 : vector<16x32xf32>
    %cst_7 = arith.constant 0.000000e+00 : f32
    %9 = vector.broadcast %cst_7 : f32 to vector<16x32xf32>
    %10 = arith.maximumf %8, %9 : vector<16x32xf32>
    %11 = arith.truncf %10 : vector<16x32xf32> to vector<16x32xbf16>
    %c0_8 = arith.constant 0 : index
    %c0_9 = arith.constant 0 : index
    %12 = vector.load %arg5[%c0_8, %c0_9] : memref<16x32xbf16, #tpu.memory_space<vmem>>, vector<16x32xbf16>
    tpu.vector_store %arg5[%c0_8, %c0_9], %11 {strides = array<i32>} : memref<16x32xbf16, #tpu.memory_space<vmem>>, vector<16x32xbf16>,
    return
  }
  func.func @transform_0(%arg0: i32) -> (i32, i32) {
    %c0_i32 = arith.constant 0 : i32
    %c0_i32_0 = arith.constant 0 : i32
    return %arg0, %c0_i32 : i32, i32
  }
  func.func @transform_1(%arg0: i32) -> (i32, i32) {
    %c0_i32 = arith.constant 0 : i32
    %c0_i32_0 = arith.constant 0 : i32
    %c0_i32_1 = arith.constant 0 : i32
    return %c0_i32, %c0_i32_0 : i32, i32
  }
  func.func @transform_2(%arg0: i32) -> (i32, i32) {
    %c0_i32 = arith.constant 0 : i32
    %c0_i32_0 = arith.constant 0 : i32
    %c0_i32_1 = arith.constant 0 : i32
    return %c0_i32, %c0_i32_0 : i32, i32
  }
  func.func @transform_3(%arg0: i32) -> (i32, i32) {
    %c0_i32 = arith.constant 0 : i32
    %c0_i32_0 = arith.constant 0 : i32
    return %arg0, %c0_i32 : i32, i32
  }
  func.func @transform_4(%arg0: i32) -> (i32, i32) {
    %c0_i32 = arith.constant 0 : i32
    %c0_i32_0 = arith.constant 0 : i32
    return %arg0, %c0_i32 : i32, i32
  }
}

module attributes {stable_mosaic.version = 11 : i64} {
  func.func @_mm_bias_kernel(%arg0: i32, %arg1: memref<8x288xbf16, #tpu.memory_space<vmem>>, %arg2: memref<288x64xbf16, #tpu.memory_space<vmem>>, %arg3: memref<1x64xf32, #tpu.memory_space<vmem>>, %arg4: memref<8x64xbf16, #tpu.memory_space<vmem>>) attributes {dimension_semantics = [#tpu.dimension_semantics<parallel>], iteration_bounds = array<i64: 1>, scalar_prefetch = 0 : i64, scratch_operands = 0 : i64, tpu.core_type = #tpu.core_type<tc>, window_params = [{transform_indices = @transform_0, window_bounds = array<i64: 8, 288>}, {pipeline_mode = #tpu.pipeline_mode<synchronous>, transform_indices = @transform_1, window_bounds = array<i64: 288, 64>}, {pipeline_mode = #tpu.pipeline_mode<synchronous>, transform_indices = @transform_2, window_bounds = array<i64: 1, 64>}, {transform_indices = @transform_3, window_bounds = array<i64: 8, 64>}]} {
    %c0 = arith.constant 0 : index
    %c0_0 = arith.constant 0 : index
    %0 = vector.load %arg1[%c0, %c0_0] : memref<8x288xbf16, #tpu.memory_space<vmem>>, vector<8x288xbf16>
    %c0_1 = arith.constant 0 : index
    %c0_2 = arith.constant 0 : index
    %1 = vector.load %arg2[%c0_1, %c0_2] : memref<288x64xbf16, #tpu.memory_space<vmem>>, vector<288x64xbf16>
    %cst = arith.constant dense<0.000000e+00> : vector<8x64xf32>
    %2 = tpu.matmul %0, %1, %cst {dimension_numbers = #tpu.dot_dimension_numbers<[1], [0], [0], [1], [0, 0, 1, 1], [], []>} : vector<8x288xbf16>, vector<288x64xbf16>, vector<8x64xf32> -> vector<8x64xf32>
    %c0_3 = arith.constant 0 : index
    %c0_4 = arith.constant 0 : index
    %3 = vector.load %arg3[%c0_3, %c0_4] : memref<1x64xf32, #tpu.memory_space<vmem>>, vector<1x64xf32>
    %4 = vector.broadcast %3 : vector<1x64xf32> to vector<8x64xf32>
    %5 = arith.addf %2, %4 : vector<8x64xf32>
    %cst_5 = arith.constant 0.000000e+00 : f32
    %6 = vector.broadcast %cst_5 : f32 to vector<8x64xf32>
    %7 = arith.maximumf %5, %6 : vector<8x64xf32>
    %8 = arith.truncf %7 : vector<8x64xf32> to vector<8x64xbf16>
    %c0_6 = arith.constant 0 : index
    %c0_7 = arith.constant 0 : index
    %9 = vector.load %arg4[%c0_6, %c0_7] : memref<8x64xbf16, #tpu.memory_space<vmem>>, vector<8x64xbf16>
    tpu.vector_store %arg4[%c0_6, %c0_7], %8 {strides = array<i32>} : memref<8x64xbf16, #tpu.memory_space<vmem>>, vector<8x64xbf16>,
    return
  }
  func.func @transform_0(%arg0: i32) -> (i32, i32) {
    %c0_i32 = arith.constant 0 : i32
    %c0_i32_0 = arith.constant 0 : i32
    return %arg0, %c0_i32 : i32, i32
  }
  func.func @transform_1(%arg0: i32) -> (i32, i32) {
    %c0_i32 = arith.constant 0 : i32
    %c0_i32_0 = arith.constant 0 : i32
    %c0_i32_1 = arith.constant 0 : i32
    return %c0_i32, %c0_i32_0 : i32, i32
  }
  func.func @transform_2(%arg0: i32) -> (i32, i32) {
    %c0_i32 = arith.constant 0 : i32
    %c0_i32_0 = arith.constant 0 : i32
    %c0_i32_1 = arith.constant 0 : i32
    return %c0_i32, %c0_i32_0 : i32, i32
  }
  func.func @transform_3(%arg0: i32) -> (i32, i32) {
    %c0_i32 = arith.constant 0 : i32
    %c0_i32_0 = arith.constant 0 : i32
    return %arg0, %c0_i32 : i32, i32
  }
}

module attributes {stable_mosaic.version = 11 : i64} {
  func.func @_mm_bias_kernel(%arg0: i32, %arg1: memref<8x576xbf16, #tpu.memory_space<vmem>>, %arg2: memref<576x64xbf16, #tpu.memory_space<vmem>>, %arg3: memref<1x64xf32, #tpu.memory_space<vmem>>, %arg4: memref<8x64xbf16, #tpu.memory_space<vmem>>) attributes {dimension_semantics = [#tpu.dimension_semantics<parallel>], iteration_bounds = array<i64: 1>, scalar_prefetch = 0 : i64, scratch_operands = 0 : i64, tpu.core_type = #tpu.core_type<tc>, window_params = [{transform_indices = @transform_0, window_bounds = array<i64: 8, 576>}, {pipeline_mode = #tpu.pipeline_mode<synchronous>, transform_indices = @transform_1, window_bounds = array<i64: 576, 64>}, {pipeline_mode = #tpu.pipeline_mode<synchronous>, transform_indices = @transform_2, window_bounds = array<i64: 1, 64>}, {transform_indices = @transform_3, window_bounds = array<i64: 8, 64>}]} {
    %c0 = arith.constant 0 : index
    %c0_0 = arith.constant 0 : index
    %0 = vector.load %arg1[%c0, %c0_0] : memref<8x576xbf16, #tpu.memory_space<vmem>>, vector<8x576xbf16>
    %c0_1 = arith.constant 0 : index
    %c0_2 = arith.constant 0 : index
    %1 = vector.load %arg2[%c0_1, %c0_2] : memref<576x64xbf16, #tpu.memory_space<vmem>>, vector<576x64xbf16>
    %cst = arith.constant dense<0.000000e+00> : vector<8x64xf32>
    %2 = tpu.matmul %0, %1, %cst {dimension_numbers = #tpu.dot_dimension_numbers<[1], [0], [0], [1], [0, 0, 1, 1], [], []>} : vector<8x576xbf16>, vector<576x64xbf16>, vector<8x64xf32> -> vector<8x64xf32>
    %c0_3 = arith.constant 0 : index
    %c0_4 = arith.constant 0 : index
    %3 = vector.load %arg3[%c0_3, %c0_4] : memref<1x64xf32, #tpu.memory_space<vmem>>, vector<1x64xf32>
    %4 = vector.broadcast %3 : vector<1x64xf32> to vector<8x64xf32>
    %5 = arith.addf %2, %4 : vector<8x64xf32>
    %cst_5 = arith.constant 0.000000e+00 : f32
    %6 = vector.broadcast %cst_5 : f32 to vector<8x64xf32>
    %7 = arith.maximumf %5, %6 : vector<8x64xf32>
    %8 = arith.truncf %7 : vector<8x64xf32> to vector<8x64xbf16>
    %c0_6 = arith.constant 0 : index
    %c0_7 = arith.constant 0 : index
    %9 = vector.load %arg4[%c0_6, %c0_7] : memref<8x64xbf16, #tpu.memory_space<vmem>>, vector<8x64xbf16>
    tpu.vector_store %arg4[%c0_6, %c0_7], %8 {strides = array<i32>} : memref<8x64xbf16, #tpu.memory_space<vmem>>, vector<8x64xbf16>,
    return
  }
  func.func @transform_0(%arg0: i32) -> (i32, i32) {
    %c0_i32 = arith.constant 0 : i32
    %c0_i32_0 = arith.constant 0 : i32
    return %arg0, %c0_i32 : i32, i32
  }
  func.func @transform_1(%arg0: i32) -> (i32, i32) {
    %c0_i32 = arith.constant 0 : i32
    %c0_i32_0 = arith.constant 0 : i32
    %c0_i32_1 = arith.constant 0 : i32
    return %c0_i32, %c0_i32_0 : i32, i32
  }
  func.func @transform_2(%arg0: i32) -> (i32, i32) {
    %c0_i32 = arith.constant 0 : i32
    %c0_i32_0 = arith.constant 0 : i32
    %c0_i32_1 = arith.constant 0 : i32
    return %c0_i32, %c0_i32_0 : i32, i32
  }
  func.func @transform_3(%arg0: i32) -> (i32, i32) {
    %c0_i32 = arith.constant 0 : i32
    %c0_i32_0 = arith.constant 0 : i32
    return %arg0, %c0_i32 : i32, i32
  }
}

module attributes {stable_mosaic.version = 11 : i64} {
  func.func @_mm_bias_downsample_kernel(%arg0: i32, %arg1: memref<8x576xbf16, #tpu.memory_space<vmem>>, %arg2: memref<576x64xbf16, #tpu.memory_space<vmem>>, %arg3: memref<1x64xf32, #tpu.memory_space<vmem>>, %arg4: memref<8x32xbf16, #tpu.memory_space<vmem>>, %arg5: memref<32x64xbf16, #tpu.memory_space<vmem>>, %arg6: memref<1x64xf32, #tpu.memory_space<vmem>>, %arg7: memref<8x64xbf16, #tpu.memory_space<vmem>>) attributes {dimension_semantics = [#tpu.dimension_semantics<parallel>], iteration_bounds = array<i64: 1>, scalar_prefetch = 0 : i64, scratch_operands = 0 : i64, tpu.core_type = #tpu.core_type<tc>, window_params = [{transform_indices = @transform_0, window_bounds = array<i64: 8, 576>}, {pipeline_mode = #tpu.pipeline_mode<synchronous>, transform_indices = @transform_1, window_bounds = array<i64: 576, 64>}, {pipeline_mode = #tpu.pipeline_mode<synchronous>, transform_indices = @transform_2, window_bounds = array<i64: 1, 64>}, {transform_indices = @transform_3, window_bounds = array<i64: 8, 32>}, {pipeline_mode = #tpu.pipeline_mode<synchronous>, transform_indices = @transform_4, window_bounds = array<i64: 32, 64>}, {pipeline_mode = #tpu.pipeline_mode<synchronous>, transform_indices = @transform_5, window_bounds = array<i64: 1, 64>}, {transform_indices = @transform_6, window_bounds = array<i64: 8, 64>}]} {
    %c0 = arith.constant 0 : index
    %c0_0 = arith.constant 0 : index
    %0 = vector.load %arg1[%c0, %c0_0] : memref<8x576xbf16, #tpu.memory_space<vmem>>, vector<8x576xbf16>
    %c0_1 = arith.constant 0 : index
    %c0_2 = arith.constant 0 : index
    %1 = vector.load %arg2[%c0_1, %c0_2] : memref<576x64xbf16, #tpu.memory_space<vmem>>, vector<576x64xbf16>
    %cst = arith.constant dense<0.000000e+00> : vector<8x64xf32>
    %2 = tpu.matmul %0, %1, %cst {dimension_numbers = #tpu.dot_dimension_numbers<[1], [0], [0], [1], [0, 0, 1, 1], [], []>} : vector<8x576xbf16>, vector<576x64xbf16>, vector<8x64xf32> -> vector<8x64xf32>
    %c0_3 = arith.constant 0 : index
    %c0_4 = arith.constant 0 : index
    %3 = vector.load %arg4[%c0_3, %c0_4] : memref<8x32xbf16, #tpu.memory_space<vmem>>, vector<8x32xbf16>
    %c0_5 = arith.constant 0 : index
    %c0_6 = arith.constant 0 : index
    %4 = vector.load %arg5[%c0_5, %c0_6] : memref<32x64xbf16, #tpu.memory_space<vmem>>, vector<32x64xbf16>
    %cst_7 = arith.constant dense<0.000000e+00> : vector<8x64xf32>
    %5 = tpu.matmul %3, %4, %cst_7 {dimension_numbers = #tpu.dot_dimension_numbers<[1], [0], [0], [1], [0, 0, 1, 1], [], []>} : vector<8x32xbf16>, vector<32x64xbf16>, vector<8x64xf32> -> vector<8x64xf32>
    %c0_8 = arith.constant 0 : index
    %c0_9 = arith.constant 0 : index
    %6 = vector.load %arg6[%c0_8, %c0_9] : memref<1x64xf32, #tpu.memory_space<vmem>>, vector<1x64xf32>
    %7 = vector.broadcast %6 : vector<1x64xf32> to vector<8x64xf32>
    %8 = arith.addf %5, %7 : vector<8x64xf32>
    %c0_10 = arith.constant 0 : index
    %c0_11 = arith.constant 0 : index
    %9 = vector.load %arg3[%c0_10, %c0_11] : memref<1x64xf32, #tpu.memory_space<vmem>>, vector<1x64xf32>
    %10 = vector.broadcast %9 : vector<1x64xf32> to vector<8x64xf32>
    %11 = arith.addf %2, %10 : vector<8x64xf32>
    %12 = arith.addf %11, %8 : vector<8x64xf32>
    %cst_12 = arith.constant 0.000000e+00 : f32
    %13 = vector.broadcast %cst_12 : f32 to vector<8x64xf32>
    %14 = arith.maximumf %12, %13 : vector<8x64xf32>
    %15 = arith.truncf %14 : vector<8x64xf32> to vector<8x64xbf16>
    %c0_13 = arith.constant 0 : index
    %c0_14 = arith.constant 0 : index
    %16 = vector.load %arg7[%c0_13, %c0_14] : memref<8x64xbf16, #tpu.memory_space<vmem>>, vector<8x64xbf16>
    tpu.vector_store %arg7[%c0_13, %c0_14], %15 {strides = array<i32>} : memref<8x64xbf16, #tpu.memory_space<vmem>>, vector<8x64xbf16>,
    return
  }
  func.func @transform_0(%arg0: i32) -> (i32, i32) {
    %c0_i32 = arith.constant 0 : i32
    %c0_i32_0 = arith.constant 0 : i32
    return %arg0, %c0_i32 : i32, i32
  }
  func.func @transform_1(%arg0: i32) -> (i32, i32) {
    %c0_i32 = arith.constant 0 : i32
    %c0_i32_0 = arith.constant 0 : i32
    %c0_i32_1 = arith.constant 0 : i32
    return %c0_i32, %c0_i32_0 : i32, i32
  }
  func.func @transform_2(%arg0: i32) -> (i32, i32) {
    %c0_i32 = arith.constant 0 : i32
    %c0_i32_0 = arith.constant 0 : i32
    %c0_i32_1 = arith.constant 0 : i32
    return %c0_i32, %c0_i32_0 : i32, i32
  }
  func.func @transform_3(%arg0: i32) -> (i32, i32) {
    %c0_i32 = arith.constant 0 : i32
    %c0_i32_0 = arith.constant 0 : i32
    return %arg0, %c0_i32 : i32, i32
  }
  func.func @transform_4(%arg0: i32) -> (i32, i32) {
    %c0_i32 = arith.constant 0 : i32
    %c0_i32_0 = arith.constant 0 : i32
    %c0_i32_1 = arith.constant 0 : i32
    return %c0_i32, %c0_i32_0 : i32, i32
  }
  func.func @transform_5(%arg0: i32) -> (i32, i32) {
    %c0_i32 = arith.constant 0 : i32
    %c0_i32_0 = arith.constant 0 : i32
    %c0_i32_1 = arith.constant 0 : i32
    return %c0_i32, %c0_i32_0 : i32, i32
  }
  func.func @transform_6(%arg0: i32) -> (i32, i32) {
    %c0_i32 = arith.constant 0 : i32
    %c0_i32_0 = arith.constant 0 : i32
    return %arg0, %c0_i32 : i32, i32
  }
}

module attributes {stable_mosaic.version = 11 : i64} {
  func.func @_mm_bias_residual_kernel(%arg0: i32, %arg1: memref<8x576xbf16, #tpu.memory_space<vmem>>, %arg2: memref<576x64xbf16, #tpu.memory_space<vmem>>, %arg3: memref<1x64xf32, #tpu.memory_space<vmem>>, %arg4: memref<8x64xbf16, #tpu.memory_space<vmem>>, %arg5: memref<8x64xbf16, #tpu.memory_space<vmem>>) attributes {dimension_semantics = [#tpu.dimension_semantics<parallel>], iteration_bounds = array<i64: 1>, scalar_prefetch = 0 : i64, scratch_operands = 0 : i64, tpu.core_type = #tpu.core_type<tc>, window_params = [{transform_indices = @transform_0, window_bounds = array<i64: 8, 576>}, {pipeline_mode = #tpu.pipeline_mode<synchronous>, transform_indices = @transform_1, window_bounds = array<i64: 576, 64>}, {pipeline_mode = #tpu.pipeline_mode<synchronous>, transform_indices = @transform_2, window_bounds = array<i64: 1, 64>}, {transform_indices = @transform_3, window_bounds = array<i64: 8, 64>}, {transform_indices = @transform_4, window_bounds = array<i64: 8, 64>}]} {
    %c0 = arith.constant 0 : index
    %c0_0 = arith.constant 0 : index
    %0 = vector.load %arg1[%c0, %c0_0] : memref<8x576xbf16, #tpu.memory_space<vmem>>, vector<8x576xbf16>
    %c0_1 = arith.constant 0 : index
    %c0_2 = arith.constant 0 : index
    %1 = vector.load %arg2[%c0_1, %c0_2] : memref<576x64xbf16, #tpu.memory_space<vmem>>, vector<576x64xbf16>
    %cst = arith.constant dense<0.000000e+00> : vector<8x64xf32>
    %2 = tpu.matmul %0, %1, %cst {dimension_numbers = #tpu.dot_dimension_numbers<[1], [0], [0], [1], [0, 0, 1, 1], [], []>} : vector<8x576xbf16>, vector<576x64xbf16>, vector<8x64xf32> -> vector<8x64xf32>
    %c0_3 = arith.constant 0 : index
    %c0_4 = arith.constant 0 : index
    %3 = vector.load %arg3[%c0_3, %c0_4] : memref<1x64xf32, #tpu.memory_space<vmem>>, vector<1x64xf32>
    %4 = vector.broadcast %3 : vector<1x64xf32> to vector<8x64xf32>
    %5 = arith.addf %2, %4 : vector<8x64xf32>
    %c0_5 = arith.constant 0 : index
    %c0_6 = arith.constant 0 : index
    %6 = vector.load %arg4[%c0_5, %c0_6] : memref<8x64xbf16, #tpu.memory_space<vmem>>, vector<8x64xbf16>
    %7 = arith.extf %6 : vector<8x64xbf16> to vector<8x64xf32>
    %8 = arith.addf %5, %7 : vector<8x64xf32>
    %cst_7 = arith.constant 0.000000e+00 : f32
    %9 = vector.broadcast %cst_7 : f32 to vector<8x64xf32>
    %10 = arith.maximumf %8, %9 : vector<8x64xf32>
    %11 = arith.truncf %10 : vector<8x64xf32> to vector<8x64xbf16>
    %c0_8 = arith.constant 0 : index
    %c0_9 = arith.constant 0 : index
    %12 = vector.load %arg5[%c0_8, %c0_9] : memref<8x64xbf16, #tpu.memory_space<vmem>>, vector<8x64xbf16>
    tpu.vector_store %arg5[%c0_8, %c0_9], %11 {strides = array<i32>} : memref<8x64xbf16, #tpu.memory_space<vmem>>, vector<8x64xbf16>,
    return
  }
  func.func @transform_0(%arg0: i32) -> (i32, i32) {
    %c0_i32 = arith.constant 0 : i32
    %c0_i32_0 = arith.constant 0 : i32
    return %arg0, %c0_i32 : i32, i32
  }
  func.func @transform_1(%arg0: i32) -> (i32, i32) {
    %c0_i32 = arith.constant 0 : i32
    %c0_i32_0 = arith.constant 0 : i32
    %c0_i32_1 = arith.constant 0 : i32
    return %c0_i32, %c0_i32_0 : i32, i32
  }
  func.func @transform_2(%arg0: i32) -> (i32, i32) {
    %c0_i32 = arith.constant 0 : i32
    %c0_i32_0 = arith.constant 0 : i32
    %c0_i32_1 = arith.constant 0 : i32
    return %c0_i32, %c0_i32_0 : i32, i32
  }
  func.func @transform_3(%arg0: i32) -> (i32, i32) {
    %c0_i32 = arith.constant 0 : i32
    %c0_i32_0 = arith.constant 0 : i32
    return %arg0, %c0_i32 : i32, i32
  }
  func.func @transform_4(%arg0: i32) -> (i32, i32) {
    %c0_i32 = arith.constant 0 : i32
    %c0_i32_0 = arith.constant 0 : i32
    return %arg0, %c0_i32 : i32, i32
  }
}

module attributes {stable_mosaic.version = 11 : i64} {
  func.func @_mm_bias_kernel(%arg0: i32, %arg1: memref<2x256xbf16, #tpu.memory_space<vmem>>, %arg2: memref<256x20xbf16, #tpu.memory_space<vmem>>, %arg3: memref<1x20xf32, #tpu.memory_space<vmem>>, %arg4: memref<2x20xf32, #tpu.memory_space<vmem>>) attributes {dimension_semantics = [#tpu.dimension_semantics<parallel>], iteration_bounds = array<i64: 1>, scalar_prefetch = 0 : i64, scratch_operands = 0 : i64, tpu.core_type = #tpu.core_type<tc>, window_params = [{transform_indices = @transform_0, window_bounds = array<i64: 2, 256>}, {pipeline_mode = #tpu.pipeline_mode<synchronous>, transform_indices = @transform_1, window_bounds = array<i64: 256, 20>}, {pipeline_mode = #tpu.pipeline_mode<synchronous>, transform_indices = @transform_2, window_bounds = array<i64: 1, 20>}, {transform_indices = @transform_3, window_bounds = array<i64: 2, 20>}]} {
    %c0 = arith.constant 0 : index
    %c0_0 = arith.constant 0 : index
    %0 = vector.load %arg1[%c0, %c0_0] : memref<2x256xbf16, #tpu.memory_space<vmem>>, vector<2x256xbf16>
    %c0_1 = arith.constant 0 : index
    %c0_2 = arith.constant 0 : index
    %1 = vector.load %arg2[%c0_1, %c0_2] : memref<256x20xbf16, #tpu.memory_space<vmem>>, vector<256x20xbf16>
    %cst = arith.constant dense<0.000000e+00> : vector<2x20xf32>
    %2 = tpu.matmul %0, %1, %cst {dimension_numbers = #tpu.dot_dimension_numbers<[1], [0], [0], [1], [0, 0, 1, 1], [], []>} : vector<2x256xbf16>, vector<256x20xbf16>, vector<2x20xf32> -> vector<2x20xf32>
    %c0_3 = arith.constant 0 : index
    %c0_4 = arith.constant 0 : index
    %3 = vector.load %arg3[%c0_3, %c0_4] : memref<1x20xf32, #tpu.memory_space<vmem>>, vector<1x20xf32>
    %4 = vector.broadcast %3 : vector<1x20xf32> to vector<2x20xf32>
    %5 = arith.addf %2, %4 : vector<2x20xf32>
    %c0_5 = arith.constant 0 : index
    %c0_6 = arith.constant 0 : index
    %6 = vector.load %arg4[%c0_5, %c0_6] : memref<2x20xf32, #tpu.memory_space<vmem>>, vector<2x20xf32>
    tpu.vector_store %arg4[%c0_5, %c0_6], %5 {strides = array<i32>} : memref<2x20xf32, #tpu.memory_space<vmem>>, vector<2x20xf32>,
    return
  }
  func.func @transform_0(%arg0: i32) -> (i32, i32) {
    %c0_i32 = arith.constant 0 : i32
    %c0_i32_0 = arith.constant 0 : i32
    return %arg0, %c0_i32 : i32, i32
  }
  func.func @transform_1(%arg0: i32) -> (i32, i32) {
    %c0_i32 = arith.constant 0 : i32
    %c0_i32_0 = arith.constant 0 : i32
    %c0_i32_1 = arith.constant 0 : i32
    return %c0_i32, %c0_i32_0 : i32, i32
  }
  func.func @transform_2(%arg0: i32) -> (i32, i32) {
    %c0_i32 = arith.constant 0 : i32
    %c0_i32_0 = arith.constant 0 : i32
    %c0_i32_1 = arith.constant 0 : i32
    return %c0_i32, %c0_i32_0 : i32, i32
  }
  func.func @transform_3(%arg0: i32) -> (i32, i32) {
    %c0_i32 = arith.constant 0 : i32
    %c0_i32_0 = arith.constant 0 : i32
    return %arg0, %c0_i32 : i32, i32
  }
}

</mosaic_0001>

<llo_original>
// kernel: avenet_forward.19
$region0: #{avenet_forward.19}
  #allocation0 [shape = 'u32[]', space=smem, size = 0x4, offset = 0x4, fixed_abs, tag = 'smem constant byte address 0x4 - core index']
  #allocation1 [shape = 'u32[144,128]{1,0:T(1,128)}', space=vmem, size = 0x12000, scoped, tag = 'internal scratch']
  %s0 = inlined_call_operand.vmem [shape: bf16[2048,49], index: 0, kind: input, shape index: {}]
  %s1 = inlined_call_operand.vmem [shape: bf16[49,8], index: 1, kind: input, shape index: {}]
  %s2 = inlined_call_operand.vmem [shape: f32[1,8], index: 2, kind: input, shape index: {}]
  %s3 = inlined_call_operand.vmem [shape: bf16[2048,8], index: 3, kind: output, shape index: {}]
  %s4 = sld [smem:[#allocation0]]
  $region45: #{avenet_forward.19} parent=0
    _
  %s6 = ssub.s32 1, %s4
  %s7 = scalar_select 0, %s6, %s4
  loop: start=0, step=1, limit=10
  $region2: #{avenet_forward.19} parent=0 // loop_pre_header
    _
  $region3: #{avenet_forward.19} parent=0 // loop_header
    %s9 = sphi 0, %s13
    %p10 = scmp.ge.s32.totalorder %s9, 10
    %s19 = sphi 0, %s21
    %s22 = sphi 0, %s19
    %s23 = sphi 0, %s22
    %s39 = sphi 0, %s23
    %s43 = sphi 0, %s43
    %s45 = sphi 0, %s43
    %s46 = sphi 0, %s45
    %s60 = sphi 0, %s46
    %s64 = sphi 0, %s64
    %s66 = sphi 0, %s64
    %s67 = sphi 0, %s66
    %s81 = sphi 0, %s67
    %s87 = sphi 0, %s89
    %s90 = sphi 0, %s87
    %s91 = sphi 0, %s90
    %s107 = sphi 0, %s91
  $region4: #{avenet_forward.19} parent=0 // loop_header_branch
    %12 = sbr.rel (%p10) target = $region8
  $region5: #{avenet_forward.19} parent=0 // loop_body
    %s14 = ssub.s32 %s9, 1
    %s15 = ssub.s32 %s9, 2
    %s16 = sadd.s32 %s9, 1
    %s17 = ssub.s32 %s9, %s16
    %p18 = scmp.eq.s32.totalorder %s17, 0
    %s20 = sadd.s32 %s19, 1
    %s21 = scalar_select %p18, %s19, %s20
    %p24 = pneg %p18
    %p25 = scmp.eq.s32.totalorder %s9, 7
    %p26 = por %p24, %p25
    %p27 = scmp.ne.s32.totalorder %s19, %s22
    %p28 = scmp.eq.s32.totalorder %s9, 0
    %p29 = por %p27, %p28
    %p30 = scmp.ne.s32.totalorder %s19, %s22
    %p31 = scmp.eq.s32.totalorder %s14, 7
    %p32 = por %p30, %p31
    %p33 = scmp.ne.s32.totalorder %s22, %s23
    %p34 = scmp.eq.s32.totalorder %s14, 0
    %p35 = por %p33, %p34
    %p36 = scmp.ne.s32.totalorder %s22, %s23
    %p37 = scmp.eq.s32.totalorder %s15, 7
    %p38 = por %p36, %p37
    %p40 = scmp.ne.s32.totalorder %s23, %s39
    %p41 = scmp.eq.s32.totalorder %s15, 0
    %p42 = por %p40, %p41
    %s44 = sadd.s32 %s43, 1
    %p47 = scmp.eq.s32.totalorder %s9, 7
    %p48 = scmp.ne.s32.totalorder %s43, %s45
    %p49 = scmp.eq.s32.totalorder %s9, 0
    %p50 = por %p48, %p49
    %p51 = scmp.ne.s32.totalorder %s43, %s45
    %p52 = scmp.eq.s32.totalorder %s14, 7
    %p53 = por %p51, %p52
    %p54 = scmp.ne.s32.totalorder %s45, %s46
    %p55 = scmp.eq.s32.totalorder %s14, 0
    %p56 = por %p54, %p55
    %p57 = scmp.ne.s32.totalorder %s45, %s46
    %p58 = scmp.eq.s32.totalorder %s15, 7
    %p59 = por %p57, %p58
    %p61 = scmp.ne.s32.totalorder %s46, %s60
    %p62 = scmp.eq.s32.totalorder %s15, 0
    %p63 = por %p61, %p62
    %s65 = sadd.s32 %s64, 1
    %p68 = scmp.eq.s32.totalorder %s9, 7
    %p69 = scmp.ne.s32.totalorder %s64, %s66
    %p70 = scmp.eq.s32.totalorder %s9, 0
    %p71 = por %p69, %p70
    %p72 = scmp.ne.s32.totalorder %s64, %s66
    %p73 = scmp.eq.s32.totalorder %s14, 7
    %p74 = por %p72, %p73
    %p75 = scmp.ne.s32.totalorder %s66, %s67
    %p76 = scmp.eq.s32.totalorder %s14, 0
    %p77 = por %p75, %p76
    %p78 = scmp.ne.s32.totalorder %s66, %s67
    %p79 = scmp.eq.s32.totalorder %s15, 7
    %p80 = por %p78, %p79
    %p82 = scmp.ne.s32.totalorder %s67, %s81
    %p83 = scmp.eq.s32.totalorder %s15, 0
    %p84 = por %p82, %p83
    %s85 = ssub.s32 %s9, %s16
    %p86 = scmp.eq.s32.totalorder %s85, 0
    %s88 = sadd.s32 %s87, 1
    %s89 = scalar_select %p86, %s87, %s88
    %p92 = pneg %p86
    %p93 = scmp.eq.s32.totalorder %s9, 7
    %p94 = por %p92, %p93
    %p95 = scmp.ne.s32.totalorder %s87, %s90
    %p96 = scmp.eq.s32.totalorder %s9, 0
    %p97 = por %p95, %p96
    %p98 = scmp.ne.s32.totalorder %s87, %s90
    %p99 = scmp.eq.s32.totalorder %s14, 7
    %p100 = por %p98, %p99
    %p101 = scmp.ne.s32.totalorder %s90, %s91
    %p102 = scmp.eq.s32.totalorder %s14, 0
    %p103 = por %p101, %p102
    %p104 = scmp.ne.s32.totalorder %s90, %s91
    %p105 = scmp.eq.s32.totalorder %s15, 7
    %p106 = por %p104, %p105
    %p108 = scmp.ne.s32.totalorder %s91, %s107
    %p109 = scmp.eq.s32.totalorder %s15, 0
    %p110 = por %p108, %p109
    %p111 = scmp.le.s32.totalorder 1, %s9
    %p112 = scmp.lt.s32.totalorder %s9, 9
    %p113 = pnand %p111, %p112
    %p114 = pneg %p113
    // Predicated region
    $region9: #{avenet_forward.19} parent=5 // pred_check
      _
    $region10: #{avenet_forward.19} parent=5 // pred_check_branch
      %116 = sbr.rel (%p113) target = $region12
    $region11: #{avenet_forward.19} parent=5 // pred_region
      %s117 = ssub.s32 %s9, 1
      // Predicated region
      $region13: #{avenet_forward.19} parent=11 // pred_check
        %p118 = pneg %p56
      $region14: #{avenet_forward.19} parent=11 // pred_check_branch
        %120 = sbr.rel (%p118) target = $region16
      $region15: #{avenet_forward.19} parent=11 // pred_region
        _
      $region16: #{avenet_forward.19} parent=11 // pred_fallthru
        _
      // Predicated region
      $region17: #{avenet_forward.19} parent=11 // pred_check
        %p121 = pneg %p77
      $region18: #{avenet_forward.19} parent=11 // pred_check_branch
        %123 = sbr.rel (%p121) target = $region20
      $region19: #{avenet_forward.19} parent=11 // pred_region
        _
      $region20: #{avenet_forward.19} parent=11 // pred_fallthru
        _
    $region12: #{avenet_forward.19} parent=5 // pred_fallthru
      _
    %p124 = scmp.lt.s32.totalorder %s9, 8
    // Predicated region
    $region21: #{avenet_forward.19} parent=5 // pred_check
      %p125 = pneg %p124
    $region22: #{avenet_forward.19} parent=5 // pred_check_branch
      %127 = sbr.rel (%p125) target = $region24
    $region23: #{avenet_forward.19} parent=5 // pred_region
      // Predicated region
      $region25: #{avenet_forward.19} parent=23 // pred_check
        %p128 = pneg %p29
      $region26: #{avenet_forward.19} parent=23 // pred_check_branch
        %130 = sbr.rel (%p128) target = $region28
      $region27: #{avenet_forward.19} parent=23 // pred_region
        %s131 = smul.u32 32, %s9
        %p132 = scmp.lt.s32.totalorder %s131, 255
        %s133 = scalar_select %p132, %s131, 255
        %s134 = smul.addr %s133, 4
        %s135 = scalar_lea.vmem %s0, %s134
        %s136 = smul.u32 32, %s9
      $region28: #{avenet_forward.19} parent=23 // pred_fallthru
        _
    $region24: #{avenet_forward.19} parent=5 // pred_fallthru
      _
    %p137 = scmp.le.s32.totalorder 1, %s9
    %p138 = scmp.lt.s32.totalorder %s9, 9
    %p139 = pnand %p137, %p138
    %p140 = pneg %p139
    // Predicated region
    $region29: #{avenet_forward.19} parent=5 // pred_check
      _
    $region30: #{avenet_forward.19} parent=5 // pred_check_branch
      %142 = sbr.rel (%p139) target = $region32
    $region31: #{avenet_forward.19} parent=5 // pred_region
      %s143 = ssub.s32 %s9, 1
      %s144 = smul.u32 32, %s14
      %p145 = scmp.lt.s32.totalorder %s144, 255
      %s146 = scalar_select %p145, %s144, 255
      %s147 = smul.addr %s146, 4
      %s148 = scalar_lea.vmem %s0, %s147
      %p149 = pneg %p35
      %p150 = pneg %p32
      %p151 = pneg %p56
      %p152 = pneg %p53
      %p153 = pneg %p77
      %p154 = pneg %p74
      %p155 = pneg %p103
      %p156 = pneg %p100
      %s157 = smul.u32 32, %s14
      %p158 = scmp.lt.s32.totalorder %s157, 255
      %s159 = scalar_select %p158, %s157, 255
      %s160 = smul.addr %s159, 4
      %s161 = scalar_lea.vmem %s3, %s160
      %s162 = smul.u32 32, %s14
      %p163 = scmp.lt.s32.totalorder %s162, 255
      %s164 = scalar_select %p163, %s162, 255
      %s165 = smul.addr %s164, 4
      %s166 = scalar_lea.vmem %s0, %s165
      %s167 = smul.u32 32, %s14
      %s168 = smul.u32 32, %s14
      %p169 = scmp.lt.s32.totalorder %s168, 255
      %s170 = scalar_select %p169, %s168, 255
      %s171 = smul.addr %s170, 4
      %s172 = scalar_lea.vmem %s3, %s171
      %s173 = smul.u32 32, %s14
      %v175 = vld [vmem:[%s166] sm:$0xf]
      %v176 = vld [vmem:[%s166 + $0x4] sm:$0xf]
      %v177 = vld [vmem:[%s166 + $0x8] sm:$0xf]
      %v178 = vld [vmem:[%s166 + $0xc] sm:$0xf]
      %v179 = vld [vmem:[%s166 + $0x10] sm:$0xf]
      %v180 = vld [vmem:[%s166 + $0x14] sm:$0xf]
      %v181 = vld [vmem:[%s166 + $0x18] sm:$0xf]
      %v182 = vld [vmem:[%s166 + $0x1c] sm:$0xf]
      %v183 = vld [vmem:[%s166 + $0x20] sm:$0xf]
      %v184 = vld [vmem:[%s166 + $0x24] sm:$0xf]
      %v185 = vld [vmem:[%s166 + $0x28] sm:$0xf]
      %v186 = vld [vmem:[%s166 + $0x2c] sm:$0xf]
      %v187 = vld [vmem:[%s166 + $0x30] sm:$0xf]
      %v188 = vld [vmem:[%s166 + $0x34] sm:$0xf]
      %v189 = vld [vmem:[%s166 + $0x38] sm:$0xf]
      %v190 = vld [vmem:[%s166 + $0x3c] sm:$0xf]
      %v191 = vld [vmem:[%s166 + $0x40] sm:$0xf]
      %v192 = vld [vmem:[%s166 + $0x44] sm:$0xf]
      %v193 = vld [vmem:[%s166 + $0x48] sm:$0xf]
      %v194 = vld [vmem:[%s166 + $0x4c] sm:$0xf]
      %v195 = vld [vmem:[%s166 + $0x50] sm:$0xf]
      %v196 = vld [vmem:[%s166 + $0x54] sm:$0xf]
      %v197 = vld [vmem:[%s166 + $0x58] sm:$0xf]
      %v198 = vld [vmem:[%s166 + $0x5c] sm:$0xf]
      %v199 = vld [vmem:[%s166 + $0x60] sm:$0xf]
      %v200 = vld [vmem:[%s166 + $0x64] sm:$0xf]
      %v201 = vld [vmem:[%s166 + $0x68] sm:$0xf]
      %v202 = vld [vmem:[%s166 + $0x6c] sm:$0xf]
      %v203 = vld [vmem:[%s166 + $0x70] sm:$0xf]
      %v204 = vld [vmem:[%s166 + $0x74] sm:$0xf]
      %v205 = vld [vmem:[%s166 + $0x78] sm:$0xf]
      %v206 = vld [vmem:[%s166 + $0x7c] sm:$0xf]
      %v207 = vld [vmem:[%s1] sm:$0xf]
      %v208 = vld [vmem:[%s1 + $0x4] sm:$0xf]
      %v209 = vld [vmem:[%s1 + $0x8] sm:$0xf]
      %v210 = vld [vmem:[%s1 + $0xc] sm:$0xf]
      %v211 = vld [vmem:[%s1 + $0x10] sm:$0xf]
      %v212 = vld [vmem:[%s1 + $0x14] sm:$0xf]
      %v213 = vld [vmem:[%s1 + $0x18] sm:$0x1]
      %v214 = vld [vmem:[%s2] sm:$0x1]
      %v216 = vlaneseq
      %v217 = vshrl.u32 %v216, 7
      %v218 = vsub.s32 0, %v217
      %v219 = vrot.slane %v214, %v218
      %v253 = vunpack.c.l.b16 %v175
      %v254 = vunpack.c.l.b16 %v176
      %v255 = vunpack.c.l.b16 %v177
      %v256 = vunpack.c.l.b16 %v178
      %v257 = vunpack.c.l.b16 %v179
      %v258 = vunpack.c.l.b16 %v180
      %v259 = vunpack.c.l.b16 %v181
      %v260 = vunpack.c.l.b16 %v182
      %v261 = vunpack.c.l.b16 %v183
      %v262 = vunpack.c.l.b16 %v184
      %v263 = vunpack.c.l.b16 %v185
      %v264 = vunpack.c.l.b16 %v186
      %v265 = vunpack.c.l.b16 %v187
      %v266 = vunpack.c.l.b16 %v188
      %v267 = vunpack.c.l.b16 %v189
      %v268 = vunpack.c.l.b16 %v190
      %v269 = vunpack.c.l.b16 %v191
      %v270 = vunpack.c.l.b16 %v192
      %v271 = vunpack.c.l.b16 %v193
      %v272 = vunpack.c.l.b16 %v194
      %v273 = vunpack.c.l.b16 %v195
      %v274 = vunpack.c.l.b16 %v196
      %v275 = vunpack.c.l.b16 %v197
      %v276 = vunpack.c.l.b16 %v198
      %v277 = vunpack.c.l.b16 %v199
      %v278 = vunpack.c.l.b16 %v200
      %v279 = vunpack.c.l.b16 %v201
      %v280 = vunpack.c.l.b16 %v202
      %v281 = vunpack.c.l.b16 %v203
      %v282 = vunpack.c.l.b16 %v204
      %v283 = vunpack.c.l.b16 %v205
      %v284 = vunpack.c.l.b16 %v206
      %v285 = vpack.c.b16 %v254, %v253
      %v286 = vpack.c.b16 %v256, %v255
      %v287 = vpack.c.b16 %v258, %v257
      %v288 = vpack.c.b16 %v260, %v259
      %v289 = vpack.c.b16 %v262, %v261
      %v290 = vpack.c.b16 %v264, %v263
      %v291 = vpack.c.b16 %v266, %v265
      %v292 = vpack.c.b16 %v268, %v267
      %v293 = vpack.c.b16 %v270, %v269
      %v294 = vpack.c.b16 %v272, %v271
      %v295 = vpack.c.b16 %v274, %v273
      %v296 = vpack.c.b16 %v276, %v275
      %v297 = vpack.c.b16 %v278, %v277
      %v298 = vpack.c.b16 %v280, %v279
      %v299 = vpack.c.b16 %v282, %v281
      %v300 = vpack.c.b16 %v284, %v283
      %v308 = vunpack.c.l.b16 %v207
      %v309 = vunpack.c.l.b16 %v208
      %v310 = vunpack.c.l.b16 %v209
      %v311 = vunpack.c.l.b16 %v210
      %v312 = vunpack.c.l.b16 %v211
      %v313 = vunpack.c.l.b16 %v212
      %v314 = vunpack.c.l.b16 %v213
      %v315 = vpack.c.b16 %v309, %v308
      %v316 = vpack.c.b16 %v311, %v310
      %v317 = vpack.c.b16 %v313, %v312
      %v318 = vpack.c.b16 %v314, %v314
      %vm322 = vcmask 400384
      %v324 = vsel %vm322, %v285, 0
      %v327 = vsel %vm322, %v286, 0
      %v330 = vsel %vm322, %v287, 0
      %v333 = vsel %vm322, %v288, 0
      %v336 = vsel %vm322, %v289, 0
      %v339 = vsel %vm322, %v290, 0
      %v342 = vsel %vm322, %v291, 0
      %v345 = vsel %vm322, %v292, 0
      %v348 = vsel %vm322, %v293, 0
      %v351 = vsel %vm322, %v294, 0
      %v354 = vsel %vm322, %v295, 0
      %v357 = vsel %vm322, %v296, 0
      %v360 = vsel %vm322, %v297, 0
      %v363 = vsel %vm322, %v298, 0
      %v366 = vsel %vm322, %v299, 0
      %v369 = vsel %vm322, %v300, 0
      %vm371 = vcmask 1040384
      %v372 = vsel 0, 4294967295, 65535
      %v373 = vsel %vm371, %v372, 0
      %v375 = vand.u32 %v318, %v373
      %377 = vmatprep.subr.bf16.mxu0 0
      %378 = vmatpush1.bf16.msra.mxu0 %v315
      %379 = vmatprep.subr.bf16.mxu0 0
      %380 = vmatpush1.bf16.msra.mxu0 %v316
      %381 = vmatprep.subr.bf16.mxu0 0
      %382 = vmatpush1.bf16.msra.mxu0 %v317
      %383 = vmatprep.subr.bf16.mxu0 0
      %384 = vmatpush1.bf16.msra.mxu0 %v375
      %385 = vmatprep.subr.bf16.mxu0 0
      %386 = vmatpush1.bf16.msra.mxu0 0
      %387 = vmatprep.subr.bf16.mxu0 0
      %388 = vmatpush1.bf16.msra.mxu0 0
      %389 = vmatprep.subr.bf16.mxu0 0
      %390 = vmatpush1.bf16.msra.mxu0 0
      %391 = vmatprep.subr.bf16.mxu0 0
      %392 = vmatpush1.bf16.msra.mxu0 0
      %393 = vmatprep.subr.bf16.mxu0 0
      %394 = vmatpush1.bf16.msra.mxu0 0
      %395 = vmatprep.subr.bf16.mxu0 0
      %396 = vmatpush1.bf16.msra.mxu0 0
      %397 = vmatprep.subr.bf16.mxu0 0
      %398 = vmatpush1.bf16.msra.mxu0 0
      %399 = vmatprep.subr.bf16.mxu0 0
      %400 = vmatpush1.bf16.msra.mxu0 0
      %401 = vmatprep.subr.bf16.mxu0 0
      %402 = vmatpush1.bf16.msra.mxu0 0
      %403 = vmatprep.subr.bf16.mxu0 0
      %404 = vmatpush1.bf16.msra.mxu0 0
      %405 = vmatprep.subr.bf16.mxu0 0
      %406 = vmatpush1.bf16.msra.mxu0 0
      %407 = vmatprep.subr.bf16.mxu0 0
      %408 = vmatpush1.bf16.msra.mxu0 0
      %409 = vmatprep.mubr.bf16.mxu0 0
      %410 = vmatmul.mubr.bf16.gmra.mrb[0].mxu0 %v324
      %v411 = vpop.f32.mrb[0].mxu0
      %v412 = vadd.f32 %v219, %v411
      %v413 = vpop.f32.mrb[0].mxu0
      %v414 = vpop.f32.mrb[0].mxu0
      %v415 = vadd.f32 %v219, %v414
      %v416 = vpop.f32.mrb[0].mxu0
      %417 = vmatprep.mubr.bf16.mxu0 0
      %418 = vmatmul.mubr.bf16.gmra.mrb[0].mxu0 %v327
      %v419 = vpop.f32.mrb[0].mxu0
      %v420 = vadd.f32 %v219, %v419
      %v421 = vpop.f32.mrb[0].mxu0
      %v422 = vpop.f32.mrb[0].mxu0
      %v423 = vadd.f32 %v219, %v422
      %v424 = vpop.f32.mrb[0].mxu0
      %425 = vmatprep.mubr.bf16.mxu0 0
      %426 = vmatmul.mubr.bf16.gmra.mrb[0].mxu0 %v330
      %v427 = vpop.f32.mrb[0].mxu0
      %v428 = vadd.f32 %v219, %v427
      %v429 = vpop.f32.mrb[0].mxu0
      %v430 = vpop.f32.mrb[0].mxu0
      %v431 = vadd.f32 %v219, %v430
      %v432 = vpop.f32.mrb[0].mxu0
      %433 = vmatprep.mubr.bf16.mxu0 0
      %434 = vmatmul.mubr.bf16.gmra.mrb[0].mxu0 %v333
      %v435 = vpop.f32.mrb[0].mxu0
      %v436 = vadd.f32 %v219, %v435
      %v437 = vpop.f32.mrb[0].mxu0
      %v438 = vpop.f32.mrb[0].mxu0
      %v439 = vadd.f32 %v219, %v438
      %v440 = vpop.f32.mrb[0].mxu0
      %441 = vmatprep.mubr.bf16.mxu0 0
      %442 = vmatmul.mubr.bf16.gmra.mrb[0].mxu0 %v336
      %v443 = vpop.f32.mrb[0].mxu0
      %v444 = vadd.f32 %v219, %v443
      %v445 = vpop.f32.mrb[0].mxu0
      %v446 = vpop.f32.mrb[0].mxu0
      %v447 = vadd.f32 %v219, %v446
      %v448 = vpop.f32.mrb[0].mxu0
      %449 = vmatprep.mubr.bf16.mxu0 0
      %450 = vmatmul.mubr.bf16.gmra.mrb[0].mxu0 %v339
      %v451 = vpop.f32.mrb[0].mxu0
      %v452 = vadd.f32 %v219, %v451
      %v453 = vpop.f32.mrb[0].mxu0
      %v454 = vpop.f32.mrb[0].mxu0
      %v455 = vadd.f32 %v219, %v454
      %v456 = vpop.f32.mrb[0].mxu0
      %457 = vmatprep.mubr.bf16.mxu0 0
      %458 = vmatmul.mubr.bf16.gmra.mrb[0].mxu0 %v342
      %v459 = vpop.f32.mrb[0].mxu0
      %v460 = vadd.f32 %v219, %v459
      %v461 = vpop.f32.mrb[0].mxu0
      %v462 = vpop.f32.mrb[0].mxu0
      %v463 = vadd.f32 %v219, %v462
      %v464 = vpop.f32.mrb[0].mxu0
      %465 = vmatprep.mubr.bf16.mxu0 0
      %466 = vmatmul.mubr.bf16.gmra.mrb[0].mxu0 %v345
      %v467 = vpop.f32.mrb[0].mxu0
      %v468 = vadd.f32 %v219, %v467
      %v469 = vpop.f32.mrb[0].mxu0
      %v470 = vpop.f32.mrb[0].mxu0
      %v471 = vadd.f32 %v219, %v470
      %v472 = vpop.f32.mrb[0].mxu0
      %473 = vmatprep.mubr.bf16.mxu0 0
      %474 = vmatmul.mubr.bf16.gmra.mrb[0].mxu0 %v348
      %v475 = vpop.f32.mrb[0].mxu0
      %v476 = vadd.f32 %v219, %v475
      %v477 = vpop.f32.mrb[0].mxu0
      %v478 = vpop.f32.mrb[0].mxu0
      %v479 = vadd.f32 %v219, %v478
      %v480 = vpop.f32.mrb[0].mxu0
      %481 = vmatprep.mubr.bf16.mxu0 0
      %482 = vmatmul.mubr.bf16.gmra.mrb[0].mxu0 %v351
      %v483 = vpop.f32.mrb[0].mxu0
      %v484 = vadd.f32 %v219, %v483
      %v485 = vpop.f32.mrb[0].mxu0
      %v486 = vpop.f32.mrb[0].mxu0
      %v487 = vadd.f32 %v219, %v486
      %v488 = vpop.f32.mrb[0].mxu0
      %489 = vmatprep.mubr.bf16.mxu0 0
      %490 = vmatmul.mubr.bf16.gmra.mrb[0].mxu0 %v354
      %v491 = vpop.f32.mrb[0].mxu0
      %v492 = vadd.f32 %v219, %v491
      %v493 = vpop.f32.mrb[0].mxu0
      %v494 = vpop.f32.mrb[0].mxu0
      %v495 = vadd.f32 %v219, %v494
      %v496 = vpop.f32.mrb[0].mxu0
      %497 = vmatprep.mubr.bf16.mxu0 0
      %498 = vmatmul.mubr.bf16.gmra.mrb[0].mxu0 %v357
      %v499 = vpop.f32.mrb[0].mxu0
      %v500 = vadd.f32 %v219, %v499
      %v501 = vpop.f32.mrb[0].mxu0
      %v502 = vpop.f32.mrb[0].mxu0
      %v503 = vadd.f32 %v219, %v502
      %v504 = vpop.f32.mrb[0].mxu0
      %505 = vmatprep.mubr.bf16.mxu0 0
      %506 = vmatmul.mubr.bf16.gmra.mrb[0].mxu0 %v360
      %v507 = vpop.f32.mrb[0].mxu0
      %v508 = vadd.f32 %v219, %v507
      %v509 = vpop.f32.mrb[0].mxu0
      %v510 = vpop.f32.mrb[0].mxu0
      %v511 = vadd.f32 %v219, %v510
      %v512 = vpop.f32.mrb[0].mxu0
      %513 = vmatprep.mubr.bf16.mxu0 0
      %514 = vmatmul.mubr.bf16.gmra.mrb[0].mxu0 %v363
      %v515 = vpop.f32.mrb[0].mxu0
      %v516 = vadd.f32 %v219, %v515
      %v517 = vpop.f32.mrb[0].mxu0
      %v518 = vpop.f32.mrb[0].mxu0
      %v519 = vadd.f32 %v219, %v518
      %v520 = vpop.f32.mrb[0].mxu0
      %521 = vmatprep.mubr.bf16.mxu0 0
      %522 = vmatmul.mubr.bf16.gmra.mrb[0].mxu0 %v366
      %v523 = vpop.f32.mrb[0].mxu0
      %v524 = vadd.f32 %v219, %v523
      %v525 = vpop.f32.mrb[0].mxu0
      %v526 = vpop.f32.mrb[0].mxu0
      %v527 = vadd.f32 %v219, %v526
      %v528 = vpop.f32.mrb[0].mxu0
      %529 = vmatprep.mubr.bf16.mxu0 0
      %530 = vmatmul.mubr.bf16.gmra.mrb[0].mxu0 %v369
      %v531 = vpop.f32.mrb[0].mxu0
      %v532 = vadd.f32 %v219, %v531
      %v533 = vpop.f32.mrb[0].mxu0
      %v534 = vpop.f32.mrb[0].mxu0
      %v535 = vadd.f32 %v219, %v534
      %v536 = vpop.f32.mrb[0].mxu0
      %537 = vdwg.mxu0
      %v538 = vmax.f32 %v412, 0.0
      %v539 = vmax.f32 %v415, 0.0
      %v540 = vmax.f32 %v420, 0.0
      %v541 = vmax.f32 %v423, 0.0
      %v542 = vmax.f32 %v428, 0.0
      %v543 = vmax.f32 %v431, 0.0
      %v544 = vmax.f32 %v436, 0.0
      %v545 = vmax.f32 %v439, 0.0
      %v546 = vmax.f32 %v444, 0.0
      %v547 = vmax.f32 %v447, 0.0
      %v548 = vmax.f32 %v452, 0.0
      %v549 = vmax.f32 %v455, 0.0
      %v550 = vmax.f32 %v460, 0.0
      %v551 = vmax.f32 %v463, 0.0
      %v552 = vmax.f32 %v468, 0.0
      %v553 = vmax.f32 %v471, 0.0
      %v554 = vmax.f32 %v476, 0.0
      %v555 = vmax.f32 %v479, 0.0
      %v556 = vmax.f32 %v484, 0.0
      %v557 = vmax.f32 %v487, 0.0
      %v558 = vmax.f32 %v492, 0.0
      %v559 = vmax.f32 %v495, 0.0
      %v560 = vmax.f32 %v500, 0.0
      %v561 = vmax.f32 %v503, 0.0
      %v562 = vmax.f32 %v508, 0.0
      %v563 = vmax.f32 %v511, 0.0
      %v564 = vmax.f32 %v516, 0.0
      %v565 = vmax.f32 %v519, 0.0
      %v566 = vmax.f32 %v524, 0.0
      %v567 = vmax.f32 %v527, 0.0
      %v568 = vmax.f32 %v532, 0.0
      %v569 = vmax.f32 %v535, 0.0
      %v570 = vpack.c.bf16 %v539, %v538
      %v571 = vpack.c.bf16 %v541, %v540
      %v572 = vpack.c.bf16 %v543, %v542
      %v573 = vpack.c.bf16 %v545, %v544
      %v574 = vpack.c.bf16 %v547, %v546
      %v575 = vpack.c.bf16 %v549, %v548
      %v576 = vpack.c.bf16 %v551, %v550
      %v577 = vpack.c.bf16 %v553, %v552
      %v578 = vpack.c.bf16 %v555, %v554
      %v579 = vpack.c.bf16 %v557, %v556
      %v580 = vpack.c.bf16 %v559, %v558
      %v581 = vpack.c.bf16 %v561, %v560
      %v582 = vpack.c.bf16 %v563, %v562
      %v583 = vpack.c.bf16 %v565, %v564
      %v584 = vpack.c.bf16 %v567, %v566
      %v585 = vpack.c.bf16 %v569, %v568
      %v602 = vunpack.c.l.b16 %v570
      %v603 = vunpack.c.h.b16 %v570
      %v604 = vunpack.c.l.b16 %v571
      %v605 = vunpack.c.h.b16 %v571
      %v606 = vunpack.c.l.b16 %v572
      %v607 = vunpack.c.h.b16 %v572
      %v608 = vunpack.c.l.b16 %v573
      %v609 = vunpack.c.h.b16 %v573
      %v610 = vunpack.c.l.b16 %v574
      %v611 = vunpack.c.h.b16 %v574
      %v612 = vunpack.c.l.b16 %v575
      %v613 = vunpack.c.h.b16 %v575
      %v614 = vunpack.c.l.b16 %v576
      %v615 = vunpack.c.h.b16 %v576
      %v616 = vunpack.c.l.b16 %v577
      %v617 = vunpack.c.h.b16 %v577
      %v618 = vunpack.c.l.b16 %v578
      %v619 = vunpack.c.h.b16 %v578
      %v620 = vunpack.c.l.b16 %v579
      %v621 = vunpack.c.h.b16 %v579
      %v622 = vunpack.c.l.b16 %v580
      %v623 = vunpack.c.h.b16 %v580
      %v624 = vunpack.c.l.b16 %v581
      %v625 = vunpack.c.h.b16 %v581
      %v626 = vunpack.c.l.b16 %v582
      %v627 = vunpack.c.h.b16 %v582
      %v628 = vunpack.c.l.b16 %v583
      %v629 = vunpack.c.h.b16 %v583
      %v630 = vunpack.c.l.b16 %v584
      %v631 = vunpack.c.h.b16 %v584
      %v632 = vunpack.c.l.b16 %v585
      %v633 = vunpack.c.h.b16 %v585
      %v634 = vpack.c.b16 %v602, %v602
      %v635 = vpack.c.b16 %v603, %v603
      %v636 = vpack.c.b16 %v604, %v604
      %v637 = vpack.c.b16 %v605, %v605
      %v638 = vpack.c.b16 %v606, %v606
      %v639 = vpack.c.b16 %v607, %v607
      %v640 = vpack.c.b16 %v608, %v608
      %v641 = vpack.c.b16 %v609, %v609
      %v642 = vpack.c.b16 %v610, %v610
      %v643 = vpack.c.b16 %v611, %v611
      %v644 = vpack.c.b16 %v612, %v612
      %v645 = vpack.c.b16 %v613, %v613
      %v646 = vpack.c.b16 %v614, %v614
      %v647 = vpack.c.b16 %v615, %v615
      %v648 = vpack.c.b16 %v616, %v616
      %v649 = vpack.c.b16 %v617, %v617
      %v650 = vpack.c.b16 %v618, %v618
      %v651 = vpack.c.b16 %v619, %v619
      %v652 = vpack.c.b16 %v620, %v620
      %v653 = vpack.c.b16 %v621, %v621
      %v654 = vpack.c.b16 %v622, %v622
      %v655 = vpack.c.b16 %v623, %v623
      %v656 = vpack.c.b16 %v624, %v624
      %v657 = vpack.c.b16 %v625, %v625
      %v658 = vpack.c.b16 %v626, %v626
      %v659 = vpack.c.b16 %v627, %v627
      %v660 = vpack.c.b16 %v628, %v628
      %v661 = vpack.c.b16 %v629, %v629
      %v662 = vpack.c.b16 %v630, %v630
      %v663 = vpack.c.b16 %v631, %v631
      %v664 = vpack.c.b16 %v632, %v632
      %v665 = vpack.c.b16 %v633, %v633
      %vm698 = vcmask 60416
      %699 = vst.msk [vmem:[%s172] sm:$0xf] %vm698, %v634
      %700 = vst.msk [vmem:[%s172 + $0x4] sm:$0xf] %vm698, %v635
      %701 = vst.msk [vmem:[%s172 + $0x8] sm:$0xf] %vm698, %v636
      %702 = vst.msk [vmem:[%s172 + $0xc] sm:$0xf] %vm698, %v637
      %703 = vst.msk [vmem:[%s172 + $0x10] sm:$0xf] %vm698, %v638
      %704 = vst.msk [vmem:[%s172 + $0x14] sm:$0xf] %vm698, %v639
      %705 = vst.msk [vmem:[%s172 + $0x18] sm:$0xf] %vm698, %v640
      %706 = vst.msk [vmem:[%s172 + $0x1c] sm:$0xf] %vm698, %v641
      %707 = vst.msk [vmem:[%s172 + $0x20] sm:$0xf] %vm698, %v642
      %708 = vst.msk [vmem:[%s172 + $0x24] sm:$0xf] %vm698, %v643
      %709 = vst.msk [vmem:[%s172 + $0x28] sm:$0xf] %vm698, %v644
      %710 = vst.msk [vmem:[%s172 + $0x2c] sm:$0xf] %vm698, %v645
      %711 = vst.msk [vmem:[%s172 + $0x30] sm:$0xf] %vm698, %v646
      %712 = vst.msk [vmem:[%s172 + $0x34] sm:$0xf] %vm698, %v647
      %713 = vst.msk [vmem:[%s172 + $0x38] sm:$0xf] %vm698, %v648
      %714 = vst.msk [vmem:[%s172 + $0x3c] sm:$0xf] %vm698, %v649
      %715 = vst.msk [vmem:[%s172 + $0x40] sm:$0xf] %vm698, %v650
      %716 = vst.msk [vmem:[%s172 + $0x44] sm:$0xf] %vm698, %v651
      %717 = vst.msk [vmem:[%s172 + $0x48] sm:$0xf] %vm698, %v652
      %718 = vst.msk [vmem:[%s172 + $0x4c] sm:$0xf] %vm698, %v653
      %719 = vst.msk [vmem:[%s172 + $0x50] sm:$0xf] %vm698, %v654
      %720 = vst.msk [vmem:[%s172 + $0x54] sm:$0xf] %vm698, %v655
      %721 = vst.msk [vmem:[%s172 + $0x58] sm:$0xf] %vm698, %v656
      %722 = vst.msk [vmem:[%s172 + $0x5c] sm:$0xf] %vm698, %v657
      %723 = vst.msk [vmem:[%s172 + $0x60] sm:$0xf] %vm698, %v658
      %724 = vst.msk [vmem:[%s172 + $0x64] sm:$0xf] %vm698, %v659
      %725 = vst.msk [vmem:[%s172 + $0x68] sm:$0xf] %vm698, %v660
      %726 = vst.msk [vmem:[%s172 + $0x6c] sm:$0xf] %vm698, %v661
      %727 = vst.msk [vmem:[%s172 + $0x70] sm:$0xf] %vm698, %v662
      %728 = vst.msk [vmem:[%s172 + $0x74] sm:$0xf] %vm698, %v663
      %729 = vst.msk [vmem:[%s172 + $0x78] sm:$0xf] %vm698, %v664
      %730 = vst.msk [vmem:[%s172 + $0x7c] sm:$0xf] %vm698, %v665
      %s731 = smul.u32 32, %s14
      %p732 = scmp.lt.s32.totalorder %s731, 255
      %s733 = scalar_select %p732, %s731, 255
      %s734 = smul.addr %s733, 4
      %s735 = scalar_lea.vmem %s3, %s734
      // Predicated region
      $region33: #{avenet_forward.19} parent=31 // pred_check
        %p736 = pneg %p100
      $region34: #{avenet_forward.19} parent=31 // pred_check_branch
        %738 = sbr.rel (%p736) target = $region36
      $region35: #{avenet_forward.19} parent=31 // pred_region
        %s739 = smul.u32 32, %s14
      $region36: #{avenet_forward.19} parent=31 // pred_fallthru
        _
    $region32: #{avenet_forward.19} parent=5 // pred_fallthru
      _
    %p740 = scmp.le.s32.totalorder 2, %s9
    // Predicated region
    $region37: #{avenet_forward.19} parent=5 // pred_check
      %p741 = pneg %p740
    $region38: #{avenet_forward.19} parent=5 // pred_check_branch
      %743 = sbr.rel (%p741) target = $region40
    $region39: #{avenet_forward.19} parent=5 // pred_region
      %s744 = ssub.s32 %s9, 2
      // Predicated region
      $region41: #{avenet_forward.19} parent=39 // pred_check
        %p745 = pneg %p106
      $region42: #{avenet_forward.19} parent=39 // pred_check_branch
        %747 = sbr.rel (%p745) target = $region44
      $region43: #{avenet_forward.19} parent=39 // pred_region
        %s748 = smul.u32 32, %s15
        %p749 = scmp.lt.s32.totalorder %s748, 255
        %s750 = scalar_select %p749, %s748, 255
        %s751 = smul.addr %s750, 4
        %s752 = scalar_lea.vmem %s3, %s751
      $region44: #{avenet_forward.19} parent=39 // pred_fallthru
        _
    $region40: #{avenet_forward.19} parent=5 // pred_fallthru
      _
  $region6: #{avenet_forward.19} parent=0 // loop_footer
    %s13 = sadd.s32 1, %s9
  $region7: #{avenet_forward.19} parent=0 // loop_footer_branch
    %8 = sbr.rel target = $region3
  $region8: #{avenet_forward.19} parent=0 // loop_exit
    _

// kernel: avenet_forward.20
$region0: #{avenet_forward.20}
  #allocation0 [shape = 'u32[]', space=smem, size = 0x4, offset = 0x4, fixed_abs, tag = 'smem constant byte address 0x4 - core index']
  #allocation1 [shape = 'u32[144,128]{1,0:T(1,128)}', space=vmem, size = 0x12000, scoped, tag = 'internal scratch']
  %s0 = inlined_call_operand.vmem [shape: bf16[9,512,8], index: 0, kind: input, shape index: {}]
  %s1 = inlined_call_operand.vmem [shape: bf16[512,8], index: 1, kind: output, shape index: {}]
  %s2 = sld [smem:[#allocation0]]
  $region14: #{avenet_forward.20} parent=0
    _
  %s4 = ssub.s32 1, %s2
  %s5 = scalar_select 0, %s4, %s2
  // Predicated region
  $region2: #{avenet_forward.20} parent=0 // pred_check
    _
  $region3: #{avenet_forward.20} parent=0 // pred_check_branch
    %7 = sbr.rel (0) target = $region5
  $region4: #{avenet_forward.20} parent=0 // pred_region
    _
  $region5: #{avenet_forward.20} parent=0 // pred_fallthru
    _
  %v8 = vld [vmem:[%s0] sm:$0xf]
  %v9 = vld [vmem:[%s0 + $0x4] sm:$0xf]
  %v10 = vld [vmem:[%s0 + $0x8] sm:$0xf]
  %v11 = vld [vmem:[%s0 + $0xc] sm:$0xf]
  %v12 = vld [vmem:[%s0 + $0x10] sm:$0xf]
  %v13 = vld [vmem:[%s0 + $0x14] sm:$0xf]
  %v14 = vld [vmem:[%s0 + $0x18] sm:$0xf]
  %v15 = vld [vmem:[%s0 + $0x1c] sm:$0xf]
  %v16 = vld [vmem:[%s0 + $0x20] sm:$0xf]
  %v17 = vld [vmem:[%s0 + $0x24] sm:$0xf]
  %v18 = vld [vmem:[%s0 + $0x28] sm:$0xf]
  %v19 = vld [vmem:[%s0 + $0x2c] sm:$0xf]
  %v20 = vld [vmem:[%s0 + $0x30] sm:$0xf]
  %v21 = vld [vmem:[%s0 + $0x34] sm:$0xf]
  %v22 = vld [vmem:[%s0 + $0x38] sm:$0xf]
  %v23 = vld [vmem:[%s0 + $0x3c] sm:$0xf]
  %v24 = vld [vmem:[%s0 + $0x40] sm:$0xf]
  %v25 = vld [vmem:[%s0 + $0x44] sm:$0xf]
  %v26 = vld [vmem:[%s0 + $0x48] sm:$0xf]
  %v27 = vld [vmem:[%s0 + $0x4c] sm:$0xf]
  %v28 = vld [vmem:[%s0 + $0x50] sm:$0xf]
  %v29 = vld [vmem:[%s0 + $0x54] sm:$0xf]
  %v30 = vld [vmem:[%s0 + $0x58] sm:$0xf]
  %v31 = vld [vmem:[%s0 + $0x5c] sm:$0xf]
  %v32 = vld [vmem:[%s0 + $0x60] sm:$0xf]
  %v33 = vld [vmem:[%s0 + $0x64] sm:$0xf]
  %v34 = vld [vmem:[%s0 + $0x68] sm:$0xf]
  %v35 = vld [vmem:[%s0 + $0x6c] sm:$0xf]
  %v36 = vld [vmem:[%s0 + $0x70] sm:$0xf]
  %v37 = vld [vmem:[%s0 + $0x74] sm:$0xf]
  %v38 = vld [vmem:[%s0 + $0x78] sm:$0xf]
  %v39 = vld [vmem:[%s0 + $0x7c] sm:$0xf]
  %v40 = vld [vmem:[%s0 + $0x80] sm:$0xf]
  %v41 = vld [vmem:[%s0 + $0x84] sm:$0xf]
  %v42 = vld [vmem:[%s0 + $0x88] sm:$0xf]
  %v43 = vld [vmem:[%s0 + $0x8c] sm:$0xf]
  %v44 = vld [vmem:[%s0 + $0x90] sm:$0xf]
  %v45 = vld [vmem:[%s0 + $0x94] sm:$0xf]
  %v46 = vld [vmem:[%s0 + $0x98] sm:$0xf]
  %v47 = vld [vmem:[%s0 + $0x9c] sm:$0xf]
  %v48 = vld [vmem:[%s0 + $0xa0] sm:$0xf]
  %v49 = vld [vmem:[%s0 + $0xa4] sm:$0xf]
  %v50 = vld [vmem:[%s0 + $0xa8] sm:$0xf]
  %v51 = vld [vmem:[%s0 + $0xac] sm:$0xf]
  %v52 = vld [vmem:[%s0 + $0xb0] sm:$0xf]
  %v53 = vld [vmem:[%s0 + $0xb4] sm:$0xf]
  %v54 = vld [vmem:[%s0 + $0xb8] sm:$0xf]
  %v55 = vld [vmem:[%s0 + $0xbc] sm:$0xf]
  %v56 = vld [vmem:[%s0 + $0xc0] sm:$0xf]
  %v57 = vld [vmem:[%s0 + $0xc4] sm:$0xf]
  %v58 = vld [vmem:[%s0 + $0xc8] sm:$0xf]
  %v59 = vld [vmem:[%s0 + $0xcc] sm:$0xf]
  %v60 = vld [vmem:[%s0 + $0xd0] sm:$0xf]
  %v61 = vld [vmem:[%s0 + $0xd4] sm:$0xf]
  %v62 = vld [vmem:[%s0 + $0xd8] sm:$0xf]
  %v63 = vld [vmem:[%s0 + $0xdc] sm:$0xf]
  %v64 = vld [vmem:[%s0 + $0xe0] sm:$0xf]
  %v65 = vld [vmem:[%s0 + $0xe4] sm:$0xf]
  %v66 = vld [vmem:[%s0 + $0xe8] sm:$0xf]
  %v67 = vld [vmem:[%s0 + $0xec] sm:$0xf]
  %v68 = vld [vmem:[%s0 + $0xf0] sm:$0xf]
  %v69 = vld [vmem:[%s0 + $0xf4] sm:$0xf]
  %v70 = vld [vmem:[%s0 + $0xf8] sm:$0xf]
  %v71 = vld [vmem:[%s0 + $0xfc] sm:$0xf]
  %s72 = scalar_lea.vmem %s0, 256
  %v73 = vld [vmem:[%s72] sm:$0xf]
  %v74 = vld [vmem:[%s72 + $0x4] sm:$0xf]
  %v75 = vld [vmem:[%s72 + $0x8] sm:$0xf]
  %v76 = vld [vmem:[%s72 + $0xc] sm:$0xf]
  %v77 = vld [vmem:[%s72 + $0x10] sm:$0xf]
  %v78 = vld [vmem:[%s72 + $0x14] sm:$0xf]
  %v79 = vld [vmem:[%s72 + $0x18] sm:$0xf]
  %v80 = vld [vmem:[%s72 + $0x1c] sm:$0xf]
  %v81 = vld [vmem:[%s72 + $0x20] sm:$0xf]
  %v82 = vld [vmem:[%s72 + $0x24] sm:$0xf]
  %v83 = vld [vmem:[%s72 + $0x28] sm:$0xf]
  %v84 = vld [vmem:[%s72 + $0x2c] sm:$0xf]
  %v85 = vld [vmem:[%s72 + $0x30] sm:$0xf]
  %v86 = vld [vmem:[%s72 + $0x34] sm:$0xf]
  %v87 = vld [vmem:[%s72 + $0x38] sm:$0xf]
  %v88 = vld [vmem:[%s72 + $0x3c] sm:$0xf]
  %v89 = vld [vmem:[%s72 + $0x40] sm:$0xf]
  %v90 = vld [vmem:[%s72 + $0x44] sm:$0xf]
  %v91 = vld [vmem:[%s72 + $0x48] sm:$0xf]
  %v92 = vld [vmem:[%s72 + $0x4c] sm:$0xf]
  %v93 = vld [vmem:[%s72 + $0x50] sm:$0xf]
  %v94 = vld [vmem:[%s72 + $0x54] sm:$0xf]
  %v95 = vld [vmem:[%s72 + $0x58] sm:$0xf]
  %v96 = vld [vmem:[%s72 + $0x5c] sm:$0xf]
  %v97 = vld [vmem:[%s72 + $0x60] sm:$0xf]
  %v98 = vld [vmem:[%s72 + $0x64] sm:$0xf]
  %v99 = vld [vmem:[%s72 + $0x68] sm:$0xf]
  %v100 = vld [vmem:[%s72 + $0x6c] sm:$0xf]
  %v101 = vld [vmem:[%s72 + $0x70] sm:$0xf]
  %v102 = vld [vmem:[%s72 + $0x74] sm:$0xf]
  %v103 = vld [vmem:[%s72 + $0x78] sm:$0xf]
  %v104 = vld [vmem:[%s72 + $0x7c] sm:$0xf]
  %v105 = vld [vmem:[%s72 + $0x80] sm:$0xf]
  %v106 = vld [vmem:[%s72 + $0x84] sm:$0xf]
  %v107 = vld [vmem:[%s72 + $0x88] sm:$0xf]
  %v108 = vld [vmem:[%s72 + $0x8c] sm:$0xf]
  %v109 = vld [vmem:[%s72 + $0x90] sm:$0xf]
  %v110 = vld [vmem:[%s72 + $0x94] sm:$0xf]
  %v111 = vld [vmem:[%s72 + $0x98] sm:$0xf]
  %v112 = vld [vmem:[%s72 + $0x9c] sm:$0xf]
  %v113 = vld [vmem:[%s72 + $0xa0] sm:$0xf]
  %v114 = vld [vmem:[%s72 + $0xa4] sm:$0xf]
  %v115 = vld [vmem:[%s72 + $0xa8] sm:$0xf]
  %v116 = vld [vmem:[%s72 + $0xac] sm:$0xf]
  %v117 = vld [vmem:[%s72 + $0xb0] sm:$0xf]
  %v118 = vld [vmem:[%s72 + $0xb4] sm:$0xf]
  %v119 = vld [vmem:[%s72 + $0xb8] sm:$0xf]
  %v120 = vld [vmem:[%s72 + $0xbc] sm:$0xf]
  %v121 = vld [vmem:[%s72 + $0xc0] sm:$0xf]
  %v122 = vld [vmem:[%s72 + $0xc4] sm:$0xf]
  %v123 = vld [vmem:[%s72 + $0xc8] sm:$0xf]
  %v124 = vld [vmem:[%s72 + $0xcc] sm:$0xf]
  %v125 = vld [vmem:[%s72 + $0xd0] sm:$0xf]
  %v126 = vld [vmem:[%s72 + $0xd4] sm:$0xf]
  %v127 = vld [vmem:[%s72 + $0xd8] sm:$0xf]
  %v128 = vld [vmem:[%s72 + $0xdc] sm:$0xf]
  %v129 = vld [vmem:[%s72 + $0xe0] sm:$0xf]
  %v130 = vld [vmem:[%s72 + $0xe4] sm:$0xf]
  %v131 = vld [vmem:[%s72 + $0xe8] sm:$0xf]
  %v132 = vld [vmem:[%s72 + $0xec] sm:$0xf]
  %v133 = vld [vmem:[%s72 + $0xf0] sm:$0xf]
  %v134 = vld [vmem:[%s72 + $0xf4] sm:$0xf]
  %v135 = vld [vmem:[%s72 + $0xf8] sm:$0xf]
  %v136 = vld [vmem:[%s72 + $0xfc] sm:$0xf]
  %v137 = vmax.bf16 %v8, %v73
  %v138 = vmax.bf16 %v9, %v74
  %v139 = vmax.bf16 %v10, %v75
  %v140 = vmax.bf16 %v11, %v76
  %v141 = vmax.bf16 %v12, %v77
  %v142 = vmax.bf16 %v13, %v78
  %v143 = vmax.bf16 %v14, %v79
  %v144 = vmax.bf16 %v15, %v80
  %v145 = vmax.bf16 %v16, %v81
  %v146 = vmax.bf16 %v17, %v82
  %v147 = vmax.bf16 %v18, %v83
  %v148 = vmax.bf16 %v19, %v84
  %v149 = vmax.bf16 %v20, %v85
  %v150 = vmax.bf16 %v21, %v86
  %v151 = vmax.bf16 %v22, %v87
  %v152 = vmax.bf16 %v23, %v88
  %v153 = vmax.bf16 %v24, %v89
  %v154 = vmax.bf16 %v25, %v90
  %v155 = vmax.bf16 %v26, %v91
  %v156 = vmax.bf16 %v27, %v92
  %v157 = vmax.bf16 %v28, %v93
  %v158 = vmax.bf16 %v29, %v94
  %v159 = vmax.bf16 %v30, %v95
  %v160 = vmax.bf16 %v31, %v96
  %v161 = vmax.bf16 %v32, %v97
  %v162 = vmax.bf16 %v33, %v98
  %v163 = vmax.bf16 %v34, %v99
  %v164 = vmax.bf16 %v35, %v100
  %v165 = vmax.bf16 %v36, %v101
  %v166 = vmax.bf16 %v37, %v102
  %v167 = vmax.bf16 %v38, %v103
  %v168 = vmax.bf16 %v39, %v104
  %v169 = vmax.bf16 %v40, %v105
  %v170 = vmax.bf16 %v41, %v106
  %v171 = vmax.bf16 %v42, %v107
  %v172 = vmax.bf16 %v43, %v108
  %v173 = vmax.bf16 %v44, %v109
  %v174 = vmax.bf16 %v45, %v110
  %v175 = vmax.bf16 %v46, %v111
  %v176 = vmax.bf16 %v47, %v112
  %v177 = vmax.bf16 %v48, %v113
  %v178 = vmax.bf16 %v49, %v114
  %v179 = vmax.bf16 %v50, %v115
  %v180 = vmax.bf16 %v51, %v116
  %v181 = vmax.bf16 %v52, %v117
  %v182 = vmax.bf16 %v53, %v118
  %v183 = vmax.bf16 %v54, %v119
  %v184 = vmax.bf16 %v55, %v120
  %v185 = vmax.bf16 %v56, %v121
  %v186 = vmax.bf16 %v57, %v122
  %v187 = vmax.bf16 %v58, %v123
  %v188 = vmax.bf16 %v59, %v124
  %v189 = vmax.bf16 %v60, %v125
  %v190 = vmax.bf16 %v61, %v126
  %v191 = vmax.bf16 %v62, %v127
  %v192 = vmax.bf16 %v63, %v128
  %v193 = vmax.bf16 %v64, %v129
  %v194 = vmax.bf16 %v65, %v130
  %v195 = vmax.bf16 %v66, %v131
  %v196 = vmax.bf16 %v67, %v132
  %v197 = vmax.bf16 %v68, %v133
  %v198 = vmax.bf16 %v69, %v134
  %v199 = vmax.bf16 %v70, %v135
  %v200 = vmax.bf16 %v71, %v136
  %s201 = scalar_lea.vmem %s0, 512
  %v202 = vld [vmem:[%s201] sm:$0xf]
  %v203 = vld [vmem:[%s201 + $0x4] sm:$0xf]
  %v204 = vld [vmem:[%s201 + $0x8] sm:$0xf]
  %v205 = vld [vmem:[%s201 + $0xc] sm:$0xf]
  %v206 = vld [vmem:[%s201 + $0x10] sm:$0xf]
  %v207 = vld [vmem:[%s201 + $0x14] sm:$0xf]
  %v208 = vld [vmem:[%s201 + $0x18] sm:$0xf]
  %v209 = vld [vmem:[%s201 + $0x1c] sm:$0xf]
  %v210 = vld [vmem:[%s201 + $0x20] sm:$0xf]
  %v211 = vld [vmem:[%s201 + $0x24] sm:$0xf]
  %v212 = vld [vmem:[%s201 + $0x28] sm:$0xf]
  %v213 = vld [vmem:[%s201 + $0x2c] sm:$0xf]
  %v214 = vld [vmem:[%s201 + $0x30] sm:$0xf]
  %v215 = vld [vmem:[%s201 + $0x34] sm:$0xf]
  %v216 = vld [vmem:[%s201 + $0x38] sm:$0xf]
  %v217 = vld [vmem:[%s201 + $0x3c] sm:$0xf]
  %v218 = vld [vmem:[%s201 + $0x40] sm:$0xf]
  %v219 = vld [vmem:[%s201 + $0x44] sm:$0xf]
  %v220 = vld [vmem:[%s201 + $0x48] sm:$0xf]
  %v221 = vld [vmem:[%s201 + $0x4c] sm:$0xf]
  %v222 = vld [vmem:[%s201 + $0x50] sm:$0xf]
  %v223 = vld [vmem:[%s201 + $0x54] sm:$0xf]
  %v224 = vld [vmem:[%s201 + $0x58] sm:$0xf]
  %v225 = vld [vmem:[%s201 + $0x5c] sm:$0xf]
  %v226 = vld [vmem:[%s201 + $0x60] sm:$0xf]
  %v227 = vld [vmem:[%s201 + $0x64] sm:$0xf]
  %v228 = vld [vmem:[%s201 + $0x68] sm:$0xf]
  %v229 = vld [vmem:[%s201 + $0x6c] sm:$0xf]
  %v230 = vld [vmem:[%s201 + $0x70] sm:$0xf]
  %v231 = vld [vmem:[%s201 + $0x74] sm:$0xf]
  %v232 = vld [vmem:[%s201 + $0x78] sm:$0xf]
  %v233 = vld [vmem:[%s201 + $0x7c] sm:$0xf]
  %v234 = vld [vmem:[%s201 + $0x80] sm:$0xf]
  %v235 = vld [vmem:[%s201 + $0x84] sm:$0xf]
  %v236 = vld [vmem:[%s201 + $0x88] sm:$0xf]
  %v237 = vld [vmem:[%s201 + $0x8c] sm:$0xf]
  %v238 = vld [vmem:[%s201 + $0x90] sm:$0xf]
  %v239 = vld [vmem:[%s201 + $0x94] sm:$0xf]
  %v240 = vld [vmem:[%s201 + $0x98] sm:$0xf]
  %v241 = vld [vmem:[%s201 + $0x9c] sm:$0xf]
  %v242 = vld [vmem:[%s201 + $0xa0] sm:$0xf]
  %v243 = vld [vmem:[%s201 + $0xa4] sm:$0xf]
  %v244 = vld [vmem:[%s201 + $0xa8] sm:$0xf]
  %v245 = vld [vmem:[%s201 + $0xac] sm:$0xf]
  %v246 = vld [vmem:[%s201 + $0xb0] sm:$0xf]
  %v247 = vld [vmem:[%s201 + $0xb4] sm:$0xf]
  %v248 = vld [vmem:[%s201 + $0xb8] sm:$0xf]
  %v249 = vld [vmem:[%s201 + $0xbc] sm:$0xf]
  %v250 = vld [vmem:[%s201 + $0xc0] sm:$0xf]
  %v251 = vld [vmem:[%s201 + $0xc4] sm:$0xf]
  %v252 = vld [vmem:[%s201 + $0xc8] sm:$0xf]
  %v253 = vld [vmem:[%s201 + $0xcc] sm:$0xf]
  %v254 = vld [vmem:[%s201 + $0xd0] sm:$0xf]
  %v255 = vld [vmem:[%s201 + $0xd4] sm:$0xf]
  %v256 = vld [vmem:[%s201 + $0xd8] sm:$0xf]
  %v257 = vld [vmem:[%s201 + $0xdc] sm:$0xf]
  %v258 = vld [vmem:[%s201 + $0xe0] sm:$0xf]
  %v259 = vld [vmem:[%s201 + $0xe4] sm:$0xf]
  %v260 = vld [vmem:[%s201 + $0xe8] sm:$0xf]
  %v261 = vld [vmem:[%s201 + $0xec] sm:$0xf]
  %v262 = vld [vmem:[%s201 + $0xf0] sm:$0xf]
  %v263 = vld [vmem:[%s201 + $0xf4] sm:$0xf]
  %v264 = vld [vmem:[%s201 + $0xf8] sm:$0xf]
  %v265 = vld [vmem:[%s201 + $0xfc] sm:$0xf]
  %v266 = vmax.bf16 %v137, %v202
  %v267 = vmax.bf16 %v138, %v203
  %v268 = vmax.bf16 %v139, %v204
  %v269 = vmax.bf16 %v140, %v205
  %v270 = vmax.bf16 %v141, %v206
  %v271 = vmax.bf16 %v142, %v207
  %v272 = vmax.bf16 %v143, %v208
  %v273 = vmax.bf16 %v144, %v209
  %v274 = vmax.bf16 %v145, %v210
  %v275 = vmax.bf16 %v146, %v211
  %v276 = vmax.bf16 %v147, %v212
  %v277 = vmax.bf16 %v148, %v213
  %v278 = vmax.bf16 %v149, %v214
  %v279 = vmax.bf16 %v150, %v215
  %v280 = vmax.bf16 %v151, %v216
  %v281 = vmax.bf16 %v152, %v217
  %v282 = vmax.bf16 %v153, %v218
  %v283 = vmax.bf16 %v154, %v219
  %v284 = vmax.bf16 %v155, %v220
  %v285 = vmax.bf16 %v156, %v221
  %v286 = vmax.bf16 %v157, %v222
  %v287 = vmax.bf16 %v158, %v223
  %v288 = vmax.bf16 %v159, %v224
  %v289 = vmax.bf16 %v160, %v225
  %v290 = vmax.bf16 %v161, %v226
  %v291 = vmax.bf16 %v162, %v227
  %v292 = vmax.bf16 %v163, %v228
  %v293 = vmax.bf16 %v164, %v229
  %v294 = vmax.bf16 %v165, %v230
  %v295 = vmax.bf16 %v166, %v231
  %v296 = vmax.bf16 %v167, %v232
  %v297 = vmax.bf16 %v168, %v233
  %v298 = vmax.bf16 %v169, %v234
  %v299 = vmax.bf16 %v170, %v235
  %v300 = vmax.bf16 %v171, %v236
  %v301 = vmax.bf16 %v172, %v237
  %v302 = vmax.bf16 %v173, %v238
  %v303 = vmax.bf16 %v174, %v239
  %v304 = vmax.bf16 %v175, %v240
  %v305 = vmax.bf16 %v176, %v241
  %v306 = vmax.bf16 %v177, %v242
  %v307 = vmax.bf16 %v178, %v243
  %v308 = vmax.bf16 %v179, %v244
  %v309 = vmax.bf16 %v180, %v245
  %v310 = vmax.bf16 %v181, %v246
  %v311 = vmax.bf16 %v182, %v247
  %v312 = vmax.bf16 %v183, %v248
  %v313 = vmax.bf16 %v184, %v249
  %v314 = vmax.bf16 %v185, %v250
  %v315 = vmax.bf16 %v186, %v251
  %v316 = vmax.bf16 %v187, %v252
  %v317 = vmax.bf16 %v188, %v253
  %v318 = vmax.bf16 %v189, %v254
  %v319 = vmax.bf16 %v190, %v255
  %v320 = vmax.bf16 %v191, %v256
  %v321 = vmax.bf16 %v192, %v257
  %v322 = vmax.bf16 %v193, %v258
  %v323 = vmax.bf16 %v194, %v259
  %v324 = vmax.bf16 %v195, %v260
  %v325 = vmax.bf16 %v196, %v261
  %v326 = vmax.bf16 %v197, %v262
  %v327 = vmax.bf16 %v198, %v263
  %v328 = vmax.bf16 %v199, %v264
  %v329 = vmax.bf16 %v200, %v265
  %s330 = scalar_lea.vmem %s0, 768
  %v331 = vld [vmem:[%s330] sm:$0xf]
  %v332 = vld [vmem:[%s330 + $0x4] sm:$0xf]
  %v333 = vld [vmem:[%s330 + $0x8] sm:$0xf]
  %v334 = vld [vmem:[%s330 + $0xc] sm:$0xf]
  %v335 = vld [vmem:[%s330 + $0x10] sm:$0xf]
  %v336 = vld [vmem:[%s330 + $0x14] sm:$0xf]
  %v337 = vld [vmem:[%s330 + $0x18] sm:$0xf]
  %v338 = vld [vmem:[%s330 + $0x1c] sm:$0xf]
  %v339 = vld [vmem:[%s330 + $0x20] sm:$0xf]
  %v340 = vld [vmem:[%s330 + $0x24] sm:$0xf]
  %v341 = vld [vmem:[%s330 + $0x28] sm:$0xf]
  %v342 = vld [vmem:[%s330 + $0x2c] sm:$0xf]
  %v343 = vld [vmem:[%s330 + $0x30] sm:$0xf]
  %v344 = vld [vmem:[%s330 + $0x34] sm:$0xf]
  %v345 = vld [vmem:[%s330 + $0x38] sm:$0xf]
  %v346 = vld [vmem:[%s330 + $0x3c] sm:$0xf]
  %v347 = vld [vmem:[%s330 + $0x40] sm:$0xf]
  %v348 = vld [vmem:[%s330 + $0x44] sm:$0xf]
  %v349 = vld [vmem:[%s330 + $0x48] sm:$0xf]
  %v350 = vld [vmem:[%s330 + $0x4c] sm:$0xf]
  %v351 = vld [vmem:[%s330 + $0x50] sm:$0xf]
  %v352 = vld [vmem:[%s330 + $0x54] sm:$0xf]
  %v353 = vld [vmem:[%s330 + $0x58] sm:$0xf]
  %v354 = vld [vmem:[%s330 + $0x5c] sm:$0xf]
  %v355 = vld [vmem:[%s330 + $0x60] sm:$0xf]
  %v356 = vld [vmem:[%s330 + $0x64] sm:$0xf]
  %v357 = vld [vmem:[%s330 + $0x68] sm:$0xf]
  %v358 = vld [vmem:[%s330 + $0x6c] sm:$0xf]
  %v359 = vld [vmem:[%s330 + $0x70] sm:$0xf]
  %v360 = vld [vmem:[%s330 + $0x74] sm:$0xf]
  %v361 = vld [vmem:[%s330 + $0x78] sm:$0xf]
  %v362 = vld [vmem:[%s330 + $0x7c] sm:$0xf]
  %v363 = vld [vmem:[%s330 + $0x80] sm:$0xf]
  %v364 = vld [vmem:[%s330 + $0x84] sm:$0xf]
  %v365 = vld [vmem:[%s330 + $0x88] sm:$0xf]
  %v366 = vld [vmem:[%s330 + $0x8c] sm:$0xf]
  %v367 = vld [vmem:[%s330 + $0x90] sm:$0xf]
  %v368 = vld [vmem:[%s330 + $0x94] sm:$0xf]
  %v369 = vld [vmem:[%s330 + $0x98] sm:$0xf]
  %v370 = vld [vmem:[%s330 + $0x9c] sm:$0xf]
  %v371 = vld [vmem:[%s330 + $0xa0] sm:$0xf]
  %v372 = vld [vmem:[%s330 + $0xa4] sm:$0xf]
  %v373 = vld [vmem:[%s330 + $0xa8] sm:$0xf]
  %v374 = vld [vmem:[%s330 + $0xac] sm:$0xf]
  %v375 = vld [vmem:[%s330 + $0xb0] sm:$0xf]
  %v376 = vld [vmem:[%s330 + $0xb4] sm:$0xf]
  %v377 = vld [vmem:[%s330 + $0xb8] sm:$0xf]
  %v378 = vld [vmem:[%s330 + $0xbc] sm:$0xf]
  %v379 = vld [vmem:[%s330 + $0xc0] sm:$0xf]
  %v380 = vld [vmem:[%s330 + $0xc4] sm:$0xf]
  %v381 = vld [vmem:[%s330 + $0xc8] sm:$0xf]
  %v382 = vld [vmem:[%s330 + $0xcc] sm:$0xf]
  %v383 = vld [vmem:[%s330 + $0xd0] sm:$0xf]
  %v384 = vld [vmem:[%s330 + $0xd4] sm:$0xf]
  %v385 = vld [vmem:[%s330 + $0xd8] sm:$0xf]
  %v386 = vld [vmem:[%s330 + $0xdc] sm:$0xf]
  %v387 = vld [vmem:[%s330 + $0xe0] sm:$0xf]
  %v388 = vld [vmem:[%s330 + $0xe4] sm:$0xf]
  %v389 = vld [vmem:[%s330 + $0xe8] sm:$0xf]
  %v390 = vld [vmem:[%s330 + $0xec] sm:$0xf]
  %v391 = vld [vmem:[%s330 + $0xf0] sm:$0xf]
  %v392 = vld [vmem:[%s330 + $0xf4] sm:$0xf]
  %v393 = vld [vmem:[%s330 + $0xf8] sm:$0xf]
  %v394 = vld [vmem:[%s330 + $0xfc] sm:$0xf]
  %v395 = vmax.bf16 %v266, %v331
  %v396 = vmax.bf16 %v267, %v332
  %v397 = vmax.bf16 %v268, %v333
  %v398 = vmax.bf16 %v269, %v334
  %v399 = vmax.bf16 %v270, %v335
  %v400 = vmax.bf16 %v271, %v336
  %v401 = vmax.bf16 %v272, %v337
  %v402 = vmax.bf16 %v273, %v338
  %v403 = vmax.bf16 %v274, %v339
  %v404 = vmax.bf16 %v275, %v340
  %v405 = vmax.bf16 %v276, %v341
  %v406 = vmax.bf16 %v277, %v342
  %v407 = vmax.bf16 %v278, %v343
  %v408 = vmax.bf16 %v279, %v344
  %v409 = vmax.bf16 %v280, %v345
  %v410 = vmax.bf16 %v281, %v346
  %v411 = vmax.bf16 %v282, %v347
  %v412 = vmax.bf16 %v283, %v348
  %v413 = vmax.bf16 %v284, %v349
  %v414 = vmax.bf16 %v285, %v350
  %v415 = vmax.bf16 %v286, %v351
  %v416 = vmax.bf16 %v287, %v352
  %v417 = vmax.bf16 %v288, %v353
  %v418 = vmax.bf16 %v289, %v354
  %v419 = vmax.bf16 %v290, %v355
  %v420 = vmax.bf16 %v291, %v356
  %v421 = vmax.bf16 %v292, %v357
  %v422 = vmax.bf16 %v293, %v358
  %v423 = vmax.bf16 %v294, %v359
  %v424 = vmax.bf16 %v295, %v360
  %v425 = vmax.bf16 %v296, %v361
  %v426 = vmax.bf16 %v297, %v362
  %v427 = vmax.bf16 %v298, %v363
  %v428 = vmax.bf16 %v299, %v364
  %v429 = vmax.bf16 %v300, %v365
  %v430 = vmax.bf16 %v301, %v366
  %v431 = vmax.bf16 %v302, %v367
  %v432 = vmax.bf16 %v303, %v368
  %v433 = vmax.bf16 %v304, %v369
  %v434 = vmax.bf16 %v305, %v370
  %v435 = vmax.bf16 %v306, %v371
  %v436 = vmax.bf16 %v307, %v372
  %v437 = vmax.bf16 %v308, %v373
  %v438 = vmax.bf16 %v309, %v374
  %v439 = vmax.bf16 %v310, %v375
  %v440 = vmax.bf16 %v311, %v376
  %v441 = vmax.bf16 %v312, %v377
  %v442 = vmax.bf16 %v313, %v378
  %v443 = vmax.bf16 %v314, %v379
  %v444 = vmax.bf16 %v315, %v380
  %v445 = vmax.bf16 %v316, %v381
  %v446 = vmax.bf16 %v317, %v382
  %v447 = vmax.bf16 %v318, %v383
  %v448 = vmax.bf16 %v319, %v384
  %v449 = vmax.bf16 %v320, %v385
  %v450 = vmax.bf16 %v321, %v386
  %v451 = vmax.bf16 %v322, %v387
  %v452 = vmax.bf16 %v323, %v388
  %v453 = vmax.bf16 %v324, %v389
  %v454 = vmax.bf16 %v325, %v390
  %v455 = vmax.bf16 %v326, %v391
  %v456 = vmax.bf16 %v327, %v392
  %v457 = vmax.bf16 %v328, %v393
  %v458 = vmax.bf16 %v329, %v394
  %s459 = scalar_lea.vmem %s0, 1024
  %v460 = vld [vmem:[%s459] sm:$0xf]
  %v461 = vld [vmem:[%s459 + $0x4] sm:$0xf]
  %v462 = vld [vmem:[%s459 + $0x8] sm:$0xf]
  %v463 = vld [vmem:[%s459 + $0xc] sm:$0xf]
  %v464 = vld [vmem:[%s459 + $0x10] sm:$0xf]
  %v465 = vld [vmem:[%s459 + $0x14] sm:$0xf]
  %v466 = vld [vmem:[%s459 + $0x18] sm:$0xf]
  %v467 = vld [vmem:[%s459 + $0x1c] sm:$0xf]
  %v468 = vld [vmem:[%s459 + $0x20] sm:$0xf]
  %v469 = vld [vmem:[%s459 + $0x24] sm:$0xf]
  %v470 = vld [vmem:[%s459 + $0x28] sm:$0xf]
  %v471 = vld [vmem:[%s459 + $0x2c] sm:$0xf]
  %v472 = vld [vmem:[%s459 + $0x30] sm:$0xf]
  %v473 = vld [vmem:[%s459 + $0x34] sm:$0xf]
  %v474 = vld [vmem:[%s459 + $0x38] sm:$0xf]
  %v475 = vld [vmem:[%s459 + $0x3c] sm:$0xf]
  %v476 = vld [vmem:[%s459 + $0x40] sm:$0xf]
  %v477 = vld [vmem:[%s459 + $0x44] sm:$0xf]
  %v478 = vld [vmem:[%s459 + $0x48] sm:$0xf]
  %v479 = vld [vmem:[%s459 + $0x4c] sm:$0xf]
  %v480 = vld [vmem:[%s459 + $0x50] sm:$0xf]
  %v481 = vld [vmem:[%s459 + $0x54] sm:$0xf]
  %v482 = vld [vmem:[%s459 + $0x58] sm:$0xf]
  %v483 = vld [vmem:[%s459 + $0x5c] sm:$0xf]
  %v484 = vld [vmem:[%s459 + $0x60] sm:$0xf]
  %v485 = vld [vmem:[%s459 + $0x64] sm:$0xf]
  %v486 = vld [vmem:[%s459 + $0x68] sm:$0xf]
  %v487 = vld [vmem:[%s459 + $0x6c] sm:$0xf]
  %v488 = vld [vmem:[%s459 + $0x70] sm:$0xf]
  %v489 = vld [vmem:[%s459 + $0x74] sm:$0xf]
  %v490 = vld [vmem:[%s459 + $0x78] sm:$0xf]
  %v491 = vld [vmem:[%s459 + $0x7c] sm:$0xf]
  %v492 = vld [vmem:[%s459 + $0x80] sm:$0xf]
  %v493 = vld [vmem:[%s459 + $0x84] sm:$0xf]
  %v494 = vld [vmem:[%s459 + $0x88] sm:$0xf]
  %v495 = vld [vmem:[%s459 + $0x8c] sm:$0xf]
  %v496 = vld [vmem:[%s459 + $0x90] sm:$0xf]
  %v497 = vld [vmem:[%s459 + $0x94] sm:$0xf]
  %v498 = vld [vmem:[%s459 + $0x98] sm:$0xf]
  %v499 = vld [vmem:[%s459 + $0x9c] sm:$0xf]
  %v500 = vld [vmem:[%s459 + $0xa0] sm:$0xf]
  %v501 = vld [vmem:[%s459 + $0xa4] sm:$0xf]
  %v502 = vld [vmem:[%s459 + $0xa8] sm:$0xf]
  %v503 = vld [vmem:[%s459 + $0xac] sm:$0xf]
  %v504 = vld [vmem:[%s459 + $0xb0] sm:$0xf]
  %v505 = vld [vmem:[%s459 + $0xb4] sm:$0xf]
  %v506 = vld [vmem:[%s459 + $0xb8] sm:$0xf]
  %v507 = vld [vmem:[%s459 + $0xbc] sm:$0xf]
  %v508 = vld [vmem:[%s459 + $0xc0] sm:$0xf]
  %v509 = vld [vmem:[%s459 + $0xc4] sm:$0xf]
  %v510 = vld [vmem:[%s459 + $0xc8] sm:$0xf]
  %v511 = vld [vmem:[%s459 + $0xcc] sm:$0xf]
  %v512 = vld [vmem:[%s459 + $0xd0] sm:$0xf]
  %v513 = vld [vmem:[%s459 + $0xd4] sm:$0xf]
  %v514 = vld [vmem:[%s459 + $0xd8] sm:$0xf]
  %v515 = vld [vmem:[%s459 + $0xdc] sm:$0xf]
  %v516 = vld [vmem:[%s459 + $0xe0] sm:$0xf]
  %v517 = vld [vmem:[%s459 + $0xe4] sm:$0xf]
  %v518 = vld [vmem:[%s459 + $0xe8] sm:$0xf]
  %v519 = vld [vmem:[%s459 + $0xec] sm:$0xf]
  %v520 = vld [vmem:[%s459 + $0xf0] sm:$0xf]
  %v521 = vld [vmem:[%s459 + $0xf4] sm:$0xf]
  %v522 = vld [vmem:[%s459 + $0xf8] sm:$0xf]
  %v523 = vld [vmem:[%s459 + $0xfc] sm:$0xf]
  %v524 = vmax.bf16 %v395, %v460
  %v525 = vmax.bf16 %v396, %v461
  %v526 = vmax.bf16 %v397, %v462
  %v527 = vmax.bf16 %v398, %v463
  %v528 = vmax.bf16 %v399, %v464
  %v529 = vmax.bf16 %v400, %v465
  %v530 = vmax.bf16 %v401, %v466
  %v531 = vmax.bf16 %v402, %v467
  %v532 = vmax.bf16 %v403, %v468
  %v533 = vmax.bf16 %v404, %v469
  %v534 = vmax.bf16 %v405, %v470
  %v535 = vmax.bf16 %v406, %v471
  %v536 = vmax.bf16 %v407, %v472
  %v537 = vmax.bf16 %v408, %v473
  %v538 = vmax.bf16 %v409, %v474
  %v539 = vmax.bf16 %v410, %v475
  %v540 = vmax.bf16 %v411, %v476
  %v541 = vmax.bf16 %v412, %v477
  %v542 = vmax.bf16 %v413, %v478
  %v543 = vmax.bf16 %v414, %v479
  %v544 = vmax.bf16 %v415, %v480
  %v545 = vmax.bf16 %v416, %v481
  %v546 = vmax.bf16 %v417, %v482
  %v547 = vmax.bf16 %v418, %v483
  %v548 = vmax.bf16 %v419, %v484
  %v549 = vmax.bf16 %v420, %v485
  %v550 = vmax.bf16 %v421, %v486
  %v551 = vmax.bf16 %v422, %v487
  %v552 = vmax.bf16 %v423, %v488
  %v553 = vmax.bf16 %v424, %v489
  %v554 = vmax.bf16 %v425, %v490
  %v555 = vmax.bf16 %v426, %v491
  %v556 = vmax.bf16 %v427, %v492
  %v557 = vmax.bf16 %v428, %v493
  %v558 = vmax.bf16 %v429, %v494
  %v559 = vmax.bf16 %v430, %v495
  %v560 = vmax.bf16 %v431, %v496
  %v561 = vmax.bf16 %v432, %v497
  %v562 = vmax.bf16 %v433, %v498
  %v563 = vmax.bf16 %v434, %v499
  %v564 = vmax.bf16 %v435, %v500
  %v565 = vmax.bf16 %v436, %v501
  %v566 = vmax.bf16 %v437, %v502
  %v567 = vmax.bf16 %v438, %v503
  %v568 = vmax.bf16 %v439, %v504
  %v569 = vmax.bf16 %v440, %v505
  %v570 = vmax.bf16 %v441, %v506
  %v571 = vmax.bf16 %v442, %v507
  %v572 = vmax.bf16 %v443, %v508
  %v573 = vmax.bf16 %v444, %v509
  %v574 = vmax.bf16 %v445, %v510
  %v575 = vmax.bf16 %v446, %v511
  %v576 = vmax.bf16 %v447, %v512
  %v577 = vmax.bf16 %v448, %v513
  %v578 = vmax.bf16 %v449, %v514
  %v579 = vmax.bf16 %v450, %v515
  %v580 = vmax.bf16 %v451, %v516
  %v581 = vmax.bf16 %v452, %v517
  %v582 = vmax.bf16 %v453, %v518
  %v583 = vmax.bf16 %v454, %v519
  %v584 = vmax.bf16 %v455, %v520
  %v585 = vmax.bf16 %v456, %v521
  %v586 = vmax.bf16 %v457, %v522
  %v587 = vmax.bf16 %v458, %v523
  %s588 = scalar_lea.vmem %s0, 1280
  %v589 = vld [vmem:[%s588] sm:$0xf]
  %v590 = vld [vmem:[%s588 + $0x4] sm:$0xf]
  %v591 = vld [vmem:[%s588 + $0x8] sm:$0xf]
  %v592 = vld [vmem:[%s588 + $0xc] sm:$0xf]
  %v593 = vld [vmem:[%s588 + $0x10] sm:$0xf]
  %v594 = vld [vmem:[%s588 + $0x14] sm:$0xf]
  %v595 = vld [vmem:[%s588 + $0x18] sm:$0xf]
  %v596 = vld [vmem:[%s588 + $0x1c] sm:$0xf]
  %v597 = vld [vmem:[%s588 + $0x20] sm:$0xf]
  %v598 = vld [vmem:[%s588 + $0x24] sm:$0xf]
  %v599 = vld [vmem:[%s588 + $0x28] sm:$0xf]
  %v600 = vld [vmem:[%s588 + $0x2c] sm:$0xf]
  %v601 = vld [vmem:[%s588 + $0x30] sm:$0xf]
  %v602 = vld [vmem:[%s588 + $0x34] sm:$0xf]
  %v603 = vld [vmem:[%s588 + $0x38] sm:$0xf]
  %v604 = vld [vmem:[%s588 + $0x3c] sm:$0xf]
  %v605 = vld [vmem:[%s588 + $0x40] sm:$0xf]
  %v606 = vld [vmem:[%s588 + $0x44] sm:$0xf]
  %v607 = vld [vmem:[%s588 + $0x48] sm:$0xf]
  %v608 = vld [vmem:[%s588 + $0x4c] sm:$0xf]
  %v609 = vld [vmem:[%s588 + $0x50] sm:$0xf]
  %v610 = vld [vmem:[%s588 + $0x54] sm:$0xf]
  %v611 = vld [vmem:[%s588 + $0x58] sm:$0xf]
  %v612 = vld [vmem:[%s588 + $0x5c] sm:$0xf]
  %v613 = vld [vmem:[%s588 + $0x60] sm:$0xf]
  %v614 = vld [vmem:[%s588 + $0x64] sm:$0xf]
  %v615 = vld [vmem:[%s588 + $0x68] sm:$0xf]
  %v616 = vld [vmem:[%s588 + $0x6c] sm:$0xf]
  %v617 = vld [vmem:[%s588 + $0x70] sm:$0xf]
  %v618 = vld [vmem:[%s588 + $0x74] sm:$0xf]
  %v619 = vld [vmem:[%s588 + $0x78] sm:$0xf]
  %v620 = vld [vmem:[%s588 + $0x7c] sm:$0xf]
  %v621 = vld [vmem:[%s588 + $0x80] sm:$0xf]
  %v622 = vld [vmem:[%s588 + $0x84] sm:$0xf]
  %v623 = vld [vmem:[%s588 + $0x88] sm:$0xf]
  %v624 = vld [vmem:[%s588 + $0x8c] sm:$0xf]
  %v625 = vld [vmem:[%s588 + $0x90] sm:$0xf]
  %v626 = vld [vmem:[%s588 + $0x94] sm:$0xf]
  %v627 = vld [vmem:[%s588 + $0x98] sm:$0xf]
  %v628 = vld [vmem:[%s588 + $0x9c] sm:$0xf]
  %v629 = vld [vmem:[%s588 + $0xa0] sm:$0xf]
  %v630 = vld [vmem:[%s588 + $0xa4] sm:$0xf]
  %v631 = vld [vmem:[%s588 + $0xa8] sm:$0xf]
  %v632 = vld [vmem:[%s588 + $0xac] sm:$0xf]
  %v633 = vld [vmem:[%s588 + $0xb0] sm:$0xf]
  %v634 = vld [vmem:[%s588 + $0xb4] sm:$0xf]
  %v635 = vld [vmem:[%s588 + $0xb8] sm:$0xf]
  %v636 = vld [vmem:[%s588 + $0xbc] sm:$0xf]
  %v637 = vld [vmem:[%s588 + $0xc0] sm:$0xf]
  %v638 = vld [vmem:[%s588 + $0xc4] sm:$0xf]
  %v639 = vld [vmem:[%s588 + $0xc8] sm:$0xf]
  %v640 = vld [vmem:[%s588 + $0xcc] sm:$0xf]
  %v641 = vld [vmem:[%s588 + $0xd0] sm:$0xf]
  %v642 = vld [vmem:[%s588 + $0xd4] sm:$0xf]
  %v643 = vld [vmem:[%s588 + $0xd8] sm:$0xf]
  %v644 = vld [vmem:[%s588 + $0xdc] sm:$0xf]
  %v645 = vld [vmem:[%s588 + $0xe0] sm:$0xf]
  %v646 = vld [vmem:[%s588 + $0xe4] sm:$0xf]
  %v647 = vld [vmem:[%s588 + $0xe8] sm:$0xf]
  %v648 = vld [vmem:[%s588 + $0xec] sm:$0xf]
  %v649 = vld [vmem:[%s588 + $0xf0] sm:$0xf]
  %v650 = vld [vmem:[%s588 + $0xf4] sm:$0xf]
  %v651 = vld [vmem:[%s588 + $0xf8] sm:$0xf]
  %v652 = vld [vmem:[%s588 + $0xfc] sm:$0xf]
  %v653 = vmax.bf16 %v524, %v589
  %v654 = vmax.bf16 %v525, %v590
  %v655 = vmax.bf16 %v526, %v591
  %v656 = vmax.bf16 %v527, %v592
  %v657 = vmax.bf16 %v528, %v593
  %v658 = vmax.bf16 %v529, %v594
  %v659 = vmax.bf16 %v530, %v595
  %v660 = vmax.bf16 %v531, %v596
  %v661 = vmax.bf16 %v532, %v597
  %v662 = vmax.bf16 %v533, %v598
  %v663 = vmax.bf16 %v534, %v599
  %v664 = vmax.bf16 %v535, %v600
  %v665 = vmax.bf16 %v536, %v601
  %v666 = vmax.bf16 %v537, %v602
  %v667 = vmax.bf16 %v538, %v603
  %v668 = vmax.bf16 %v539, %v604
  %v669 = vmax.bf16 %v540, %v605
  %v670 = vmax.bf16 %v541, %v606
  %v671 = vmax.bf16 %v542, %v607
  %v672 = vmax.bf16 %v543, %v608
  %v673 = vmax.bf16 %v544, %v609
  %v674 = vmax.bf16 %v545, %v610
  %v675 = vmax.bf16 %v546, %v611
  %v676 = vmax.bf16 %v547, %v612
  %v677 = vmax.bf16 %v548, %v613
  %v678 = vmax.bf16 %v549, %v614
  %v679 = vmax.bf16 %v550, %v615
  %v680 = vmax.bf16 %v551, %v616
  %v681 = vmax.bf16 %v552, %v617
  %v682 = vmax.bf16 %v553, %v618
  %v683 = vmax.bf16 %v554, %v619
  %v684 = vmax.bf16 %v555, %v620
  %v685 = vmax.bf16 %v556, %v621
  %v686 = vmax.bf16 %v557, %v622
  %v687 = vmax.bf16 %v558, %v623
  %v688 = vmax.bf16 %v559, %v624
  %v689 = vmax.bf16 %v560, %v625
  %v690 = vmax.bf16 %v561, %v626
  %v691 = vmax.bf16 %v562, %v627
  %v692 = vmax.bf16 %v563, %v628
  %v693 = vmax.bf16 %v564, %v629
  %v694 = vmax.bf16 %v565, %v630
  %v695 = vmax.bf16 %v566, %v631
  %v696 = vmax.bf16 %v567, %v632
  %v697 = vmax.bf16 %v568, %v633
  %v698 = vmax.bf16 %v569, %v634
  %v699 = vmax.bf16 %v570, %v635
  %v700 = vmax.bf16 %v571, %v636
  %v701 = vmax.bf16 %v572, %v637
  %v702 = vmax.bf16 %v573, %v638
  %v703 = vmax.bf16 %v574, %v639
  %v704 = vmax.bf16 %v575, %v640
  %v705 = vmax.bf16 %v576, %v641
  %v706 = vmax.bf16 %v577, %v642
  %v707 = vmax.bf16 %v578, %v643
  %v708 = vmax.bf16 %v579, %v644
  %v709 = vmax.bf16 %v580, %v645
  %v710 = vmax.bf16 %v581, %v646
  %v711 = vmax.bf16 %v582, %v647
  %v712 = vmax.bf16 %v583, %v648
  %v713 = vmax.bf16 %v584, %v649
  %v714 = vmax.bf16 %v585, %v650
  %v715 = vmax.bf16 %v586, %v651
  %v716 = vmax.bf16 %v587, %v652
  %s717 = scalar_lea.vmem %s0, 1536
  %v718 = vld [vmem:[%s717] sm:$0xf]
  %v719 = vld [vmem:[%s717 + $0x4] sm:$0xf]
  %v720 = vld [vmem:[%s717 + $0x8] sm:$0xf]
  %v721 = vld [vmem:[%s717 + $0xc] sm:$0xf]
  %v722 = vld [vmem:[%s717 + $0x10] sm:$0xf]
  %v723 = vld [vmem:[%s717 + $0x14] sm:$0xf]
  %v724 = vld [vmem:[%s717 + $0x18] sm:$0xf]
  %v725 = vld [vmem:[%s717 + $0x1c] sm:$0xf]
  %v726 = vld [vmem:[%s717 + $0x20] sm:$0xf]
  %v727 = vld [vmem:[%s717 + $0x24] sm:$0xf]
  %v728 = vld [vmem:[%s717 + $0x28] sm:$0xf]
  %v729 = vld [vmem:[%s717 + $0x2c] sm:$0xf]
  %v730 = vld [vmem:[%s717 + $0x30] sm:$0xf]
  %v731 = vld [vmem:[%s717 + $0x34] sm:$0xf]
  %v732 = vld [vmem:[%s717 + $0x38] sm:$0xf]
  %v733 = vld [vmem:[%s717 + $0x3c] sm:$0xf]
  %v734 = vld [vmem:[%s717 + $0x40] sm:$0xf]
  %v735 = vld [vmem:[%s717 + $0x44] sm:$0xf]
  %v736 = vld [vmem:[%s717 + $0x48] sm:$0xf]
  %v737 = vld [vmem:[%s717 + $0x4c] sm:$0xf]
  %v738 = vld [vmem:[%s717 + $0x50] sm:$0xf]
  %v739 = vld [vmem:[%s717 + $0x54] sm:$0xf]
  %v740 = vld [vmem:[%s717 + $0x58] sm:$0xf]
  %v741 = vld [vmem:[%s717 + $0x5c] sm:$0xf]
  %v742 = vld [vmem:[%s717 + $0x60] sm:$0xf]
  %v743 = vld [vmem:[%s717 + $0x64] sm:$0xf]
  %v744 = vld [vmem:[%s717 + $0x68] sm:$0xf]
  %v745 = vld [vmem:[%s717 + $0x6c] sm:$0xf]
  %v746 = vld [vmem:[%s717 + $0x70] sm:$0xf]
  %v747 = vld [vmem:[%s717 + $0x74] sm:$0xf]
  %v748 = vld [vmem:[%s717 + $0x78] sm:$0xf]
  %v749 = vld [vmem:[%s717 + $0x7c] sm:$0xf]
  %v750 = vld [vmem:[%s717 + $0x80] sm:$0xf]
  %v751 = vld [vmem:[%s717 + $0x84] sm:$0xf]
  %v752 = vld [vmem:[%s717 + $0x88] sm:$0xf]
  %v753 = vld [vmem:[%s717 + $0x8c] sm:$0xf]
  %v754 = vld [vmem:[%s717 + $0x90] sm:$0xf]
  %v755 = vld [vmem:[%s717 + $0x94] sm:$0xf]
  %v756 = vld [vmem:[%s717 + $0x98] sm:$0xf]
  %v757 = vld [vmem:[%s717 + $0x9c] sm:$0xf]
  %v758 = vld [vmem:[%s717 + $0xa0] sm:$0xf]
  %v759 = vld [vmem:[%s717 + $0xa4] sm:$0xf]
  %v760 = vld [vmem:[%s717 + $0xa8] sm:$0xf]
  %v761 = vld [vmem:[%s717 + $0xac] sm:$0xf]
  %v762 = vld [vmem:[%s717 + $0xb0] sm:$0xf]
  %v763 = vld [vmem:[%s717 + $0xb4] sm:$0xf]
  %v764 = vld [vmem:[%s717 + $0xb8] sm:$0xf]
  %v765 = vld [vmem:[%s717 + $0xbc] sm:$0xf]
  %v766 = vld [vmem:[%s717 + $0xc0] sm:$0xf]
  %v767 = vld [vmem:[%s717 + $0xc4] sm:$0xf]
  %v768 = vld [vmem:[%s717 + $0xc8] sm:$0xf]
  %v769 = vld [vmem:[%s717 + $0xcc] sm:$0xf]
  %v770 = vld [vmem:[%s717 + $0xd0] sm:$0xf]
  %v771 = vld [vmem:[%s717 + $0xd4] sm:$0xf]
  %v772 = vld [vmem:[%s717 + $0xd8] sm:$0xf]
  %v773 = vld [vmem:[%s717 + $0xdc] sm:$0xf]
  %v774 = vld [vmem:[%s717 + $0xe0] sm:$0xf]
  %v775 = vld [vmem:[%s717 + $0xe4] sm:$0xf]
  %v776 = vld [vmem:[%s717 + $0xe8] sm:$0xf]
  %v777 = vld [vmem:[%s717 + $0xec] sm:$0xf]
  %v778 = vld [vmem:[%s717 + $0xf0] sm:$0xf]
  %v779 = vld [vmem:[%s717 + $0xf4] sm:$0xf]
  %v780 = vld [vmem:[%s717 + $0xf8] sm:$0xf]
  %v781 = vld [vmem:[%s717 + $0xfc] sm:$0xf]
  %v782 = vmax.bf16 %v653, %v718
  %v783 = vmax.bf16 %v654, %v719
  %v784 = vmax.bf16 %v655, %v720
  %v785 = vmax.bf16 %v656, %v721
  %v786 = vmax.bf16 %v657, %v722
  %v787 = vmax.bf16 %v658, %v723
  %v788 = vmax.bf16 %v659, %v724
  %v789 = vmax.bf16 %v660, %v725
  %v790 = vmax.bf16 %v661, %v726
  %v791 = vmax.bf16 %v662, %v727
  %v792 = vmax.bf16 %v663, %v728
  %v793 = vmax.bf16 %v664, %v729
  %v794 = vmax.bf16 %v665, %v730
  %v795 = vmax.bf16 %v666, %v731
  %v796 = vmax.bf16 %v667, %v732
  %v797 = vmax.bf16 %v668, %v733
  %v798 = vmax.bf16 %v669, %v734
  %v799 = vmax.bf16 %v670, %v735
  %v800 = vmax.bf16 %v671, %v736
  %v801 = vmax.bf16 %v672, %v737
  %v802 = vmax.bf16 %v673, %v738
  %v803 = vmax.bf16 %v674, %v739
  %v804 = vmax.bf16 %v675, %v740
  %v805 = vmax.bf16 %v676, %v741
  %v806 = vmax.bf16 %v677, %v742
  %v807 = vmax.bf16 %v678, %v743
  %v808 = vmax.bf16 %v679, %v744
  %v809 = vmax.bf16 %v680, %v745
  %v810 = vmax.bf16 %v681, %v746
  %v811 = vmax.bf16 %v682, %v747
  %v812 = vmax.bf16 %v683, %v748
  %v813 = vmax.bf16 %v684, %v749
  %v814 = vmax.bf16 %v685, %v750
  %v815 = vmax.bf16 %v686, %v751
  %v816 = vmax.bf16 %v687, %v752
  %v817 = vmax.bf16 %v688, %v753
  %v818 = vmax.bf16 %v689, %v754
  %v819 = vmax.bf16 %v690, %v755
  %v820 = vmax.bf16 %v691, %v756
  %v821 = vmax.bf16 %v692, %v757
  %v822 = vmax.bf16 %v693, %v758
  %v823 = vmax.bf16 %v694, %v759
  %v824 = vmax.bf16 %v695, %v760
  %v825 = vmax.bf16 %v696, %v761
  %v826 = vmax.bf16 %v697, %v762
  %v827 = vmax.bf16 %v698, %v763
  %v828 = vmax.bf16 %v699, %v764
  %v829 = vmax.bf16 %v700, %v765
  %v830 = vmax.bf16 %v701, %v766
  %v831 = vmax.bf16 %v702, %v767
  %v832 = vmax.bf16 %v703, %v768
  %v833 = vmax.bf16 %v704, %v769
  %v834 = vmax.bf16 %v705, %v770
  %v835 = vmax.bf16 %v706, %v771
  %v836 = vmax.bf16 %v707, %v772
  %v837 = vmax.bf16 %v708, %v773
  %v838 = vmax.bf16 %v709, %v774
  %v839 = vmax.bf16 %v710, %v775
  %v840 = vmax.bf16 %v711, %v776
  %v841 = vmax.bf16 %v712, %v777
  %v842 = vmax.bf16 %v713, %v778
  %v843 = vmax.bf16 %v714, %v779
  %v844 = vmax.bf16 %v715, %v780
  %v845 = vmax.bf16 %v716, %v781
  %s846 = scalar_lea.vmem %s0, 1792
  %v847 = vld [vmem:[%s846] sm:$0xf]
  %v848 = vld [vmem:[%s846 + $0x4] sm:$0xf]
  %v849 = vld [vmem:[%s846 + $0x8] sm:$0xf]
  %v850 = vld [vmem:[%s846 + $0xc] sm:$0xf]
  %v851 = vld [vmem:[%s846 + $0x10] sm:$0xf]
  %v852 = vld [vmem:[%s846 + $0x14] sm:$0xf]
  %v853 = vld [vmem:[%s846 + $0x18] sm:$0xf]
  %v854 = vld [vmem:[%s846 + $0x1c] sm:$0xf]
  %v855 = vld [vmem:[%s846 + $0x20] sm:$0xf]
  %v856 = vld [vmem:[%s846 + $0x24] sm:$0xf]
  %v857 = vld [vmem:[%s846 + $0x28] sm:$0xf]
  %v858 = vld [vmem:[%s846 + $0x2c] sm:$0xf]
  %v859 = vld [vmem:[%s846 + $0x30] sm:$0xf]
  %v860 = vld [vmem:[%s846 + $0x34] sm:$0xf]
  %v861 = vld [vmem:[%s846 + $0x38] sm:$0xf]
  %v862 = vld [vmem:[%s846 + $0x3c] sm:$0xf]
  %v863 = vld [vmem:[%s846 + $0x40] sm:$0xf]
  %v864 = vld [vmem:[%s846 + $0x44] sm:$0xf]
  %v865 = vld [vmem:[%s846 + $0x48] sm:$0xf]
  %v866 = vld [vmem:[%s846 + $0x4c] sm:$0xf]
  %v867 = vld [vmem:[%s846 + $0x50] sm:$0xf]
  %v868 = vld [vmem:[%s846 + $0x54] sm:$0xf]
  %v869 = vld [vmem:[%s846 + $0x58] sm:$0xf]
  %v870 = vld [vmem:[%s846 + $0x5c] sm:$0xf]
  %v871 = vld [vmem:[%s846 + $0x60] sm:$0xf]
  %v872 = vld [vmem:[%s846 + $0x64] sm:$0xf]
  %v873 = vld [vmem:[%s846 + $0x68] sm:$0xf]
  %v874 = vld [vmem:[%s846 + $0x6c] sm:$0xf]
  %v875 = vld [vmem:[%s846 + $0x70] sm:$0xf]
  %v876 = vld [vmem:[%s846 + $0x74] sm:$0xf]
  %v877 = vld [vmem:[%s846 + $0x78] sm:$0xf]
  %v878 = vld [vmem:[%s846 + $0x7c] sm:$0xf]
  %v879 = vld [vmem:[%s846 + $0x80] sm:$0xf]
  %v880 = vld [vmem:[%s846 + $0x84] sm:$0xf]
  %v881 = vld [vmem:[%s846 + $0x88] sm:$0xf]
  %v882 = vld [vmem:[%s846 + $0x8c] sm:$0xf]
  %v883 = vld [vmem:[%s846 + $0x90] sm:$0xf]
  %v884 = vld [vmem:[%s846 + $0x94] sm:$0xf]
  %v885 = vld [vmem:[%s846 + $0x98] sm:$0xf]
  %v886 = vld [vmem:[%s846 + $0x9c] sm:$0xf]
  %v887 = vld [vmem:[%s846 + $0xa0] sm:$0xf]
  %v888 = vld [vmem:[%s846 + $0xa4] sm:$0xf]
  %v889 = vld [vmem:[%s846 + $0xa8] sm:$0xf]
  %v890 = vld [vmem:[%s846 + $0xac] sm:$0xf]
  %v891 = vld [vmem:[%s846 + $0xb0] sm:$0xf]
  %v892 = vld [vmem:[%s846 + $0xb4] sm:$0xf]
  %v893 = vld [vmem:[%s846 + $0xb8] sm:$0xf]
  %v894 = vld [vmem:[%s846 + $0xbc] sm:$0xf]
  %v895 = vld [vmem:[%s846 + $0xc0] sm:$0xf]
  %v896 = vld [vmem:[%s846 + $0xc4] sm:$0xf]
  %v897 = vld [vmem:[%s846 + $0xc8] sm:$0xf]
  %v898 = vld [vmem:[%s846 + $0xcc] sm:$0xf]
  %v899 = vld [vmem:[%s846 + $0xd0] sm:$0xf]
  %v900 = vld [vmem:[%s846 + $0xd4] sm:$0xf]
  %v901 = vld [vmem:[%s846 + $0xd8] sm:$0xf]
  %v902 = vld [vmem:[%s846 + $0xdc] sm:$0xf]
  %v903 = vld [vmem:[%s846 + $0xe0] sm:$0xf]
  %v904 = vld [vmem:[%s846 + $0xe4] sm:$0xf]
  %v905 = vld [vmem:[%s846 + $0xe8] sm:$0xf]
  %v906 = vld [vmem:[%s846 + $0xec] sm:$0xf]
  %v907 = vld [vmem:[%s846 + $0xf0] sm:$0xf]
  %v908 = vld [vmem:[%s846 + $0xf4] sm:$0xf]
  %v909 = vld [vmem:[%s846 + $0xf8] sm:$0xf]
  %v910 = vld [vmem:[%s846 + $0xfc] sm:$0xf]
  %v911 = vmax.bf16 %v782, %v847
  %v912 = vmax.bf16 %v783, %v848
  %v913 = vmax.bf16 %v784, %v849
  %v914 = vmax.bf16 %v785, %v850
  %v915 = vmax.bf16 %v786, %v851
  %v916 = vmax.bf16 %v787, %v852
  %v917 = vmax.bf16 %v788, %v853
  %v918 = vmax.bf16 %v789, %v854
  %v919 = vmax.bf16 %v790, %v855
  %v920 = vmax.bf16 %v791, %v856
  %v921 = vmax.bf16 %v792, %v857
  %v922 = vmax.bf16 %v793, %v858
  %v923 = vmax.bf16 %v794, %v859
  %v924 = vmax.bf16 %v795, %v860
  %v925 = vmax.bf16 %v796, %v861
  %v926 = vmax.bf16 %v797, %v862
  %v927 = vmax.bf16 %v798, %v863
  %v928 = vmax.bf16 %v799, %v864
  %v929 = vmax.bf16 %v800, %v865
  %v930 = vmax.bf16 %v801, %v866
  %v931 = vmax.bf16 %v802, %v867
  %v932 = vmax.bf16 %v803, %v868
  %v933 = vmax.bf16 %v804, %v869
  %v934 = vmax.bf16 %v805, %v870
  %v935 = vmax.bf16 %v806, %v871
  %v936 = vmax.bf16 %v807, %v872
  %v937 = vmax.bf16 %v808, %v873
  %v938 = vmax.bf16 %v809, %v874
  %v939 = vmax.bf16 %v810, %v875
  %v940 = vmax.bf16 %v811, %v876
  %v941 = vmax.bf16 %v812, %v877
  %v942 = vmax.bf16 %v813, %v878
  %v943 = vmax.bf16 %v814, %v879
  %v944 = vmax.bf16 %v815, %v880
  %v945 = vmax.bf16 %v816, %v881
  %v946 = vmax.bf16 %v817, %v882
  %v947 = vmax.bf16 %v818, %v883
  %v948 = vmax.bf16 %v819, %v884
  %v949 = vmax.bf16 %v820, %v885
  %v950 = vmax.bf16 %v821, %v886
  %v951 = vmax.bf16 %v822, %v887
  %v952 = vmax.bf16 %v823, %v888
  %v953 = vmax.bf16 %v824, %v889
  %v954 = vmax.bf16 %v825, %v890
  %v955 = vmax.bf16 %v826, %v891
  %v956 = vmax.bf16 %v827, %v892
  %v957 = vmax.bf16 %v828, %v893
  %v958 = vmax.bf16 %v829, %v894
  %v959 = vmax.bf16 %v830, %v895
  %v960 = vmax.bf16 %v831, %v896
  %v961 = vmax.bf16 %v832, %v897
  %v962 = vmax.bf16 %v833, %v898
  %v963 = vmax.bf16 %v834, %v899
  %v964 = vmax.bf16 %v835, %v900
  %v965 = vmax.bf16 %v836, %v901
  %v966 = vmax.bf16 %v837, %v902
  %v967 = vmax.bf16 %v838, %v903
  %v968 = vmax.bf16 %v839, %v904
  %v969 = vmax.bf16 %v840, %v905
  %v970 = vmax.bf16 %v841, %v906
  %v971 = vmax.bf16 %v842, %v907
  %v972 = vmax.bf16 %v843, %v908
  %v973 = vmax.bf16 %v844, %v909
  %v974 = vmax.bf16 %v845, %v910
  %s975 = scalar_lea.vmem %s0, 2048
  %v976 = vld [vmem:[%s975] sm:$0xf]
  %v977 = vld [vmem:[%s975 + $0x4] sm:$0xf]
  %v978 = vld [vmem:[%s975 + $0x8] sm:$0xf]
  %v979 = vld [vmem:[%s975 + $0xc] sm:$0xf]
  %v980 = vld [vmem:[%s975 + $0x10] sm:$0xf]
  %v981 = vld [vmem:[%s975 + $0x14] sm:$0xf]
  %v982 = vld [vmem:[%s975 + $0x18] sm:$0xf]
  %v983 = vld [vmem:[%s975 + $0x1c] sm:$0xf]
  %v984 = vld [vmem:[%s975 + $0x20] sm:$0xf]
  %v985 = vld [vmem:[%s975 + $0x24] sm:$0xf]
  %v986 = vld [vmem:[%s975 + $0x28] sm:$0xf]
  %v987 = vld [vmem:[%s975 + $0x2c] sm:$0xf]
  %v988 = vld [vmem:[%s975 + $0x30] sm:$0xf]
  %v989 = vld [vmem:[%s975 + $0x34] sm:$0xf]
  %v990 = vld [vmem:[%s975 + $0x38] sm:$0xf]
  %v991 = vld [vmem:[%s975 + $0x3c] sm:$0xf]
  %v992 = vld [vmem:[%s975 + $0x40] sm:$0xf]
  %v993 = vld [vmem:[%s975 + $0x44] sm:$0xf]
  %v994 = vld [vmem:[%s975 + $0x48] sm:$0xf]
  %v995 = vld [vmem:[%s975 + $0x4c] sm:$0xf]
  %v996 = vld [vmem:[%s975 + $0x50] sm:$0xf]
  %v997 = vld [vmem:[%s975 + $0x54] sm:$0xf]
  %v998 = vld [vmem:[%s975 + $0x58] sm:$0xf]
  %v999 = vld [vmem:[%s975 + $0x5c] sm:$0xf]
  %v1000 = vld [vmem:[%s975 + $0x60] sm:$0xf]
  %v1001 = vld [vmem:[%s975 + $0x64] sm:$0xf]
  %v1002 = vld [vmem:[%s975 + $0x68] sm:$0xf]
  %v1003 = vld [vmem:[%s975 + $0x6c] sm:$0xf]
  %v1004 = vld [vmem:[%s975 + $0x70] sm:$0xf]
  %v1005 = vld [vmem:[%s975 + $0x74] sm:$0xf]
  %v1006 = vld [vmem:[%s975 + $0x78] sm:$0xf]
  %v1007 = vld [vmem:[%s975 + $0x7c] sm:$0xf]
  %v1008 = vld [vmem:[%s975 + $0x80] sm:$0xf]
  %v1009 = vld [vmem:[%s975 + $0x84] sm:$0xf]
  %v1010 = vld [vmem:[%s975 + $0x88] sm:$0xf]
  %v1011 = vld [vmem:[%s975 + $0x8c] sm:$0xf]
  %v1012 = vld [vmem:[%s975 + $0x90] sm:$0xf]
  %v1013 = vld [vmem:[%s975 + $0x94] sm:$0xf]
  %v1014 = vld [vmem:[%s975 + $0x98] sm:$0xf]
  %v1015 = vld [vmem:[%s975 + $0x9c] sm:$0xf]
  %v1016 = vld [vmem:[%s975 + $0xa0] sm:$0xf]
  %v1017 = vld [vmem:[%s975 + $0xa4] sm:$0xf]
  %v1018 = vld [vmem:[%s975 + $0xa8] sm:$0xf]
  %v1019 = vld [vmem:[%s975 + $0xac] sm:$0xf]
  %v1020 = vld [vmem:[%s975 + $0xb0] sm:$0xf]
  %v1021 = vld [vmem:[%s975 + $0xb4] sm:$0xf]
  %v1022 = vld [vmem:[%s975 + $0xb8] sm:$0xf]
  %v1023 = vld [vmem:[%s975 + $0xbc] sm:$0xf]
  %v1024 = vld [vmem:[%s975 + $0xc0] sm:$0xf]
  %v1025 = vld [vmem:[%s975 + $0xc4] sm:$0xf]
  %v1026 = vld [vmem:[%s975 + $0xc8] sm:$0xf]
  %v1027 = vld [vmem:[%s975 + $0xcc] sm:$0xf]
  %v1028 = vld [vmem:[%s975 + $0xd0] sm:$0xf]
  %v1029 = vld [vmem:[%s975 + $0xd4] sm:$0xf]
  %v1030 = vld [vmem:[%s975 + $0xd8] sm:$0xf]
  %v1031 = vld [vmem:[%s975 + $0xdc] sm:$0xf]
  %v1032 = vld [vmem:[%s975 + $0xe0] sm:$0xf]
  %v1033 = vld [vmem:[%s975 + $0xe4] sm:$0xf]
  %v1034 = vld [vmem:[%s975 + $0xe8] sm:$0xf]
  %v1035 = vld [vmem:[%s975 + $0xec] sm:$0xf]
  %v1036 = vld [vmem:[%s975 + $0xf0] sm:$0xf]
  %v1037 = vld [vmem:[%s975 + $0xf4] sm:$0xf]
  %v1038 = vld [vmem:[%s975 + $0xf8] sm:$0xf]
  %v1039 = vld [vmem:[%s975 + $0xfc] sm:$0xf]
  %v1040 = vmax.bf16 %v911, %v976
  %v1041 = vmax.bf16 %v912, %v977
  %v1042 = vmax.bf16 %v913, %v978
  %v1043 = vmax.bf16 %v914, %v979
  %v1044 = vmax.bf16 %v915, %v980
  %v1045 = vmax.bf16 %v916, %v981
  %v1046 = vmax.bf16 %v917, %v982
  %v1047 = vmax.bf16 %v918, %v983
  %v1048 = vmax.bf16 %v919, %v984
  %v1049 = vmax.bf16 %v920, %v985
  %v1050 = vmax.bf16 %v921, %v986
  %v1051 = vmax.bf16 %v922, %v987
  %v1052 = vmax.bf16 %v923, %v988
  %v1053 = vmax.bf16 %v924, %v989
  %v1054 = vmax.bf16 %v925, %v990
  %v1055 = vmax.bf16 %v926, %v991
  %v1056 = vmax.bf16 %v927, %v992
  %v1057 = vmax.bf16 %v928, %v993
  %v1058 = vmax.bf16 %v929, %v994
  %v1059 = vmax.bf16 %v930, %v995
  %v1060 = vmax.bf16 %v931, %v996
  %v1061 = vmax.bf16 %v932, %v997
  %v1062 = vmax.bf16 %v933, %v998
  %v1063 = vmax.bf16 %v934, %v999
  %v1064 = vmax.bf16 %v935, %v1000
  %v1065 = vmax.bf16 %v936, %v1001
  %v1066 = vmax.bf16 %v937, %v1002
  %v1067 = vmax.bf16 %v938, %v1003
  %v1068 = vmax.bf16 %v939, %v1004
  %v1069 = vmax.bf16 %v940, %v1005
  %v1070 = vmax.bf16 %v941, %v1006
  %v1071 = vmax.bf16 %v942, %v1007
  %v1072 = vmax.bf16 %v943, %v1008
  %v1073 = vmax.bf16 %v944, %v1009
  %v1074 = vmax.bf16 %v945, %v1010
  %v1075 = vmax.bf16 %v946, %v1011
  %v1076 = vmax.bf16 %v947, %v1012
  %v1077 = vmax.bf16 %v948, %v1013
  %v1078 = vmax.bf16 %v949, %v1014
  %v1079 = vmax.bf16 %v950, %v1015
  %v1080 = vmax.bf16 %v951, %v1016
  %v1081 = vmax.bf16 %v952, %v1017
  %v1082 = vmax.bf16 %v953, %v1018
  %v1083 = vmax.bf16 %v954, %v1019
  %v1084 = vmax.bf16 %v955, %v1020
  %v1085 = vmax.bf16 %v956, %v1021
  %v1086 = vmax.bf16 %v957, %v1022
  %v1087 = vmax.bf16 %v958, %v1023
  %v1088 = vmax.bf16 %v959, %v1024
  %v1089 = vmax.bf16 %v960, %v1025
  %v1090 = vmax.bf16 %v961, %v1026
  %v1091 = vmax.bf16 %v962, %v1027
  %v1092 = vmax.bf16 %v963, %v1028
  %v1093 = vmax.bf16 %v964, %v1029
  %v1094 = vmax.bf16 %v965, %v1030
  %v1095 = vmax.bf16 %v966, %v1031
  %v1096 = vmax.bf16 %v967, %v1032
  %v1097 = vmax.bf16 %v968, %v1033
  %v1098 = vmax.bf16 %v969, %v1034
  %v1099 = vmax.bf16 %v970, %v1035
  %v1100 = vmax.bf16 %v971, %v1036
  %v1101 = vmax.bf16 %v972, %v1037
  %v1102 = vmax.bf16 %v973, %v1038
  %v1103 = vmax.bf16 %v974, %v1039
  %vm1104 = vcmask 60416
  %1105 = vst.msk [vmem:[%s1] sm:$0xf] %vm1104, %v1040
  %1106 = vst.msk [vmem:[%s1 + $0x4] sm:$0xf] %vm1104, %v1041
  %1107 = vst.msk [vmem:[%s1 + $0x8] sm:$0xf] %vm1104, %v1042
  %1108 = vst.msk [vmem:[%s1 + $0xc] sm:$0xf] %vm1104, %v1043
  %1109 = vst.msk [vmem:[%s1 + $0x10] sm:$0xf] %vm1104, %v1044
  %1110 = vst.msk [vmem:[%s1 + $0x14] sm:$0xf] %vm1104, %v1045
  %1111 = vst.msk [vmem:[%s1 + $0x18] sm:$0xf] %vm1104, %v1046
  %1112 = vst.msk [vmem:[%s1 + $0x1c] sm:$0xf] %vm1104, %v1047
  %1113 = vst.msk [vmem:[%s1 + $0x20] sm:$0xf] %vm1104, %v1048
  %1114 = vst.msk [vmem:[%s1 + $0x24] sm:$0xf] %vm1104, %v1049
  %1115 = vst.msk [vmem:[%s1 + $0x28] sm:$0xf] %vm1104, %v1050
  %1116 = vst.msk [vmem:[%s1 + $0x2c] sm:$0xf] %vm1104, %v1051
  %1117 = vst.msk [vmem:[%s1 + $0x30] sm:$0xf] %vm1104, %v1052
  %1118 = vst.msk [vmem:[%s1 + $0x34] sm:$0xf] %vm1104, %v1053
  %1119 = vst.msk [vmem:[%s1 + $0x38] sm:$0xf] %vm1104, %v1054
  %1120 = vst.msk [vmem:[%s1 + $0x3c] sm:$0xf] %vm1104, %v1055
  %1121 = vst.msk [vmem:[%s1 + $0x40] sm:$0xf] %vm1104, %v1056
  %1122 = vst.msk [vmem:[%s1 + $0x44] sm:$0xf] %vm1104, %v1057
  %1123 = vst.msk [vmem:[%s1 + $0x48] sm:$0xf] %vm1104, %v1058
  %1124 = vst.msk [vmem:[%s1 + $0x4c] sm:$0xf] %vm1104, %v1059
  %1125 = vst.msk [vmem:[%s1 + $0x50] sm:$0xf] %vm1104, %v1060
  %1126 = vst.msk [vmem:[%s1 + $0x54] sm:$0xf] %vm1104, %v1061
  %1127 = vst.msk [vmem:[%s1 + $0x58] sm:$0xf] %vm1104, %v1062
  %1128 = vst.msk [vmem:[%s1 + $0x5c] sm:$0xf] %vm1104, %v1063
  %1129 = vst.msk [vmem:[%s1 + $0x60] sm:$0xf] %vm1104, %v1064
  %1130 = vst.msk [vmem:[%s1 + $0x64] sm:$0xf] %vm1104, %v1065
  %1131 = vst.msk [vmem:[%s1 + $0x68] sm:$0xf] %vm1104, %v1066
  %1132 = vst.msk [vmem:[%s1 + $0x6c] sm:$0xf] %vm1104, %v1067
  %1133 = vst.msk [vmem:[%s1 + $0x70] sm:$0xf] %vm1104, %v1068
  %1134 = vst.msk [vmem:[%s1 + $0x74] sm:$0xf] %vm1104, %v1069
  %1135 = vst.msk [vmem:[%s1 + $0x78] sm:$0xf] %vm1104, %v1070
  %1136 = vst.msk [vmem:[%s1 + $0x7c] sm:$0xf] %vm1104, %v1071
  %1137 = vst.msk [vmem:[%s1 + $0x80] sm:$0xf] %vm1104, %v1072
  %1138 = vst.msk [vmem:[%s1 + $0x84] sm:$0xf] %vm1104, %v1073
  %1139 = vst.msk [vmem:[%s1 + $0x88] sm:$0xf] %vm1104, %v1074
  %1140 = vst.msk [vmem:[%s1 + $0x8c] sm:$0xf] %vm1104, %v1075
  %1141 = vst.msk [vmem:[%s1 + $0x90] sm:$0xf] %vm1104, %v1076
  %1142 = vst.msk [vmem:[%s1 + $0x94] sm:$0xf] %vm1104, %v1077
  %1143 = vst.msk [vmem:[%s1 + $0x98] sm:$0xf] %vm1104, %v1078
  %1144 = vst.msk [vmem:[%s1 + $0x9c] sm:$0xf] %vm1104, %v1079
  %1145 = vst.msk [vmem:[%s1 + $0xa0] sm:$0xf] %vm1104, %v1080
  %1146 = vst.msk [vmem:[%s1 + $0xa4] sm:$0xf] %vm1104, %v1081
  %1147 = vst.msk [vmem:[%s1 + $0xa8] sm:$0xf] %vm1104, %v1082
  %1148 = vst.msk [vmem:[%s1 + $0xac] sm:$0xf] %vm1104, %v1083
  %1149 = vst.msk [vmem:[%s1 + $0xb0] sm:$0xf] %vm1104, %v1084
  %1150 = vst.msk [vmem:[%s1 + $0xb4] sm:$0xf] %vm1104, %v1085
  %1151 = vst.msk [vmem:[%s1 + $0xb8] sm:$0xf] %vm1104, %v1086
  %1152 = vst.msk [vmem:[%s1 + $0xbc] sm:$0xf] %vm1104, %v1087
  %1153 = vst.msk [vmem:[%s1 + $0xc0] sm:$0xf] %vm1104, %v1088
  %1154 = vst.msk [vmem:[%s1 + $0xc4] sm:$0xf] %vm1104, %v1089
  %1155 = vst.msk [vmem:[%s1 + $0xc8] sm:$0xf] %vm1104, %v1090
  %1156 = vst.msk [vmem:[%s1 + $0xcc] sm:$0xf] %vm1104, %v1091
  %1157 = vst.msk [vmem:[%s1 + $0xd0] sm:$0xf] %vm1104, %v1092
  %1158 = vst.msk [vmem:[%s1 + $0xd4] sm:$0xf] %vm1104, %v1093
  %1159 = vst.msk [vmem:[%s1 + $0xd8] sm:$0xf] %vm1104, %v1094
  %1160 = vst.msk [vmem:[%s1 + $0xdc] sm:$0xf] %vm1104, %v1095
  %1161 = vst.msk [vmem:[%s1 + $0xe0] sm:$0xf] %vm1104, %v1096
  %1162 = vst.msk [vmem:[%s1 + $0xe4] sm:$0xf] %vm1104, %v1097
  %1163 = vst.msk [vmem:[%s1 + $0xe8] sm:$0xf] %vm1104, %v1098
  %1164 = vst.msk [vmem:[%s1 + $0xec] sm:$0xf] %vm1104, %v1099
  %1165 = vst.msk [vmem:[%s1 + $0xf0] sm:$0xf] %vm1104, %v1100
  %1166 = vst.msk [vmem:[%s1 + $0xf4] sm:$0xf] %vm1104, %v1101
  %1167 = vst.msk [vmem:[%s1 + $0xf8] sm:$0xf] %vm1104, %v1102
  %1168 = vst.msk [vmem:[%s1 + $0xfc] sm:$0xf] %vm1104, %v1103
  // Predicated region
  $region6: #{avenet_forward.20} parent=0 // pred_check
    _
  $region7: #{avenet_forward.20} parent=0 // pred_check_branch
    %1170 = sbr.rel (0) target = $region9
  $region8: #{avenet_forward.20} parent=0 // pred_region
    _
  $region9: #{avenet_forward.20} parent=0 // pred_fallthru
    _
  // Predicated region
  $region10: #{avenet_forward.20} parent=0 // pred_check
    _
  $region11: #{avenet_forward.20} parent=0 // pred_check_branch
    %1172 = sbr.rel (0) target = $region13
  $region12: #{avenet_forward.20} parent=0 // pred_region
    _
  $region13: #{avenet_forward.20} parent=0 // pred_fallthru
    _

// kernel: avenet_forward.21
$region0: #{avenet_forward.21}
  #allocation0 [shape = 'u32[]', space=smem, size = 0x4, offset = 0x4, fixed_abs, tag = 'smem constant byte address 0x4 - core index']
  #allocation1 [shape = 'u32[144,128]{1,0:T(1,128)}', space=vmem, size = 0x12000, scoped, tag = 'internal scratch']
  %s0 = inlined_call_operand.vmem [shape: bf16[512,72], index: 0, kind: input, shape index: {}]
  %s1 = inlined_call_operand.vmem [shape: bf16[72,8], index: 1, kind: input, shape index: {}]
  %s2 = inlined_call_operand.vmem [shape: f32[1,8], index: 2, kind: input, shape index: {}]
  %s3 = inlined_call_operand.vmem [shape: bf16[512,8], index: 3, kind: output, shape index: {}]
  %s4 = sld [smem:[#allocation0]]
  $region45: #{avenet_forward.21} parent=0
    _
  %s6 = ssub.s32 1, %s4
  %s7 = scalar_select 0, %s6, %s4
  loop: start=0, step=1, limit=4
  $region2: #{avenet_forward.21} parent=0 // loop_pre_header
    _
  $region3: #{avenet_forward.21} parent=0 // loop_header
    %s9 = sphi 0, %s13
    %p10 = scmp.ge.s32.totalorder %s9, 4
    %s19 = sphi 0, %s21
    %s22 = sphi 0, %s19
    %s23 = sphi 0, %s22
    %s39 = sphi 0, %s23
    %s43 = sphi 0, %s43
    %s45 = sphi 0, %s43
    %s46 = sphi 0, %s45
    %s60 = sphi 0, %s46
    %s64 = sphi 0, %s64
    %s66 = sphi 0, %s64
    %s67 = sphi 0, %s66
    %s81 = sphi 0, %s67
    %s87 = sphi 0, %s89
    %s90 = sphi 0, %s87
    %s91 = sphi 0, %s90
    %s107 = sphi 0, %s91
  $region4: #{avenet_forward.21} parent=0 // loop_header_branch
    %12 = sbr.rel (%p10) target = $region8
  $region5: #{avenet_forward.21} parent=0 // loop_body
    %s14 = ssub.s32 %s9, 1
    %s15 = ssub.s32 %s9, 2
    %s16 = sadd.s32 %s9, 1
    %s17 = ssub.s32 %s9, %s16
    %p18 = scmp.eq.s32.totalorder %s17, 0
    %s20 = sadd.s32 %s19, 1
    %s21 = scalar_select %p18, %s19, %s20
    %p24 = pneg %p18
    %p25 = scmp.eq.s32.totalorder %s9, 1
    %p26 = por %p24, %p25
    %p27 = scmp.ne.s32.totalorder %s19, %s22
    %p28 = scmp.eq.s32.totalorder %s9, 0
    %p29 = por %p27, %p28
    %p30 = scmp.ne.s32.totalorder %s19, %s22
    %p31 = scmp.eq.s32.totalorder %s14, 1
    %p32 = por %p30, %p31
    %p33 = scmp.ne.s32.totalorder %s22, %s23
    %p34 = scmp.eq.s32.totalorder %s14, 0
    %p35 = por %p33, %p34
    %p36 = scmp.ne.s32.totalorder %s22, %s23
    %p37 = scmp.eq.s32.totalorder %s15, 1
    %p38 = por %p36, %p37
    %p40 = scmp.ne.s32.totalorder %s23, %s39
    %p41 = scmp.eq.s32.totalorder %s15, 0
    %p42 = por %p40, %p41
    %s44 = sadd.s32 %s43, 1
    %p47 = scmp.eq.s32.totalorder %s9, 1
    %p48 = scmp.ne.s32.totalorder %s43, %s45
    %p49 = scmp.eq.s32.totalorder %s9, 0
    %p50 = por %p48, %p49
    %p51 = scmp.ne.s32.totalorder %s43, %s45
    %p52 = scmp.eq.s32.totalorder %s14, 1
    %p53 = por %p51, %p52
    %p54 = scmp.ne.s32.totalorder %s45, %s46
    %p55 = scmp.eq.s32.totalorder %s14, 0
    %p56 = por %p54, %p55
    %p57 = scmp.ne.s32.totalorder %s45, %s46
    %p58 = scmp.eq.s32.totalorder %s15, 1
    %p59 = por %p57, %p58
    %p61 = scmp.ne.s32.totalorder %s46, %s60
    %p62 = scmp.eq.s32.totalorder %s15, 0
    %p63 = por %p61, %p62
    %s65 = sadd.s32 %s64, 1
    %p68 = scmp.eq.s32.totalorder %s9, 1
    %p69 = scmp.ne.s32.totalorder %s64, %s66
    %p70 = scmp.eq.s32.totalorder %s9, 0
    %p71 = por %p69, %p70
    %p72 = scmp.ne.s32.totalorder %s64, %s66
    %p73 = scmp.eq.s32.totalorder %s14, 1
    %p74 = por %p72, %p73
    %p75 = scmp.ne.s32.totalorder %s66, %s67
    %p76 = scmp.eq.s32.totalorder %s14, 0
    %p77 = por %p75, %p76
    %p78 = scmp.ne.s32.totalorder %s66, %s67
    %p79 = scmp.eq.s32.totalorder %s15, 1
    %p80 = por %p78, %p79
    %p82 = scmp.ne.s32.totalorder %s67, %s81
    %p83 = scmp.eq.s32.totalorder %s15, 0
    %p84 = por %p82, %p83
    %s85 = ssub.s32 %s9, %s16
    %p86 = scmp.eq.s32.totalorder %s85, 0
    %s88 = sadd.s32 %s87, 1
    %s89 = scalar_select %p86, %s87, %s88
    %p92 = pneg %p86
    %p93 = scmp.eq.s32.totalorder %s9, 1
    %p94 = por %p92, %p93
    %p95 = scmp.ne.s32.totalorder %s87, %s90
    %p96 = scmp.eq.s32.totalorder %s9, 0
    %p97 = por %p95, %p96
    %p98 = scmp.ne.s32.totalorder %s87, %s90
    %p99 = scmp.eq.s32.totalorder %s14, 1
    %p100 = por %p98, %p99
    %p101 = scmp.ne.s32.totalorder %s90, %s91
    %p102 = scmp.eq.s32.totalorder %s14, 0
    %p103 = por %p101, %p102
    %p104 = scmp.ne.s32.totalorder %s90, %s91
    %p105 = scmp.eq.s32.totalorder %s15, 1
    %p106 = por %p104, %p105
    %p108 = scmp.ne.s32.totalorder %s91, %s107
    %p109 = scmp.eq.s32.totalorder %s15, 0
    %p110 = por %p108, %p109
    %p111 = scmp.le.s32.totalorder 1, %s9
    %p112 = scmp.lt.s32.totalorder %s9, 3
    %p113 = pnand %p111, %p112
    %p114 = pneg %p113
    // Predicated region
    $region9: #{avenet_forward.21} parent=5 // pred_check
      _
    $region10: #{avenet_forward.21} parent=5 // pred_check_branch
      %116 = sbr.rel (%p113) target = $region12
    $region11: #{avenet_forward.21} parent=5 // pred_region
      %s117 = ssub.s32 %s9, 1
      // Predicated region
      $region13: #{avenet_forward.21} parent=11 // pred_check
        %p118 = pneg %p56
      $region14: #{avenet_forward.21} parent=11 // pred_check_branch
        %120 = sbr.rel (%p118) target = $region16
      $region15: #{avenet_forward.21} parent=11 // pred_region
        _
      $region16: #{avenet_forward.21} parent=11 // pred_fallthru
        _
      // Predicated region
      $region17: #{avenet_forward.21} parent=11 // pred_check
        %p121 = pneg %p77
      $region18: #{avenet_forward.21} parent=11 // pred_check_branch
        %123 = sbr.rel (%p121) target = $region20
      $region19: #{avenet_forward.21} parent=11 // pred_region
        _
      $region20: #{avenet_forward.21} parent=11 // pred_fallthru
        _
    $region12: #{avenet_forward.21} parent=5 // pred_fallthru
      _
    %p124 = scmp.lt.s32.totalorder %s9, 2
    // Predicated region
    $region21: #{avenet_forward.21} parent=5 // pred_check
      %p125 = pneg %p124
    $region22: #{avenet_forward.21} parent=5 // pred_check_branch
      %127 = sbr.rel (%p125) target = $region24
    $region23: #{avenet_forward.21} parent=5 // pred_region
      // Predicated region
      $region25: #{avenet_forward.21} parent=23 // pred_check
        %p128 = pneg %p29
      $region26: #{avenet_forward.21} parent=23 // pred_check_branch
        %130 = sbr.rel (%p128) target = $region28
      $region27: #{avenet_forward.21} parent=23 // pred_region
        %s131 = smul.u32 32, %s9
        %p132 = scmp.lt.s32.totalorder %s131, 63
        %s133 = scalar_select %p132, %s131, 63
        %s134 = smul.addr %s133, 4
        %s135 = scalar_lea.vmem %s0, %s134
        %s136 = smul.u32 32, %s9
      $region28: #{avenet_forward.21} parent=23 // pred_fallthru
        _
    $region24: #{avenet_forward.21} parent=5 // pred_fallthru
      _
    %p137 = scmp.le.s32.totalorder 1, %s9
    %p138 = scmp.lt.s32.totalorder %s9, 3
    %p139 = pnand %p137, %p138
    %p140 = pneg %p139
    // Predicated region
    $region29: #{avenet_forward.21} parent=5 // pred_check
      _
    $region30: #{avenet_forward.21} parent=5 // pred_check_branch
      %142 = sbr.rel (%p139) target = $region32
    $region31: #{avenet_forward.21} parent=5 // pred_region
      %s143 = ssub.s32 %s9, 1
      %s144 = smul.u32 32, %s14
      %p145 = scmp.lt.s32.totalorder %s144, 63
      %s146 = scalar_select %p145, %s144, 63
      %s147 = smul.addr %s146, 4
      %s148 = scalar_lea.vmem %s0, %s147
      %p149 = pneg %p35
      %p150 = pneg %p32
      %p151 = pneg %p56
      %p152 = pneg %p53
      %p153 = pneg %p77
      %p154 = pneg %p74
      %p155 = pneg %p103
      %p156 = pneg %p100
      %s157 = smul.u32 32, %s14
      %p158 = scmp.lt.s32.totalorder %s157, 63
      %s159 = scalar_select %p158, %s157, 63
      %s160 = smul.addr %s159, 4
      %s161 = scalar_lea.vmem %s3, %s160
      %s162 = smul.u32 32, %s14
      %p163 = scmp.lt.s32.totalorder %s162, 63
      %s164 = scalar_select %p163, %s162, 63
      %s165 = smul.addr %s164, 4
      %s166 = scalar_lea.vmem %s0, %s165
      %s167 = smul.u32 32, %s14
      %s168 = smul.u32 32, %s14
      %p169 = scmp.lt.s32.totalorder %s168, 63
      %s170 = scalar_select %p169, %s168, 63
      %s171 = smul.addr %s170, 4
      %s172 = scalar_lea.vmem %s3, %s171
      %s173 = smul.u32 32, %s14
      %v175 = vld [vmem:[%s166] sm:$0xf]
      %v176 = vld [vmem:[%s166 + $0x4] sm:$0xf]
      %v177 = vld [vmem:[%s166 + $0x8] sm:$0xf]
      %v178 = vld [vmem:[%s166 + $0xc] sm:$0xf]
      %v179 = vld [vmem:[%s166 + $0x10] sm:$0xf]
      %v180 = vld [vmem:[%s166 + $0x14] sm:$0xf]
      %v181 = vld [vmem:[%s166 + $0x18] sm:$0xf]
      %v182 = vld [vmem:[%s166 + $0x1c] sm:$0xf]
      %v183 = vld [vmem:[%s166 + $0x20] sm:$0xf]
      %v184 = vld [vmem:[%s166 + $0x24] sm:$0xf]
      %v185 = vld [vmem:[%s166 + $0x28] sm:$0xf]
      %v186 = vld [vmem:[%s166 + $0x2c] sm:$0xf]
      %v187 = vld [vmem:[%s166 + $0x30] sm:$0xf]
      %v188 = vld [vmem:[%s166 + $0x34] sm:$0xf]
      %v189 = vld [vmem:[%s166 + $0x38] sm:$0xf]
      %v190 = vld [vmem:[%s166 + $0x3c] sm:$0xf]
      %v191 = vld [vmem:[%s166 + $0x40] sm:$0xf]
      %v192 = vld [vmem:[%s166 + $0x44] sm:$0xf]
      %v193 = vld [vmem:[%s166 + $0x48] sm:$0xf]
      %v194 = vld [vmem:[%s166 + $0x4c] sm:$0xf]
      %v195 = vld [vmem:[%s166 + $0x50] sm:$0xf]
      %v196 = vld [vmem:[%s166 + $0x54] sm:$0xf]
      %v197 = vld [vmem:[%s166 + $0x58] sm:$0xf]
      %v198 = vld [vmem:[%s166 + $0x5c] sm:$0xf]
      %v199 = vld [vmem:[%s166 + $0x60] sm:$0xf]
      %v200 = vld [vmem:[%s166 + $0x64] sm:$0xf]
      %v201 = vld [vmem:[%s166 + $0x68] sm:$0xf]
      %v202 = vld [vmem:[%s166 + $0x6c] sm:$0xf]
      %v203 = vld [vmem:[%s166 + $0x70] sm:$0xf]
      %v204 = vld [vmem:[%s166 + $0x74] sm:$0xf]
      %v205 = vld [vmem:[%s166 + $0x78] sm:$0xf]
      %v206 = vld [vmem:[%s166 + $0x7c] sm:$0xf]
      %v207 = vld [vmem:[%s1] sm:$0xf]
      %v208 = vld [vmem:[%s1 + $0x4] sm:$0xf]
      %v209 = vld [vmem:[%s1 + $0x8] sm:$0xf]
      %v210 = vld [vmem:[%s1 + $0xc] sm:$0xf]
      %v211 = vld [vmem:[%s1 + $0x10] sm:$0xf]
      %v212 = vld [vmem:[%s1 + $0x14] sm:$0xf]
      %v213 = vld [vmem:[%s1 + $0x18] sm:$0xf]
      %v214 = vld [vmem:[%s1 + $0x1c] sm:$0xf]
      %v215 = vld [vmem:[%s1 + $0x20] sm:$0xf]
      %v216 = vld [vmem:[%s2] sm:$0x1]
      %v218 = vlaneseq
      %v219 = vshrl.u32 %v218, 7
      %v220 = vsub.s32 0, %v219
      %v221 = vrot.slane %v216, %v220
      %v255 = vunpack.c.l.b16 %v175
      %v256 = vunpack.c.l.b16 %v176
      %v257 = vunpack.c.l.b16 %v177
      %v258 = vunpack.c.l.b16 %v178
      %v259 = vunpack.c.l.b16 %v179
      %v260 = vunpack.c.l.b16 %v180
      %v261 = vunpack.c.l.b16 %v181
      %v262 = vunpack.c.l.b16 %v182
      %v263 = vunpack.c.l.b16 %v183
      %v264 = vunpack.c.l.b16 %v184
      %v265 = vunpack.c.l.b16 %v185
      %v266 = vunpack.c.l.b16 %v186
      %v267 = vunpack.c.l.b16 %v187
      %v268 = vunpack.c.l.b16 %v188
      %v269 = vunpack.c.l.b16 %v189
      %v270 = vunpack.c.l.b16 %v190
      %v271 = vunpack.c.l.b16 %v191
      %v272 = vunpack.c.l.b16 %v192
      %v273 = vunpack.c.l.b16 %v193
      %v274 = vunpack.c.l.b16 %v194
      %v275 = vunpack.c.l.b16 %v195
      %v276 = vunpack.c.l.b16 %v196
      %v277 = vunpack.c.l.b16 %v197
      %v278 = vunpack.c.l.b16 %v198
      %v279 = vunpack.c.l.b16 %v199
      %v280 = vunpack.c.l.b16 %v200
      %v281 = vunpack.c.l.b16 %v201
      %v282 = vunpack.c.l.b16 %v202
      %v283 = vunpack.c.l.b16 %v203
      %v284 = vunpack.c.l.b16 %v204
      %v285 = vunpack.c.l.b16 %v205
      %v286 = vunpack.c.l.b16 %v206
      %v287 = vpack.c.b16 %v256, %v255
      %v288 = vpack.c.b16 %v258, %v257
      %v289 = vpack.c.b16 %v260, %v259
      %v290 = vpack.c.b16 %v262, %v261
      %v291 = vpack.c.b16 %v264, %v263
      %v292 = vpack.c.b16 %v266, %v265
      %v293 = vpack.c.b16 %v268, %v267
      %v294 = vpack.c.b16 %v270, %v269
      %v295 = vpack.c.b16 %v272, %v271
      %v296 = vpack.c.b16 %v274, %v273
      %v297 = vpack.c.b16 %v276, %v275
      %v298 = vpack.c.b16 %v278, %v277
      %v299 = vpack.c.b16 %v280, %v279
      %v300 = vpack.c.b16 %v282, %v281
      %v301 = vpack.c.b16 %v284, %v283
      %v302 = vpack.c.b16 %v286, %v285
      %v312 = vunpack.c.l.b16 %v207
      %v313 = vunpack.c.l.b16 %v208
      %v314 = vunpack.c.l.b16 %v209
      %v315 = vunpack.c.l.b16 %v210
      %v316 = vunpack.c.l.b16 %v211
      %v317 = vunpack.c.l.b16 %v212
      %v318 = vunpack.c.l.b16 %v213
      %v319 = vunpack.c.l.b16 %v214
      %v320 = vunpack.c.l.b16 %v215
      %v321 = vpack.c.b16 %v313, %v312
      %v322 = vpack.c.b16 %v315, %v314
      %v323 = vpack.c.b16 %v317, %v316
      %v324 = vpack.c.b16 %v319, %v318
      %v325 = vpack.c.b16 %v320, %v320
      %vm330 = vcmask 588800
      %v332 = vsel %vm330, %v287, 0
      %v335 = vsel %vm330, %v288, 0
      %v338 = vsel %vm330, %v289, 0
      %v341 = vsel %vm330, %v290, 0
      %v344 = vsel %vm330, %v291, 0
      %v347 = vsel %vm330, %v292, 0
      %v350 = vsel %vm330, %v293, 0
      %v353 = vsel %vm330, %v294, 0
      %v356 = vsel %vm330, %v295, 0
      %v359 = vsel %vm330, %v296, 0
      %v362 = vsel %vm330, %v297, 0
      %v365 = vsel %vm330, %v298, 0
      %v368 = vsel %vm330, %v299, 0
      %v371 = vsel %vm330, %v300, 0
      %v374 = vsel %vm330, %v301, 0
      %v377 = vsel %vm330, %v302, 0
      %vm379 = vcmask 1043456
      %v381 = vsel %vm379, %v325, 0
      %383 = vmatprep.subr.bf16.mxu0 0
      %384 = vmatpush1.bf16.msra.mxu0 %v321
      %385 = vmatprep.subr.bf16.mxu0 0
      %386 = vmatpush1.bf16.msra.mxu0 %v322
      %387 = vmatprep.subr.bf16.mxu0 0
      %388 = vmatpush1.bf16.msra.mxu0 %v323
      %389 = vmatprep.subr.bf16.mxu0 0
      %390 = vmatpush1.bf16.msra.mxu0 %v324
      %391 = vmatprep.subr.bf16.mxu0 0
      %392 = vmatpush1.bf16.msra.mxu0 %v381
      %393 = vmatprep.subr.bf16.mxu0 0
      %394 = vmatpush1.bf16.msra.mxu0 0
      %395 = vmatprep.subr.bf16.mxu0 0
      %396 = vmatpush1.bf16.msra.mxu0 0
      %397 = vmatprep.subr.bf16.mxu0 0
      %398 = vmatpush1.bf16.msra.mxu0 0
      %399 = vmatprep.subr.bf16.mxu0 0
      %400 = vmatpush1.bf16.msra.mxu0 0
      %401 = vmatprep.subr.bf16.mxu0 0
      %402 = vmatpush1.bf16.msra.mxu0 0
      %403 = vmatprep.subr.bf16.mxu0 0
      %404 = vmatpush1.bf16.msra.mxu0 0
      %405 = vmatprep.subr.bf16.mxu0 0
      %406 = vmatpush1.bf16.msra.mxu0 0
      %407 = vmatprep.subr.bf16.mxu0 0
      %408 = vmatpush1.bf16.msra.mxu0 0
      %409 = vmatprep.subr.bf16.mxu0 0
      %410 = vmatpush1.bf16.msra.mxu0 0
      %411 = vmatprep.subr.bf16.mxu0 0
      %412 = vmatpush1.bf16.msra.mxu0 0
      %413 = vmatprep.subr.bf16.mxu0 0
      %414 = vmatpush1.bf16.msra.mxu0 0
      %415 = vmatprep.mubr.bf16.mxu0 0
      %416 = vmatmul.mubr.bf16.gmra.mrb[0].mxu0 %v332
      %v417 = vpop.f32.mrb[0].mxu0
      %v418 = vadd.f32 %v221, %v417
      %v419 = vpop.f32.mrb[0].mxu0
      %v420 = vpop.f32.mrb[0].mxu0
      %v421 = vadd.f32 %v221, %v420
      %v422 = vpop.f32.mrb[0].mxu0
      %423 = vmatprep.mubr.bf16.mxu0 0
      %424 = vmatmul.mubr.bf16.gmra.mrb[0].mxu0 %v335
      %v425 = vpop.f32.mrb[0].mxu0
      %v426 = vadd.f32 %v221, %v425
      %v427 = vpop.f32.mrb[0].mxu0
      %v428 = vpop.f32.mrb[0].mxu0
      %v429 = vadd.f32 %v221, %v428
      %v430 = vpop.f32.mrb[0].mxu0
      %431 = vmatprep.mubr.bf16.mxu0 0
      %432 = vmatmul.mubr.bf16.gmra.mrb[0].mxu0 %v338
      %v433 = vpop.f32.mrb[0].mxu0
      %v434 = vadd.f32 %v221, %v433
      %v435 = vpop.f32.mrb[0].mxu0
      %v436 = vpop.f32.mrb[0].mxu0
      %v437 = vadd.f32 %v221, %v436
      %v438 = vpop.f32.mrb[0].mxu0
      %439 = vmatprep.mubr.bf16.mxu0 0
      %440 = vmatmul.mubr.bf16.gmra.mrb[0].mxu0 %v341
      %v441 = vpop.f32.mrb[0].mxu0
      %v442 = vadd.f32 %v221, %v441
      %v443 = vpop.f32.mrb[0].mxu0
      %v444 = vpop.f32.mrb[0].mxu0
      %v445 = vadd.f32 %v221, %v444
      %v446 = vpop.f32.mrb[0].mxu0
      %447 = vmatprep.mubr.bf16.mxu0 0
      %448 = vmatmul.mubr.bf16.gmra.mrb[0].mxu0 %v344
      %v449 = vpop.f32.mrb[0].mxu0
      %v450 = vadd.f32 %v221, %v449
      %v451 = vpop.f32.mrb[0].mxu0
      %v452 = vpop.f32.mrb[0].mxu0
      %v453 = vadd.f32 %v221, %v452
      %v454 = vpop.f32.mrb[0].mxu0
      %455 = vmatprep.mubr.bf16.mxu0 0
      %456 = vmatmul.mubr.bf16.gmra.mrb[0].mxu0 %v347
      %v457 = vpop.f32.mrb[0].mxu0
      %v458 = vadd.f32 %v221, %v457
      %v459 = vpop.f32.mrb[0].mxu0
      %v460 = vpop.f32.mrb[0].mxu0
      %v461 = vadd.f32 %v221, %v460
      %v462 = vpop.f32.mrb[0].mxu0
      %463 = vmatprep.mubr.bf16.mxu0 0
      %464 = vmatmul.mubr.bf16.gmra.mrb[0].mxu0 %v350
      %v465 = vpop.f32.mrb[0].mxu0
      %v466 = vadd.f32 %v221, %v465
      %v467 = vpop.f32.mrb[0].mxu0
      %v468 = vpop.f32.mrb[0].mxu0
      %v469 = vadd.f32 %v221, %v468
      %v470 = vpop.f32.mrb[0].mxu0
      %471 = vmatprep.mubr.bf16.mxu0 0
      %472 = vmatmul.mubr.bf16.gmra.mrb[0].mxu0 %v353
      %v473 = vpop.f32.mrb[0].mxu0
      %v474 = vadd.f32 %v221, %v473
      %v475 = vpop.f32.mrb[0].mxu0
      %v476 = vpop.f32.mrb[0].mxu0
      %v477 = vadd.f32 %v221, %v476
      %v478 = vpop.f32.mrb[0].mxu0
      %479 = vmatprep.mubr.bf16.mxu0 0
      %480 = vmatmul.mubr.bf16.gmra.mrb[0].mxu0 %v356
      %v481 = vpop.f32.mrb[0].mxu0
      %v482 = vadd.f32 %v221, %v481
      %v483 = vpop.f32.mrb[0].mxu0
      %v484 = vpop.f32.mrb[0].mxu0
      %v485 = vadd.f32 %v221, %v484
      %v486 = vpop.f32.mrb[0].mxu0
      %487 = vmatprep.mubr.bf16.mxu0 0
      %488 = vmatmul.mubr.bf16.gmra.mrb[0].mxu0 %v359
      %v489 = vpop.f32.mrb[0].mxu0
      %v490 = vadd.f32 %v221, %v489
      %v491 = vpop.f32.mrb[0].mxu0
      %v492 = vpop.f32.mrb[0].mxu0
      %v493 = vadd.f32 %v221, %v492
      %v494 = vpop.f32.mrb[0].mxu0
      %495 = vmatprep.mubr.bf16.mxu0 0
      %496 = vmatmul.mubr.bf16.gmra.mrb[0].mxu0 %v362
      %v497 = vpop.f32.mrb[0].mxu0
      %v498 = vadd.f32 %v221, %v497
      %v499 = vpop.f32.mrb[0].mxu0
      %v500 = vpop.f32.mrb[0].mxu0
      %v501 = vadd.f32 %v221, %v500
      %v502 = vpop.f32.mrb[0].mxu0
      %503 = vmatprep.mubr.bf16.mxu0 0
      %504 = vmatmul.mubr.bf16.gmra.mrb[0].mxu0 %v365
      %v505 = vpop.f32.mrb[0].mxu0
      %v506 = vadd.f32 %v221, %v505
      %v507 = vpop.f32.mrb[0].mxu0
      %v508 = vpop.f32.mrb[0].mxu0
      %v509 = vadd.f32 %v221, %v508
      %v510 = vpop.f32.mrb[0].mxu0
      %511 = vmatprep.mubr.bf16.mxu0 0
      %512 = vmatmul.mubr.bf16.gmra.mrb[0].mxu0 %v368
      %v513 = vpop.f32.mrb[0].mxu0
      %v514 = vadd.f32 %v221, %v513
      %v515 = vpop.f32.mrb[0].mxu0
      %v516 = vpop.f32.mrb[0].mxu0
      %v517 = vadd.f32 %v221, %v516
      %v518 = vpop.f32.mrb[0].mxu0
      %519 = vmatprep.mubr.bf16.mxu0 0
      %520 = vmatmul.mubr.bf16.gmra.mrb[0].mxu0 %v371
      %v521 = vpop.f32.mrb[0].mxu0
      %v522 = vadd.f32 %v221, %v521
      %v523 = vpop.f32.mrb[0].mxu0
      %v524 = vpop.f32.mrb[0].mxu0
      %v525 = vadd.f32 %v221, %v524
      %v526 = vpop.f32.mrb[0].mxu0
      %527 = vmatprep.mubr.bf16.mxu0 0
      %528 = vmatmul.mubr.bf16.gmra.mrb[0].mxu0 %v374
      %v529 = vpop.f32.mrb[0].mxu0
      %v530 = vadd.f32 %v221, %v529
      %v531 = vpop.f32.mrb[0].mxu0
      %v532 = vpop.f32.mrb[0].mxu0
      %v533 = vadd.f32 %v221, %v532
      %v534 = vpop.f32.mrb[0].mxu0
      %535 = vmatprep.mubr.bf16.mxu0 0
      %536 = vmatmul.mubr.bf16.gmra.mrb[0].mxu0 %v377
      %v537 = vpop.f32.mrb[0].mxu0
      %v538 = vadd.f32 %v221, %v537
      %v539 = vpop.f32.mrb[0].mxu0
      %v540 = vpop.f32.mrb[0].mxu0
      %v541 = vadd.f32 %v221, %v540
      %v542 = vpop.f32.mrb[0].mxu0
      %543 = vdwg.mxu0
      %v544 = vmax.f32 %v418, 0.0
      %v545 = vmax.f32 %v421, 0.0
      %v546 = vmax.f32 %v426, 0.0
      %v547 = vmax.f32 %v429, 0.0
      %v548 = vmax.f32 %v434, 0.0
      %v549 = vmax.f32 %v437, 0.0
      %v550 = vmax.f32 %v442, 0.0
      %v551 = vmax.f32 %v445, 0.0
      %v552 = vmax.f32 %v450, 0.0
      %v553 = vmax.f32 %v453, 0.0
      %v554 = vmax.f32 %v458, 0.0
      %v555 = vmax.f32 %v461, 0.0
      %v556 = vmax.f32 %v466, 0.0
      %v557 = vmax.f32 %v469, 0.0
      %v558 = vmax.f32 %v474, 0.0
      %v559 = vmax.f32 %v477, 0.0
      %v560 = vmax.f32 %v482, 0.0
      %v561 = vmax.f32 %v485, 0.0
      %v562 = vmax.f32 %v490, 0.0
      %v563 = vmax.f32 %v493, 0.0
      %v564 = vmax.f32 %v498, 0.0
      %v565 = vmax.f32 %v501, 0.0
      %v566 = vmax.f32 %v506, 0.0
      %v567 = vmax.f32 %v509, 0.0
      %v568 = vmax.f32 %v514, 0.0
      %v569 = vmax.f32 %v517, 0.0
      %v570 = vmax.f32 %v522, 0.0
      %v571 = vmax.f32 %v525, 0.0
      %v572 = vmax.f32 %v530, 0.0
      %v573 = vmax.f32 %v533, 0.0
      %v574 = vmax.f32 %v538, 0.0
      %v575 = vmax.f32 %v541, 0.0
      %v576 = vpack.c.bf16 %v545, %v544
      %v577 = vpack.c.bf16 %v547, %v546
      %v578 = vpack.c.bf16 %v549, %v548
      %v579 = vpack.c.bf16 %v551, %v550
      %v580 = vpack.c.bf16 %v553, %v552
      %v581 = vpack.c.bf16 %v555, %v554
      %v582 = vpack.c.bf16 %v557, %v556
      %v583 = vpack.c.bf16 %v559, %v558
      %v584 = vpack.c.bf16 %v561, %v560
      %v585 = vpack.c.bf16 %v563, %v562
      %v586 = vpack.c.bf16 %v565, %v564
      %v587 = vpack.c.bf16 %v567, %v566
      %v588 = vpack.c.bf16 %v569, %v568
      %v589 = vpack.c.bf16 %v571, %v570
      %v590 = vpack.c.bf16 %v573, %v572
      %v591 = vpack.c.bf16 %v575, %v574
      %v608 = vunpack.c.l.b16 %v576
      %v609 = vunpack.c.h.b16 %v576
      %v610 = vunpack.c.l.b16 %v577
      %v611 = vunpack.c.h.b16 %v577
      %v612 = vunpack.c.l.b16 %v578
      %v613 = vunpack.c.h.b16 %v578
      %v614 = vunpack.c.l.b16 %v579
      %v615 = vunpack.c.h.b16 %v579
      %v616 = vunpack.c.l.b16 %v580
      %v617 = vunpack.c.h.b16 %v580
      %v618 = vunpack.c.l.b16 %v581
      %v619 = vunpack.c.h.b16 %v581
      %v620 = vunpack.c.l.b16 %v582
      %v621 = vunpack.c.h.b16 %v582
      %v622 = vunpack.c.l.b16 %v583
      %v623 = vunpack.c.h.b16 %v583
      %v624 = vunpack.c.l.b16 %v584
      %v625 = vunpack.c.h.b16 %v584
      %v626 = vunpack.c.l.b16 %v585
      %v627 = vunpack.c.h.b16 %v585
      %v628 = vunpack.c.l.b16 %v586
      %v629 = vunpack.c.h.b16 %v586
      %v630 = vunpack.c.l.b16 %v587
      %v631 = vunpack.c.h.b16 %v587
      %v632 = vunpack.c.l.b16 %v588
      %v633 = vunpack.c.h.b16 %v588
      %v634 = vunpack.c.l.b16 %v589
      %v635 = vunpack.c.h.b16 %v589
      %v636 = vunpack.c.l.b16 %v590
      %v637 = vunpack.c.h.b16 %v590
      %v638 = vunpack.c.l.b16 %v591
      %v639 = vunpack.c.h.b16 %v591
      %v640 = vpack.c.b16 %v608, %v608
      %v641 = vpack.c.b16 %v609, %v609
      %v642 = vpack.c.b16 %v610, %v610
      %v643 = vpack.c.b16 %v611, %v611
      %v644 = vpack.c.b16 %v612, %v612
      %v645 = vpack.c.b16 %v613, %v613
      %v646 = vpack.c.b16 %v614, %v614
      %v647 = vpack.c.b16 %v615, %v615
      %v648 = vpack.c.b16 %v616, %v616
      %v649 = vpack.c.b16 %v617, %v617
      %v650 = vpack.c.b16 %v618, %v618
      %v651 = vpack.c.b16 %v619, %v619
      %v652 = vpack.c.b16 %v620, %v620
      %v653 = vpack.c.b16 %v621, %v621
      %v654 = vpack.c.b16 %v622, %v622
      %v655 = vpack.c.b16 %v623, %v623
      %v656 = vpack.c.b16 %v624, %v624
      %v657 = vpack.c.b16 %v625, %v625
      %v658 = vpack.c.b16 %v626, %v626
      %v659 = vpack.c.b16 %v627, %v627
      %v660 = vpack.c.b16 %v628, %v628
      %v661 = vpack.c.b16 %v629, %v629
      %v662 = vpack.c.b16 %v630, %v630
      %v663 = vpack.c.b16 %v631, %v631
      %v664 = vpack.c.b16 %v632, %v632
      %v665 = vpack.c.b16 %v633, %v633
      %v666 = vpack.c.b16 %v634, %v634
      %v667 = vpack.c.b16 %v635, %v635
      %v668 = vpack.c.b16 %v636, %v636
      %v669 = vpack.c.b16 %v637, %v637
      %v670 = vpack.c.b16 %v638, %v638
      %v671 = vpack.c.b16 %v639, %v639
      %vm704 = vcmask 60416
      %705 = vst.msk [vmem:[%s172] sm:$0xf] %vm704, %v640
      %706 = vst.msk [vmem:[%s172 + $0x4] sm:$0xf] %vm704, %v641
      %707 = vst.msk [vmem:[%s172 + $0x8] sm:$0xf] %vm704, %v642
      %708 = vst.msk [vmem:[%s172 + $0xc] sm:$0xf] %vm704, %v643
      %709 = vst.msk [vmem:[%s172 + $0x10] sm:$0xf] %vm704, %v644
      %710 = vst.msk [vmem:[%s172 + $0x14] sm:$0xf] %vm704, %v645
      %711 = vst.msk [vmem:[%s172 + $0x18] sm:$0xf] %vm704, %v646
      %712 = vst.msk [vmem:[%s172 + $0x1c] sm:$0xf] %vm704, %v647
      %713 = vst.msk [vmem:[%s172 + $0x20] sm:$0xf] %vm704, %v648
      %714 = vst.msk [vmem:[%s172 + $0x24] sm:$0xf] %vm704, %v649
      %715 = vst.msk [vmem:[%s172 + $0x28] sm:$0xf] %vm704, %v650
      %716 = vst.msk [vmem:[%s172 + $0x2c] sm:$0xf] %vm704, %v651
      %717 = vst.msk [vmem:[%s172 + $0x30] sm:$0xf] %vm704, %v652
      %718 = vst.msk [vmem:[%s172 + $0x34] sm:$0xf] %vm704, %v653
      %719 = vst.msk [vmem:[%s172 + $0x38] sm:$0xf] %vm704, %v654
      %720 = vst.msk [vmem:[%s172 + $0x3c] sm:$0xf] %vm704, %v655
      %721 = vst.msk [vmem:[%s172 + $0x40] sm:$0xf] %vm704, %v656
      %722 = vst.msk [vmem:[%s172 + $0x44] sm:$0xf] %vm704, %v657
      %723 = vst.msk [vmem:[%s172 + $0x48] sm:$0xf] %vm704, %v658
      %724 = vst.msk [vmem:[%s172 + $0x4c] sm:$0xf] %vm704, %v659
      %725 = vst.msk [vmem:[%s172 + $0x50] sm:$0xf] %vm704, %v660
      %726 = vst.msk [vmem:[%s172 + $0x54] sm:$0xf] %vm704, %v661
      %727 = vst.msk [vmem:[%s172 + $0x58] sm:$0xf] %vm704, %v662
      %728 = vst.msk [vmem:[%s172 + $0x5c] sm:$0xf] %vm704, %v663
      %729 = vst.msk [vmem:[%s172 + $0x60] sm:$0xf] %vm704, %v664
      %730 = vst.msk [vmem:[%s172 + $0x64] sm:$0xf] %vm704, %v665
      %731 = vst.msk [vmem:[%s172 + $0x68] sm:$0xf] %vm704, %v666
      %732 = vst.msk [vmem:[%s172 + $0x6c] sm:$0xf] %vm704, %v667
      %733 = vst.msk [vmem:[%s172 + $0x70] sm:$0xf] %vm704, %v668
      %734 = vst.msk [vmem:[%s172 + $0x74] sm:$0xf] %vm704, %v669
      %735 = vst.msk [vmem:[%s172 + $0x78] sm:$0xf] %vm704, %v670
      %736 = vst.msk [vmem:[%s172 + $0x7c] sm:$0xf] %vm704, %v671
      %s737 = smul.u32 32, %s14
      %p738 = scmp.lt.s32.totalorder %s737, 63
      %s739 = scalar_select %p738, %s737, 63
      %s740 = smul.addr %s739, 4
      %s741 = scalar_lea.vmem %s3, %s740
      // Predicated region
      $region33: #{avenet_forward.21} parent=31 // pred_check
        %p742 = pneg %p100
      $region34: #{avenet_forward.21} parent=31 // pred_check_branch
        %744 = sbr.rel (%p742) target = $region36
      $region35: #{avenet_forward.21} parent=31 // pred_region
        %s745 = smul.u32 32, %s14
      $region36: #{avenet_forward.21} parent=31 // pred_fallthru
        _
    $region32: #{avenet_forward.21} parent=5 // pred_fallthru
      _
    %p746 = scmp.le.s32.totalorder 2, %s9
    // Predicated region
    $region37: #{avenet_forward.21} parent=5 // pred_check
      %p747 = pneg %p746
    $region38: #{avenet_forward.21} parent=5 // pred_check_branch
      %749 = sbr.rel (%p747) target = $region40
    $region39: #{avenet_forward.21} parent=5 // pred_region
      %s750 = ssub.s32 %s9, 2
      // Predicated region
      $region41: #{avenet_forward.21} parent=39 // pred_check
        %p751 = pneg %p106
      $region42: #{avenet_forward.21} parent=39 // pred_check_branch
        %753 = sbr.rel (%p751) target = $region44
      $region43: #{avenet_forward.21} parent=39 // pred_region
        %s754 = smul.u32 32, %s15
        %p755 = scmp.lt.s32.totalorder %s754, 63
        %s756 = scalar_select %p755, %s754, 63
        %s757 = smul.addr %s756, 4
        %s758 = scalar_lea.vmem %s3, %s757
      $region44: #{avenet_forward.21} parent=39 // pred_fallthru
        _
    $region40: #{avenet_forward.21} parent=5 // pred_fallthru
      _
  $region6: #{avenet_forward.21} parent=0 // loop_footer
    %s13 = sadd.s32 1, %s9
  $region7: #{avenet_forward.21} parent=0 // loop_footer_branch
    %8 = sbr.rel target = $region3
  $region8: #{avenet_forward.21} parent=0 // loop_exit
    _

// kernel: avenet_forward.22
$region0: #{avenet_forward.22}
  #allocation0 [shape = 'u32[]', space=smem, size = 0x4, offset = 0x4, fixed_abs, tag = 'smem constant byte address 0x4 - core index']
  #allocation1 [shape = 'u32[144,128]{1,0:T(1,128)}', space=vmem, size = 0x12000, scoped, tag = 'internal scratch']
  %s0 = inlined_call_operand.vmem [shape: bf16[512,72], index: 0, kind: input, shape index: {}]
  %s1 = inlined_call_operand.vmem [shape: bf16[72,8], index: 1, kind: input, shape index: {}]
  %s2 = inlined_call_operand.vmem [shape: f32[1,8], index: 2, kind: input, shape index: {}]
  %s3 = inlined_call_operand.vmem [shape: bf16[512,8], index: 3, kind: input, shape index: {}]
  %s4 = inlined_call_operand.vmem [shape: bf16[512,8], index: 4, kind: output, shape index: {}]
  %s5 = sld [smem:[#allocation0]]
  $region49: #{avenet_forward.22} parent=0
    _
  %s7 = ssub.s32 1, %s5
  %s8 = scalar_select 0, %s7, %s5
  loop: start=0, step=1, limit=4
  $region2: #{avenet_forward.22} parent=0 // loop_pre_header
    _
  $region3: #{avenet_forward.22} parent=0 // loop_header
    %s10 = sphi 0, %s14
    %p11 = scmp.ge.s32.totalorder %s10, 4
    %s20 = sphi 0, %s22
    %s23 = sphi 0, %s20
    %s24 = sphi 0, %s23
    %s40 = sphi 0, %s24
    %s44 = sphi 0, %s44
    %s46 = sphi 0, %s44
    %s47 = sphi 0, %s46
    %s61 = sphi 0, %s47
    %s65 = sphi 0, %s65
    %s67 = sphi 0, %s65
    %s68 = sphi 0, %s67
    %s82 = sphi 0, %s68
    %s88 = sphi 0, %s90
    %s91 = sphi 0, %s88
    %s92 = sphi 0, %s91
    %s108 = sphi 0, %s92
    %s114 = sphi 0, %s116
    %s117 = sphi 0, %s114
    %s118 = sphi 0, %s117
    %s134 = sphi 0, %s118
  $region4: #{avenet_forward.22} parent=0 // loop_header_branch
    %13 = sbr.rel (%p11) target = $region8
  $region5: #{avenet_forward.22} parent=0 // loop_body
    %s15 = ssub.s32 %s10, 1
    %s16 = ssub.s32 %s10, 2
    %s17 = sadd.s32 %s10, 1
    %s18 = ssub.s32 %s10, %s17
    %p19 = scmp.eq.s32.totalorder %s18, 0
    %s21 = sadd.s32 %s20, 1
    %s22 = scalar_select %p19, %s20, %s21
    %p25 = pneg %p19
    %p26 = scmp.eq.s32.totalorder %s10, 1
    %p27 = por %p25, %p26
    %p28 = scmp.ne.s32.totalorder %s20, %s23
    %p29 = scmp.eq.s32.totalorder %s10, 0
    %p30 = por %p28, %p29
    %p31 = scmp.ne.s32.totalorder %s20, %s23
    %p32 = scmp.eq.s32.totalorder %s15, 1
    %p33 = por %p31, %p32
    %p34 = scmp.ne.s32.totalorder %s23, %s24
    %p35 = scmp.eq.s32.totalorder %s15, 0
    %p36 = por %p34, %p35
    %p37 = scmp.ne.s32.totalorder %s23, %s24
    %p38 = scmp.eq.s32.totalorder %s16, 1
    %p39 = por %p37, %p38
    %p41 = scmp.ne.s32.totalorder %s24, %s40
    %p42 = scmp.eq.s32.totalorder %s16, 0
    %p43 = por %p41, %p42
    %s45 = sadd.s32 %s44, 1
    %p48 = scmp.eq.s32.totalorder %s10, 1
    %p49 = scmp.ne.s32.totalorder %s44, %s46
    %p50 = scmp.eq.s32.totalorder %s10, 0
    %p51 = por %p49, %p50
    %p52 = scmp.ne.s32.totalorder %s44, %s46
    %p53 = scmp.eq.s32.totalorder %s15, 1
    %p54 = por %p52, %p53
    %p55 = scmp.ne.s32.totalorder %s46, %s47
    %p56 = scmp.eq.s32.totalorder %s15, 0
    %p57 = por %p55, %p56
    %p58 = scmp.ne.s32.totalorder %s46, %s47
    %p59 = scmp.eq.s32.totalorder %s16, 1
    %p60 = por %p58, %p59
    %p62 = scmp.ne.s32.totalorder %s47, %s61
    %p63 = scmp.eq.s32.totalorder %s16, 0
    %p64 = por %p62, %p63
    %s66 = sadd.s32 %s65, 1
    %p69 = scmp.eq.s32.totalorder %s10, 1
    %p70 = scmp.ne.s32.totalorder %s65, %s67
    %p71 = scmp.eq.s32.totalorder %s10, 0
    %p72 = por %p70, %p71
    %p73 = scmp.ne.s32.totalorder %s65, %s67
    %p74 = scmp.eq.s32.totalorder %s15, 1
    %p75 = por %p73, %p74
    %p76 = scmp.ne.s32.totalorder %s67, %s68
    %p77 = scmp.eq.s32.totalorder %s15, 0
    %p78 = por %p76, %p77
    %p79 = scmp.ne.s32.totalorder %s67, %s68
    %p80 = scmp.eq.s32.totalorder %s16, 1
    %p81 = por %p79, %p80
    %p83 = scmp.ne.s32.totalorder %s68, %s82
    %p84 = scmp.eq.s32.totalorder %s16, 0
    %p85 = por %p83, %p84
    %s86 = ssub.s32 %s10, %s17
    %p87 = scmp.eq.s32.totalorder %s86, 0
    %s89 = sadd.s32 %s88, 1
    %s90 = scalar_select %p87, %s88, %s89
    %p93 = pneg %p87
    %p94 = scmp.eq.s32.totalorder %s10, 1
    %p95 = por %p93, %p94
    %p96 = scmp.ne.s32.totalorder %s88, %s91
    %p97 = scmp.eq.s32.totalorder %s10, 0
    %p98 = por %p96, %p97
    %p99 = scmp.ne.s32.totalorder %s88, %s91
    %p100 = scmp.eq.s32.totalorder %s15, 1
    %p101 = por %p99, %p100
    %p102 = scmp.ne.s32.totalorder %s91, %s92
    %p103 = scmp.eq.s32.totalorder %s15, 0
    %p104 = por %p102, %p103
    %p105 = scmp.ne.s32.totalorder %s91, %s92
    %p106 = scmp.eq.s32.totalorder %s16, 1
    %p107 = por %p105, %p106
    %p109 = scmp.ne.s32.totalorder %s92, %s108
    %p110 = scmp.eq.s32.totalorder %s16, 0
    %p111 = por %p109, %p110
    %s112 = ssub.s32 %s10, %s17
    %p113 = scmp.eq.s32.totalorder %s112, 0
    %s115 = sadd.s32 %s114, 1
    %s116 = scalar_select %p113, %s114, %s115
    %p119 = pneg %p113
    %p120 = scmp.eq.s32.totalorder %s10, 1
    %p121 = por %p119, %p120
    %p122 = scmp.ne.s32.totalorder %s114, %s117
    %p123 = scmp.eq.s32.totalorder %s10, 0
    %p124 = por %p122, %p123
    %p125 = scmp.ne.s32.totalorder %s114, %s117
    %p126 = scmp.eq.s32.totalorder %s15, 1
    %p127 = por %p125, %p126
    %p128 = scmp.ne.s32.totalorder %s117, %s118
    %p129 = scmp.eq.s32.totalorder %s15, 0
    %p130 = por %p128, %p129
    %p131 = scmp.ne.s32.totalorder %s117, %s118
    %p132 = scmp.eq.s32.totalorder %s16, 1
    %p133 = por %p131, %p132
    %p135 = scmp.ne.s32.totalorder %s118, %s134
    %p136 = scmp.eq.s32.totalorder %s16, 0
    %p137 = por %p135, %p136
    %p138 = scmp.le.s32.totalorder 1, %s10
    %p139 = scmp.lt.s32.totalorder %s10, 3
    %p140 = pnand %p138, %p139
    %p141 = pneg %p140
    // Predicated region
    $region9: #{avenet_forward.22} parent=5 // pred_check
      _
    $region10: #{avenet_forward.22} parent=5 // pred_check_branch
      %143 = sbr.rel (%p140) target = $region12
    $region11: #{avenet_forward.22} parent=5 // pred_region
      %s144 = ssub.s32 %s10, 1
      // Predicated region
      $region13: #{avenet_forward.22} parent=11 // pred_check
        %p145 = pneg %p57
      $region14: #{avenet_forward.22} parent=11 // pred_check_branch
        %147 = sbr.rel (%p145) target = $region16
      $region15: #{avenet_forward.22} parent=11 // pred_region
        _
      $region16: #{avenet_forward.22} parent=11 // pred_fallthru
        _
      // Predicated region
      $region17: #{avenet_forward.22} parent=11 // pred_check
        %p148 = pneg %p78
      $region18: #{avenet_forward.22} parent=11 // pred_check_branch
        %150 = sbr.rel (%p148) target = $region20
      $region19: #{avenet_forward.22} parent=11 // pred_region
        _
      $region20: #{avenet_forward.22} parent=11 // pred_fallthru
        _
    $region12: #{avenet_forward.22} parent=5 // pred_fallthru
      _
    %p151 = scmp.lt.s32.totalorder %s10, 2
    // Predicated region
    $region21: #{avenet_forward.22} parent=5 // pred_check
      %p152 = pneg %p151
    $region22: #{avenet_forward.22} parent=5 // pred_check_branch
      %154 = sbr.rel (%p152) target = $region24
    $region23: #{avenet_forward.22} parent=5 // pred_region
      // Predicated region
      $region25: #{avenet_forward.22} parent=23 // pred_check
        %p155 = pneg %p30
      $region26: #{avenet_forward.22} parent=23 // pred_check_branch
        %157 = sbr.rel (%p155) target = $region28
      $region27: #{avenet_forward.22} parent=23 // pred_region
        %s158 = smul.u32 32, %s10
        %p159 = scmp.lt.s32.totalorder %s158, 63
        %s160 = scalar_select %p159, %s158, 63
        %s161 = smul.addr %s160, 4
        %s162 = scalar_lea.vmem %s0, %s161
        %s163 = smul.u32 32, %s10
      $region28: #{avenet_forward.22} parent=23 // pred_fallthru
        _
      // Predicated region
      $region29: #{avenet_forward.22} parent=23 // pred_check
        %p164 = pneg %p98
      $region30: #{avenet_forward.22} parent=23 // pred_check_branch
        %166 = sbr.rel (%p164) target = $region32
      $region31: #{avenet_forward.22} parent=23 // pred_region
        %s167 = smul.u32 32, %s10
        %p168 = scmp.lt.s32.totalorder %s167, 63
        %s169 = scalar_select %p168, %s167, 63
        %s170 = smul.addr %s169, 4
        %s171 = scalar_lea.vmem %s3, %s170
        %s172 = smul.u32 32, %s10
      $region32: #{avenet_forward.22} parent=23 // pred_fallthru
        _
    $region24: #{avenet_forward.22} parent=5 // pred_fallthru
      _
    %p173 = scmp.le.s32.totalorder 1, %s10
    %p174 = scmp.lt.s32.totalorder %s10, 3
    %p175 = pnand %p173, %p174
    %p176 = pneg %p175
    // Predicated region
    $region33: #{avenet_forward.22} parent=5 // pred_check
      _
    $region34: #{avenet_forward.22} parent=5 // pred_check_branch
      %178 = sbr.rel (%p175) target = $region36
    $region35: #{avenet_forward.22} parent=5 // pred_region
      %s179 = ssub.s32 %s10, 1
      %s180 = smul.u32 32, %s15
      %p181 = scmp.lt.s32.totalorder %s180, 63
      %s182 = scalar_select %p181, %s180, 63
      %s183 = smul.addr %s182, 4
      %s184 = scalar_lea.vmem %s0, %s183
      %p185 = pneg %p36
      %p186 = pneg %p33
      %p187 = pneg %p57
      %p188 = pneg %p54
      %p189 = pneg %p78
      %p190 = pneg %p75
      %s191 = smul.u32 32, %s15
      %p192 = scmp.lt.s32.totalorder %s191, 63
      %s193 = scalar_select %p192, %s191, 63
      %s194 = smul.addr %s193, 4
      %s195 = scalar_lea.vmem %s3, %s194
      %p196 = pneg %p104
      %p197 = pneg %p101
      %p198 = pneg %p130
      %p199 = pneg %p127
      %s200 = smul.u32 32, %s15
      %p201 = scmp.lt.s32.totalorder %s200, 63
      %s202 = scalar_select %p201, %s200, 63
      %s203 = smul.addr %s202, 4
      %s204 = scalar_lea.vmem %s4, %s203
      %s205 = smul.u32 32, %s15
      %p206 = scmp.lt.s32.totalorder %s205, 63
      %s207 = scalar_select %p206, %s205, 63
      %s208 = smul.addr %s207, 4
      %s209 = scalar_lea.vmem %s0, %s208
      %s210 = smul.u32 32, %s15
      %s211 = smul.u32 32, %s15
      %p212 = scmp.lt.s32.totalorder %s211, 63
      %s213 = scalar_select %p212, %s211, 63
      %s214 = smul.addr %s213, 4
      %s215 = scalar_lea.vmem %s3, %s214
      %s216 = smul.u32 32, %s15
      %s217 = smul.u32 32, %s15
      %p218 = scmp.lt.s32.totalorder %s217, 63
      %s219 = scalar_select %p218, %s217, 63
      %s220 = smul.addr %s219, 4
      %s221 = scalar_lea.vmem %s4, %s220
      %s222 = smul.u32 32, %s15
      %v224 = vld [vmem:[%s209] sm:$0xf]
      %v225 = vld [vmem:[%s209 + $0x4] sm:$0xf]
      %v226 = vld [vmem:[%s209 + $0x8] sm:$0xf]
      %v227 = vld [vmem:[%s209 + $0xc] sm:$0xf]
      %v228 = vld [vmem:[%s209 + $0x10] sm:$0xf]
      %v229 = vld [vmem:[%s209 + $0x14] sm:$0xf]
      %v230 = vld [vmem:[%s209 + $0x18] sm:$0xf]
      %v231 = vld [vmem:[%s209 + $0x1c] sm:$0xf]
      %v232 = vld [vmem:[%s209 + $0x20] sm:$0xf]
      %v233 = vld [vmem:[%s209 + $0x24] sm:$0xf]
      %v234 = vld [vmem:[%s209 + $0x28] sm:$0xf]
      %v235 = vld [vmem:[%s209 + $0x2c] sm:$0xf]
      %v236 = vld [vmem:[%s209 + $0x30] sm:$0xf]
      %v237 = vld [vmem:[%s209 + $0x34] sm:$0xf]
      %v238 = vld [vmem:[%s209 + $0x38] sm:$0xf]
      %v239 = vld [vmem:[%s209 + $0x3c] sm:$0xf]
      %v240 = vld [vmem:[%s209 + $0x40] sm:$0xf]
      %v241 = vld [vmem:[%s209 + $0x44] sm:$0xf]
      %v242 = vld [vmem:[%s209 + $0x48] sm:$0xf]
      %v243 = vld [vmem:[%s209 + $0x4c] sm:$0xf]
      %v244 = vld [vmem:[%s209 + $0x50] sm:$0xf]
      %v245 = vld [vmem:[%s209 + $0x54] sm:$0xf]
      %v246 = vld [vmem:[%s209 + $0x58] sm:$0xf]
      %v247 = vld [vmem:[%s209 + $0x5c] sm:$0xf]
      %v248 = vld [vmem:[%s209 + $0x60] sm:$0xf]
      %v249 = vld [vmem:[%s209 + $0x64] sm:$0xf]
      %v250 = vld [vmem:[%s209 + $0x68] sm:$0xf]
      %v251 = vld [vmem:[%s209 + $0x6c] sm:$0xf]
      %v252 = vld [vmem:[%s209 + $0x70] sm:$0xf]
      %v253 = vld [vmem:[%s209 + $0x74] sm:$0xf]
      %v254 = vld [vmem:[%s209 + $0x78] sm:$0xf]
      %v255 = vld [vmem:[%s209 + $0x7c] sm:$0xf]
      %v256 = vld [vmem:[%s1] sm:$0xf]
      %v257 = vld [vmem:[%s1 + $0x4] sm:$0xf]
      %v258 = vld [vmem:[%s1 + $0x8] sm:$0xf]
      %v259 = vld [vmem:[%s1 + $0xc] sm:$0xf]
      %v260 = vld [vmem:[%s1 + $0x10] sm:$0xf]
      %v261 = vld [vmem:[%s1 + $0x14] sm:$0xf]
      %v262 = vld [vmem:[%s1 + $0x18] sm:$0xf]
      %v263 = vld [vmem:[%s1 + $0x1c] sm:$0xf]
      %v264 = vld [vmem:[%s1 + $0x20] sm:$0xf]
      %v265 = vld [vmem:[%s2] sm:$0x1]
      %v267 = vlaneseq
      %v268 = vshrl.u32 %v267, 7
      %v269 = vsub.s32 0, %v268
      %v270 = vrot.slane %v265, %v269
      %v304 = vunpack.c.l.b16 %v224
      %v305 = vunpack.c.l.b16 %v225
      %v306 = vunpack.c.l.b16 %v226
      %v307 = vunpack.c.l.b16 %v227
      %v308 = vunpack.c.l.b16 %v228
      %v309 = vunpack.c.l.b16 %v229
      %v310 = vunpack.c.l.b16 %v230
      %v311 = vunpack.c.l.b16 %v231
      %v312 = vunpack.c.l.b16 %v232
      %v313 = vunpack.c.l.b16 %v233
      %v314 = vunpack.c.l.b16 %v234
      %v315 = vunpack.c.l.b16 %v235
      %v316 = vunpack.c.l.b16 %v236
      %v317 = vunpack.c.l.b16 %v237
      %v318 = vunpack.c.l.b16 %v238
      %v319 = vunpack.c.l.b16 %v239
      %v320 = vunpack.c.l.b16 %v240
      %v321 = vunpack.c.l.b16 %v241
      %v322 = vunpack.c.l.b16 %v242
      %v323 = vunpack.c.l.b16 %v243
      %v324 = vunpack.c.l.b16 %v244
      %v325 = vunpack.c.l.b16 %v245
      %v326 = vunpack.c.l.b16 %v246
      %v327 = vunpack.c.l.b16 %v247
      %v328 = vunpack.c.l.b16 %v248
      %v329 = vunpack.c.l.b16 %v249
      %v330 = vunpack.c.l.b16 %v250
      %v331 = vunpack.c.l.b16 %v251
      %v332 = vunpack.c.l.b16 %v252
      %v333 = vunpack.c.l.b16 %v253
      %v334 = vunpack.c.l.b16 %v254
      %v335 = vunpack.c.l.b16 %v255
      %v336 = vpack.c.b16 %v305, %v304
      %v337 = vpack.c.b16 %v307, %v306
      %v338 = vpack.c.b16 %v309, %v308
      %v339 = vpack.c.b16 %v311, %v310
      %v340 = vpack.c.b16 %v313, %v312
      %v341 = vpack.c.b16 %v315, %v314
      %v342 = vpack.c.b16 %v317, %v316
      %v343 = vpack.c.b16 %v319, %v318
      %v344 = vpack.c.b16 %v321, %v320
      %v345 = vpack.c.b16 %v323, %v322
      %v346 = vpack.c.b16 %v325, %v324
      %v347 = vpack.c.b16 %v327, %v326
      %v348 = vpack.c.b16 %v329, %v328
      %v349 = vpack.c.b16 %v331, %v330
      %v350 = vpack.c.b16 %v333, %v332
      %v351 = vpack.c.b16 %v335, %v334
      %v361 = vunpack.c.l.b16 %v256
      %v362 = vunpack.c.l.b16 %v257
      %v363 = vunpack.c.l.b16 %v258
      %v364 = vunpack.c.l.b16 %v259
      %v365 = vunpack.c.l.b16 %v260
      %v366 = vunpack.c.l.b16 %v261
      %v367 = vunpack.c.l.b16 %v262
      %v368 = vunpack.c.l.b16 %v263
      %v369 = vunpack.c.l.b16 %v264
      %v370 = vpack.c.b16 %v362, %v361
      %v371 = vpack.c.b16 %v364, %v363
      %v372 = vpack.c.b16 %v366, %v365
      %v373 = vpack.c.b16 %v368, %v367
      %v374 = vpack.c.b16 %v369, %v369
      %vm379 = vcmask 588800
      %v381 = vsel %vm379, %v336, 0
      %v384 = vsel %vm379, %v337, 0
      %v387 = vsel %vm379, %v338, 0
      %v390 = vsel %vm379, %v339, 0
      %v393 = vsel %vm379, %v340, 0
      %v396 = vsel %vm379, %v341, 0
      %v399 = vsel %vm379, %v342, 0
      %v402 = vsel %vm379, %v343, 0
      %v405 = vsel %vm379, %v344, 0
      %v408 = vsel %vm379, %v345, 0
      %v411 = vsel %vm379, %v346, 0
      %v414 = vsel %vm379, %v347, 0
      %v417 = vsel %vm379, %v348, 0
      %v420 = vsel %vm379, %v349, 0
      %v423 = vsel %vm379, %v350, 0
      %v426 = vsel %vm379, %v351, 0
      %vm428 = vcmask 1043456
      %v430 = vsel %vm428, %v374, 0
      %432 = vmatprep.subr.bf16.mxu0 0
      %433 = vmatpush1.bf16.msra.mxu0 %v370
      %434 = vmatprep.subr.bf16.mxu0 0
      %435 = vmatpush1.bf16.msra.mxu0 %v371
      %436 = vmatprep.subr.bf16.mxu0 0
      %437 = vmatpush1.bf16.msra.mxu0 %v372
      %438 = vmatprep.subr.bf16.mxu0 0
      %439 = vmatpush1.bf16.msra.mxu0 %v373
      %440 = vmatprep.subr.bf16.mxu0 0
      %441 = vmatpush1.bf16.msra.mxu0 %v430
      %442 = vmatprep.subr.bf16.mxu0 0
      %443 = vmatpush1.bf16.msra.mxu0 0
      %444 = vmatprep.subr.bf16.mxu0 0
      %445 = vmatpush1.bf16.msra.mxu0 0
      %446 = vmatprep.subr.bf16.mxu0 0
      %447 = vmatpush1.bf16.msra.mxu0 0
      %448 = vmatprep.subr.bf16.mxu0 0
      %449 = vmatpush1.bf16.msra.mxu0 0
      %450 = vmatprep.subr.bf16.mxu0 0
      %451 = vmatpush1.bf16.msra.mxu0 0
      %452 = vmatprep.subr.bf16.mxu0 0
      %453 = vmatpush1.bf16.msra.mxu0 0
      %454 = vmatprep.subr.bf16.mxu0 0
      %455 = vmatpush1.bf16.msra.mxu0 0
      %456 = vmatprep.subr.bf16.mxu0 0
      %457 = vmatpush1.bf16.msra.mxu0 0
      %458 = vmatprep.subr.bf16.mxu0 0
      %459 = vmatpush1.bf16.msra.mxu0 0
      %460 = vmatprep.subr.bf16.mxu0 0
      %461 = vmatpush1.bf16.msra.mxu0 0
      %462 = vmatprep.subr.bf16.mxu0 0
      %463 = vmatpush1.bf16.msra.mxu0 0
      %464 = vmatprep.mubr.bf16.mxu0 0
      %465 = vmatmul.mubr.bf16.gmra.mrb[0].mxu0 %v381
      %v466 = vpop.f32.mrb[0].mxu0
      %v467 = vadd.f32 %v270, %v466
      %v468 = vpop.f32.mrb[0].mxu0
      %v469 = vpop.f32.mrb[0].mxu0
      %v470 = vadd.f32 %v270, %v469
      %v471 = vpop.f32.mrb[0].mxu0
      %472 = vmatprep.mubr.bf16.mxu0 0
      %473 = vmatmul.mubr.bf16.gmra.mrb[0].mxu0 %v384
      %v474 = vpop.f32.mrb[0].mxu0
      %v475 = vadd.f32 %v270, %v474
      %v476 = vpop.f32.mrb[0].mxu0
      %v477 = vpop.f32.mrb[0].mxu0
      %v478 = vadd.f32 %v270, %v477
      %v479 = vpop.f32.mrb[0].mxu0
      %480 = vmatprep.mubr.bf16.mxu0 0
      %481 = vmatmul.mubr.bf16.gmra.mrb[0].mxu0 %v387
      %v482 = vpop.f32.mrb[0].mxu0
      %v483 = vadd.f32 %v270, %v482
      %v484 = vpop.f32.mrb[0].mxu0
      %v485 = vpop.f32.mrb[0].mxu0
      %v486 = vadd.f32 %v270, %v485
      %v487 = vpop.f32.mrb[0].mxu0
      %488 = vmatprep.mubr.bf16.mxu0 0
      %489 = vmatmul.mubr.bf16.gmra.mrb[0].mxu0 %v390
      %v490 = vpop.f32.mrb[0].mxu0
      %v491 = vadd.f32 %v270, %v490
      %v492 = vpop.f32.mrb[0].mxu0
      %v493 = vpop.f32.mrb[0].mxu0
      %v494 = vadd.f32 %v270, %v493
      %v495 = vpop.f32.mrb[0].mxu0
      %496 = vmatprep.mubr.bf16.mxu0 0
      %497 = vmatmul.mubr.bf16.gmra.mrb[0].mxu0 %v393
      %v498 = vpop.f32.mrb[0].mxu0
      %v499 = vadd.f32 %v270, %v498
      %v500 = vpop.f32.mrb[0].mxu0
      %v501 = vpop.f32.mrb[0].mxu0
      %v502 = vadd.f32 %v270, %v501
      %v503 = vpop.f32.mrb[0].mxu0
      %504 = vmatprep.mubr.bf16.mxu0 0
      %505 = vmatmul.mubr.bf16.gmra.mrb[0].mxu0 %v396
      %v506 = vpop.f32.mrb[0].mxu0
      %v507 = vadd.f32 %v270, %v506
      %v508 = vpop.f32.mrb[0].mxu0
      %v509 = vpop.f32.mrb[0].mxu0
      %v510 = vadd.f32 %v270, %v509
      %v511 = vpop.f32.mrb[0].mxu0
      %512 = vmatprep.mubr.bf16.mxu0 0
      %513 = vmatmul.mubr.bf16.gmra.mrb[0].mxu0 %v399
      %v514 = vpop.f32.mrb[0].mxu0
      %v515 = vadd.f32 %v270, %v514
      %v516 = vpop.f32.mrb[0].mxu0
      %v517 = vpop.f32.mrb[0].mxu0
      %v518 = vadd.f32 %v270, %v517
      %v519 = vpop.f32.mrb[0].mxu0
      %520 = vmatprep.mubr.bf16.mxu0 0
      %521 = vmatmul.mubr.bf16.gmra.mrb[0].mxu0 %v402
      %v522 = vpop.f32.mrb[0].mxu0
      %v523 = vadd.f32 %v270, %v522
      %v524 = vpop.f32.mrb[0].mxu0
      %v525 = vpop.f32.mrb[0].mxu0
      %v526 = vadd.f32 %v270, %v525
      %v527 = vpop.f32.mrb[0].mxu0
      %528 = vmatprep.mubr.bf16.mxu0 0
      %529 = vmatmul.mubr.bf16.gmra.mrb[0].mxu0 %v405
      %v530 = vpop.f32.mrb[0].mxu0
      %v531 = vadd.f32 %v270, %v530
      %v532 = vpop.f32.mrb[0].mxu0
      %v533 = vpop.f32.mrb[0].mxu0
      %v534 = vadd.f32 %v270, %v533
      %v535 = vpop.f32.mrb[0].mxu0
      %536 = vmatprep.mubr.bf16.mxu0 0
      %537 = vmatmul.mubr.bf16.gmra.mrb[0].mxu0 %v408
      %v538 = vpop.f32.mrb[0].mxu0
      %v539 = vadd.f32 %v270, %v538
      %v540 = vpop.f32.mrb[0].mxu0
      %v541 = vpop.f32.mrb[0].mxu0
      %v542 = vadd.f32 %v270, %v541
      %v543 = vpop.f32.mrb[0].mxu0
      %544 = vmatprep.mubr.bf16.mxu0 0
      %545 = vmatmul.mubr.bf16.gmra.mrb[0].mxu0 %v411
      %v546 = vpop.f32.mrb[0].mxu0
      %v547 = vadd.f32 %v270, %v546
      %v548 = vpop.f32.mrb[0].mxu0
      %v549 = vpop.f32.mrb[0].mxu0
      %v550 = vadd.f32 %v270, %v549
      %v551 = vpop.f32.mrb[0].mxu0
      %552 = vmatprep.mubr.bf16.mxu0 0
      %553 = vmatmul.mubr.bf16.gmra.mrb[0].mxu0 %v414
      %v554 = vpop.f32.mrb[0].mxu0
      %v555 = vadd.f32 %v270, %v554
      %v556 = vpop.f32.mrb[0].mxu0
      %v557 = vpop.f32.mrb[0].mxu0
      %v558 = vadd.f32 %v270, %v557
      %v559 = vpop.f32.mrb[0].mxu0
      %560 = vmatprep.mubr.bf16.mxu0 0
      %561 = vmatmul.mubr.bf16.gmra.mrb[0].mxu0 %v417
      %v562 = vpop.f32.mrb[0].mxu0
      %v563 = vadd.f32 %v270, %v562
      %v564 = vpop.f32.mrb[0].mxu0
      %v565 = vpop.f32.mrb[0].mxu0
      %v566 = vadd.f32 %v270, %v565
      %v567 = vpop.f32.mrb[0].mxu0
      %568 = vmatprep.mubr.bf16.mxu0 0
      %569 = vmatmul.mubr.bf16.gmra.mrb[0].mxu0 %v420
      %v570 = vpop.f32.mrb[0].mxu0
      %v571 = vadd.f32 %v270, %v570
      %v572 = vpop.f32.mrb[0].mxu0
      %v573 = vpop.f32.mrb[0].mxu0
      %v574 = vadd.f32 %v270, %v573
      %v575 = vpop.f32.mrb[0].mxu0
      %576 = vmatprep.mubr.bf16.mxu0 0
      %577 = vmatmul.mubr.bf16.gmra.mrb[0].mxu0 %v423
      %v578 = vpop.f32.mrb[0].mxu0
      %v579 = vadd.f32 %v270, %v578
      %v580 = vpop.f32.mrb[0].mxu0
      %v581 = vpop.f32.mrb[0].mxu0
      %v582 = vadd.f32 %v270, %v581
      %v583 = vpop.f32.mrb[0].mxu0
      %584 = vmatprep.mubr.bf16.mxu0 0
      %585 = vmatmul.mubr.bf16.gmra.mrb[0].mxu0 %v426
      %v586 = vpop.f32.mrb[0].mxu0
      %v587 = vadd.f32 %v270, %v586
      %v588 = vpop.f32.mrb[0].mxu0
      %v589 = vpop.f32.mrb[0].mxu0
      %v590 = vadd.f32 %v270, %v589
      %v591 = vpop.f32.mrb[0].mxu0
      %592 = vdwg.mxu0
      %v593 = vld [vmem:[%s215] sm:$0xf]
      %v594 = vld [vmem:[%s215 + $0x4] sm:$0xf]
      %v595 = vld [vmem:[%s215 + $0x8] sm:$0xf]
      %v596 = vld [vmem:[%s215 + $0xc] sm:$0xf]
      %v597 = vld [vmem:[%s215 + $0x10] sm:$0xf]
      %v598 = vld [vmem:[%s215 + $0x14] sm:$0xf]
      %v599 = vld [vmem:[%s215 + $0x18] sm:$0xf]
      %v600 = vld [vmem:[%s215 + $0x1c] sm:$0xf]
      %v601 = vld [vmem:[%s215 + $0x20] sm:$0xf]
      %v602 = vld [vmem:[%s215 + $0x24] sm:$0xf]
      %v603 = vld [vmem:[%s215 + $0x28] sm:$0xf]
      %v604 = vld [vmem:[%s215 + $0x2c] sm:$0xf]
      %v605 = vld [vmem:[%s215 + $0x30] sm:$0xf]
      %v606 = vld [vmem:[%s215 + $0x34] sm:$0xf]
      %v607 = vld [vmem:[%s215 + $0x38] sm:$0xf]
      %v608 = vld [vmem:[%s215 + $0x3c] sm:$0xf]
      %v609 = vld [vmem:[%s215 + $0x40] sm:$0xf]
      %v610 = vld [vmem:[%s215 + $0x44] sm:$0xf]
      %v611 = vld [vmem:[%s215 + $0x48] sm:$0xf]
      %v612 = vld [vmem:[%s215 + $0x4c] sm:$0xf]
      %v613 = vld [vmem:[%s215 + $0x50] sm:$0xf]
      %v614 = vld [vmem:[%s215 + $0x54] sm:$0xf]
      %v615 = vld [vmem:[%s215 + $0x58] sm:$0xf]
      %v616 = vld [vmem:[%s215 + $0x5c] sm:$0xf]
      %v617 = vld [vmem:[%s215 + $0x60] sm:$0xf]
      %v618 = vld [vmem:[%s215 + $0x64] sm:$0xf]
      %v619 = vld [vmem:[%s215 + $0x68] sm:$0xf]
      %v620 = vld [vmem:[%s215 + $0x6c] sm:$0xf]
      %v621 = vld [vmem:[%s215 + $0x70] sm:$0xf]
      %v622 = vld [vmem:[%s215 + $0x74] sm:$0xf]
      %v623 = vld [vmem:[%s215 + $0x78] sm:$0xf]
      %v624 = vld [vmem:[%s215 + $0x7c] sm:$0xf]
      %v625 = vunpack.c.l.bf16 %v593
      %v626 = vunpack.c.l.bf16 %v594
      %v627 = vunpack.c.l.bf16 %v595
      %v628 = vunpack.c.l.bf16 %v596
      %v629 = vunpack.c.l.bf16 %v597
      %v630 = vunpack.c.l.bf16 %v598
      %v631 = vunpack.c.l.bf16 %v599
      %v632 = vunpack.c.l.bf16 %v600
      %v633 = vunpack.c.l.bf16 %v601
      %v634 = vunpack.c.l.bf16 %v602
      %v635 = vunpack.c.l.bf16 %v603
      %v636 = vunpack.c.l.bf16 %v604
      %v637 = vunpack.c.l.bf16 %v605
      %v638 = vunpack.c.l.bf16 %v606
      %v639 = vunpack.c.l.bf16 %v607
      %v640 = vunpack.c.l.bf16 %v608
      %v641 = vunpack.c.l.bf16 %v609
      %v642 = vunpack.c.l.bf16 %v610
      %v643 = vunpack.c.l.bf16 %v611
      %v644 = vunpack.c.l.bf16 %v612
      %v645 = vunpack.c.l.bf16 %v613
      %v646 = vunpack.c.l.bf16 %v614
      %v647 = vunpack.c.l.bf16 %v615
      %v648 = vunpack.c.l.bf16 %v616
      %v649 = vunpack.c.l.bf16 %v617
      %v650 = vunpack.c.l.bf16 %v618
      %v651 = vunpack.c.l.bf16 %v619
      %v652 = vunpack.c.l.bf16 %v620
      %v653 = vunpack.c.l.bf16 %v621
      %v654 = vunpack.c.l.bf16 %v622
      %v655 = vunpack.c.l.bf16 %v623
      %v656 = vunpack.c.l.bf16 %v624
      %v657 = vadd.f32 %v467, %v625
      %v658 = vadd.f32 %v470, %v626
      %v659 = vadd.f32 %v475, %v627
      %v660 = vadd.f32 %v478, %v628
      %v661 = vadd.f32 %v483, %v629
      %v662 = vadd.f32 %v486, %v630
      %v663 = vadd.f32 %v491, %v631
      %v664 = vadd.f32 %v494, %v632
      %v665 = vadd.f32 %v499, %v633
      %v666 = vadd.f32 %v502, %v634
      %v667 = vadd.f32 %v507, %v635
      %v668 = vadd.f32 %v510, %v636
      %v669 = vadd.f32 %v515, %v637
      %v670 = vadd.f32 %v518, %v638
      %v671 = vadd.f32 %v523, %v639
      %v672 = vadd.f32 %v526, %v640
      %v673 = vadd.f32 %v531, %v641
      %v674 = vadd.f32 %v534, %v642
      %v675 = vadd.f32 %v539, %v643
      %v676 = vadd.f32 %v542, %v644
      %v677 = vadd.f32 %v547, %v645
      %v678 = vadd.f32 %v550, %v646
      %v679 = vadd.f32 %v555, %v647
      %v680 = vadd.f32 %v558, %v648
      %v681 = vadd.f32 %v563, %v649
      %v682 = vadd.f32 %v566, %v650
      %v683 = vadd.f32 %v571, %v651
      %v684 = vadd.f32 %v574, %v652
      %v685 = vadd.f32 %v579, %v653
      %v686 = vadd.f32 %v582, %v654
      %v687 = vadd.f32 %v587, %v655
      %v688 = vadd.f32 %v590, %v656
      %v689 = vmax.f32 %v657, 0.0
      %v690 = vmax.f32 %v658, 0.0
      %v691 = vmax.f32 %v659, 0.0
      %v692 = vmax.f32 %v660, 0.0
      %v693 = vmax.f32 %v661, 0.0
      %v694 = vmax.f32 %v662, 0.0
      %v695 = vmax.f32 %v663, 0.0
      %v696 = vmax.f32 %v664, 0.0
      %v697 = vmax.f32 %v665, 0.0
      %v698 = vmax.f32 %v666, 0.0
      %v699 = vmax.f32 %v667, 0.0
      %v700 = vmax.f32 %v668, 0.0
      %v701 = vmax.f32 %v669, 0.0
      %v702 = vmax.f32 %v670, 0.0
      %v703 = vmax.f32 %v671, 0.0
      %v704 = vmax.f32 %v672, 0.0
      %v705 = vmax.f32 %v673, 0.0
      %v706 = vmax.f32 %v674, 0.0
      %v707 = vmax.f32 %v675, 0.0
      %v708 = vmax.f32 %v676, 0.0
      %v709 = vmax.f32 %v677, 0.0
      %v710 = vmax.f32 %v678, 0.0
      %v711 = vmax.f32 %v679, 0.0
      %v712 = vmax.f32 %v680, 0.0
      %v713 = vmax.f32 %v681, 0.0
      %v714 = vmax.f32 %v682, 0.0
      %v715 = vmax.f32 %v683, 0.0
      %v716 = vmax.f32 %v684, 0.0
      %v717 = vmax.f32 %v685, 0.0
      %v718 = vmax.f32 %v686, 0.0
      %v719 = vmax.f32 %v687, 0.0
      %v720 = vmax.f32 %v688, 0.0
      %v721 = vpack.c.bf16 %v690, %v689
      %v722 = vpack.c.bf16 %v692, %v691
      %v723 = vpack.c.bf16 %v694, %v693
      %v724 = vpack.c.bf16 %v696, %v695
      %v725 = vpack.c.bf16 %v698, %v697
      %v726 = vpack.c.bf16 %v700, %v699
      %v727 = vpack.c.bf16 %v702, %v701
      %v728 = vpack.c.bf16 %v704, %v703
      %v729 = vpack.c.bf16 %v706, %v705
      %v730 = vpack.c.bf16 %v708, %v707
      %v731 = vpack.c.bf16 %v710, %v709
      %v732 = vpack.c.bf16 %v712, %v711
      %v733 = vpack.c.bf16 %v714, %v713
      %v734 = vpack.c.bf16 %v716, %v715
      %v735 = vpack.c.bf16 %v718, %v717
      %v736 = vpack.c.bf16 %v720, %v719
      %v753 = vunpack.c.l.b16 %v721
      %v754 = vunpack.c.h.b16 %v721
      %v755 = vunpack.c.l.b16 %v722
      %v756 = vunpack.c.h.b16 %v722
      %v757 = vunpack.c.l.b16 %v723
      %v758 = vunpack.c.h.b16 %v723
      %v759 = vunpack.c.l.b16 %v724
      %v760 = vunpack.c.h.b16 %v724
      %v761 = vunpack.c.l.b16 %v725
      %v762 = vunpack.c.h.b16 %v725
      %v763 = vunpack.c.l.b16 %v726
      %v764 = vunpack.c.h.b16 %v726
      %v765 = vunpack.c.l.b16 %v727
      %v766 = vunpack.c.h.b16 %v727
      %v767 = vunpack.c.l.b16 %v728
      %v768 = vunpack.c.h.b16 %v728
      %v769 = vunpack.c.l.b16 %v729
      %v770 = vunpack.c.h.b16 %v729
      %v771 = vunpack.c.l.b16 %v730
      %v772 = vunpack.c.h.b16 %v730
      %v773 = vunpack.c.l.b16 %v731
      %v774 = vunpack.c.h.b16 %v731
      %v775 = vunpack.c.l.b16 %v732
      %v776 = vunpack.c.h.b16 %v732
      %v777 = vunpack.c.l.b16 %v733
      %v778 = vunpack.c.h.b16 %v733
      %v779 = vunpack.c.l.b16 %v734
      %v780 = vunpack.c.h.b16 %v734
      %v781 = vunpack.c.l.b16 %v735
      %v782 = vunpack.c.h.b16 %v735
      %v783 = vunpack.c.l.b16 %v736
      %v784 = vunpack.c.h.b16 %v736
      %v785 = vpack.c.b16 %v753, %v753
      %v786 = vpack.c.b16 %v754, %v754
      %v787 = vpack.c.b16 %v755, %v755
      %v788 = vpack.c.b16 %v756, %v756
      %v789 = vpack.c.b16 %v757, %v757
      %v790 = vpack.c.b16 %v758, %v758
      %v791 = vpack.c.b16 %v759, %v759
      %v792 = vpack.c.b16 %v760, %v760
      %v793 = vpack.c.b16 %v761, %v761
      %v794 = vpack.c.b16 %v762, %v762
      %v795 = vpack.c.b16 %v763, %v763
      %v796 = vpack.c.b16 %v764, %v764
      %v797 = vpack.c.b16 %v765, %v765
      %v798 = vpack.c.b16 %v766, %v766
      %v799 = vpack.c.b16 %v767, %v767
      %v800 = vpack.c.b16 %v768, %v768
      %v801 = vpack.c.b16 %v769, %v769
      %v802 = vpack.c.b16 %v770, %v770
      %v803 = vpack.c.b16 %v771, %v771
      %v804 = vpack.c.b16 %v772, %v772
      %v805 = vpack.c.b16 %v773, %v773
      %v806 = vpack.c.b16 %v774, %v774
      %v807 = vpack.c.b16 %v775, %v775
      %v808 = vpack.c.b16 %v776, %v776
      %v809 = vpack.c.b16 %v777, %v777
      %v810 = vpack.c.b16 %v778, %v778
      %v811 = vpack.c.b16 %v779, %v779
      %v812 = vpack.c.b16 %v780, %v780
      %v813 = vpack.c.b16 %v781, %v781
      %v814 = vpack.c.b16 %v782, %v782
      %v815 = vpack.c.b16 %v783, %v783
      %v816 = vpack.c.b16 %v784, %v784
      %vm849 = vcmask 60416
      %850 = vst.msk [vmem:[%s221] sm:$0xf] %vm849, %v785
      %851 = vst.msk [vmem:[%s221 + $0x4] sm:$0xf] %vm849, %v786
      %852 = vst.msk [vmem:[%s221 + $0x8] sm:$0xf] %vm849, %v787
      %853 = vst.msk [vmem:[%s221 + $0xc] sm:$0xf] %vm849, %v788
      %854 = vst.msk [vmem:[%s221 + $0x10] sm:$0xf] %vm849, %v789
      %855 = vst.msk [vmem:[%s221 + $0x14] sm:$0xf] %vm849, %v790
      %856 = vst.msk [vmem:[%s221 + $0x18] sm:$0xf] %vm849, %v791
      %857 = vst.msk [vmem:[%s221 + $0x1c] sm:$0xf] %vm849, %v792
      %858 = vst.msk [vmem:[%s221 + $0x20] sm:$0xf] %vm849, %v793
      %859 = vst.msk [vmem:[%s221 + $0x24] sm:$0xf] %vm849, %v794
      %860 = vst.msk [vmem:[%s221 + $0x28] sm:$0xf] %vm849, %v795
      %861 = vst.msk [vmem:[%s221 + $0x2c] sm:$0xf] %vm849, %v796
      %862 = vst.msk [vmem:[%s221 + $0x30] sm:$0xf] %vm849, %v797
      %863 = vst.msk [vmem:[%s221 + $0x34] sm:$0xf] %vm849, %v798
      %864 = vst.msk [vmem:[%s221 + $0x38] sm:$0xf] %vm849, %v799
      %865 = vst.msk [vmem:[%s221 + $0x3c] sm:$0xf] %vm849, %v800
      %866 = vst.msk [vmem:[%s221 + $0x40] sm:$0xf] %vm849, %v801
      %867 = vst.msk [vmem:[%s221 + $0x44] sm:$0xf] %vm849, %v802
      %868 = vst.msk [vmem:[%s221 + $0x48] sm:$0xf] %vm849, %v803
      %869 = vst.msk [vmem:[%s221 + $0x4c] sm:$0xf] %vm849, %v804
      %870 = vst.msk [vmem:[%s221 + $0x50] sm:$0xf] %vm849, %v805
      %871 = vst.msk [vmem:[%s221 + $0x54] sm:$0xf] %vm849, %v806
      %872 = vst.msk [vmem:[%s221 + $0x58] sm:$0xf] %vm849, %v807
      %873 = vst.msk [vmem:[%s221 + $0x5c] sm:$0xf] %vm849, %v808
      %874 = vst.msk [vmem:[%s221 + $0x60] sm:$0xf] %vm849, %v809
      %875 = vst.msk [vmem:[%s221 + $0x64] sm:$0xf] %vm849, %v810
      %876 = vst.msk [vmem:[%s221 + $0x68] sm:$0xf] %vm849, %v811
      %877 = vst.msk [vmem:[%s221 + $0x6c] sm:$0xf] %vm849, %v812
      %878 = vst.msk [vmem:[%s221 + $0x70] sm:$0xf] %vm849, %v813
      %879 = vst.msk [vmem:[%s221 + $0x74] sm:$0xf] %vm849, %v814
      %880 = vst.msk [vmem:[%s221 + $0x78] sm:$0xf] %vm849, %v815
      %881 = vst.msk [vmem:[%s221 + $0x7c] sm:$0xf] %vm849, %v816
      %s882 = smul.u32 32, %s15
      %p883 = scmp.lt.s32.totalorder %s882, 63
      %s884 = scalar_select %p883, %s882, 63
      %s885 = smul.addr %s884, 4
      %s886 = scalar_lea.vmem %s4, %s885
      // Predicated region
      $region37: #{avenet_forward.22} parent=35 // pred_check
        %p887 = pneg %p127
      $region38: #{avenet_forward.22} parent=35 // pred_check_branch
        %889 = sbr.rel (%p887) target = $region40
      $region39: #{avenet_forward.22} parent=35 // pred_region
        %s890 = smul.u32 32, %s15
      $region40: #{avenet_forward.22} parent=35 // pred_fallthru
        _
    $region36: #{avenet_forward.22} parent=5 // pred_fallthru
      _
    %p891 = scmp.le.s32.totalorder 2, %s10
    // Predicated region
    $region41: #{avenet_forward.22} parent=5 // pred_check
      %p892 = pneg %p891
    $region42: #{avenet_forward.22} parent=5 // pred_check_branch
      %894 = sbr.rel (%p892) target = $region44
    $region43: #{avenet_forward.22} parent=5 // pred_region
      %s895 = ssub.s32 %s10, 2
      // Predicated region
      $region45: #{avenet_forward.22} parent=43 // pred_check
        %p896 = pneg %p133
      $region46: #{avenet_forward.22} parent=43 // pred_check_branch
        %898 = sbr.rel (%p896) target = $region48
      $region47: #{avenet_forward.22} parent=43 // pred_region
        %s899 = smul.u32 32, %s16
        %p900 = scmp.lt.s32.totalorder %s899, 63
        %s901 = scalar_select %p900, %s899, 63
        %s902 = smul.addr %s901, 4
        %s903 = scalar_lea.vmem %s4, %s902
      $region48: #{avenet_forward.22} parent=43 // pred_fallthru
        _
    $region44: #{avenet_forward.22} parent=5 // pred_fallthru
      _
  $region6: #{avenet_forward.22} parent=0 // loop_footer
    %s14 = sadd.s32 1, %s10
  $region7: #{avenet_forward.22} parent=0 // loop_footer_branch
    %9 = sbr.rel target = $region3
  $region8: #{avenet_forward.22} parent=0 // loop_exit
    _

// kernel: avenet_forward.25
$region0: #{avenet_forward.25}
  #allocation0 [shape = 'u32[]', space=smem, size = 0x4, offset = 0x4, fixed_abs, tag = 'smem constant byte address 0x4 - core index']
  #allocation1 [shape = 'u32[144,128]{1,0:T(1,128)}', space=vmem, size = 0x12000, scoped, tag = 'internal scratch']
  %s0 = inlined_call_operand.vmem [shape: bf16[128,72], index: 0, kind: input, shape index: {}]
  %s1 = inlined_call_operand.vmem [shape: bf16[72,16], index: 1, kind: input, shape index: {}]
  %s2 = inlined_call_operand.vmem [shape: f32[1,16], index: 2, kind: input, shape index: {}]
  %s3 = inlined_call_operand.vmem [shape: bf16[128,16], index: 3, kind: output, shape index: {}]
  %s4 = sld [smem:[#allocation0]]
  $region45: #{avenet_forward.25} parent=0
    _
  %s6 = ssub.s32 1, %s4
  %s7 = scalar_select 0, %s6, %s4
  loop: start=0, step=1, limit=4
  $region2: #{avenet_forward.25} parent=0 // loop_pre_header
    _
  $region3: #{avenet_forward.25} parent=0 // loop_header
    %s9 = sphi 0, %s13
    %p10 = scmp.ge.s32.totalorder %s9, 4
    %s19 = sphi 0, %s21
    %s22 = sphi 0, %s19
    %s23 = sphi 0, %s22
    %s39 = sphi 0, %s23
    %s43 = sphi 0, %s43
    %s45 = sphi 0, %s43
    %s46 = sphi 0, %s45
    %s60 = sphi 0, %s46
    %s64 = sphi 0, %s64
    %s66 = sphi 0, %s64
    %s67 = sphi 0, %s66
    %s81 = sphi 0, %s67
    %s87 = sphi 0, %s89
    %s90 = sphi 0, %s87
    %s91 = sphi 0, %s90
    %s107 = sphi 0, %s91
  $region4: #{avenet_forward.25} parent=0 // loop_header_branch
    %12 = sbr.rel (%p10) target = $region8
  $region5: #{avenet_forward.25} parent=0 // loop_body
    %s14 = ssub.s32 %s9, 1
    %s15 = ssub.s32 %s9, 2
    %s16 = sadd.s32 %s9, 1
    %s17 = ssub.s32 %s9, %s16
    %p18 = scmp.eq.s32.totalorder %s17, 0
    %s20 = sadd.s32 %s19, 1
    %s21 = scalar_select %p18, %s19, %s20
    %p24 = pneg %p18
    %p25 = scmp.eq.s32.totalorder %s9, 1
    %p26 = por %p24, %p25
    %p27 = scmp.ne.s32.totalorder %s19, %s22
    %p28 = scmp.eq.s32.totalorder %s9, 0
    %p29 = por %p27, %p28
    %p30 = scmp.ne.s32.totalorder %s19, %s22
    %p31 = scmp.eq.s32.totalorder %s14, 1
    %p32 = por %p30, %p31
    %p33 = scmp.ne.s32.totalorder %s22, %s23
    %p34 = scmp.eq.s32.totalorder %s14, 0
    %p35 = por %p33, %p34
    %p36 = scmp.ne.s32.totalorder %s22, %s23
    %p37 = scmp.eq.s32.totalorder %s15, 1
    %p38 = por %p36, %p37
    %p40 = scmp.ne.s32.totalorder %s23, %s39
    %p41 = scmp.eq.s32.totalorder %s15, 0
    %p42 = por %p40, %p41
    %s44 = sadd.s32 %s43, 1
    %p47 = scmp.eq.s32.totalorder %s9, 1
    %p48 = scmp.ne.s32.totalorder %s43, %s45
    %p49 = scmp.eq.s32.totalorder %s9, 0
    %p50 = por %p48, %p49
    %p51 = scmp.ne.s32.totalorder %s43, %s45
    %p52 = scmp.eq.s32.totalorder %s14, 1
    %p53 = por %p51, %p52
    %p54 = scmp.ne.s32.totalorder %s45, %s46
    %p55 = scmp.eq.s32.totalorder %s14, 0
    %p56 = por %p54, %p55
    %p57 = scmp.ne.s32.totalorder %s45, %s46
    %p58 = scmp.eq.s32.totalorder %s15, 1
    %p59 = por %p57, %p58
    %p61 = scmp.ne.s32.totalorder %s46, %s60
    %p62 = scmp.eq.s32.totalorder %s15, 0
    %p63 = por %p61, %p62
    %s65 = sadd.s32 %s64, 1
    %p68 = scmp.eq.s32.totalorder %s9, 1
    %p69 = scmp.ne.s32.totalorder %s64, %s66
    %p70 = scmp.eq.s32.totalorder %s9, 0
    %p71 = por %p69, %p70
    %p72 = scmp.ne.s32.totalorder %s64, %s66
    %p73 = scmp.eq.s32.totalorder %s14, 1
    %p74 = por %p72, %p73
    %p75 = scmp.ne.s32.totalorder %s66, %s67
    %p76 = scmp.eq.s32.totalorder %s14, 0
    %p77 = por %p75, %p76
    %p78 = scmp.ne.s32.totalorder %s66, %s67
    %p79 = scmp.eq.s32.totalorder %s15, 1
    %p80 = por %p78, %p79
    %p82 = scmp.ne.s32.totalorder %s67, %s81
    %p83 = scmp.eq.s32.totalorder %s15, 0
    %p84 = por %p82, %p83
    %s85 = ssub.s32 %s9, %s16
    %p86 = scmp.eq.s32.totalorder %s85, 0
    %s88 = sadd.s32 %s87, 1
    %s89 = scalar_select %p86, %s87, %s88
    %p92 = pneg %p86
    %p93 = scmp.eq.s32.totalorder %s9, 1
    %p94 = por %p92, %p93
    %p95 = scmp.ne.s32.totalorder %s87, %s90
    %p96 = scmp.eq.s32.totalorder %s9, 0
    %p97 = por %p95, %p96
    %p98 = scmp.ne.s32.totalorder %s87, %s90
    %p99 = scmp.eq.s32.totalorder %s14, 1
    %p100 = por %p98, %p99
    %p101 = scmp.ne.s32.totalorder %s90, %s91
    %p102 = scmp.eq.s32.totalorder %s14, 0
    %p103 = por %p101, %p102
    %p104 = scmp.ne.s32.totalorder %s90, %s91
    %p105 = scmp.eq.s32.totalorder %s15, 1
    %p106 = por %p104, %p105
    %p108 = scmp.ne.s32.totalorder %s91, %s107
    %p109 = scmp.eq.s32.totalorder %s15, 0
    %p110 = por %p108, %p109
    %p111 = scmp.le.s32.totalorder 1, %s9
    %p112 = scmp.lt.s32.totalorder %s9, 3
    %p113 = pnand %p111, %p112
    %p114 = pneg %p113
    // Predicated region
    $region9: #{avenet_forward.25} parent=5 // pred_check
      _
    $region10: #{avenet_forward.25} parent=5 // pred_check_branch
      %116 = sbr.rel (%p113) target = $region12
    $region11: #{avenet_forward.25} parent=5 // pred_region
      %s117 = ssub.s32 %s9, 1
      // Predicated region
      $region13: #{avenet_forward.25} parent=11 // pred_check
        %p118 = pneg %p56
      $region14: #{avenet_forward.25} parent=11 // pred_check_branch
        %120 = sbr.rel (%p118) target = $region16
      $region15: #{avenet_forward.25} parent=11 // pred_region
        _
      $region16: #{avenet_forward.25} parent=11 // pred_fallthru
        _
      // Predicated region
      $region17: #{avenet_forward.25} parent=11 // pred_check
        %p121 = pneg %p77
      $region18: #{avenet_forward.25} parent=11 // pred_check_branch
        %123 = sbr.rel (%p121) target = $region20
      $region19: #{avenet_forward.25} parent=11 // pred_region
        _
      $region20: #{avenet_forward.25} parent=11 // pred_fallthru
        _
    $region12: #{avenet_forward.25} parent=5 // pred_fallthru
      _
    %p124 = scmp.lt.s32.totalorder %s9, 2
    // Predicated region
    $region21: #{avenet_forward.25} parent=5 // pred_check
      %p125 = pneg %p124
    $region22: #{avenet_forward.25} parent=5 // pred_check_branch
      %127 = sbr.rel (%p125) target = $region24
    $region23: #{avenet_forward.25} parent=5 // pred_region
      // Predicated region
      $region25: #{avenet_forward.25} parent=23 // pred_check
        %p128 = pneg %p29
      $region26: #{avenet_forward.25} parent=23 // pred_check_branch
        %130 = sbr.rel (%p128) target = $region28
      $region27: #{avenet_forward.25} parent=23 // pred_region
        %s131 = smul.u32 8, %s9
        %p132 = scmp.lt.s32.totalorder %s131, 15
        %s133 = scalar_select %p132, %s131, 15
        %s134 = smul.addr %s133, 4
        %s135 = scalar_lea.vmem %s0, %s134
        %s136 = smul.u32 8, %s9
      $region28: #{avenet_forward.25} parent=23 // pred_fallthru
        _
    $region24: #{avenet_forward.25} parent=5 // pred_fallthru
      _
    %p137 = scmp.le.s32.totalorder 1, %s9
    %p138 = scmp.lt.s32.totalorder %s9, 3
    %p139 = pnand %p137, %p138
    %p140 = pneg %p139
    // Predicated region
    $region29: #{avenet_forward.25} parent=5 // pred_check
      _
    $region30: #{avenet_forward.25} parent=5 // pred_check_branch
      %142 = sbr.rel (%p139) target = $region32
    $region31: #{avenet_forward.25} parent=5 // pred_region
      %s143 = ssub.s32 %s9, 1
      %s144 = smul.u32 8, %s14
      %p145 = scmp.lt.s32.totalorder %s144, 15
      %s146 = scalar_select %p145, %s144, 15
      %s147 = smul.addr %s146, 4
      %s148 = scalar_lea.vmem %s0, %s147
      %p149 = pneg %p35
      %p150 = pneg %p32
      %p151 = pneg %p56
      %p152 = pneg %p53
      %p153 = pneg %p77
      %p154 = pneg %p74
      %p155 = pneg %p103
      %p156 = pneg %p100
      %s157 = smul.u32 8, %s14
      %p158 = scmp.lt.s32.totalorder %s157, 15
      %s159 = scalar_select %p158, %s157, 15
      %s160 = smul.addr %s159, 4
      %s161 = scalar_lea.vmem %s3, %s160
      %s162 = smul.u32 8, %s14
      %p163 = scmp.lt.s32.totalorder %s162, 15
      %s164 = scalar_select %p163, %s162, 15
      %s165 = smul.addr %s164, 4
      %s166 = scalar_lea.vmem %s0, %s165
      %s167 = smul.u32 8, %s14
      %s168 = smul.u32 8, %s14
      %p169 = scmp.lt.s32.totalorder %s168, 15
      %s170 = scalar_select %p169, %s168, 15
      %s171 = smul.addr %s170, 4
      %s172 = scalar_lea.vmem %s3, %s171
      %s173 = smul.u32 8, %s14
      %v175 = vld [vmem:[%s166] sm:$0xf]
      %v176 = vld [vmem:[%s166 + $0x4] sm:$0xf]
      %v177 = vld [vmem:[%s166 + $0x8] sm:$0xf]
      %v178 = vld [vmem:[%s166 + $0xc] sm:$0xf]
      %v179 = vld [vmem:[%s166 + $0x10] sm:$0xf]
      %v180 = vld [vmem:[%s166 + $0x14] sm:$0xf]
      %v181 = vld [vmem:[%s166 + $0x18] sm:$0xf]
      %v182 = vld [vmem:[%s166 + $0x1c] sm:$0xf]
      %v183 = vld [vmem:[%s1] sm:$0xf]
      %v184 = vld [vmem:[%s1 + $0x4] sm:$0xf]
      %v185 = vld [vmem:[%s1 + $0x8] sm:$0xf]
      %v186 = vld [vmem:[%s1 + $0xc] sm:$0xf]
      %v187 = vld [vmem:[%s1 + $0x10] sm:$0xf]
      %v188 = vld [vmem:[%s1 + $0x14] sm:$0xf]
      %v189 = vld [vmem:[%s1 + $0x18] sm:$0xf]
      %v190 = vld [vmem:[%s1 + $0x1c] sm:$0xf]
      %v191 = vld [vmem:[%s1 + $0x20] sm:$0xf]
      %v192 = vld [vmem:[%s2] sm:$0x1]
      %v194 = vlaneseq
      %v195 = vshrl.u32 %v194, 7
      %v196 = vsub.s32 0, %v195
      %v197 = vrot.slane %v192, %v196
      %v207 = vunpack.c.l.b16 %v175
      %v208 = vunpack.c.l.b16 %v176
      %v209 = vunpack.c.l.b16 %v177
      %v210 = vunpack.c.l.b16 %v178
      %v211 = vunpack.c.l.b16 %v179
      %v212 = vunpack.c.l.b16 %v180
      %v213 = vunpack.c.l.b16 %v181
      %v214 = vunpack.c.l.b16 %v182
      %v215 = vpack.c.b16 %v208, %v207
      %v216 = vpack.c.b16 %v210, %v209
      %v217 = vpack.c.b16 %v212, %v211
      %v218 = vpack.c.b16 %v214, %v213
      %v228 = vunpack.c.l.b16 %v183
      %v229 = vunpack.c.l.b16 %v184
      %v230 = vunpack.c.l.b16 %v185
      %v231 = vunpack.c.l.b16 %v186
      %v232 = vunpack.c.l.b16 %v187
      %v233 = vunpack.c.l.b16 %v188
      %v234 = vunpack.c.l.b16 %v189
      %v235 = vunpack.c.l.b16 %v190
      %v236 = vunpack.c.l.b16 %v191
      %v237 = vpack.c.b16 %v229, %v228
      %v238 = vpack.c.b16 %v231, %v230
      %v239 = vpack.c.b16 %v233, %v232
      %v240 = vpack.c.b16 %v235, %v234
      %v241 = vpack.c.b16 %v236, %v236
      %vm246 = vcmask 588800
      %v248 = vsel %vm246, %v215, 0
      %v251 = vsel %vm246, %v216, 0
      %v254 = vsel %vm246, %v217, 0
      %v257 = vsel %vm246, %v218, 0
      %vm259 = vcmask 1043456
      %v261 = vsel %vm259, %v241, 0
      %263 = vmatprep.subr.bf16.mxu0 0
      %264 = vmatpush1.bf16.msra.mxu0 %v237
      %265 = vmatprep.subr.bf16.mxu0 0
      %266 = vmatpush1.bf16.msra.mxu0 %v238
      %267 = vmatprep.subr.bf16.mxu0 0
      %268 = vmatpush1.bf16.msra.mxu0 %v239
      %269 = vmatprep.subr.bf16.mxu0 0
      %270 = vmatpush1.bf16.msra.mxu0 %v240
      %271 = vmatprep.subr.bf16.mxu0 0
      %272 = vmatpush1.bf16.msra.mxu0 %v261
      %273 = vmatprep.subr.bf16.mxu0 0
      %274 = vmatpush1.bf16.msra.mxu0 0
      %275 = vmatprep.subr.bf16.mxu0 0
      %276 = vmatpush1.bf16.msra.mxu0 0
      %277 = vmatprep.subr.bf16.mxu0 0
      %278 = vmatpush1.bf16.msra.mxu0 0
      %279 = vmatprep.subr.bf16.mxu0 0
      %280 = vmatpush1.bf16.msra.mxu0 0
      %281 = vmatprep.subr.bf16.mxu0 0
      %282 = vmatpush1.bf16.msra.mxu0 0
      %283 = vmatprep.subr.bf16.mxu0 0
      %284 = vmatpush1.bf16.msra.mxu0 0
      %285 = vmatprep.subr.bf16.mxu0 0
      %286 = vmatpush1.bf16.msra.mxu0 0
      %287 = vmatprep.subr.bf16.mxu0 0
      %288 = vmatpush1.bf16.msra.mxu0 0
      %289 = vmatprep.subr.bf16.mxu0 0
      %290 = vmatpush1.bf16.msra.mxu0 0
      %291 = vmatprep.subr.bf16.mxu0 0
      %292 = vmatpush1.bf16.msra.mxu0 0
      %293 = vmatprep.subr.bf16.mxu0 0
      %294 = vmatpush1.bf16.msra.mxu0 0
      %295 = vmatprep.mubr.bf16.mxu0 0
      %296 = vmatmul.mubr.bf16.gmra.mrb[0].mxu0 %v248
      %v297 = vpop.f32.mrb[0].mxu0
      %v298 = vadd.f32 %v197, %v297
      %v299 = vpop.f32.mrb[0].mxu0
      %v300 = vpop.f32.mrb[0].mxu0
      %v301 = vadd.f32 %v197, %v300
      %v302 = vpop.f32.mrb[0].mxu0
      %303 = vmatprep.mubr.bf16.mxu0 0
      %304 = vmatmul.mubr.bf16.gmra.mrb[0].mxu0 %v251
      %v305 = vpop.f32.mrb[0].mxu0
      %v306 = vadd.f32 %v197, %v305
      %v307 = vpop.f32.mrb[0].mxu0
      %v308 = vpop.f32.mrb[0].mxu0
      %v309 = vadd.f32 %v197, %v308
      %v310 = vpop.f32.mrb[0].mxu0
      %311 = vmatprep.mubr.bf16.mxu0 0
      %312 = vmatmul.mubr.bf16.gmra.mrb[0].mxu0 %v254
      %v313 = vpop.f32.mrb[0].mxu0
      %v314 = vadd.f32 %v197, %v313
      %v315 = vpop.f32.mrb[0].mxu0
      %v316 = vpop.f32.mrb[0].mxu0
      %v317 = vadd.f32 %v197, %v316
      %v318 = vpop.f32.mrb[0].mxu0
      %319 = vmatprep.mubr.bf16.mxu0 0
      %320 = vmatmul.mubr.bf16.gmra.mrb[0].mxu0 %v257
      %v321 = vpop.f32.mrb[0].mxu0
      %v322 = vadd.f32 %v197, %v321
      %v323 = vpop.f32.mrb[0].mxu0
      %v324 = vpop.f32.mrb[0].mxu0
      %v325 = vadd.f32 %v197, %v324
      %v326 = vpop.f32.mrb[0].mxu0
      %327 = vdwg.mxu0
      %v328 = vmax.f32 %v298, 0.0
      %v329 = vmax.f32 %v301, 0.0
      %v330 = vmax.f32 %v306, 0.0
      %v331 = vmax.f32 %v309, 0.0
      %v332 = vmax.f32 %v314, 0.0
      %v333 = vmax.f32 %v317, 0.0
      %v334 = vmax.f32 %v322, 0.0
      %v335 = vmax.f32 %v325, 0.0
      %v336 = vpack.c.bf16 %v329, %v328
      %v337 = vpack.c.bf16 %v331, %v330
      %v338 = vpack.c.bf16 %v333, %v332
      %v339 = vpack.c.bf16 %v335, %v334
      %v344 = vunpack.c.l.b16 %v336
      %v345 = vunpack.c.h.b16 %v336
      %v346 = vunpack.c.l.b16 %v337
      %v347 = vunpack.c.h.b16 %v337
      %v348 = vunpack.c.l.b16 %v338
      %v349 = vunpack.c.h.b16 %v338
      %v350 = vunpack.c.l.b16 %v339
      %v351 = vunpack.c.h.b16 %v339
      %v352 = vpack.c.b16 %v344, %v344
      %v353 = vpack.c.b16 %v345, %v345
      %v354 = vpack.c.b16 %v346, %v346
      %v355 = vpack.c.b16 %v347, %v347
      %v356 = vpack.c.b16 %v348, %v348
      %v357 = vpack.c.b16 %v349, %v349
      %v358 = vpack.c.b16 %v350, %v350
      %v359 = vpack.c.b16 %v351, %v351
      %vm368 = vcmask 125952
      %369 = vst.msk [vmem:[%s172] sm:$0xf] %vm368, %v352
      %370 = vst.msk [vmem:[%s172 + $0x4] sm:$0xf] %vm368, %v353
      %371 = vst.msk [vmem:[%s172 + $0x8] sm:$0xf] %vm368, %v354
      %372 = vst.msk [vmem:[%s172 + $0xc] sm:$0xf] %vm368, %v355
      %373 = vst.msk [vmem:[%s172 + $0x10] sm:$0xf] %vm368, %v356
      %374 = vst.msk [vmem:[%s172 + $0x14] sm:$0xf] %vm368, %v357
      %375 = vst.msk [vmem:[%s172 + $0x18] sm:$0xf] %vm368, %v358
      %376 = vst.msk [vmem:[%s172 + $0x1c] sm:$0xf] %vm368, %v359
      %s377 = smul.u32 8, %s14
      %p378 = scmp.lt.s32.totalorder %s377, 15
      %s379 = scalar_select %p378, %s377, 15
      %s380 = smul.addr %s379, 4
      %s381 = scalar_lea.vmem %s3, %s380
      // Predicated region
      $region33: #{avenet_forward.25} parent=31 // pred_check
        %p382 = pneg %p100
      $region34: #{avenet_forward.25} parent=31 // pred_check_branch
        %384 = sbr.rel (%p382) target = $region36
      $region35: #{avenet_forward.25} parent=31 // pred_region
        %s385 = smul.u32 8, %s14
      $region36: #{avenet_forward.25} parent=31 // pred_fallthru
        _
    $region32: #{avenet_forward.25} parent=5 // pred_fallthru
      _
    %p386 = scmp.le.s32.totalorder 2, %s9
    // Predicated region
    $region37: #{avenet_forward.25} parent=5 // pred_check
      %p387 = pneg %p386
    $region38: #{avenet_forward.25} parent=5 // pred_check_branch
      %389 = sbr.rel (%p387) target = $region40
    $region39: #{avenet_forward.25} parent=5 // pred_region
      %s390 = ssub.s32 %s9, 2
      // Predicated region
      $region41: #{avenet_forward.25} parent=39 // pred_check
        %p391 = pneg %p106
      $region42: #{avenet_forward.25} parent=39 // pred_check_branch
        %393 = sbr.rel (%p391) target = $region44
      $region43: #{avenet_forward.25} parent=39 // pred_region
        %s394 = smul.u32 8, %s15
        %p395 = scmp.lt.s32.totalorder %s394, 15
        %s396 = scalar_select %p395, %s394, 15
        %s397 = smul.addr %s396, 4
        %s398 = scalar_lea.vmem %s3, %s397
      $region44: #{avenet_forward.25} parent=39 // pred_fallthru
        _
    $region40: #{avenet_forward.25} parent=5 // pred_fallthru
      _
  $region6: #{avenet_forward.25} parent=0 // loop_footer
    %s13 = sadd.s32 1, %s9
  $region7: #{avenet_forward.25} parent=0 // loop_footer_branch
    %8 = sbr.rel target = $region3
  $region8: #{avenet_forward.25} parent=0 // loop_exit
    _

// kernel: avenet_forward.26
$region0: #{avenet_forward.26}
  #allocation0 [shape = 'u32[]', space=smem, size = 0x4, offset = 0x4, fixed_abs, tag = 'smem constant byte address 0x4 - core index']
  #allocation1 [shape = 'u32[144,128]{1,0:T(1,128)}', space=vmem, size = 0x12000, scoped, tag = 'internal scratch']
  %s0 = inlined_call_operand.vmem [shape: bf16[128,144], index: 0, kind: input, shape index: {}]
  %s1 = inlined_call_operand.vmem [shape: bf16[144,16], index: 1, kind: input, shape index: {}]
  %s2 = inlined_call_operand.vmem [shape: f32[1,16], index: 2, kind: input, shape index: {}]
  %s3 = inlined_call_operand.vmem [shape: bf16[128,8], index: 3, kind: input, shape index: {}]
  %s4 = inlined_call_operand.vmem [shape: bf16[8,16], index: 4, kind: input, shape index: {}]
  %s5 = inlined_call_operand.vmem [shape: f32[1,16], index: 5, kind: input, shape index: {}]
  %s6 = inlined_call_operand.vmem [shape: bf16[128,16], index: 6, kind: output, shape index: {}]
  %s7 = sld [smem:[#allocation0]]
  $region57: #{avenet_forward.26} parent=0
    _
  %s9 = ssub.s32 1, %s7
  %s10 = scalar_select 0, %s9, %s7
  loop: start=0, step=1, limit=4
  $region2: #{avenet_forward.26} parent=0 // loop_pre_header
    _
  $region3: #{avenet_forward.26} parent=0 // loop_header
    %s12 = sphi 0, %s16
    %p13 = scmp.ge.s32.totalorder %s12, 4
    %s22 = sphi 0, %s24
    %s25 = sphi 0, %s22
    %s26 = sphi 0, %s25
    %s42 = sphi 0, %s26
    %s46 = sphi 0, %s46
    %s48 = sphi 0, %s46
    %s49 = sphi 0, %s48
    %s63 = sphi 0, %s49
    %s67 = sphi 0, %s67
    %s69 = sphi 0, %s67
    %s70 = sphi 0, %s69
    %s84 = sphi 0, %s70
    %s90 = sphi 0, %s92
    %s93 = sphi 0, %s90
    %s94 = sphi 0, %s93
    %s110 = sphi 0, %s94
    %s114 = sphi 0, %s114
    %s116 = sphi 0, %s114
    %s117 = sphi 0, %s116
    %s131 = sphi 0, %s117
    %s135 = sphi 0, %s135
    %s137 = sphi 0, %s135
    %s138 = sphi 0, %s137
    %s152 = sphi 0, %s138
    %s158 = sphi 0, %s160
    %s161 = sphi 0, %s158
    %s162 = sphi 0, %s161
    %s178 = sphi 0, %s162
  $region4: #{avenet_forward.26} parent=0 // loop_header_branch
    %15 = sbr.rel (%p13) target = $region8
  $region5: #{avenet_forward.26} parent=0 // loop_body
    %s17 = ssub.s32 %s12, 1
    %s18 = ssub.s32 %s12, 2
    %s19 = sadd.s32 %s12, 1
    %s20 = ssub.s32 %s12, %s19
    %p21 = scmp.eq.s32.totalorder %s20, 0
    %s23 = sadd.s32 %s22, 1
    %s24 = scalar_select %p21, %s22, %s23
    %p27 = pneg %p21
    %p28 = scmp.eq.s32.totalorder %s12, 1
    %p29 = por %p27, %p28
    %p30 = scmp.ne.s32.totalorder %s22, %s25
    %p31 = scmp.eq.s32.totalorder %s12, 0
    %p32 = por %p30, %p31
    %p33 = scmp.ne.s32.totalorder %s22, %s25
    %p34 = scmp.eq.s32.totalorder %s17, 1
    %p35 = por %p33, %p34
    %p36 = scmp.ne.s32.totalorder %s25, %s26
    %p37 = scmp.eq.s32.totalorder %s17, 0
    %p38 = por %p36, %p37
    %p39 = scmp.ne.s32.totalorder %s25, %s26
    %p40 = scmp.eq.s32.totalorder %s18, 1
    %p41 = por %p39, %p40
    %p43 = scmp.ne.s32.totalorder %s26, %s42
    %p44 = scmp.eq.s32.totalorder %s18, 0
    %p45 = por %p43, %p44
    %s47 = sadd.s32 %s46, 1
    %p50 = scmp.eq.s32.totalorder %s12, 1
    %p51 = scmp.ne.s32.totalorder %s46, %s48
    %p52 = scmp.eq.s32.totalorder %s12, 0
    %p53 = por %p51, %p52
    %p54 = scmp.ne.s32.totalorder %s46, %s48
    %p55 = scmp.eq.s32.totalorder %s17, 1
    %p56 = por %p54, %p55
    %p57 = scmp.ne.s32.totalorder %s48, %s49
    %p58 = scmp.eq.s32.totalorder %s17, 0
    %p59 = por %p57, %p58
    %p60 = scmp.ne.s32.totalorder %s48, %s49
    %p61 = scmp.eq.s32.totalorder %s18, 1
    %p62 = por %p60, %p61
    %p64 = scmp.ne.s32.totalorder %s49, %s63
    %p65 = scmp.eq.s32.totalorder %s18, 0
    %p66 = por %p64, %p65
    %s68 = sadd.s32 %s67, 1
    %p71 = scmp.eq.s32.totalorder %s12, 1
    %p72 = scmp.ne.s32.totalorder %s67, %s69
    %p73 = scmp.eq.s32.totalorder %s12, 0
    %p74 = por %p72, %p73
    %p75 = scmp.ne.s32.totalorder %s67, %s69
    %p76 = scmp.eq.s32.totalorder %s17, 1
    %p77 = por %p75, %p76
    %p78 = scmp.ne.s32.totalorder %s69, %s70
    %p79 = scmp.eq.s32.totalorder %s17, 0
    %p80 = por %p78, %p79
    %p81 = scmp.ne.s32.totalorder %s69, %s70
    %p82 = scmp.eq.s32.totalorder %s18, 1
    %p83 = por %p81, %p82
    %p85 = scmp.ne.s32.totalorder %s70, %s84
    %p86 = scmp.eq.s32.totalorder %s18, 0
    %p87 = por %p85, %p86
    %s88 = ssub.s32 %s12, %s19
    %p89 = scmp.eq.s32.totalorder %s88, 0
    %s91 = sadd.s32 %s90, 1
    %s92 = scalar_select %p89, %s90, %s91
    %p95 = pneg %p89
    %p96 = scmp.eq.s32.totalorder %s12, 1
    %p97 = por %p95, %p96
    %p98 = scmp.ne.s32.totalorder %s90, %s93
    %p99 = scmp.eq.s32.totalorder %s12, 0
    %p100 = por %p98, %p99
    %p101 = scmp.ne.s32.totalorder %s90, %s93
    %p102 = scmp.eq.s32.totalorder %s17, 1
    %p103 = por %p101, %p102
    %p104 = scmp.ne.s32.totalorder %s93, %s94
    %p105 = scmp.eq.s32.totalorder %s17, 0
    %p106 = por %p104, %p105
    %p107 = scmp.ne.s32.totalorder %s93, %s94
    %p108 = scmp.eq.s32.totalorder %s18, 1
    %p109 = por %p107, %p108
    %p111 = scmp.ne.s32.totalorder %s94, %s110
    %p112 = scmp.eq.s32.totalorder %s18, 0
    %p113 = por %p111, %p112
    %s115 = sadd.s32 %s114, 1
    %p118 = scmp.eq.s32.totalorder %s12, 1
    %p119 = scmp.ne.s32.totalorder %s114, %s116
    %p120 = scmp.eq.s32.totalorder %s12, 0
    %p121 = por %p119, %p120
    %p122 = scmp.ne.s32.totalorder %s114, %s116
    %p123 = scmp.eq.s32.totalorder %s17, 1
    %p124 = por %p122, %p123
    %p125 = scmp.ne.s32.totalorder %s116, %s117
    %p126 = scmp.eq.s32.totalorder %s17, 0
    %p127 = por %p125, %p126
    %p128 = scmp.ne.s32.totalorder %s116, %s117
    %p129 = scmp.eq.s32.totalorder %s18, 1
    %p130 = por %p128, %p129
    %p132 = scmp.ne.s32.totalorder %s117, %s131
    %p133 = scmp.eq.s32.totalorder %s18, 0
    %p134 = por %p132, %p133
    %s136 = sadd.s32 %s135, 1
    %p139 = scmp.eq.s32.totalorder %s12, 1
    %p140 = scmp.ne.s32.totalorder %s135, %s137
    %p141 = scmp.eq.s32.totalorder %s12, 0
    %p142 = por %p140, %p141
    %p143 = scmp.ne.s32.totalorder %s135, %s137
    %p144 = scmp.eq.s32.totalorder %s17, 1
    %p145 = por %p143, %p144
    %p146 = scmp.ne.s32.totalorder %s137, %s138
    %p147 = scmp.eq.s32.totalorder %s17, 0
    %p148 = por %p146, %p147
    %p149 = scmp.ne.s32.totalorder %s137, %s138
    %p150 = scmp.eq.s32.totalorder %s18, 1
    %p151 = por %p149, %p150
    %p153 = scmp.ne.s32.totalorder %s138, %s152
    %p154 = scmp.eq.s32.totalorder %s18, 0
    %p155 = por %p153, %p154
    %s156 = ssub.s32 %s12, %s19
    %p157 = scmp.eq.s32.totalorder %s156, 0
    %s159 = sadd.s32 %s158, 1
    %s160 = scalar_select %p157, %s158, %s159
    %p163 = pneg %p157
    %p164 = scmp.eq.s32.totalorder %s12, 1
    %p165 = por %p163, %p164
    %p166 = scmp.ne.s32.totalorder %s158, %s161
    %p167 = scmp.eq.s32.totalorder %s12, 0
    %p168 = por %p166, %p167
    %p169 = scmp.ne.s32.totalorder %s158, %s161
    %p170 = scmp.eq.s32.totalorder %s17, 1
    %p171 = por %p169, %p170
    %p172 = scmp.ne.s32.totalorder %s161, %s162
    %p173 = scmp.eq.s32.totalorder %s17, 0
    %p174 = por %p172, %p173
    %p175 = scmp.ne.s32.totalorder %s161, %s162
    %p176 = scmp.eq.s32.totalorder %s18, 1
    %p177 = por %p175, %p176
    %p179 = scmp.ne.s32.totalorder %s162, %s178
    %p180 = scmp.eq.s32.totalorder %s18, 0
    %p181 = por %p179, %p180
    %p182 = scmp.le.s32.totalorder 1, %s12
    %p183 = scmp.lt.s32.totalorder %s12, 3
    %p184 = pnand %p182, %p183
    %p185 = pneg %p184
    // Predicated region
    $region9: #{avenet_forward.26} parent=5 // pred_check
      _
    $region10: #{avenet_forward.26} parent=5 // pred_check_branch
      %187 = sbr.rel (%p184) target = $region12
    $region11: #{avenet_forward.26} parent=5 // pred_region
      %s188 = ssub.s32 %s12, 1
      // Predicated region
      $region13: #{avenet_forward.26} parent=11 // pred_check
        %p189 = pneg %p59
      $region14: #{avenet_forward.26} parent=11 // pred_check_branch
        %191 = sbr.rel (%p189) target = $region16
      $region15: #{avenet_forward.26} parent=11 // pred_region
        _
      $region16: #{avenet_forward.26} parent=11 // pred_fallthru
        _
      // Predicated region
      $region17: #{avenet_forward.26} parent=11 // pred_check
        %p192 = pneg %p80
      $region18: #{avenet_forward.26} parent=11 // pred_check_branch
        %194 = sbr.rel (%p192) target = $region20
      $region19: #{avenet_forward.26} parent=11 // pred_region
        _
      $region20: #{avenet_forward.26} parent=11 // pred_fallthru
        _
      // Predicated region
      $region21: #{avenet_forward.26} parent=11 // pred_check
        %p195 = pneg %p127
      $region22: #{avenet_forward.26} parent=11 // pred_check_branch
        %197 = sbr.rel (%p195) target = $region24
      $region23: #{avenet_forward.26} parent=11 // pred_region
        _
      $region24: #{avenet_forward.26} parent=11 // pred_fallthru
        _
      // Predicated region
      $region25: #{avenet_forward.26} parent=11 // pred_check
        %p198 = pneg %p148
      $region26: #{avenet_forward.26} parent=11 // pred_check_branch
        %200 = sbr.rel (%p198) target = $region28
      $region27: #{avenet_forward.26} parent=11 // pred_region
        _
      $region28: #{avenet_forward.26} parent=11 // pred_fallthru
        _
    $region12: #{avenet_forward.26} parent=5 // pred_fallthru
      _
    %p201 = scmp.lt.s32.totalorder %s12, 2
    // Predicated region
    $region29: #{avenet_forward.26} parent=5 // pred_check
      %p202 = pneg %p201
    $region30: #{avenet_forward.26} parent=5 // pred_check_branch
      %204 = sbr.rel (%p202) target = $region32
    $region31: #{avenet_forward.26} parent=5 // pred_region
      // Predicated region
      $region33: #{avenet_forward.26} parent=31 // pred_check
        %p205 = pneg %p32
      $region34: #{avenet_forward.26} parent=31 // pred_check_branch
        %207 = sbr.rel (%p205) target = $region36
      $region35: #{avenet_forward.26} parent=31 // pred_region
        %s208 = smul.u32 8, %s12
        %p209 = scmp.lt.s32.totalorder %s208, 15
        %s210 = scalar_select %p209, %s208, 15
        %s211 = smul.addr %s210, 2
        %s212 = smul.addr %s211, 4
        %s213 = scalar_lea.vmem %s0, %s212
        %s214 = smul.u32 8, %s12
      $region36: #{avenet_forward.26} parent=31 // pred_fallthru
        _
      // Predicated region
      $region37: #{avenet_forward.26} parent=31 // pred_check
        %p215 = pneg %p100
      $region38: #{avenet_forward.26} parent=31 // pred_check_branch
        %217 = sbr.rel (%p215) target = $region40
      $region39: #{avenet_forward.26} parent=31 // pred_region
        %s218 = smul.u32 8, %s12
        %p219 = scmp.lt.s32.totalorder %s218, 15
        %s220 = scalar_select %p219, %s218, 15
        %s221 = smul.addr %s220, 4
        %s222 = scalar_lea.vmem %s3, %s221
        %s223 = smul.u32 8, %s12
      $region40: #{avenet_forward.26} parent=31 // pred_fallthru
        _
    $region32: #{avenet_forward.26} parent=5 // pred_fallthru
      _
    %p224 = scmp.le.s32.totalorder 1, %s12
    %p225 = scmp.lt.s32.totalorder %s12, 3
    %p226 = pnand %p224, %p225
    %p227 = pneg %p226
    // Predicated region
    $region41: #{avenet_forward.26} parent=5 // pred_check
      _
    $region42: #{avenet_forward.26} parent=5 // pred_check_branch
      %229 = sbr.rel (%p226) target = $region44
    $region43: #{avenet_forward.26} parent=5 // pred_region
      %s230 = ssub.s32 %s12, 1
      %s231 = smul.u32 8, %s17
      %p232 = scmp.lt.s32.totalorder %s231, 15
      %s233 = scalar_select %p232, %s231, 15
      %s234 = smul.addr %s233, 2
      %s235 = smul.addr %s234, 4
      %s236 = scalar_lea.vmem %s0, %s235
      %p237 = pneg %p38
      %p238 = pneg %p35
      %p239 = pneg %p59
      %p240 = pneg %p56
      %p241 = pneg %p80
      %p242 = pneg %p77
      %s243 = smul.u32 8, %s17
      %p244 = scmp.lt.s32.totalorder %s243, 15
      %s245 = scalar_select %p244, %s243, 15
      %s246 = smul.addr %s245, 4
      %s247 = scalar_lea.vmem %s3, %s246
      %p248 = pneg %p106
      %p249 = pneg %p103
      %p250 = pneg %p127
      %p251 = pneg %p124
      %p252 = pneg %p148
      %p253 = pneg %p145
      %p254 = pneg %p174
      %p255 = pneg %p171
      %s256 = smul.u32 8, %s17
      %p257 = scmp.lt.s32.totalorder %s256, 15
      %s258 = scalar_select %p257, %s256, 15
      %s259 = smul.addr %s258, 4
      %s260 = scalar_lea.vmem %s6, %s259
      %s261 = smul.u32 8, %s17
      %p262 = scmp.lt.s32.totalorder %s261, 15
      %s263 = scalar_select %p262, %s261, 15
      %s264 = smul.addr %s263, 2
      %s265 = smul.addr %s264, 4
      %s266 = scalar_lea.vmem %s0, %s265
      %s267 = smul.u32 8, %s17
      %s268 = smul.u32 8, %s17
      %p269 = scmp.lt.s32.totalorder %s268, 15
      %s270 = scalar_select %p269, %s268, 15
      %s271 = smul.addr %s270, 4
      %s272 = scalar_lea.vmem %s3, %s271
      %s273 = smul.u32 8, %s17
      %s274 = smul.u32 8, %s17
      %p275 = scmp.lt.s32.totalorder %s274, 15
      %s276 = scalar_select %p275, %s274, 15
      %s277 = smul.addr %s276, 4
      %s278 = scalar_lea.vmem %s6, %s277
      %s279 = smul.u32 8, %s17
      %v281 = vld [vmem:[%s266] sm:$0xff]
      %v282 = vld [vmem:[%s266 + $0x8] sm:$0xff]
      %v283 = vld [vmem:[%s266 + $0x10] sm:$0xff]
      %v284 = vld [vmem:[%s266 + $0x18] sm:$0xff]
      %v285 = vld [vmem:[%s266 + $0x20] sm:$0xff]
      %v286 = vld [vmem:[%s266 + $0x28] sm:$0xff]
      %v287 = vld [vmem:[%s266 + $0x30] sm:$0xff]
      %v288 = vld [vmem:[%s266 + $0x38] sm:$0xff]
      %v289 = vld [vmem:[%s1] sm:$0xf]
      %v290 = vld [vmem:[%s1 + $0x4] sm:$0xf]
      %v291 = vld [vmem:[%s1 + $0x8] sm:$0xf]
      %v292 = vld [vmem:[%s1 + $0xc] sm:$0xf]
      %v293 = vld [vmem:[%s1 + $0x10] sm:$0xf]
      %v294 = vld [vmem:[%s1 + $0x14] sm:$0xf]
      %v295 = vld [vmem:[%s1 + $0x18] sm:$0xf]
      %v296 = vld [vmem:[%s1 + $0x1c] sm:$0xf]
      %v297 = vld [vmem:[%s1 + $0x20] sm:$0xf]
      %v298 = vld [vmem:[%s1 + $0x24] sm:$0xf]
      %v299 = vld [vmem:[%s1 + $0x28] sm:$0xf]
      %v300 = vld [vmem:[%s1 + $0x2c] sm:$0xf]
      %v301 = vld [vmem:[%s1 + $0x30] sm:$0xf]
      %v302 = vld [vmem:[%s1 + $0x34] sm:$0xf]
      %v303 = vld [vmem:[%s1 + $0x38] sm:$0xf]
      %v304 = vld [vmem:[%s1 + $0x3c] sm:$0xf]
      %v305 = vld [vmem:[%s1 + $0x40] sm:$0xf]
      %v306 = vld [vmem:[%s1 + $0x44] sm:$0xf]
      %v307 = vld [vmem:[%s272] sm:$0xf]
      %v308 = vld [vmem:[%s272 + $0x4] sm:$0xf]
      %v309 = vld [vmem:[%s272 + $0x8] sm:$0xf]
      %v310 = vld [vmem:[%s272 + $0xc] sm:$0xf]
      %v311 = vld [vmem:[%s272 + $0x10] sm:$0xf]
      %v312 = vld [vmem:[%s272 + $0x14] sm:$0xf]
      %v313 = vld [vmem:[%s272 + $0x18] sm:$0xf]
      %v314 = vld [vmem:[%s272 + $0x1c] sm:$0xf]
      %v315 = vld [vmem:[%s4] sm:$0xf]
      %v316 = vld [vmem:[%s5] sm:$0x1]
      %v318 = vlaneseq
      %v319 = vshrl.u32 %v318, 7
      %v320 = vsub.s32 0, %v319
      %v321 = vrot.slane %v316, %v320
      %v331 = vunpack.c.l.b16 %v307
      %v332 = vunpack.c.l.b16 %v308
      %v333 = vunpack.c.l.b16 %v309
      %v334 = vunpack.c.l.b16 %v310
      %v335 = vunpack.c.l.b16 %v311
      %v336 = vunpack.c.l.b16 %v312
      %v337 = vunpack.c.l.b16 %v313
      %v338 = vunpack.c.l.b16 %v314
      %v339 = vpack.c.b16 %v332, %v331
      %v340 = vpack.c.b16 %v334, %v333
      %v341 = vpack.c.b16 %v336, %v335
      %v342 = vpack.c.b16 %v338, %v337
      %vm343 = vcmask 64512
      %v345 = vsel %vm343, %v339, 0
      %v348 = vsel %vm343, %v340, 0
      %v351 = vsel %vm343, %v341, 0
      %v354 = vsel %vm343, %v342, 0
      %vm356 = vcmask 1043456
      %v358 = vsel %vm356, %v315, 0
      %360 = vmatprep.subr.bf16.mxu0 0
      %361 = vmatpush1.bf16.msra.mxu0 %v358
      %362 = vmatprep.subr.bf16.mxu0 0
      %363 = vmatpush1.bf16.msra.mxu0 0
      %364 = vmatprep.subr.bf16.mxu0 0
      %365 = vmatpush1.bf16.msra.mxu0 0
      %366 = vmatprep.subr.bf16.mxu0 0
      %367 = vmatpush1.bf16.msra.mxu0 0
      %368 = vmatprep.subr.bf16.mxu0 0
      %369 = vmatpush1.bf16.msra.mxu0 0
      %370 = vmatprep.subr.bf16.mxu0 0
      %371 = vmatpush1.bf16.msra.mxu0 0
      %372 = vmatprep.subr.bf16.mxu0 0
      %373 = vmatpush1.bf16.msra.mxu0 0
      %374 = vmatprep.subr.bf16.mxu0 0
      %375 = vmatpush1.bf16.msra.mxu0 0
      %376 = vmatprep.subr.bf16.mxu0 0
      %377 = vmatpush1.bf16.msra.mxu0 0
      %378 = vmatprep.subr.bf16.mxu0 0
      %379 = vmatpush1.bf16.msra.mxu0 0
      %380 = vmatprep.subr.bf16.mxu0 0
      %381 = vmatpush1.bf16.msra.mxu0 0
      %382 = vmatprep.subr.bf16.mxu0 0
      %383 = vmatpush1.bf16.msra.mxu0 0
      %384 = vmatprep.subr.bf16.mxu0 0
      %385 = vmatpush1.bf16.msra.mxu0 0
      %386 = vmatprep.subr.bf16.mxu0 0
      %387 = vmatpush1.bf16.msra.mxu0 0
      %388 = vmatprep.subr.bf16.mxu0 0
      %389 = vmatpush1.bf16.msra.mxu0 0
      %390 = vmatprep.subr.bf16.mxu0 0
      %391 = vmatpush1.bf16.msra.mxu0 0
      %392 = vmatprep.mubr.bf16.mxu0 0
      %393 = vmatmul.mubr.bf16.gmra.mrb[0].mxu0 %v345
      %v394 = vpop.f32.mrb[0].mxu0
      %v395 = vadd.f32 %v321, %v394
      %v396 = vpop.f32.mrb[0].mxu0
      %v397 = vpop.f32.mrb[0].mxu0
      %v398 = vadd.f32 %v321, %v397
      %v399 = vpop.f32.mrb[0].mxu0
      %400 = vmatprep.mubr.bf16.mxu0 0
      %401 = vmatmul.mubr.bf16.gmra.mrb[0].mxu0 %v348
      %v402 = vpop.f32.mrb[0].mxu0
      %v403 = vadd.f32 %v321, %v402
      %v404 = vpop.f32.mrb[0].mxu0
      %v405 = vpop.f32.mrb[0].mxu0
      %v406 = vadd.f32 %v321, %v405
      %v407 = vpop.f32.mrb[0].mxu0
      %408 = vmatprep.mubr.bf16.mxu0 0
      %409 = vmatmul.mubr.bf16.gmra.mrb[0].mxu0 %v351
      %v410 = vpop.f32.mrb[0].mxu0
      %v411 = vadd.f32 %v321, %v410
      %v412 = vpop.f32.mrb[0].mxu0
      %v413 = vpop.f32.mrb[0].mxu0
      %v414 = vadd.f32 %v321, %v413
      %v415 = vpop.f32.mrb[0].mxu0
      %416 = vmatprep.mubr.bf16.mxu0 0
      %417 = vmatmul.mubr.bf16.gmra.mrb[0].mxu0 %v354
      %v418 = vpop.f32.mrb[0].mxu0
      %v419 = vadd.f32 %v321, %v418
      %v420 = vpop.f32.mrb[0].mxu0
      %v421 = vpop.f32.mrb[0].mxu0
      %v422 = vadd.f32 %v321, %v421
      %v423 = vpop.f32.mrb[0].mxu0
      %424 = vdwg.mxu0
      %v425 = vld [vmem:[%s2] sm:$0x1]
      %v427 = vlaneseq
      %v428 = vshrl.u32 %v427, 7
      %v429 = vsub.s32 0, %v428
      %v430 = vrot.slane %v425, %v429
      %v440 = vunpack.c.l.b16 %v281
      %v441 = vunpack.c.h.b16 %v281
      %v442 = vunpack.c.l.b16 %v282
      %v443 = vunpack.c.h.b16 %v282
      %v444 = vunpack.c.l.b16 %v283
      %v445 = vunpack.c.h.b16 %v283
      %v446 = vunpack.c.l.b16 %v284
      %v447 = vunpack.c.h.b16 %v284
      %v448 = vunpack.c.l.b16 %v285
      %v449 = vunpack.c.h.b16 %v285
      %v450 = vunpack.c.l.b16 %v286
      %v451 = vunpack.c.h.b16 %v286
      %v452 = vunpack.c.l.b16 %v287
      %v453 = vunpack.c.h.b16 %v287
      %v454 = vunpack.c.l.b16 %v288
      %v455 = vunpack.c.h.b16 %v288
      %v456 = vpack.c.b16 %v442, %v440
      %v457 = vpack.c.b16 %v443, %v441
      %v458 = vpack.c.b16 %v446, %v444
      %v459 = vpack.c.b16 %v447, %v445
      %v460 = vpack.c.b16 %v450, %v448
      %v461 = vpack.c.b16 %v451, %v449
      %v462 = vpack.c.b16 %v454, %v452
      %v463 = vpack.c.b16 %v455, %v453
      %v486 = vunpack.c.l.b16 %v289
      %v487 = vunpack.c.l.b16 %v290
      %v488 = vunpack.c.l.b16 %v291
      %v489 = vunpack.c.l.b16 %v292
      %v490 = vunpack.c.l.b16 %v293
      %v491 = vunpack.c.l.b16 %v294
      %v492 = vunpack.c.l.b16 %v295
      %v493 = vunpack.c.l.b16 %v296
      %v494 = vunpack.c.l.b16 %v297
      %v495 = vunpack.c.l.b16 %v298
      %v496 = vunpack.c.l.b16 %v299
      %v497 = vunpack.c.l.b16 %v300
      %v498 = vunpack.c.l.b16 %v301
      %v499 = vunpack.c.l.b16 %v302
      %v500 = vunpack.c.l.b16 %v303
      %v501 = vunpack.c.l.b16 %v304
      %v502 = vunpack.c.l.b16 %v305
      %v503 = vunpack.c.l.b16 %v306
      %v504 = vpack.c.b16 %v487, %v486
      %v505 = vpack.c.b16 %v489, %v488
      %v506 = vpack.c.b16 %v491, %v490
      %v507 = vpack.c.b16 %v493, %v492
      %v508 = vpack.c.b16 %v495, %v494
      %v509 = vpack.c.b16 %v497, %v496
      %v510 = vpack.c.b16 %v499, %v498
      %v511 = vpack.c.b16 %v501, %v500
      %v512 = vpack.c.b16 %v503, %v502
      %vm522 = vcmask 130048
      %v524 = vsel %vm522, %v457, 0
      %v527 = vsel %vm522, %v459, 0
      %v530 = vsel %vm522, %v461, 0
      %v533 = vsel %vm522, %v463, 0
      %535 = vmatprep.subr.bf16.mxu0 0
      %536 = vmatpush1.bf16.msra.mxu0 %v504
      %537 = vmatprep.subr.bf16.mxu0 0
      %538 = vmatpush1.bf16.msra.mxu0 %v505
      %539 = vmatprep.subr.bf16.mxu0 0
      %540 = vmatpush1.bf16.msra.mxu0 %v506
      %541 = vmatprep.subr.bf16.mxu0 0
      %542 = vmatpush1.bf16.msra.mxu0 %v507
      %543 = vmatprep.subr.bf16.mxu0 0
      %544 = vmatpush1.bf16.msra.mxu0 %v508
      %545 = vmatprep.subr.bf16.mxu0 0
      %546 = vmatpush1.bf16.msra.mxu0 %v509
      %547 = vmatprep.subr.bf16.mxu0 0
      %548 = vmatpush1.bf16.msra.mxu0 %v510
      %549 = vmatprep.subr.bf16.mxu0 0
      %550 = vmatpush1.bf16.msra.mxu0 %v511
      %551 = vmatprep.subr.bf16.mxu0 0
      %552 = vmatpush1.bf16.msra.mxu0 %v512
      %553 = vmatprep.subr.bf16.mxu0 0
      %554 = vmatpush1.bf16.msra.mxu0 0
      %555 = vmatprep.subr.bf16.mxu0 0
      %556 = vmatpush1.bf16.msra.mxu0 0
      %557 = vmatprep.subr.bf16.mxu0 0
      %558 = vmatpush1.bf16.msra.mxu0 0
      %559 = vmatprep.subr.bf16.mxu0 0
      %560 = vmatpush1.bf16.msra.mxu0 0
      %561 = vmatprep.subr.bf16.mxu0 0
      %562 = vmatpush1.bf16.msra.mxu0 0
      %563 = vmatprep.subr.bf16.mxu0 0
      %564 = vmatpush1.bf16.msra.mxu0 0
      %565 = vmatprep.subr.bf16.mxu0 0
      %566 = vmatpush1.bf16.msra.mxu0 0
      %567 = vmatprep.mubr.bf16.mxu0 %v524
      %568 = vmatmul.mubr.bf16.gmra.mrb[0].mxu0 %v456
      %v569 = vpop.f32.mrb[0].mxu0
      %v570 = vadd.f32 %v430, %v569
      %v571 = vpop.f32.mrb[0].mxu0
      %v572 = vpop.f32.mrb[0].mxu0
      %v573 = vadd.f32 %v430, %v572
      %v574 = vpop.f32.mrb[0].mxu0
      %575 = vmatprep.mubr.bf16.mxu0 %v527
      %576 = vmatmul.mubr.bf16.gmra.mrb[0].mxu0 %v458
      %v577 = vpop.f32.mrb[0].mxu0
      %v578 = vadd.f32 %v430, %v577
      %v579 = vpop.f32.mrb[0].mxu0
      %v580 = vpop.f32.mrb[0].mxu0
      %v581 = vadd.f32 %v430, %v580
      %v582 = vpop.f32.mrb[0].mxu0
      %583 = vmatprep.mubr.bf16.mxu0 %v530
      %584 = vmatmul.mubr.bf16.gmra.mrb[0].mxu0 %v460
      %v585 = vpop.f32.mrb[0].mxu0
      %v586 = vadd.f32 %v430, %v585
      %v587 = vpop.f32.mrb[0].mxu0
      %v588 = vpop.f32.mrb[0].mxu0
      %v589 = vadd.f32 %v430, %v588
      %v590 = vpop.f32.mrb[0].mxu0
      %591 = vmatprep.mubr.bf16.mxu0 %v533
      %592 = vmatmul.mubr.bf16.gmra.mrb[0].mxu0 %v462
      %v593 = vpop.f32.mrb[0].mxu0
      %v594 = vadd.f32 %v430, %v593
      %v595 = vpop.f32.mrb[0].mxu0
      %v596 = vpop.f32.mrb[0].mxu0
      %v597 = vadd.f32 %v430, %v596
      %v598 = vpop.f32.mrb[0].mxu0
      %599 = vdwg.mxu0
      %v600 = vadd.f32 %v570, %v395
      %v601 = vadd.f32 %v573, %v398
      %v602 = vadd.f32 %v578, %v403
      %v603 = vadd.f32 %v581, %v406
      %v604 = vadd.f32 %v586, %v411
      %v605 = vadd.f32 %v589, %v414
      %v606 = vadd.f32 %v594, %v419
      %v607 = vadd.f32 %v597, %v422
      %v608 = vmax.f32 %v600, 0.0
      %v609 = vmax.f32 %v601, 0.0
      %v610 = vmax.f32 %v602, 0.0
      %v611 = vmax.f32 %v603, 0.0
      %v612 = vmax.f32 %v604, 0.0
      %v613 = vmax.f32 %v605, 0.0
      %v614 = vmax.f32 %v606, 0.0
      %v615 = vmax.f32 %v607, 0.0
      %v616 = vpack.c.bf16 %v609, %v608
      %v617 = vpack.c.bf16 %v611, %v610
      %v618 = vpack.c.bf16 %v613, %v612
      %v619 = vpack.c.bf16 %v615, %v614
      %v624 = vunpack.c.l.b16 %v616
      %v625 = vunpack.c.h.b16 %v616
      %v626 = vunpack.c.l.b16 %v617
      %v627 = vunpack.c.h.b16 %v617
      %v628 = vunpack.c.l.b16 %v618
      %v629 = vunpack.c.h.b16 %v618
      %v630 = vunpack.c.l.b16 %v619
      %v631 = vunpack.c.h.b16 %v619
      %v632 = vpack.c.b16 %v624, %v624
      %v633 = vpack.c.b16 %v625, %v625
      %v634 = vpack.c.b16 %v626, %v626
      %v635 = vpack.c.b16 %v627, %v627
      %v636 = vpack.c.b16 %v628, %v628
      %v637 = vpack.c.b16 %v629, %v629
      %v638 = vpack.c.b16 %v630, %v630
      %v639 = vpack.c.b16 %v631, %v631
      %vm648 = vcmask 125952
      %649 = vst.msk [vmem:[%s278] sm:$0xf] %vm648, %v632
      %650 = vst.msk [vmem:[%s278 + $0x4] sm:$0xf] %vm648, %v633
      %651 = vst.msk [vmem:[%s278 + $0x8] sm:$0xf] %vm648, %v634
      %652 = vst.msk [vmem:[%s278 + $0xc] sm:$0xf] %vm648, %v635
      %653 = vst.msk [vmem:[%s278 + $0x10] sm:$0xf] %vm648, %v636
      %654 = vst.msk [vmem:[%s278 + $0x14] sm:$0xf] %vm648, %v637
      %655 = vst.msk [vmem:[%s278 + $0x18] sm:$0xf] %vm648, %v638
      %656 = vst.msk [vmem:[%s278 + $0x1c] sm:$0xf] %vm648, %v639
      %s657 = smul.u32 8, %s17
      %p658 = scmp.lt.s32.totalorder %s657, 15
      %s659 = scalar_select %p658, %s657, 15
      %s660 = smul.addr %s659, 4
      %s661 = scalar_lea.vmem %s6, %s660
      // Predicated region
      $region45: #{avenet_forward.26} parent=43 // pred_check
        %p662 = pneg %p171
      $region46: #{avenet_forward.26} parent=43 // pred_check_branch
        %664 = sbr.rel (%p662) target = $region48
      $region47: #{avenet_forward.26} parent=43 // pred_region
        %s665 = smul.u32 8, %s17
      $region48: #{avenet_forward.26} parent=43 // pred_fallthru
        _
    $region44: #{avenet_forward.26} parent=5 // pred_fallthru
      _
    %p666 = scmp.le.s32.totalorder 2, %s12
    // Predicated region
    $region49: #{avenet_forward.26} parent=5 // pred_check
      %p667 = pneg %p666
    $region50: #{avenet_forward.26} parent=5 // pred_check_branch
      %669 = sbr.rel (%p667) target = $region52
    $region51: #{avenet_forward.26} parent=5 // pred_region
      %s670 = ssub.s32 %s12, 2
      // Predicated region
      $region53: #{avenet_forward.26} parent=51 // pred_check
        %p671 = pneg %p177
      $region54: #{avenet_forward.26} parent=51 // pred_check_branch
        %673 = sbr.rel (%p671) target = $region56
      $region55: #{avenet_forward.26} parent=51 // pred_region
        %s674 = smul.u32 8, %s18
        %p675 = scmp.lt.s32.totalorder %s674, 15
        %s676 = scalar_select %p675, %s674, 15
        %s677 = smul.addr %s676, 4
        %s678 = scalar_lea.vmem %s6, %s677
      $region56: #{avenet_forward.26} parent=51 // pred_fallthru
        _
    $region52: #{avenet_forward.26} parent=5 // pred_fallthru
      _
  $region6: #{avenet_forward.26} parent=0 // loop_footer
    %s16 = sadd.s32 1, %s12
  $region7: #{avenet_forward.26} parent=0 // loop_footer_branch
    %11 = sbr.rel target = $region3
  $region8: #{avenet_forward.26} parent=0 // loop_exit
    _

// kernel: avenet_forward.27
$region0: #{avenet_forward.27}
  #allocation0 [shape = 'u32[]', space=smem, size = 0x4, offset = 0x4, fixed_abs, tag = 'smem constant byte address 0x4 - core index']
  #allocation1 [shape = 'u32[144,128]{1,0:T(1,128)}', space=vmem, size = 0x12000, scoped, tag = 'internal scratch']
  %s0 = inlined_call_operand.vmem [shape: bf16[128,144], index: 0, kind: input, shape index: {}]
  %s1 = inlined_call_operand.vmem [shape: bf16[144,16], index: 1, kind: input, shape index: {}]
  %s2 = inlined_call_operand.vmem [shape: f32[1,16], index: 2, kind: input, shape index: {}]
  %s3 = inlined_call_operand.vmem [shape: bf16[128,16], index: 3, kind: output, shape index: {}]
  %s4 = sld [smem:[#allocation0]]
  $region45: #{avenet_forward.27} parent=0
    _
  %s6 = ssub.s32 1, %s4
  %s7 = scalar_select 0, %s6, %s4
  loop: start=0, step=1, limit=4
  $region2: #{avenet_forward.27} parent=0 // loop_pre_header
    _
  $region3: #{avenet_forward.27} parent=0 // loop_header
    %s9 = sphi 0, %s13
    %p10 = scmp.ge.s32.totalorder %s9, 4
    %s19 = sphi 0, %s21
    %s22 = sphi 0, %s19
    %s23 = sphi 0, %s22
    %s39 = sphi 0, %s23
    %s43 = sphi 0, %s43
    %s45 = sphi 0, %s43
    %s46 = sphi 0, %s45
    %s60 = sphi 0, %s46
    %s64 = sphi 0, %s64
    %s66 = sphi 0, %s64
    %s67 = sphi 0, %s66
    %s81 = sphi 0, %s67
    %s87 = sphi 0, %s89
    %s90 = sphi 0, %s87
    %s91 = sphi 0, %s90
    %s107 = sphi 0, %s91
  $region4: #{avenet_forward.27} parent=0 // loop_header_branch
    %12 = sbr.rel (%p10) target = $region8
  $region5: #{avenet_forward.27} parent=0 // loop_body
    %s14 = ssub.s32 %s9, 1
    %s15 = ssub.s32 %s9, 2
    %s16 = sadd.s32 %s9, 1
    %s17 = ssub.s32 %s9, %s16
    %p18 = scmp.eq.s32.totalorder %s17, 0
    %s20 = sadd.s32 %s19, 1
    %s21 = scalar_select %p18, %s19, %s20
    %p24 = pneg %p18
    %p25 = scmp.eq.s32.totalorder %s9, 1
    %p26 = por %p24, %p25
    %p27 = scmp.ne.s32.totalorder %s19, %s22
    %p28 = scmp.eq.s32.totalorder %s9, 0
    %p29 = por %p27, %p28
    %p30 = scmp.ne.s32.totalorder %s19, %s22
    %p31 = scmp.eq.s32.totalorder %s14, 1
    %p32 = por %p30, %p31
    %p33 = scmp.ne.s32.totalorder %s22, %s23
    %p34 = scmp.eq.s32.totalorder %s14, 0
    %p35 = por %p33, %p34
    %p36 = scmp.ne.s32.totalorder %s22, %s23
    %p37 = scmp.eq.s32.totalorder %s15, 1
    %p38 = por %p36, %p37
    %p40 = scmp.ne.s32.totalorder %s23, %s39
    %p41 = scmp.eq.s32.totalorder %s15, 0
    %p42 = por %p40, %p41
    %s44 = sadd.s32 %s43, 1
    %p47 = scmp.eq.s32.totalorder %s9, 1
    %p48 = scmp.ne.s32.totalorder %s43, %s45
    %p49 = scmp.eq.s32.totalorder %s9, 0
    %p50 = por %p48, %p49
    %p51 = scmp.ne.s32.totalorder %s43, %s45
    %p52 = scmp.eq.s32.totalorder %s14, 1
    %p53 = por %p51, %p52
    %p54 = scmp.ne.s32.totalorder %s45, %s46
    %p55 = scmp.eq.s32.totalorder %s14, 0
    %p56 = por %p54, %p55
    %p57 = scmp.ne.s32.totalorder %s45, %s46
    %p58 = scmp.eq.s32.totalorder %s15, 1
    %p59 = por %p57, %p58
    %p61 = scmp.ne.s32.totalorder %s46, %s60
    %p62 = scmp.eq.s32.totalorder %s15, 0
    %p63 = por %p61, %p62
    %s65 = sadd.s32 %s64, 1
    %p68 = scmp.eq.s32.totalorder %s9, 1
    %p69 = scmp.ne.s32.totalorder %s64, %s66
    %p70 = scmp.eq.s32.totalorder %s9, 0
    %p71 = por %p69, %p70
    %p72 = scmp.ne.s32.totalorder %s64, %s66
    %p73 = scmp.eq.s32.totalorder %s14, 1
    %p74 = por %p72, %p73
    %p75 = scmp.ne.s32.totalorder %s66, %s67
    %p76 = scmp.eq.s32.totalorder %s14, 0
    %p77 = por %p75, %p76
    %p78 = scmp.ne.s32.totalorder %s66, %s67
    %p79 = scmp.eq.s32.totalorder %s15, 1
    %p80 = por %p78, %p79
    %p82 = scmp.ne.s32.totalorder %s67, %s81
    %p83 = scmp.eq.s32.totalorder %s15, 0
    %p84 = por %p82, %p83
    %s85 = ssub.s32 %s9, %s16
    %p86 = scmp.eq.s32.totalorder %s85, 0
    %s88 = sadd.s32 %s87, 1
    %s89 = scalar_select %p86, %s87, %s88
    %p92 = pneg %p86
    %p93 = scmp.eq.s32.totalorder %s9, 1
    %p94 = por %p92, %p93
    %p95 = scmp.ne.s32.totalorder %s87, %s90
    %p96 = scmp.eq.s32.totalorder %s9, 0
    %p97 = por %p95, %p96
    %p98 = scmp.ne.s32.totalorder %s87, %s90
    %p99 = scmp.eq.s32.totalorder %s14, 1
    %p100 = por %p98, %p99
    %p101 = scmp.ne.s32.totalorder %s90, %s91
    %p102 = scmp.eq.s32.totalorder %s14, 0
    %p103 = por %p101, %p102
    %p104 = scmp.ne.s32.totalorder %s90, %s91
    %p105 = scmp.eq.s32.totalorder %s15, 1
    %p106 = por %p104, %p105
    %p108 = scmp.ne.s32.totalorder %s91, %s107
    %p109 = scmp.eq.s32.totalorder %s15, 0
    %p110 = por %p108, %p109
    %p111 = scmp.le.s32.totalorder 1, %s9
    %p112 = scmp.lt.s32.totalorder %s9, 3
    %p113 = pnand %p111, %p112
    %p114 = pneg %p113
    // Predicated region
    $region9: #{avenet_forward.27} parent=5 // pred_check
      _
    $region10: #{avenet_forward.27} parent=5 // pred_check_branch
      %116 = sbr.rel (%p113) target = $region12
    $region11: #{avenet_forward.27} parent=5 // pred_region
      %s117 = ssub.s32 %s9, 1
      // Predicated region
      $region13: #{avenet_forward.27} parent=11 // pred_check
        %p118 = pneg %p56
      $region14: #{avenet_forward.27} parent=11 // pred_check_branch
        %120 = sbr.rel (%p118) target = $region16
      $region15: #{avenet_forward.27} parent=11 // pred_region
        _
      $region16: #{avenet_forward.27} parent=11 // pred_fallthru
        _
      // Predicated region
      $region17: #{avenet_forward.27} parent=11 // pred_check
        %p121 = pneg %p77
      $region18: #{avenet_forward.27} parent=11 // pred_check_branch
        %123 = sbr.rel (%p121) target = $region20
      $region19: #{avenet_forward.27} parent=11 // pred_region
        _
      $region20: #{avenet_forward.27} parent=11 // pred_fallthru
        _
    $region12: #{avenet_forward.27} parent=5 // pred_fallthru
      _
    %p124 = scmp.lt.s32.totalorder %s9, 2
    // Predicated region
    $region21: #{avenet_forward.27} parent=5 // pred_check
      %p125 = pneg %p124
    $region22: #{avenet_forward.27} parent=5 // pred_check_branch
      %127 = sbr.rel (%p125) target = $region24
    $region23: #{avenet_forward.27} parent=5 // pred_region
      // Predicated region
      $region25: #{avenet_forward.27} parent=23 // pred_check
        %p128 = pneg %p29
      $region26: #{avenet_forward.27} parent=23 // pred_check_branch
        %130 = sbr.rel (%p128) target = $region28
      $region27: #{avenet_forward.27} parent=23 // pred_region
        %s131 = smul.u32 8, %s9
        %p132 = scmp.lt.s32.totalorder %s131, 15
        %s133 = scalar_select %p132, %s131, 15
        %s134 = smul.addr %s133, 2
        %s135 = smul.addr %s134, 4
        %s136 = scalar_lea.vmem %s0, %s135
        %s137 = smul.u32 8, %s9
      $region28: #{avenet_forward.27} parent=23 // pred_fallthru
        _
    $region24: #{avenet_forward.27} parent=5 // pred_fallthru
      _
    %p138 = scmp.le.s32.totalorder 1, %s9
    %p139 = scmp.lt.s32.totalorder %s9, 3
    %p140 = pnand %p138, %p139
    %p141 = pneg %p140
    // Predicated region
    $region29: #{avenet_forward.27} parent=5 // pred_check
      _
    $region30: #{avenet_forward.27} parent=5 // pred_check_branch
      %143 = sbr.rel (%p140) target = $region32
    $region31: #{avenet_forward.27} parent=5 // pred_region
      %s144 = ssub.s32 %s9, 1
      %s145 = smul.u32 8, %s14
      %p146 = scmp.lt.s32.totalorder %s145, 15
      %s147 = scalar_select %p146, %s145, 15
      %s148 = smul.addr %s147, 2
      %s149 = smul.addr %s148, 4
      %s150 = scalar_lea.vmem %s0, %s149
      %p151 = pneg %p35
      %p152 = pneg %p32
      %p153 = pneg %p56
      %p154 = pneg %p53
      %p155 = pneg %p77
      %p156 = pneg %p74
      %p157 = pneg %p103
      %p158 = pneg %p100
      %s159 = smul.u32 8, %s14
      %p160 = scmp.lt.s32.totalorder %s159, 15
      %s161 = scalar_select %p160, %s159, 15
      %s162 = smul.addr %s161, 4
      %s163 = scalar_lea.vmem %s3, %s162
      %s164 = smul.u32 8, %s14
      %p165 = scmp.lt.s32.totalorder %s164, 15
      %s166 = scalar_select %p165, %s164, 15
      %s167 = smul.addr %s166, 2
      %s168 = smul.addr %s167, 4
      %s169 = scalar_lea.vmem %s0, %s168
      %s170 = smul.u32 8, %s14
      %s171 = smul.u32 8, %s14
      %p172 = scmp.lt.s32.totalorder %s171, 15
      %s173 = scalar_select %p172, %s171, 15
      %s174 = smul.addr %s173, 4
      %s175 = scalar_lea.vmem %s3, %s174
      %s176 = smul.u32 8, %s14
      %v178 = vld [vmem:[%s169] sm:$0xff]
      %v179 = vld [vmem:[%s169 + $0x8] sm:$0xff]
      %v180 = vld [vmem:[%s169 + $0x10] sm:$0xff]
      %v181 = vld [vmem:[%s169 + $0x18] sm:$0xff]
      %v182 = vld [vmem:[%s169 + $0x20] sm:$0xff]
      %v183 = vld [vmem:[%s169 + $0x28] sm:$0xff]
      %v184 = vld [vmem:[%s169 + $0x30] sm:$0xff]
      %v185 = vld [vmem:[%s169 + $0x38] sm:$0xff]
      %v186 = vld [vmem:[%s1] sm:$0xf]
      %v187 = vld [vmem:[%s1 + $0x4] sm:$0xf]
      %v188 = vld [vmem:[%s1 + $0x8] sm:$0xf]
      %v189 = vld [vmem:[%s1 + $0xc] sm:$0xf]
      %v190 = vld [vmem:[%s1 + $0x10] sm:$0xf]
      %v191 = vld [vmem:[%s1 + $0x14] sm:$0xf]
      %v192 = vld [vmem:[%s1 + $0x18] sm:$0xf]
      %v193 = vld [vmem:[%s1 + $0x1c] sm:$0xf]
      %v194 = vld [vmem:[%s1 + $0x20] sm:$0xf]
      %v195 = vld [vmem:[%s1 + $0x24] sm:$0xf]
      %v196 = vld [vmem:[%s1 + $0x28] sm:$0xf]
      %v197 = vld [vmem:[%s1 + $0x2c] sm:$0xf]
      %v198 = vld [vmem:[%s1 + $0x30] sm:$0xf]
      %v199 = vld [vmem:[%s1 + $0x34] sm:$0xf]
      %v200 = vld [vmem:[%s1 + $0x38] sm:$0xf]
      %v201 = vld [vmem:[%s1 + $0x3c] sm:$0xf]
      %v202 = vld [vmem:[%s1 + $0x40] sm:$0xf]
      %v203 = vld [vmem:[%s1 + $0x44] sm:$0xf]
      %v204 = vld [vmem:[%s2] sm:$0x1]
      %v206 = vlaneseq
      %v207 = vshrl.u32 %v206, 7
      %v208 = vsub.s32 0, %v207
      %v209 = vrot.slane %v204, %v208
      %v219 = vunpack.c.l.b16 %v178
      %v220 = vunpack.c.h.b16 %v178
      %v221 = vunpack.c.l.b16 %v179
      %v222 = vunpack.c.h.b16 %v179
      %v223 = vunpack.c.l.b16 %v180
      %v224 = vunpack.c.h.b16 %v180
      %v225 = vunpack.c.l.b16 %v181
      %v226 = vunpack.c.h.b16 %v181
      %v227 = vunpack.c.l.b16 %v182
      %v228 = vunpack.c.h.b16 %v182
      %v229 = vunpack.c.l.b16 %v183
      %v230 = vunpack.c.h.b16 %v183
      %v231 = vunpack.c.l.b16 %v184
      %v232 = vunpack.c.h.b16 %v184
      %v233 = vunpack.c.l.b16 %v185
      %v234 = vunpack.c.h.b16 %v185
      %v235 = vpack.c.b16 %v221, %v219
      %v236 = vpack.c.b16 %v222, %v220
      %v237 = vpack.c.b16 %v225, %v223
      %v238 = vpack.c.b16 %v226, %v224
      %v239 = vpack.c.b16 %v229, %v227
      %v240 = vpack.c.b16 %v230, %v228
      %v241 = vpack.c.b16 %v233, %v231
      %v242 = vpack.c.b16 %v234, %v232
      %v265 = vunpack.c.l.b16 %v186
      %v266 = vunpack.c.l.b16 %v187
      %v267 = vunpack.c.l.b16 %v188
      %v268 = vunpack.c.l.b16 %v189
      %v269 = vunpack.c.l.b16 %v190
      %v270 = vunpack.c.l.b16 %v191
      %v271 = vunpack.c.l.b16 %v192
      %v272 = vunpack.c.l.b16 %v193
      %v273 = vunpack.c.l.b16 %v194
      %v274 = vunpack.c.l.b16 %v195
      %v275 = vunpack.c.l.b16 %v196
      %v276 = vunpack.c.l.b16 %v197
      %v277 = vunpack.c.l.b16 %v198
      %v278 = vunpack.c.l.b16 %v199
      %v279 = vunpack.c.l.b16 %v200
      %v280 = vunpack.c.l.b16 %v201
      %v281 = vunpack.c.l.b16 %v202
      %v282 = vunpack.c.l.b16 %v203
      %v283 = vpack.c.b16 %v266, %v265
      %v284 = vpack.c.b16 %v268, %v267
      %v285 = vpack.c.b16 %v270, %v269
      %v286 = vpack.c.b16 %v272, %v271
      %v287 = vpack.c.b16 %v274, %v273
      %v288 = vpack.c.b16 %v276, %v275
      %v289 = vpack.c.b16 %v278, %v277
      %v290 = vpack.c.b16 %v280, %v279
      %v291 = vpack.c.b16 %v282, %v281
      %vm301 = vcmask 130048
      %v303 = vsel %vm301, %v236, 0
      %v306 = vsel %vm301, %v238, 0
      %v309 = vsel %vm301, %v240, 0
      %v312 = vsel %vm301, %v242, 0
      %314 = vmatprep.subr.bf16.mxu0 0
      %315 = vmatpush1.bf16.msra.mxu0 %v283
      %316 = vmatprep.subr.bf16.mxu0 0
      %317 = vmatpush1.bf16.msra.mxu0 %v284
      %318 = vmatprep.subr.bf16.mxu0 0
      %319 = vmatpush1.bf16.msra.mxu0 %v285
      %320 = vmatprep.subr.bf16.mxu0 0
      %321 = vmatpush1.bf16.msra.mxu0 %v286
      %322 = vmatprep.subr.bf16.mxu0 0
      %323 = vmatpush1.bf16.msra.mxu0 %v287
      %324 = vmatprep.subr.bf16.mxu0 0
      %325 = vmatpush1.bf16.msra.mxu0 %v288
      %326 = vmatprep.subr.bf16.mxu0 0
      %327 = vmatpush1.bf16.msra.mxu0 %v289
      %328 = vmatprep.subr.bf16.mxu0 0
      %329 = vmatpush1.bf16.msra.mxu0 %v290
      %330 = vmatprep.subr.bf16.mxu0 0
      %331 = vmatpush1.bf16.msra.mxu0 %v291
      %332 = vmatprep.subr.bf16.mxu0 0
      %333 = vmatpush1.bf16.msra.mxu0 0
      %334 = vmatprep.subr.bf16.mxu0 0
      %335 = vmatpush1.bf16.msra.mxu0 0
      %336 = vmatprep.subr.bf16.mxu0 0
      %337 = vmatpush1.bf16.msra.mxu0 0
      %338 = vmatprep.subr.bf16.mxu0 0
      %339 = vmatpush1.bf16.msra.mxu0 0
      %340 = vmatprep.subr.bf16.mxu0 0
      %341 = vmatpush1.bf16.msra.mxu0 0
      %342 = vmatprep.subr.bf16.mxu0 0
      %343 = vmatpush1.bf16.msra.mxu0 0
      %344 = vmatprep.subr.bf16.mxu0 0
      %345 = vmatpush1.bf16.msra.mxu0 0
      %346 = vmatprep.mubr.bf16.mxu0 %v303
      %347 = vmatmul.mubr.bf16.gmra.mrb[0].mxu0 %v235
      %v348 = vpop.f32.mrb[0].mxu0
      %v349 = vadd.f32 %v209, %v348
      %v350 = vpop.f32.mrb[0].mxu0
      %v351 = vpop.f32.mrb[0].mxu0
      %v352 = vadd.f32 %v209, %v351
      %v353 = vpop.f32.mrb[0].mxu0
      %354 = vmatprep.mubr.bf16.mxu0 %v306
      %355 = vmatmul.mubr.bf16.gmra.mrb[0].mxu0 %v237
      %v356 = vpop.f32.mrb[0].mxu0
      %v357 = vadd.f32 %v209, %v356
      %v358 = vpop.f32.mrb[0].mxu0
      %v359 = vpop.f32.mrb[0].mxu0
      %v360 = vadd.f32 %v209, %v359
      %v361 = vpop.f32.mrb[0].mxu0
      %362 = vmatprep.mubr.bf16.mxu0 %v309
      %363 = vmatmul.mubr.bf16.gmra.mrb[0].mxu0 %v239
      %v364 = vpop.f32.mrb[0].mxu0
      %v365 = vadd.f32 %v209, %v364
      %v366 = vpop.f32.mrb[0].mxu0
      %v367 = vpop.f32.mrb[0].mxu0
      %v368 = vadd.f32 %v209, %v367
      %v369 = vpop.f32.mrb[0].mxu0
      %370 = vmatprep.mubr.bf16.mxu0 %v312
      %371 = vmatmul.mubr.bf16.gmra.mrb[0].mxu0 %v241
      %v372 = vpop.f32.mrb[0].mxu0
      %v373 = vadd.f32 %v209, %v372
      %v374 = vpop.f32.mrb[0].mxu0
      %v375 = vpop.f32.mrb[0].mxu0
      %v376 = vadd.f32 %v209, %v375
      %v377 = vpop.f32.mrb[0].mxu0
      %378 = vdwg.mxu0
      %v379 = vmax.f32 %v349, 0.0
      %v380 = vmax.f32 %v352, 0.0
      %v381 = vmax.f32 %v357, 0.0
      %v382 = vmax.f32 %v360, 0.0
      %v383 = vmax.f32 %v365, 0.0
      %v384 = vmax.f32 %v368, 0.0
      %v385 = vmax.f32 %v373, 0.0
      %v386 = vmax.f32 %v376, 0.0
      %v387 = vpack.c.bf16 %v380, %v379
      %v388 = vpack.c.bf16 %v382, %v381
      %v389 = vpack.c.bf16 %v384, %v383
      %v390 = vpack.c.bf16 %v386, %v385
      %v395 = vunpack.c.l.b16 %v387
      %v396 = vunpack.c.h.b16 %v387
      %v397 = vunpack.c.l.b16 %v388
      %v398 = vunpack.c.h.b16 %v388
      %v399 = vunpack.c.l.b16 %v389
      %v400 = vunpack.c.h.b16 %v389
      %v401 = vunpack.c.l.b16 %v390
      %v402 = vunpack.c.h.b16 %v390
      %v403 = vpack.c.b16 %v395, %v395
      %v404 = vpack.c.b16 %v396, %v396
      %v405 = vpack.c.b16 %v397, %v397
      %v406 = vpack.c.b16 %v398, %v398
      %v407 = vpack.c.b16 %v399, %v399
      %v408 = vpack.c.b16 %v400, %v400
      %v409 = vpack.c.b16 %v401, %v401
      %v410 = vpack.c.b16 %v402, %v402
      %vm419 = vcmask 125952
      %420 = vst.msk [vmem:[%s175] sm:$0xf] %vm419, %v403
      %421 = vst.msk [vmem:[%s175 + $0x4] sm:$0xf] %vm419, %v404
      %422 = vst.msk [vmem:[%s175 + $0x8] sm:$0xf] %vm419, %v405
      %423 = vst.msk [vmem:[%s175 + $0xc] sm:$0xf] %vm419, %v406
      %424 = vst.msk [vmem:[%s175 + $0x10] sm:$0xf] %vm419, %v407
      %425 = vst.msk [vmem:[%s175 + $0x14] sm:$0xf] %vm419, %v408
      %426 = vst.msk [vmem:[%s175 + $0x18] sm:$0xf] %vm419, %v409
      %427 = vst.msk [vmem:[%s175 + $0x1c] sm:$0xf] %vm419, %v410
      %s428 = smul.u32 8, %s14
      %p429 = scmp.lt.s32.totalorder %s428, 15
      %s430 = scalar_select %p429, %s428, 15
      %s431 = smul.addr %s430, 4
      %s432 = scalar_lea.vmem %s3, %s431
      // Predicated region
      $region33: #{avenet_forward.27} parent=31 // pred_check
        %p433 = pneg %p100
      $region34: #{avenet_forward.27} parent=31 // pred_check_branch
        %435 = sbr.rel (%p433) target = $region36
      $region35: #{avenet_forward.27} parent=31 // pred_region
        %s436 = smul.u32 8, %s14
      $region36: #{avenet_forward.27} parent=31 // pred_fallthru
        _
    $region32: #{avenet_forward.27} parent=5 // pred_fallthru
      _
    %p437 = scmp.le.s32.totalorder 2, %s9
    // Predicated region
    $region37: #{avenet_forward.27} parent=5 // pred_check
      %p438 = pneg %p437
    $region38: #{avenet_forward.27} parent=5 // pred_check_branch
      %440 = sbr.rel (%p438) target = $region40
    $region39: #{avenet_forward.27} parent=5 // pred_region
      %s441 = ssub.s32 %s9, 2
      // Predicated region
      $region41: #{avenet_forward.27} parent=39 // pred_check
        %p442 = pneg %p106
      $region42: #{avenet_forward.27} parent=39 // pred_check_branch
        %444 = sbr.rel (%p442) target = $region44
      $region43: #{avenet_forward.27} parent=39 // pred_region
        %s445 = smul.u32 8, %s15
        %p446 = scmp.lt.s32.totalorder %s445, 15
        %s447 = scalar_select %p446, %s445, 15
        %s448 = smul.addr %s447, 4
        %s449 = scalar_lea.vmem %s3, %s448
      $region44: #{avenet_forward.27} parent=39 // pred_fallthru
        _
    $region40: #{avenet_forward.27} parent=5 // pred_fallthru
      _
  $region6: #{avenet_forward.27} parent=0 // loop_footer
    %s13 = sadd.s32 1, %s9
  $region7: #{avenet_forward.27} parent=0 // loop_footer_branch
    %8 = sbr.rel target = $region3
  $region8: #{avenet_forward.27} parent=0 // loop_exit
    _

// kernel: avenet_forward.28
$region0: #{avenet_forward.28}
  #allocation0 [shape = 'u32[]', space=smem, size = 0x4, offset = 0x4, fixed_abs, tag = 'smem constant byte address 0x4 - core index']
  #allocation1 [shape = 'u32[144,128]{1,0:T(1,128)}', space=vmem, size = 0x12000, scoped, tag = 'internal scratch']
  %s0 = inlined_call_operand.vmem [shape: bf16[128,144], index: 0, kind: input, shape index: {}]
  %s1 = inlined_call_operand.vmem [shape: bf16[144,16], index: 1, kind: input, shape index: {}]
  %s2 = inlined_call_operand.vmem [shape: f32[1,16], index: 2, kind: input, shape index: {}]
  %s3 = inlined_call_operand.vmem [shape: bf16[128,16], index: 3, kind: input, shape index: {}]
  %s4 = inlined_call_operand.vmem [shape: bf16[128,16], index: 4, kind: output, shape index: {}]
  %s5 = sld [smem:[#allocation0]]
  $region49: #{avenet_forward.28} parent=0
    _
  %s7 = ssub.s32 1, %s5
  %s8 = scalar_select 0, %s7, %s5
  loop: start=0, step=1, limit=4
  $region2: #{avenet_forward.28} parent=0 // loop_pre_header
    _
  $region3: #{avenet_forward.28} parent=0 // loop_header
    %s10 = sphi 0, %s14
    %p11 = scmp.ge.s32.totalorder %s10, 4
    %s20 = sphi 0, %s22
    %s23 = sphi 0, %s20
    %s24 = sphi 0, %s23
    %s40 = sphi 0, %s24
    %s44 = sphi 0, %s44
    %s46 = sphi 0, %s44
    %s47 = sphi 0, %s46
    %s61 = sphi 0, %s47
    %s65 = sphi 0, %s65
    %s67 = sphi 0, %s65
    %s68 = sphi 0, %s67
    %s82 = sphi 0, %s68
    %s88 = sphi 0, %s90
    %s91 = sphi 0, %s88
    %s92 = sphi 0, %s91
    %s108 = sphi 0, %s92
    %s114 = sphi 0, %s116
    %s117 = sphi 0, %s114
    %s118 = sphi 0, %s117
    %s134 = sphi 0, %s118
  $region4: #{avenet_forward.28} parent=0 // loop_header_branch
    %13 = sbr.rel (%p11) target = $region8
  $region5: #{avenet_forward.28} parent=0 // loop_body
    %s15 = ssub.s32 %s10, 1
    %s16 = ssub.s32 %s10, 2
    %s17 = sadd.s32 %s10, 1
    %s18 = ssub.s32 %s10, %s17
    %p19 = scmp.eq.s32.totalorder %s18, 0
    %s21 = sadd.s32 %s20, 1
    %s22 = scalar_select %p19, %s20, %s21
    %p25 = pneg %p19
    %p26 = scmp.eq.s32.totalorder %s10, 1
    %p27 = por %p25, %p26
    %p28 = scmp.ne.s32.totalorder %s20, %s23
    %p29 = scmp.eq.s32.totalorder %s10, 0
    %p30 = por %p28, %p29
    %p31 = scmp.ne.s32.totalorder %s20, %s23
    %p32 = scmp.eq.s32.totalorder %s15, 1
    %p33 = por %p31, %p32
    %p34 = scmp.ne.s32.totalorder %s23, %s24
    %p35 = scmp.eq.s32.totalorder %s15, 0
    %p36 = por %p34, %p35
    %p37 = scmp.ne.s32.totalorder %s23, %s24
    %p38 = scmp.eq.s32.totalorder %s16, 1
    %p39 = por %p37, %p38
    %p41 = scmp.ne.s32.totalorder %s24, %s40
    %p42 = scmp.eq.s32.totalorder %s16, 0
    %p43 = por %p41, %p42
    %s45 = sadd.s32 %s44, 1
    %p48 = scmp.eq.s32.totalorder %s10, 1
    %p49 = scmp.ne.s32.totalorder %s44, %s46
    %p50 = scmp.eq.s32.totalorder %s10, 0
    %p51 = por %p49, %p50
    %p52 = scmp.ne.s32.totalorder %s44, %s46
    %p53 = scmp.eq.s32.totalorder %s15, 1
    %p54 = por %p52, %p53
    %p55 = scmp.ne.s32.totalorder %s46, %s47
    %p56 = scmp.eq.s32.totalorder %s15, 0
    %p57 = por %p55, %p56
    %p58 = scmp.ne.s32.totalorder %s46, %s47
    %p59 = scmp.eq.s32.totalorder %s16, 1
    %p60 = por %p58, %p59
    %p62 = scmp.ne.s32.totalorder %s47, %s61
    %p63 = scmp.eq.s32.totalorder %s16, 0
    %p64 = por %p62, %p63
    %s66 = sadd.s32 %s65, 1
    %p69 = scmp.eq.s32.totalorder %s10, 1
    %p70 = scmp.ne.s32.totalorder %s65, %s67
    %p71 = scmp.eq.s32.totalorder %s10, 0
    %p72 = por %p70, %p71
    %p73 = scmp.ne.s32.totalorder %s65, %s67
    %p74 = scmp.eq.s32.totalorder %s15, 1
    %p75 = por %p73, %p74
    %p76 = scmp.ne.s32.totalorder %s67, %s68
    %p77 = scmp.eq.s32.totalorder %s15, 0
    %p78 = por %p76, %p77
    %p79 = scmp.ne.s32.totalorder %s67, %s68
    %p80 = scmp.eq.s32.totalorder %s16, 1
    %p81 = por %p79, %p80
    %p83 = scmp.ne.s32.totalorder %s68, %s82
    %p84 = scmp.eq.s32.totalorder %s16, 0
    %p85 = por %p83, %p84
    %s86 = ssub.s32 %s10, %s17
    %p87 = scmp.eq.s32.totalorder %s86, 0
    %s89 = sadd.s32 %s88, 1
    %s90 = scalar_select %p87, %s88, %s89
    %p93 = pneg %p87
    %p94 = scmp.eq.s32.totalorder %s10, 1
    %p95 = por %p93, %p94
    %p96 = scmp.ne.s32.totalorder %s88, %s91
    %p97 = scmp.eq.s32.totalorder %s10, 0
    %p98 = por %p96, %p97
    %p99 = scmp.ne.s32.totalorder %s88, %s91
    %p100 = scmp.eq.s32.totalorder %s15, 1
    %p101 = por %p99, %p100
    %p102 = scmp.ne.s32.totalorder %s91, %s92
    %p103 = scmp.eq.s32.totalorder %s15, 0
    %p104 = por %p102, %p103
    %p105 = scmp.ne.s32.totalorder %s91, %s92
    %p106 = scmp.eq.s32.totalorder %s16, 1
    %p107 = por %p105, %p106
    %p109 = scmp.ne.s32.totalorder %s92, %s108
    %p110 = scmp.eq.s32.totalorder %s16, 0
    %p111 = por %p109, %p110
    %s112 = ssub.s32 %s10, %s17
    %p113 = scmp.eq.s32.totalorder %s112, 0
    %s115 = sadd.s32 %s114, 1
    %s116 = scalar_select %p113, %s114, %s115
    %p119 = pneg %p113
    %p120 = scmp.eq.s32.totalorder %s10, 1
    %p121 = por %p119, %p120
    %p122 = scmp.ne.s32.totalorder %s114, %s117
    %p123 = scmp.eq.s32.totalorder %s10, 0
    %p124 = por %p122, %p123
    %p125 = scmp.ne.s32.totalorder %s114, %s117
    %p126 = scmp.eq.s32.totalorder %s15, 1
    %p127 = por %p125, %p126
    %p128 = scmp.ne.s32.totalorder %s117, %s118
    %p129 = scmp.eq.s32.totalorder %s15, 0
    %p130 = por %p128, %p129
    %p131 = scmp.ne.s32.totalorder %s117, %s118
    %p132 = scmp.eq.s32.totalorder %s16, 1
    %p133 = por %p131, %p132
    %p135 = scmp.ne.s32.totalorder %s118, %s134
    %p136 = scmp.eq.s32.totalorder %s16, 0
    %p137 = por %p135, %p136
    %p138 = scmp.le.s32.totalorder 1, %s10
    %p139 = scmp.lt.s32.totalorder %s10, 3
    %p140 = pnand %p138, %p139
    %p141 = pneg %p140
    // Predicated region
    $region9: #{avenet_forward.28} parent=5 // pred_check
      _
    $region10: #{avenet_forward.28} parent=5 // pred_check_branch
      %143 = sbr.rel (%p140) target = $region12
    $region11: #{avenet_forward.28} parent=5 // pred_region
      %s144 = ssub.s32 %s10, 1
      // Predicated region
      $region13: #{avenet_forward.28} parent=11 // pred_check
        %p145 = pneg %p57
      $region14: #{avenet_forward.28} parent=11 // pred_check_branch
        %147 = sbr.rel (%p145) target = $region16
      $region15: #{avenet_forward.28} parent=11 // pred_region
        _
      $region16: #{avenet_forward.28} parent=11 // pred_fallthru
        _
      // Predicated region
      $region17: #{avenet_forward.28} parent=11 // pred_check
        %p148 = pneg %p78
      $region18: #{avenet_forward.28} parent=11 // pred_check_branch
        %150 = sbr.rel (%p148) target = $region20
      $region19: #{avenet_forward.28} parent=11 // pred_region
        _
      $region20: #{avenet_forward.28} parent=11 // pred_fallthru
        _
    $region12: #{avenet_forward.28} parent=5 // pred_fallthru
      _
    %p151 = scmp.lt.s32.totalorder %s10, 2
    // Predicated region
    $region21: #{avenet_forward.28} parent=5 // pred_check
      %p152 = pneg %p151
    $region22: #{avenet_forward.28} parent=5 // pred_check_branch
      %154 = sbr.rel (%p152) target = $region24
    $region23: #{avenet_forward.28} parent=5 // pred_region
      // Predicated region
      $region25: #{avenet_forward.28} parent=23 // pred_check
        %p155 = pneg %p30
      $region26: #{avenet_forward.28} parent=23 // pred_check_branch
        %157 = sbr.rel (%p155) target = $region28
      $region27: #{avenet_forward.28} parent=23 // pred_region
        %s158 = smul.u32 8, %s10
        %p159 = scmp.lt.s32.totalorder %s158, 15
        %s160 = scalar_select %p159, %s158, 15
        %s161 = smul.addr %s160, 2
        %s162 = smul.addr %s161, 4
        %s163 = scalar_lea.vmem %s0, %s162
        %s164 = smul.u32 8, %s10
      $region28: #{avenet_forward.28} parent=23 // pred_fallthru
        _
      // Predicated region
      $region29: #{avenet_forward.28} parent=23 // pred_check
        %p165 = pneg %p98
      $region30: #{avenet_forward.28} parent=23 // pred_check_branch
        %167 = sbr.rel (%p165) target = $region32
      $region31: #{avenet_forward.28} parent=23 // pred_region
        %s168 = smul.u32 8, %s10
        %p169 = scmp.lt.s32.totalorder %s168, 15
        %s170 = scalar_select %p169, %s168, 15
        %s171 = smul.addr %s170, 4
        %s172 = scalar_lea.vmem %s3, %s171
        %s173 = smul.u32 8, %s10
      $region32: #{avenet_forward.28} parent=23 // pred_fallthru
        _
    $region24: #{avenet_forward.28} parent=5 // pred_fallthru
      _
    %p174 = scmp.le.s32.totalorder 1, %s10
    %p175 = scmp.lt.s32.totalorder %s10, 3
    %p176 = pnand %p174, %p175
    %p177 = pneg %p176
    // Predicated region
    $region33: #{avenet_forward.28} parent=5 // pred_check
      _
    $region34: #{avenet_forward.28} parent=5 // pred_check_branch
      %179 = sbr.rel (%p176) target = $region36
    $region35: #{avenet_forward.28} parent=5 // pred_region
      %s180 = ssub.s32 %s10, 1
      %s181 = smul.u32 8, %s15
      %p182 = scmp.lt.s32.totalorder %s181, 15
      %s183 = scalar_select %p182, %s181, 15
      %s184 = smul.addr %s183, 2
      %s185 = smul.addr %s184, 4
      %s186 = scalar_lea.vmem %s0, %s185
      %p187 = pneg %p36
      %p188 = pneg %p33
      %p189 = pneg %p57
      %p190 = pneg %p54
      %p191 = pneg %p78
      %p192 = pneg %p75
      %s193 = smul.u32 8, %s15
      %p194 = scmp.lt.s32.totalorder %s193, 15
      %s195 = scalar_select %p194, %s193, 15
      %s196 = smul.addr %s195, 4
      %s197 = scalar_lea.vmem %s3, %s196
      %p198 = pneg %p104
      %p199 = pneg %p101
      %p200 = pneg %p130
      %p201 = pneg %p127
      %s202 = smul.u32 8, %s15
      %p203 = scmp.lt.s32.totalorder %s202, 15
      %s204 = scalar_select %p203, %s202, 15
      %s205 = smul.addr %s204, 4
      %s206 = scalar_lea.vmem %s4, %s205
      %s207 = smul.u32 8, %s15
      %p208 = scmp.lt.s32.totalorder %s207, 15
      %s209 = scalar_select %p208, %s207, 15
      %s210 = smul.addr %s209, 2
      %s211 = smul.addr %s210, 4
      %s212 = scalar_lea.vmem %s0, %s211
      %s213 = smul.u32 8, %s15
      %s214 = smul.u32 8, %s15
      %p215 = scmp.lt.s32.totalorder %s214, 15
      %s216 = scalar_select %p215, %s214, 15
      %s217 = smul.addr %s216, 4
      %s218 = scalar_lea.vmem %s3, %s217
      %s219 = smul.u32 8, %s15
      %s220 = smul.u32 8, %s15
      %p221 = scmp.lt.s32.totalorder %s220, 15
      %s222 = scalar_select %p221, %s220, 15
      %s223 = smul.addr %s222, 4
      %s224 = scalar_lea.vmem %s4, %s223
      %s225 = smul.u32 8, %s15
      %v227 = vld [vmem:[%s212] sm:$0xff]
      %v228 = vld [vmem:[%s212 + $0x8] sm:$0xff]
      %v229 = vld [vmem:[%s212 + $0x10] sm:$0xff]
      %v230 = vld [vmem:[%s212 + $0x18] sm:$0xff]
      %v231 = vld [vmem:[%s212 + $0x20] sm:$0xff]
      %v232 = vld [vmem:[%s212 + $0x28] sm:$0xff]
      %v233 = vld [vmem:[%s212 + $0x30] sm:$0xff]
      %v234 = vld [vmem:[%s212 + $0x38] sm:$0xff]
      %v235 = vld [vmem:[%s1] sm:$0xf]
      %v236 = vld [vmem:[%s1 + $0x4] sm:$0xf]
      %v237 = vld [vmem:[%s1 + $0x8] sm:$0xf]
      %v238 = vld [vmem:[%s1 + $0xc] sm:$0xf]
      %v239 = vld [vmem:[%s1 + $0x10] sm:$0xf]
      %v240 = vld [vmem:[%s1 + $0x14] sm:$0xf]
      %v241 = vld [vmem:[%s1 + $0x18] sm:$0xf]
      %v242 = vld [vmem:[%s1 + $0x1c] sm:$0xf]
      %v243 = vld [vmem:[%s1 + $0x20] sm:$0xf]
      %v244 = vld [vmem:[%s1 + $0x24] sm:$0xf]
      %v245 = vld [vmem:[%s1 + $0x28] sm:$0xf]
      %v246 = vld [vmem:[%s1 + $0x2c] sm:$0xf]
      %v247 = vld [vmem:[%s1 + $0x30] sm:$0xf]
      %v248 = vld [vmem:[%s1 + $0x34] sm:$0xf]
      %v249 = vld [vmem:[%s1 + $0x38] sm:$0xf]
      %v250 = vld [vmem:[%s1 + $0x3c] sm:$0xf]
      %v251 = vld [vmem:[%s1 + $0x40] sm:$0xf]
      %v252 = vld [vmem:[%s1 + $0x44] sm:$0xf]
      %v253 = vld [vmem:[%s2] sm:$0x1]
      %v255 = vlaneseq
      %v256 = vshrl.u32 %v255, 7
      %v257 = vsub.s32 0, %v256
      %v258 = vrot.slane %v253, %v257
      %v268 = vunpack.c.l.b16 %v227
      %v269 = vunpack.c.h.b16 %v227
      %v270 = vunpack.c.l.b16 %v228
      %v271 = vunpack.c.h.b16 %v228
      %v272 = vunpack.c.l.b16 %v229
      %v273 = vunpack.c.h.b16 %v229
      %v274 = vunpack.c.l.b16 %v230
      %v275 = vunpack.c.h.b16 %v230
      %v276 = vunpack.c.l.b16 %v231
      %v277 = vunpack.c.h.b16 %v231
      %v278 = vunpack.c.l.b16 %v232
      %v279 = vunpack.c.h.b16 %v232
      %v280 = vunpack.c.l.b16 %v233
      %v281 = vunpack.c.h.b16 %v233
      %v282 = vunpack.c.l.b16 %v234
      %v283 = vunpack.c.h.b16 %v234
      %v284 = vpack.c.b16 %v270, %v268
      %v285 = vpack.c.b16 %v271, %v269
      %v286 = vpack.c.b16 %v274, %v272
      %v287 = vpack.c.b16 %v275, %v273
      %v288 = vpack.c.b16 %v278, %v276
      %v289 = vpack.c.b16 %v279, %v277
      %v290 = vpack.c.b16 %v282, %v280
      %v291 = vpack.c.b16 %v283, %v281
      %v314 = vunpack.c.l.b16 %v235
      %v315 = vunpack.c.l.b16 %v236
      %v316 = vunpack.c.l.b16 %v237
      %v317 = vunpack.c.l.b16 %v238
      %v318 = vunpack.c.l.b16 %v239
      %v319 = vunpack.c.l.b16 %v240
      %v320 = vunpack.c.l.b16 %v241
      %v321 = vunpack.c.l.b16 %v242
      %v322 = vunpack.c.l.b16 %v243
      %v323 = vunpack.c.l.b16 %v244
      %v324 = vunpack.c.l.b16 %v245
      %v325 = vunpack.c.l.b16 %v246
      %v326 = vunpack.c.l.b16 %v247
      %v327 = vunpack.c.l.b16 %v248
      %v328 = vunpack.c.l.b16 %v249
      %v329 = vunpack.c.l.b16 %v250
      %v330 = vunpack.c.l.b16 %v251
      %v331 = vunpack.c.l.b16 %v252
      %v332 = vpack.c.b16 %v315, %v314
      %v333 = vpack.c.b16 %v317, %v316
      %v334 = vpack.c.b16 %v319, %v318
      %v335 = vpack.c.b16 %v321, %v320
      %v336 = vpack.c.b16 %v323, %v322
      %v337 = vpack.c.b16 %v325, %v324
      %v338 = vpack.c.b16 %v327, %v326
      %v339 = vpack.c.b16 %v329, %v328
      %v340 = vpack.c.b16 %v331, %v330
      %vm350 = vcmask 130048
      %v352 = vsel %vm350, %v285, 0
      %v355 = vsel %vm350, %v287, 0
      %v358 = vsel %vm350, %v289, 0
      %v361 = vsel %vm350, %v291, 0
      %363 = vmatprep.subr.bf16.mxu0 0
      %364 = vmatpush1.bf16.msra.mxu0 %v332
      %365 = vmatprep.subr.bf16.mxu0 0
      %366 = vmatpush1.bf16.msra.mxu0 %v333
      %367 = vmatprep.subr.bf16.mxu0 0
      %368 = vmatpush1.bf16.msra.mxu0 %v334
      %369 = vmatprep.subr.bf16.mxu0 0
      %370 = vmatpush1.bf16.msra.mxu0 %v335
      %371 = vmatprep.subr.bf16.mxu0 0
      %372 = vmatpush1.bf16.msra.mxu0 %v336
      %373 = vmatprep.subr.bf16.mxu0 0
      %374 = vmatpush1.bf16.msra.mxu0 %v337
      %375 = vmatprep.subr.bf16.mxu0 0
      %376 = vmatpush1.bf16.msra.mxu0 %v338
      %377 = vmatprep.subr.bf16.mxu0 0
      %378 = vmatpush1.bf16.msra.mxu0 %v339
      %379 = vmatprep.subr.bf16.mxu0 0
      %380 = vmatpush1.bf16.msra.mxu0 %v340
      %381 = vmatprep.subr.bf16.mxu0 0
      %382 = vmatpush1.bf16.msra.mxu0 0
      %383 = vmatprep.subr.bf16.mxu0 0
      %384 = vmatpush1.bf16.msra.mxu0 0
      %385 = vmatprep.subr.bf16.mxu0 0
      %386 = vmatpush1.bf16.msra.mxu0 0
      %387 = vmatprep.subr.bf16.mxu0 0
      %388 = vmatpush1.bf16.msra.mxu0 0
      %389 = vmatprep.subr.bf16.mxu0 0
      %390 = vmatpush1.bf16.msra.mxu0 0
      %391 = vmatprep.subr.bf16.mxu0 0
      %392 = vmatpush1.bf16.msra.mxu0 0
      %393 = vmatprep.subr.bf16.mxu0 0
      %394 = vmatpush1.bf16.msra.mxu0 0
      %395 = vmatprep.mubr.bf16.mxu0 %v352
      %396 = vmatmul.mubr.bf16.gmra.mrb[0].mxu0 %v284
      %v397 = vpop.f32.mrb[0].mxu0
      %v398 = vadd.f32 %v258, %v397
      %v399 = vpop.f32.mrb[0].mxu0
      %v400 = vpop.f32.mrb[0].mxu0
      %v401 = vadd.f32 %v258, %v400
      %v402 = vpop.f32.mrb[0].mxu0
      %403 = vmatprep.mubr.bf16.mxu0 %v355
      %404 = vmatmul.mubr.bf16.gmra.mrb[0].mxu0 %v286
      %v405 = vpop.f32.mrb[0].mxu0
      %v406 = vadd.f32 %v258, %v405
      %v407 = vpop.f32.mrb[0].mxu0
      %v408 = vpop.f32.mrb[0].mxu0
      %v409 = vadd.f32 %v258, %v408
      %v410 = vpop.f32.mrb[0].mxu0
      %411 = vmatprep.mubr.bf16.mxu0 %v358
      %412 = vmatmul.mubr.bf16.gmra.mrb[0].mxu0 %v288
      %v413 = vpop.f32.mrb[0].mxu0
      %v414 = vadd.f32 %v258, %v413
      %v415 = vpop.f32.mrb[0].mxu0
      %v416 = vpop.f32.mrb[0].mxu0
      %v417 = vadd.f32 %v258, %v416
      %v418 = vpop.f32.mrb[0].mxu0
      %419 = vmatprep.mubr.bf16.mxu0 %v361
      %420 = vmatmul.mubr.bf16.gmra.mrb[0].mxu0 %v290
      %v421 = vpop.f32.mrb[0].mxu0
      %v422 = vadd.f32 %v258, %v421
      %v423 = vpop.f32.mrb[0].mxu0
      %v424 = vpop.f32.mrb[0].mxu0
      %v425 = vadd.f32 %v258, %v424
      %v426 = vpop.f32.mrb[0].mxu0
      %427 = vdwg.mxu0
      %v428 = vld [vmem:[%s218] sm:$0xf]
      %v429 = vld [vmem:[%s218 + $0x4] sm:$0xf]
      %v430 = vld [vmem:[%s218 + $0x8] sm:$0xf]
      %v431 = vld [vmem:[%s218 + $0xc] sm:$0xf]
      %v432 = vld [vmem:[%s218 + $0x10] sm:$0xf]
      %v433 = vld [vmem:[%s218 + $0x14] sm:$0xf]
      %v434 = vld [vmem:[%s218 + $0x18] sm:$0xf]
      %v435 = vld [vmem:[%s218 + $0x1c] sm:$0xf]
      %v436 = vunpack.c.l.bf16 %v428
      %v437 = vunpack.c.l.bf16 %v429
      %v438 = vunpack.c.l.bf16 %v430
      %v439 = vunpack.c.l.bf16 %v431
      %v440 = vunpack.c.l.bf16 %v432
      %v441 = vunpack.c.l.bf16 %v433
      %v442 = vunpack.c.l.bf16 %v434
      %v443 = vunpack.c.l.bf16 %v435
      %v444 = vadd.f32 %v398, %v436
      %v445 = vadd.f32 %v401, %v437
      %v446 = vadd.f32 %v406, %v438
      %v447 = vadd.f32 %v409, %v439
      %v448 = vadd.f32 %v414, %v440
      %v449 = vadd.f32 %v417, %v441
      %v450 = vadd.f32 %v422, %v442
      %v451 = vadd.f32 %v425, %v443
      %v452 = vmax.f32 %v444, 0.0
      %v453 = vmax.f32 %v445, 0.0
      %v454 = vmax.f32 %v446, 0.0
      %v455 = vmax.f32 %v447, 0.0
      %v456 = vmax.f32 %v448, 0.0
      %v457 = vmax.f32 %v449, 0.0
      %v458 = vmax.f32 %v450, 0.0
      %v459 = vmax.f32 %v451, 0.0
      %v460 = vpack.c.bf16 %v453, %v452
      %v461 = vpack.c.bf16 %v455, %v454
      %v462 = vpack.c.bf16 %v457, %v456
      %v463 = vpack.c.bf16 %v459, %v458
      %v468 = vunpack.c.l.b16 %v460
      %v469 = vunpack.c.h.b16 %v460
      %v470 = vunpack.c.l.b16 %v461
      %v471 = vunpack.c.h.b16 %v461
      %v472 = vunpack.c.l.b16 %v462
      %v473 = vunpack.c.h.b16 %v462
      %v474 = vunpack.c.l.b16 %v463
      %v475 = vunpack.c.h.b16 %v463
      %v476 = vpack.c.b16 %v468, %v468
      %v477 = vpack.c.b16 %v469, %v469
      %v478 = vpack.c.b16 %v470, %v470
      %v479 = vpack.c.b16 %v471, %v471
      %v480 = vpack.c.b16 %v472, %v472
      %v481 = vpack.c.b16 %v473, %v473
      %v482 = vpack.c.b16 %v474, %v474
      %v483 = vpack.c.b16 %v475, %v475
      %vm492 = vcmask 125952
      %493 = vst.msk [vmem:[%s224] sm:$0xf] %vm492, %v476
      %494 = vst.msk [vmem:[%s224 + $0x4] sm:$0xf] %vm492, %v477
      %495 = vst.msk [vmem:[%s224 + $0x8] sm:$0xf] %vm492, %v478
      %496 = vst.msk [vmem:[%s224 + $0xc] sm:$0xf] %vm492, %v479
      %497 = vst.msk [vmem:[%s224 + $0x10] sm:$0xf] %vm492, %v480
      %498 = vst.msk [vmem:[%s224 + $0x14] sm:$0xf] %vm492, %v481
      %499 = vst.msk [vmem:[%s224 + $0x18] sm:$0xf] %vm492, %v482
      %500 = vst.msk [vmem:[%s224 + $0x1c] sm:$0xf] %vm492, %v483
      %s501 = smul.u32 8, %s15
      %p502 = scmp.lt.s32.totalorder %s501, 15
      %s503 = scalar_select %p502, %s501, 15
      %s504 = smul.addr %s503, 4
      %s505 = scalar_lea.vmem %s4, %s504
      // Predicated region
      $region37: #{avenet_forward.28} parent=35 // pred_check
        %p506 = pneg %p127
      $region38: #{avenet_forward.28} parent=35 // pred_check_branch
        %508 = sbr.rel (%p506) target = $region40
      $region39: #{avenet_forward.28} parent=35 // pred_region
        %s509 = smul.u32 8, %s15
      $region40: #{avenet_forward.28} parent=35 // pred_fallthru
        _
    $region36: #{avenet_forward.28} parent=5 // pred_fallthru
      _
    %p510 = scmp.le.s32.totalorder 2, %s10
    // Predicated region
    $region41: #{avenet_forward.28} parent=5 // pred_check
      %p511 = pneg %p510
    $region42: #{avenet_forward.28} parent=5 // pred_check_branch
      %513 = sbr.rel (%p511) target = $region44
    $region43: #{avenet_forward.28} parent=5 // pred_region
      %s514 = ssub.s32 %s10, 2
      // Predicated region
      $region45: #{avenet_forward.28} parent=43 // pred_check
        %p515 = pneg %p133
      $region46: #{avenet_forward.28} parent=43 // pred_check_branch
        %517 = sbr.rel (%p515) target = $region48
      $region47: #{avenet_forward.28} parent=43 // pred_region
        %s518 = smul.u32 8, %s16
        %p519 = scmp.lt.s32.totalorder %s518, 15
        %s520 = scalar_select %p519, %s518, 15
        %s521 = smul.addr %s520, 4
        %s522 = scalar_lea.vmem %s4, %s521
      $region48: #{avenet_forward.28} parent=43 // pred_fallthru
        _
    $region44: #{avenet_forward.28} parent=5 // pred_fallthru
      _
  $region6: #{avenet_forward.28} parent=0 // loop_footer
    %s14 = sadd.s32 1, %s10
  $region7: #{avenet_forward.28} parent=0 // loop_footer_branch
    %9 = sbr.rel target = $region3
  $region8: #{avenet_forward.28} parent=0 // loop_exit
    _

// kernel: avenet_forward.29
$region0: #{avenet_forward.29}
  #allocation0 [shape = 'u32[]', space=smem, size = 0x4, offset = 0x4, fixed_abs, tag = 'smem constant byte address 0x4 - core index']
  #allocation1 [shape = 'u32[144,128]{1,0:T(1,128)}', space=vmem, size = 0x12000, scoped, tag = 'internal scratch']
  %s0 = inlined_call_operand.vmem [shape: bf16[32,144], index: 0, kind: input, shape index: {}]
  %s1 = inlined_call_operand.vmem [shape: bf16[144,32], index: 1, kind: input, shape index: {}]
  %s2 = inlined_call_operand.vmem [shape: f32[1,32], index: 2, kind: input, shape index: {}]
  %s3 = inlined_call_operand.vmem [shape: bf16[32,32], index: 3, kind: output, shape index: {}]
  %s4 = sld [smem:[#allocation0]]
  $region45: #{avenet_forward.29} parent=0
    _
  %s6 = ssub.s32 1, %s4
  %s7 = scalar_select 0, %s6, %s4
  loop: start=0, step=1, limit=4
  $region2: #{avenet_forward.29} parent=0 // loop_pre_header
    _
  $region3: #{avenet_forward.29} parent=0 // loop_header
    %s9 = sphi 0, %s13
    %p10 = scmp.ge.s32.totalorder %s9, 4
    %s19 = sphi 0, %s21
    %s22 = sphi 0, %s19
    %s23 = sphi 0, %s22
    %s39 = sphi 0, %s23
    %s43 = sphi 0, %s43
    %s45 = sphi 0, %s43
    %s46 = sphi 0, %s45
    %s60 = sphi 0, %s46
    %s64 = sphi 0, %s64
    %s66 = sphi 0, %s64
    %s67 = sphi 0, %s66
    %s81 = sphi 0, %s67
    %s87 = sphi 0, %s89
    %s90 = sphi 0, %s87
    %s91 = sphi 0, %s90
    %s107 = sphi 0, %s91
  $region4: #{avenet_forward.29} parent=0 // loop_header_branch
    %12 = sbr.rel (%p10) target = $region8
  $region5: #{avenet_forward.29} parent=0 // loop_body
    %s14 = ssub.s32 %s9, 1
    %s15 = ssub.s32 %s9, 2
    %s16 = sadd.s32 %s9, 1
    %s17 = ssub.s32 %s9, %s16
    %p18 = scmp.eq.s32.totalorder %s17, 0
    %s20 = sadd.s32 %s19, 1
    %s21 = scalar_select %p18, %s19, %s20
    %p24 = pneg %p18
    %p25 = scmp.eq.s32.totalorder %s9, 1
    %p26 = por %p24, %p25
    %p27 = scmp.ne.s32.totalorder %s19, %s22
    %p28 = scmp.eq.s32.totalorder %s9, 0
    %p29 = por %p27, %p28
    %p30 = scmp.ne.s32.totalorder %s19, %s22
    %p31 = scmp.eq.s32.totalorder %s14, 1
    %p32 = por %p30, %p31
    %p33 = scmp.ne.s32.totalorder %s22, %s23
    %p34 = scmp.eq.s32.totalorder %s14, 0
    %p35 = por %p33, %p34
    %p36 = scmp.ne.s32.totalorder %s22, %s23
    %p37 = scmp.eq.s32.totalorder %s15, 1
    %p38 = por %p36, %p37
    %p40 = scmp.ne.s32.totalorder %s23, %s39
    %p41 = scmp.eq.s32.totalorder %s15, 0
    %p42 = por %p40, %p41
    %s44 = sadd.s32 %s43, 1
    %p47 = scmp.eq.s32.totalorder %s9, 1
    %p48 = scmp.ne.s32.totalorder %s43, %s45
    %p49 = scmp.eq.s32.totalorder %s9, 0
    %p50 = por %p48, %p49
    %p51 = scmp.ne.s32.totalorder %s43, %s45
    %p52 = scmp.eq.s32.totalorder %s14, 1
    %p53 = por %p51, %p52
    %p54 = scmp.ne.s32.totalorder %s45, %s46
    %p55 = scmp.eq.s32.totalorder %s14, 0
    %p56 = por %p54, %p55
    %p57 = scmp.ne.s32.totalorder %s45, %s46
    %p58 = scmp.eq.s32.totalorder %s15, 1
    %p59 = por %p57, %p58
    %p61 = scmp.ne.s32.totalorder %s46, %s60
    %p62 = scmp.eq.s32.totalorder %s15, 0
    %p63 = por %p61, %p62
    %s65 = sadd.s32 %s64, 1
    %p68 = scmp.eq.s32.totalorder %s9, 1
    %p69 = scmp.ne.s32.totalorder %s64, %s66
    %p70 = scmp.eq.s32.totalorder %s9, 0
    %p71 = por %p69, %p70
    %p72 = scmp.ne.s32.totalorder %s64, %s66
    %p73 = scmp.eq.s32.totalorder %s14, 1
    %p74 = por %p72, %p73
    %p75 = scmp.ne.s32.totalorder %s66, %s67
    %p76 = scmp.eq.s32.totalorder %s14, 0
    %p77 = por %p75, %p76
    %p78 = scmp.ne.s32.totalorder %s66, %s67
    %p79 = scmp.eq.s32.totalorder %s15, 1
    %p80 = por %p78, %p79
    %p82 = scmp.ne.s32.totalorder %s67, %s81
    %p83 = scmp.eq.s32.totalorder %s15, 0
    %p84 = por %p82, %p83
    %s85 = ssub.s32 %s9, %s16
    %p86 = scmp.eq.s32.totalorder %s85, 0
    %s88 = sadd.s32 %s87, 1
    %s89 = scalar_select %p86, %s87, %s88
    %p92 = pneg %p86
    %p93 = scmp.eq.s32.totalorder %s9, 1
    %p94 = por %p92, %p93
    %p95 = scmp.ne.s32.totalorder %s87, %s90
    %p96 = scmp.eq.s32.totalorder %s9, 0
    %p97 = por %p95, %p96
    %p98 = scmp.ne.s32.totalorder %s87, %s90
    %p99 = scmp.eq.s32.totalorder %s14, 1
    %p100 = por %p98, %p99
    %p101 = scmp.ne.s32.totalorder %s90, %s91
    %p102 = scmp.eq.s32.totalorder %s14, 0
    %p103 = por %p101, %p102
    %p104 = scmp.ne.s32.totalorder %s90, %s91
    %p105 = scmp.eq.s32.totalorder %s15, 1
    %p106 = por %p104, %p105
    %p108 = scmp.ne.s32.totalorder %s91, %s107
    %p109 = scmp.eq.s32.totalorder %s15, 0
    %p110 = por %p108, %p109
    %p111 = scmp.le.s32.totalorder 1, %s9
    %p112 = scmp.lt.s32.totalorder %s9, 3
    %p113 = pnand %p111, %p112
    %p114 = pneg %p113
    // Predicated region
    $region9: #{avenet_forward.29} parent=5 // pred_check
      _
    $region10: #{avenet_forward.29} parent=5 // pred_check_branch
      %116 = sbr.rel (%p113) target = $region12
    $region11: #{avenet_forward.29} parent=5 // pred_region
      %s117 = ssub.s32 %s9, 1
      // Predicated region
      $region13: #{avenet_forward.29} parent=11 // pred_check
        %p118 = pneg %p56
      $region14: #{avenet_forward.29} parent=11 // pred_check_branch
        %120 = sbr.rel (%p118) target = $region16
      $region15: #{avenet_forward.29} parent=11 // pred_region
        _
      $region16: #{avenet_forward.29} parent=11 // pred_fallthru
        _
      // Predicated region
      $region17: #{avenet_forward.29} parent=11 // pred_check
        %p121 = pneg %p77
      $region18: #{avenet_forward.29} parent=11 // pred_check_branch
        %123 = sbr.rel (%p121) target = $region20
      $region19: #{avenet_forward.29} parent=11 // pred_region
        _
      $region20: #{avenet_forward.29} parent=11 // pred_fallthru
        _
    $region12: #{avenet_forward.29} parent=5 // pred_fallthru
      _
    %p124 = scmp.lt.s32.totalorder %s9, 2
    // Predicated region
    $region21: #{avenet_forward.29} parent=5 // pred_check
      %p125 = pneg %p124
    $region22: #{avenet_forward.29} parent=5 // pred_check_branch
      %127 = sbr.rel (%p125) target = $region24
    $region23: #{avenet_forward.29} parent=5 // pred_region
      // Predicated region
      $region25: #{avenet_forward.29} parent=23 // pred_check
        %p128 = pneg %p29
      $region26: #{avenet_forward.29} parent=23 // pred_check_branch
        %130 = sbr.rel (%p128) target = $region28
      $region27: #{avenet_forward.29} parent=23 // pred_region
        %s131 = smul.u32 2, %s9
        %p132 = scmp.lt.s32.totalorder %s131, 3
        %s133 = scalar_select %p132, %s131, 3
        %s134 = smul.addr %s133, 2
        %s135 = smul.addr %s134, 4
        %s136 = scalar_lea.vmem %s0, %s135
        %s137 = smul.u32 2, %s9
      $region28: #{avenet_forward.29} parent=23 // pred_fallthru
        _
    $region24: #{avenet_forward.29} parent=5 // pred_fallthru
      _
    %p138 = scmp.le.s32.totalorder 1, %s9
    %p139 = scmp.lt.s32.totalorder %s9, 3
    %p140 = pnand %p138, %p139
    %p141 = pneg %p140
    // Predicated region
    $region29: #{avenet_forward.29} parent=5 // pred_check
      _
    $region30: #{avenet_forward.29} parent=5 // pred_check_branch
      %143 = sbr.rel (%p140) target = $region32
    $region31: #{avenet_forward.29} parent=5 // pred_region
      %s144 = ssub.s32 %s9, 1
      %s145 = smul.u32 2, %s14
      %p146 = scmp.lt.s32.totalorder %s145, 3
      %s147 = scalar_select %p146, %s145, 3
      %s148 = smul.addr %s147, 2
      %s149 = smul.addr %s148, 4
      %s150 = scalar_lea.vmem %s0, %s149
      %p151 = pneg %p35
      %p152 = pneg %p32
      %p153 = pneg %p56
      %p154 = pneg %p53
      %p155 = pneg %p77
      %p156 = pneg %p74
      %p157 = pneg %p103
      %p158 = pneg %p100
      %s159 = smul.u32 2, %s14
      %p160 = scmp.lt.s32.totalorder %s159, 3
      %s161 = scalar_select %p160, %s159, 3
      %s162 = smul.addr %s161, 4
      %s163 = scalar_lea.vmem %s3, %s162
      %s164 = smul.u32 2, %s14
      %p165 = scmp.lt.s32.totalorder %s164, 3
      %s166 = scalar_select %p165, %s164, 3
      %s167 = smul.addr %s166, 2
      %s168 = smul.addr %s167, 4
      %s169 = scalar_lea.vmem %s0, %s168
      %s170 = smul.u32 2, %s14
      %s171 = smul.u32 2, %s14
      %p172 = scmp.lt.s32.totalorder %s171, 3
      %s173 = scalar_select %p172, %s171, 3
      %s174 = smul.addr %s173, 4
      %s175 = scalar_lea.vmem %s3, %s174
      %s176 = smul.u32 2, %s14
      %v178 = vld [vmem:[%s169] sm:$0xff]
      %v179 = vld [vmem:[%s169 + $0x8] sm:$0xff]
      %v180 = vld [vmem:[%s1] sm:$0xf]
      %v181 = vld [vmem:[%s1 + $0x4] sm:$0xf]
      %v182 = vld [vmem:[%s1 + $0x8] sm:$0xf]
      %v183 = vld [vmem:[%s1 + $0xc] sm:$0xf]
      %v184 = vld [vmem:[%s1 + $0x10] sm:$0xf]
      %v185 = vld [vmem:[%s1 + $0x14] sm:$0xf]
      %v186 = vld [vmem:[%s1 + $0x18] sm:$0xf]
      %v187 = vld [vmem:[%s1 + $0x1c] sm:$0xf]
      %v188 = vld [vmem:[%s1 + $0x20] sm:$0xf]
      %v189 = vld [vmem:[%s1 + $0x24] sm:$0xf]
      %v190 = vld [vmem:[%s1 + $0x28] sm:$0xf]
      %v191 = vld [vmem:[%s1 + $0x2c] sm:$0xf]
      %v192 = vld [vmem:[%s1 + $0x30] sm:$0xf]
      %v193 = vld [vmem:[%s1 + $0x34] sm:$0xf]
      %v194 = vld [vmem:[%s1 + $0x38] sm:$0xf]
      %v195 = vld [vmem:[%s1 + $0x3c] sm:$0xf]
      %v196 = vld [vmem:[%s1 + $0x40] sm:$0xf]
      %v197 = vld [vmem:[%s1 + $0x44] sm:$0xf]
      %v198 = vld [vmem:[%s2] sm:$0x1]
      %v200 = vlaneseq
      %v201 = vshrl.u32 %v200, 7
      %v202 = vsub.s32 0, %v201
      %v203 = vrot.slane %v198, %v202
      %v207 = vunpack.c.l.b16 %v178
      %v208 = vunpack.c.h.b16 %v178
      %v209 = vunpack.c.l.b16 %v179
      %v210 = vunpack.c.h.b16 %v179
      %v211 = vpack.c.b16 %v209, %v207
      %v212 = vpack.c.b16 %v210, %v208
      %v232 = vunpack.c.l.b16 %v180
      %v233 = vunpack.c.l.b16 %v181
      %v234 = vunpack.c.l.b16 %v182
      %v235 = vunpack.c.l.b16 %v183
      %v236 = vunpack.c.l.b16 %v184
      %v237 = vunpack.c.l.b16 %v185
      %v238 = vunpack.c.l.b16 %v186
      %v239 = vunpack.c.l.b16 %v187
      %v240 = vunpack.c.l.b16 %v188
      %v241 = vunpack.c.l.b16 %v189
      %v242 = vunpack.c.l.b16 %v190
      %v243 = vunpack.c.l.b16 %v191
      %v244 = vunpack.c.l.b16 %v192
      %v245 = vunpack.c.l.b16 %v193
      %v246 = vunpack.c.l.b16 %v194
      %v247 = vunpack.c.l.b16 %v195
      %v248 = vunpack.c.l.b16 %v196
      %v249 = vunpack.c.l.b16 %v197
      %v250 = vpack.c.b16 %v233, %v232
      %v251 = vpack.c.b16 %v235, %v234
      %v252 = vpack.c.b16 %v237, %v236
      %v253 = vpack.c.b16 %v239, %v238
      %v254 = vpack.c.b16 %v241, %v240
      %v255 = vpack.c.b16 %v243, %v242
      %v256 = vpack.c.b16 %v245, %v244
      %v257 = vpack.c.b16 %v247, %v246
      %v258 = vpack.c.b16 %v249, %v248
      %vm268 = vcmask 130048
      %v270 = vsel %vm268, %v212, 0
      %272 = vmatprep.subr.bf16.mxu0 0
      %273 = vmatpush1.bf16.msra.mxu0 %v250
      %274 = vmatprep.subr.bf16.mxu0 0
      %275 = vmatpush1.bf16.msra.mxu0 %v251
      %276 = vmatprep.subr.bf16.mxu0 0
      %277 = vmatpush1.bf16.msra.mxu0 %v252
      %278 = vmatprep.subr.bf16.mxu0 0
      %279 = vmatpush1.bf16.msra.mxu0 %v253
      %280 = vmatprep.subr.bf16.mxu0 0
      %281 = vmatpush1.bf16.msra.mxu0 %v254
      %282 = vmatprep.subr.bf16.mxu0 0
      %283 = vmatpush1.bf16.msra.mxu0 %v255
      %284 = vmatprep.subr.bf16.mxu0 0
      %285 = vmatpush1.bf16.msra.mxu0 %v256
      %286 = vmatprep.subr.bf16.mxu0 0
      %287 = vmatpush1.bf16.msra.mxu0 %v257
      %288 = vmatprep.subr.bf16.mxu0 0
      %289 = vmatpush1.bf16.msra.mxu0 %v258
      %290 = vmatprep.subr.bf16.mxu0 0
      %291 = vmatpush1.bf16.msra.mxu0 0
      %292 = vmatprep.subr.bf16.mxu0 0
      %293 = vmatpush1.bf16.msra.mxu0 0
      %294 = vmatprep.subr.bf16.mxu0 0
      %295 = vmatpush1.bf16.msra.mxu0 0
      %296 = vmatprep.subr.bf16.mxu0 0
      %297 = vmatpush1.bf16.msra.mxu0 0
      %298 = vmatprep.subr.bf16.mxu0 0
      %299 = vmatpush1.bf16.msra.mxu0 0
      %300 = vmatprep.subr.bf16.mxu0 0
      %301 = vmatpush1.bf16.msra.mxu0 0
      %302 = vmatprep.subr.bf16.mxu0 0
      %303 = vmatpush1.bf16.msra.mxu0 0
      %304 = vmatprep.mubr.bf16.mxu0 %v270
      %305 = vmatmul.mubr.bf16.gmra.mrb[0].mxu0 %v211
      %v306 = vpop.f32.mrb[0].mxu0
      %v307 = vadd.f32 %v203, %v306
      %v308 = vpop.f32.mrb[0].mxu0
      %v309 = vpop.f32.mrb[0].mxu0
      %v310 = vadd.f32 %v203, %v309
      %v311 = vpop.f32.mrb[0].mxu0
      %312 = vdwg.mxu0
      %v313 = vmax.f32 %v307, 0.0
      %v314 = vmax.f32 %v310, 0.0
      %v315 = vpack.c.bf16 %v314, %v313
      %v317 = vunpack.c.l.b16 %v315
      %v318 = vunpack.c.h.b16 %v315
      %v319 = vpack.c.b16 %v317, %v317
      %v320 = vpack.c.b16 %v318, %v318
      %vm323 = vcmask 257024
      %324 = vst.msk [vmem:[%s175] sm:$0xf] %vm323, %v319
      %325 = vst.msk [vmem:[%s175 + $0x4] sm:$0xf] %vm323, %v320
      %s326 = smul.u32 2, %s14
      %p327 = scmp.lt.s32.totalorder %s326, 3
      %s328 = scalar_select %p327, %s326, 3
      %s329 = smul.addr %s328, 4
      %s330 = scalar_lea.vmem %s3, %s329
      // Predicated region
      $region33: #{avenet_forward.29} parent=31 // pred_check
        %p331 = pneg %p100
      $region34: #{avenet_forward.29} parent=31 // pred_check_branch
        %333 = sbr.rel (%p331) target = $region36
      $region35: #{avenet_forward.29} parent=31 // pred_region
        %s334 = smul.u32 2, %s14
      $region36: #{avenet_forward.29} parent=31 // pred_fallthru
        _
    $region32: #{avenet_forward.29} parent=5 // pred_fallthru
      _
    %p335 = scmp.le.s32.totalorder 2, %s9
    // Predicated region
    $region37: #{avenet_forward.29} parent=5 // pred_check
      %p336 = pneg %p335
    $region38: #{avenet_forward.29} parent=5 // pred_check_branch
      %338 = sbr.rel (%p336) target = $region40
    $region39: #{avenet_forward.29} parent=5 // pred_region
      %s339 = ssub.s32 %s9, 2
      // Predicated region
      $region41: #{avenet_forward.29} parent=39 // pred_check
        %p340 = pneg %p106
      $region42: #{avenet_forward.29} parent=39 // pred_check_branch
        %342 = sbr.rel (%p340) target = $region44
      $region43: #{avenet_forward.29} parent=39 // pred_region
        %s343 = smul.u32 2, %s15
        %p344 = scmp.lt.s32.totalorder %s343, 3
        %s345 = scalar_select %p344, %s343, 3
        %s346 = smul.addr %s345, 4
        %s347 = scalar_lea.vmem %s3, %s346
      $region44: #{avenet_forward.29} parent=39 // pred_fallthru
        _
    $region40: #{avenet_forward.29} parent=5 // pred_fallthru
      _
  $region6: #{avenet_forward.29} parent=0 // loop_footer
    %s13 = sadd.s32 1, %s9
  $region7: #{avenet_forward.29} parent=0 // loop_footer_branch
    %8 = sbr.rel target = $region3
  $region8: #{avenet_forward.29} parent=0 // loop_exit
    _

// kernel: avenet_forward.31
$region0: #{avenet_forward.31}
  #allocation0 [shape = 'u32[]', space=smem, size = 0x4, offset = 0x4, fixed_abs, tag = 'smem constant byte address 0x4 - core index']
  #allocation1 [shape = 'u32[144,128]{1,0:T(1,128)}', space=vmem, size = 0x12000, scoped, tag = 'internal scratch']
  %s0 = inlined_call_operand.vmem [shape: bf16[32,288], index: 0, kind: input, shape index: {}]
  %s1 = inlined_call_operand.vmem [shape: bf16[288,32], index: 1, kind: input, shape index: {}]
  %s2 = inlined_call_operand.vmem [shape: f32[1,32], index: 2, kind: input, shape index: {}]
  %s3 = inlined_call_operand.vmem [shape: bf16[32,32], index: 3, kind: output, shape index: {}]
  %s4 = sld [smem:[#allocation0]]
  $region45: #{avenet_forward.31} parent=0
    _
  %s6 = ssub.s32 1, %s4
  %s7 = scalar_select 0, %s6, %s4
  loop: start=0, step=1, limit=4
  $region2: #{avenet_forward.31} parent=0 // loop_pre_header
    _
  $region3: #{avenet_forward.31} parent=0 // loop_header
    %s9 = sphi 0, %s13
    %p10 = scmp.ge.s32.totalorder %s9, 4
    %s19 = sphi 0, %s21
    %s22 = sphi 0, %s19
    %s23 = sphi 0, %s22
    %s39 = sphi 0, %s23
    %s43 = sphi 0, %s43
    %s45 = sphi 0, %s43
    %s46 = sphi 0, %s45
    %s60 = sphi 0, %s46
    %s64 = sphi 0, %s64
    %s66 = sphi 0, %s64
    %s67 = sphi 0, %s66
    %s81 = sphi 0, %s67
    %s87 = sphi 0, %s89
    %s90 = sphi 0, %s87
    %s91 = sphi 0, %s90
    %s107 = sphi 0, %s91
  $region4: #{avenet_forward.31} parent=0 // loop_header_branch
    %12 = sbr.rel (%p10) target = $region8
  $region5: #{avenet_forward.31} parent=0 // loop_body
    %s14 = ssub.s32 %s9, 1
    %s15 = ssub.s32 %s9, 2
    %s16 = sadd.s32 %s9, 1
    %s17 = ssub.s32 %s9, %s16
    %p18 = scmp.eq.s32.totalorder %s17, 0
    %s20 = sadd.s32 %s19, 1
    %s21 = scalar_select %p18, %s19, %s20
    %p24 = pneg %p18
    %p25 = scmp.eq.s32.totalorder %s9, 1
    %p26 = por %p24, %p25
    %p27 = scmp.ne.s32.totalorder %s19, %s22
    %p28 = scmp.eq.s32.totalorder %s9, 0
    %p29 = por %p27, %p28
    %p30 = scmp.ne.s32.totalorder %s19, %s22
    %p31 = scmp.eq.s32.totalorder %s14, 1
    %p32 = por %p30, %p31
    %p33 = scmp.ne.s32.totalorder %s22, %s23
    %p34 = scmp.eq.s32.totalorder %s14, 0
    %p35 = por %p33, %p34
    %p36 = scmp.ne.s32.totalorder %s22, %s23
    %p37 = scmp.eq.s32.totalorder %s15, 1
    %p38 = por %p36, %p37
    %p40 = scmp.ne.s32.totalorder %s23, %s39
    %p41 = scmp.eq.s32.totalorder %s15, 0
    %p42 = por %p40, %p41
    %s44 = sadd.s32 %s43, 1
    %p47 = scmp.eq.s32.totalorder %s9, 1
    %p48 = scmp.ne.s32.totalorder %s43, %s45
    %p49 = scmp.eq.s32.totalorder %s9, 0
    %p50 = por %p48, %p49
    %p51 = scmp.ne.s32.totalorder %s43, %s45
    %p52 = scmp.eq.s32.totalorder %s14, 1
    %p53 = por %p51, %p52
    %p54 = scmp.ne.s32.totalorder %s45, %s46
    %p55 = scmp.eq.s32.totalorder %s14, 0
    %p56 = por %p54, %p55
    %p57 = scmp.ne.s32.totalorder %s45, %s46
    %p58 = scmp.eq.s32.totalorder %s15, 1
    %p59 = por %p57, %p58
    %p61 = scmp.ne.s32.totalorder %s46, %s60
    %p62 = scmp.eq.s32.totalorder %s15, 0
    %p63 = por %p61, %p62
    %s65 = sadd.s32 %s64, 1
    %p68 = scmp.eq.s32.totalorder %s9, 1
    %p69 = scmp.ne.s32.totalorder %s64, %s66
    %p70 = scmp.eq.s32.totalorder %s9, 0
    %p71 = por %p69, %p70
    %p72 = scmp.ne.s32.totalorder %s64, %s66
    %p73 = scmp.eq.s32.totalorder %s14, 1
    %p74 = por %p72, %p73
    %p75 = scmp.ne.s32.totalorder %s66, %s67
    %p76 = scmp.eq.s32.totalorder %s14, 0
    %p77 = por %p75, %p76
    %p78 = scmp.ne.s32.totalorder %s66, %s67
    %p79 = scmp.eq.s32.totalorder %s15, 1
    %p80 = por %p78, %p79
    %p82 = scmp.ne.s32.totalorder %s67, %s81
    %p83 = scmp.eq.s32.totalorder %s15, 0
    %p84 = por %p82, %p83
    %s85 = ssub.s32 %s9, %s16
    %p86 = scmp.eq.s32.totalorder %s85, 0
    %s88 = sadd.s32 %s87, 1
    %s89 = scalar_select %p86, %s87, %s88
    %p92 = pneg %p86
    %p93 = scmp.eq.s32.totalorder %s9, 1
    %p94 = por %p92, %p93
    %p95 = scmp.ne.s32.totalorder %s87, %s90
    %p96 = scmp.eq.s32.totalorder %s9, 0
    %p97 = por %p95, %p96
    %p98 = scmp.ne.s32.totalorder %s87, %s90
    %p99 = scmp.eq.s32.totalorder %s14, 1
    %p100 = por %p98, %p99
    %p101 = scmp.ne.s32.totalorder %s90, %s91
    %p102 = scmp.eq.s32.totalorder %s14, 0
    %p103 = por %p101, %p102
    %p104 = scmp.ne.s32.totalorder %s90, %s91
    %p105 = scmp.eq.s32.totalorder %s15, 1
    %p106 = por %p104, %p105
    %p108 = scmp.ne.s32.totalorder %s91, %s107
    %p109 = scmp.eq.s32.totalorder %s15, 0
    %p110 = por %p108, %p109
    %p111 = scmp.le.s32.totalorder 1, %s9
    %p112 = scmp.lt.s32.totalorder %s9, 3
    %p113 = pnand %p111, %p112
    %p114 = pneg %p113
    // Predicated region
    $region9: #{avenet_forward.31} parent=5 // pred_check
      _
    $region10: #{avenet_forward.31} parent=5 // pred_check_branch
      %116 = sbr.rel (%p113) target = $region12
    $region11: #{avenet_forward.31} parent=5 // pred_region
      %s117 = ssub.s32 %s9, 1
      // Predicated region
      $region13: #{avenet_forward.31} parent=11 // pred_check
        %p118 = pneg %p56
      $region14: #{avenet_forward.31} parent=11 // pred_check_branch
        %120 = sbr.rel (%p118) target = $region16
      $region15: #{avenet_forward.31} parent=11 // pred_region
        _
      $region16: #{avenet_forward.31} parent=11 // pred_fallthru
        _
      // Predicated region
      $region17: #{avenet_forward.31} parent=11 // pred_check
        %p121 = pneg %p77
      $region18: #{avenet_forward.31} parent=11 // pred_check_branch
        %123 = sbr.rel (%p121) target = $region20
      $region19: #{avenet_forward.31} parent=11 // pred_region
        _
      $region20: #{avenet_forward.31} parent=11 // pred_fallthru
        _
    $region12: #{avenet_forward.31} parent=5 // pred_fallthru
      _
    %p124 = scmp.lt.s32.totalorder %s9, 2
    // Predicated region
    $region21: #{avenet_forward.31} parent=5 // pred_check
      %p125 = pneg %p124
    $region22: #{avenet_forward.31} parent=5 // pred_check_branch
      %127 = sbr.rel (%p125) target = $region24
    $region23: #{avenet_forward.31} parent=5 // pred_region
      // Predicated region
      $region25: #{avenet_forward.31} parent=23 // pred_check
        %p128 = pneg %p29
      $region26: #{avenet_forward.31} parent=23 // pred_check_branch
        %130 = sbr.rel (%p128) target = $region28
      $region27: #{avenet_forward.31} parent=23 // pred_region
        %s131 = smul.u32 2, %s9
        %p132 = scmp.lt.s32.totalorder %s131, 3
        %s133 = scalar_select %p132, %s131, 3
        %s134 = smul.addr %s133, 3
        %s135 = smul.addr %s134, 4
        %s136 = scalar_lea.vmem %s0, %s135
        %s137 = smul.u32 2, %s9
      $region28: #{avenet_forward.31} parent=23 // pred_fallthru
        _
    $region24: #{avenet_forward.31} parent=5 // pred_fallthru
      _
    %p138 = scmp.le.s32.totalorder 1, %s9
    %p139 = scmp.lt.s32.totalorder %s9, 3
    %p140 = pnand %p138, %p139
    %p141 = pneg %p140
    // Predicated region
    $region29: #{avenet_forward.31} parent=5 // pred_check
      _
    $region30: #{avenet_forward.31} parent=5 // pred_check_branch
      %143 = sbr.rel (%p140) target = $region32
    $region31: #{avenet_forward.31} parent=5 // pred_region
      %s144 = ssub.s32 %s9, 1
      %s145 = smul.u32 2, %s14
      %p146 = scmp.lt.s32.totalorder %s145, 3
      %s147 = scalar_select %p146, %s145, 3
      %s148 = smul.addr %s147, 3
      %s149 = smul.addr %s148, 4
      %s150 = scalar_lea.vmem %s0, %s149
      %p151 = pneg %p35
      %p152 = pneg %p32
      %p153 = pneg %p56
      %p154 = pneg %p53
      %p155 = pneg %p77
      %p156 = pneg %p74
      %p157 = pneg %p103
      %p158 = pneg %p100
      %s159 = smul.u32 2, %s14
      %p160 = scmp.lt.s32.totalorder %s159, 3
      %s161 = scalar_select %p160, %s159, 3
      %s162 = smul.addr %s161, 4
      %s163 = scalar_lea.vmem %s3, %s162
      %s164 = smul.u32 2, %s14
      %p165 = scmp.lt.s32.totalorder %s164, 3
      %s166 = scalar_select %p165, %s164, 3
      %s167 = smul.addr %s166, 3
      %s168 = smul.addr %s167, 4
      %s169 = scalar_lea.vmem %s0, %s168
      %s170 = smul.u32 2, %s14
      %s171 = smul.u32 2, %s14
      %p172 = scmp.lt.s32.totalorder %s171, 3
      %s173 = scalar_select %p172, %s171, 3
      %s174 = smul.addr %s173, 4
      %s175 = scalar_lea.vmem %s3, %s174
      %s176 = smul.u32 2, %s14
      %v178 = vld [vmem:[%s169] sm:$0xff]
      %v179 = vld [vmem:[%s169 + $0x8] sm:$0xf]
      %v180 = vld [vmem:[%s169 + $0xc] sm:$0xff]
      %v181 = vld [vmem:[%s169 + $0x14] sm:$0xf]
      %v182 = vld [vmem:[%s1] sm:$0xf]
      %v183 = vld [vmem:[%s1 + $0x4] sm:$0xf]
      %v184 = vld [vmem:[%s1 + $0x8] sm:$0xf]
      %v185 = vld [vmem:[%s1 + $0xc] sm:$0xf]
      %v186 = vld [vmem:[%s1 + $0x10] sm:$0xf]
      %v187 = vld [vmem:[%s1 + $0x14] sm:$0xf]
      %v188 = vld [vmem:[%s1 + $0x18] sm:$0xf]
      %v189 = vld [vmem:[%s1 + $0x1c] sm:$0xf]
      %v190 = vld [vmem:[%s1 + $0x20] sm:$0xf]
      %v191 = vld [vmem:[%s1 + $0x24] sm:$0xf]
      %v192 = vld [vmem:[%s1 + $0x28] sm:$0xf]
      %v193 = vld [vmem:[%s1 + $0x2c] sm:$0xf]
      %v194 = vld [vmem:[%s1 + $0x30] sm:$0xf]
      %v195 = vld [vmem:[%s1 + $0x34] sm:$0xf]
      %v196 = vld [vmem:[%s1 + $0x38] sm:$0xf]
      %v197 = vld [vmem:[%s1 + $0x3c] sm:$0xf]
      %v198 = vld [vmem:[%s1 + $0x40] sm:$0xf]
      %v199 = vld [vmem:[%s1 + $0x44] sm:$0xf]
      %v200 = vld [vmem:[%s1 + $0x48] sm:$0xf]
      %v201 = vld [vmem:[%s1 + $0x4c] sm:$0xf]
      %v202 = vld [vmem:[%s1 + $0x50] sm:$0xf]
      %v203 = vld [vmem:[%s1 + $0x54] sm:$0xf]
      %v204 = vld [vmem:[%s1 + $0x58] sm:$0xf]
      %v205 = vld [vmem:[%s1 + $0x5c] sm:$0xf]
      %v206 = vld [vmem:[%s1 + $0x60] sm:$0xf]
      %v207 = vld [vmem:[%s1 + $0x64] sm:$0xf]
      %v208 = vld [vmem:[%s1 + $0x68] sm:$0xf]
      %v209 = vld [vmem:[%s1 + $0x6c] sm:$0xf]
      %v210 = vld [vmem:[%s1 + $0x70] sm:$0xf]
      %v211 = vld [vmem:[%s1 + $0x74] sm:$0xf]
      %v212 = vld [vmem:[%s1 + $0x78] sm:$0xf]
      %v213 = vld [vmem:[%s1 + $0x7c] sm:$0xf]
      %v214 = vld [vmem:[%s1 + $0x80] sm:$0xf]
      %v215 = vld [vmem:[%s1 + $0x84] sm:$0xf]
      %v216 = vld [vmem:[%s1 + $0x88] sm:$0xf]
      %v217 = vld [vmem:[%s1 + $0x8c] sm:$0xf]
      %v218 = vld [vmem:[%s2] sm:$0x1]
      %v220 = vlaneseq
      %v221 = vshrl.u32 %v220, 7
      %v222 = vsub.s32 0, %v221
      %v223 = vrot.slane %v218, %v222
      %v229 = vunpack.c.l.b16 %v178
      %v230 = vunpack.c.h.b16 %v178
      %v231 = vunpack.c.l.b16 %v179
      %v232 = vunpack.c.l.b16 %v180
      %v233 = vunpack.c.h.b16 %v180
      %v234 = vunpack.c.l.b16 %v181
      %v235 = vpack.c.b16 %v232, %v229
      %v236 = vpack.c.b16 %v233, %v230
      %v237 = vpack.c.b16 %v234, %v231
      %v276 = vunpack.c.l.b16 %v182
      %v277 = vunpack.c.l.b16 %v183
      %v278 = vunpack.c.l.b16 %v184
      %v279 = vunpack.c.l.b16 %v185
      %v280 = vunpack.c.l.b16 %v186
      %v281 = vunpack.c.l.b16 %v187
      %v282 = vunpack.c.l.b16 %v188
      %v283 = vunpack.c.l.b16 %v189
      %v284 = vunpack.c.l.b16 %v190
      %v285 = vunpack.c.l.b16 %v191
      %v286 = vunpack.c.l.b16 %v192
      %v287 = vunpack.c.l.b16 %v193
      %v288 = vunpack.c.l.b16 %v194
      %v289 = vunpack.c.l.b16 %v195
      %v290 = vunpack.c.l.b16 %v196
      %v291 = vunpack.c.l.b16 %v197
      %v292 = vunpack.c.l.b16 %v198
      %v293 = vunpack.c.l.b16 %v199
      %v294 = vunpack.c.l.b16 %v200
      %v295 = vunpack.c.l.b16 %v201
      %v296 = vunpack.c.l.b16 %v202
      %v297 = vunpack.c.l.b16 %v203
      %v298 = vunpack.c.l.b16 %v204
      %v299 = vunpack.c.l.b16 %v205
      %v300 = vunpack.c.l.b16 %v206
      %v301 = vunpack.c.l.b16 %v207
      %v302 = vunpack.c.l.b16 %v208
      %v303 = vunpack.c.l.b16 %v209
      %v304 = vunpack.c.l.b16 %v210
      %v305 = vunpack.c.l.b16 %v211
      %v306 = vunpack.c.l.b16 %v212
      %v307 = vunpack.c.l.b16 %v213
      %v308 = vunpack.c.l.b16 %v214
      %v309 = vunpack.c.l.b16 %v215
      %v310 = vunpack.c.l.b16 %v216
      %v311 = vunpack.c.l.b16 %v217
      %v312 = vpack.c.b16 %v277, %v276
      %v313 = vpack.c.b16 %v279, %v278
      %v314 = vpack.c.b16 %v281, %v280
      %v315 = vpack.c.b16 %v283, %v282
      %v316 = vpack.c.b16 %v285, %v284
      %v317 = vpack.c.b16 %v287, %v286
      %v318 = vpack.c.b16 %v289, %v288
      %v319 = vpack.c.b16 %v291, %v290
      %v320 = vpack.c.b16 %v293, %v292
      %v321 = vpack.c.b16 %v295, %v294
      %v322 = vpack.c.b16 %v297, %v296
      %v323 = vpack.c.b16 %v299, %v298
      %v324 = vpack.c.b16 %v301, %v300
      %v325 = vpack.c.b16 %v303, %v302
      %v326 = vpack.c.b16 %v305, %v304
      %v327 = vpack.c.b16 %v307, %v306
      %v328 = vpack.c.b16 %v309, %v308
      %v329 = vpack.c.b16 %v311, %v310
      %vm348 = vcmask 261120
      %v350 = vsel %vm348, %v237, 0
      %352 = vmatprep.subr.bf16.mxu0 0
      %353 = vmatpush1.bf16.msra.mxu0 %v312
      %354 = vmatprep.subr.bf16.mxu0 0
      %355 = vmatpush1.bf16.msra.mxu0 %v313
      %356 = vmatprep.subr.bf16.mxu0 0
      %357 = vmatpush1.bf16.msra.mxu0 %v314
      %358 = vmatprep.subr.bf16.mxu0 0
      %359 = vmatpush1.bf16.msra.mxu0 %v315
      %360 = vmatprep.subr.bf16.mxu0 0
      %361 = vmatpush1.bf16.msra.mxu0 %v316
      %362 = vmatprep.subr.bf16.mxu0 0
      %363 = vmatpush1.bf16.msra.mxu0 %v317
      %364 = vmatprep.subr.bf16.mxu0 0
      %365 = vmatpush1.bf16.msra.mxu0 %v318
      %366 = vmatprep.subr.bf16.mxu0 0
      %367 = vmatpush1.bf16.msra.mxu0 %v319
      %368 = vmatprep.subr.bf16.mxu0 0
      %369 = vmatpush1.bf16.msra.mxu0 %v320
      %370 = vmatprep.subr.bf16.mxu0 0
      %371 = vmatpush1.bf16.msra.mxu0 %v321
      %372 = vmatprep.subr.bf16.mxu0 0
      %373 = vmatpush1.bf16.msra.mxu0 %v322
      %374 = vmatprep.subr.bf16.mxu0 0
      %375 = vmatpush1.bf16.msra.mxu0 %v323
      %376 = vmatprep.subr.bf16.mxu0 0
      %377 = vmatpush1.bf16.msra.mxu0 %v324
      %378 = vmatprep.subr.bf16.mxu0 0
      %379 = vmatpush1.bf16.msra.mxu0 %v325
      %380 = vmatprep.subr.bf16.mxu0 0
      %381 = vmatpush1.bf16.msra.mxu0 %v326
      %382 = vmatprep.subr.bf16.mxu0 0
      %383 = vmatpush1.bf16.msra.mxu0 %v327
      %384 = vmatprep.mubr.bf16.mxu0 %v236
      %385 = vmatmul.mubr.bf16.gmra.mrb[0].mxu0 %v235
      %v386 = vpop.f32.mrb[0].mxu0
      %v387 = vadd.f32 %v223, %v386
      %v388 = vpop.f32.mrb[0].mxu0
      %v389 = vpop.f32.mrb[0].mxu0
      %v390 = vadd.f32 %v223, %v389
      %v391 = vpop.f32.mrb[0].mxu0
      %392 = vdwg.mxu0
      %393 = vmatprep.subr.bf16.mxu0 0
      %394 = vmatpush1.bf16.msra.mxu0 %v328
      %395 = vmatprep.subr.bf16.mxu0 0
      %396 = vmatpush1.bf16.msra.mxu0 %v329
      %397 = vmatprep.subr.bf16.mxu0 0
      %398 = vmatpush1.bf16.msra.mxu0 0
      %399 = vmatprep.subr.bf16.mxu0 0
      %400 = vmatpush1.bf16.msra.mxu0 0
      %401 = vmatprep.subr.bf16.mxu0 0
      %402 = vmatpush1.bf16.msra.mxu0 0
      %403 = vmatprep.subr.bf16.mxu0 0
      %404 = vmatpush1.bf16.msra.mxu0 0
      %405 = vmatprep.subr.bf16.mxu0 0
      %406 = vmatpush1.bf16.msra.mxu0 0
      %407 = vmatprep.subr.bf16.mxu0 0
      %408 = vmatpush1.bf16.msra.mxu0 0
      %409 = vmatprep.subr.bf16.mxu0 0
      %410 = vmatpush1.bf16.msra.mxu0 0
      %411 = vmatprep.subr.bf16.mxu0 0
      %412 = vmatpush1.bf16.msra.mxu0 0
      %413 = vmatprep.subr.bf16.mxu0 0
      %414 = vmatpush1.bf16.msra.mxu0 0
      %415 = vmatprep.subr.bf16.mxu0 0
      %416 = vmatpush1.bf16.msra.mxu0 0
      %417 = vmatprep.subr.bf16.mxu0 0
      %418 = vmatpush1.bf16.msra.mxu0 0
      %419 = vmatprep.subr.bf16.mxu0 0
      %420 = vmatpush1.bf16.msra.mxu0 0
      %421 = vmatprep.subr.bf16.mxu0 0
      %422 = vmatpush1.bf16.msra.mxu0 0
      %423 = vmatprep.subr.bf16.mxu0 0
      %424 = vmatpush1.bf16.msra.mxu0 0
      %425 = vmatprep.mubr.bf16.mxu0 0
      %426 = vmatmul.mubr.bf16.gmra.mrb[0].mxu0 %v350
      %v427 = vpop.f32.mrb[0].mxu0
      %v428 = vadd.f32 %v387, %v427
      %v429 = vpop.f32.mrb[0].mxu0
      %v430 = vpop.f32.mrb[0].mxu0
      %v431 = vadd.f32 %v390, %v430
      %v432 = vpop.f32.mrb[0].mxu0
      %433 = vdwg.mxu0
      %v434 = vmax.f32 %v428, 0.0
      %v435 = vmax.f32 %v431, 0.0
      %v436 = vpack.c.bf16 %v435, %v434
      %v438 = vunpack.c.l.b16 %v436
      %v439 = vunpack.c.h.b16 %v436
      %v440 = vpack.c.b16 %v438, %v438
      %v441 = vpack.c.b16 %v439, %v439
      %vm444 = vcmask 257024
      %445 = vst.msk [vmem:[%s175] sm:$0xf] %vm444, %v440
      %446 = vst.msk [vmem:[%s175 + $0x4] sm:$0xf] %vm444, %v441
      %s447 = smul.u32 2, %s14
      %p448 = scmp.lt.s32.totalorder %s447, 3
      %s449 = scalar_select %p448, %s447, 3
      %s450 = smul.addr %s449, 4
      %s451 = scalar_lea.vmem %s3, %s450
      // Predicated region
      $region33: #{avenet_forward.31} parent=31 // pred_check
        %p452 = pneg %p100
      $region34: #{avenet_forward.31} parent=31 // pred_check_branch
        %454 = sbr.rel (%p452) target = $region36
      $region35: #{avenet_forward.31} parent=31 // pred_region
        %s455 = smul.u32 2, %s14
      $region36: #{avenet_forward.31} parent=31 // pred_fallthru
        _
    $region32: #{avenet_forward.31} parent=5 // pred_fallthru
      _
    %p456 = scmp.le.s32.totalorder 2, %s9
    // Predicated region
    $region37: #{avenet_forward.31} parent=5 // pred_check
      %p457 = pneg %p456
    $region38: #{avenet_forward.31} parent=5 // pred_check_branch
      %459 = sbr.rel (%p457) target = $region40
    $region39: #{avenet_forward.31} parent=5 // pred_region
      %s460 = ssub.s32 %s9, 2
      // Predicated region
      $region41: #{avenet_forward.31} parent=39 // pred_check
        %p461 = pneg %p106
      $region42: #{avenet_forward.31} parent=39 // pred_check_branch
        %463 = sbr.rel (%p461) target = $region44
      $region43: #{avenet_forward.31} parent=39 // pred_region
        %s464 = smul.u32 2, %s15
        %p465 = scmp.lt.s32.totalorder %s464, 3
        %s466 = scalar_select %p465, %s464, 3
        %s467 = smul.addr %s466, 4
        %s468 = scalar_lea.vmem %s3, %s467
      $region44: #{avenet_forward.31} parent=39 // pred_fallthru
        _
    $region40: #{avenet_forward.31} parent=5 // pred_fallthru
      _
  $region6: #{avenet_forward.31} parent=0 // loop_footer
    %s13 = sadd.s32 1, %s9
  $region7: #{avenet_forward.31} parent=0 // loop_footer_branch
    %8 = sbr.rel target = $region3
  $region8: #{avenet_forward.31} parent=0 // loop_exit
    _

// kernel: avenet_forward.30
$region0: #{avenet_forward.30}
  #allocation0 [shape = 'u32[]', space=smem, size = 0x4, offset = 0x4, fixed_abs, tag = 'smem constant byte address 0x4 - core index']
  #allocation1 [shape = 'u32[144,128]{1,0:T(1,128)}', space=vmem, size = 0x12000, scoped, tag = 'internal scratch']
  %s0 = inlined_call_operand.vmem [shape: bf16[32,288], index: 0, kind: input, shape index: {}]
  %s1 = inlined_call_operand.vmem [shape: bf16[288,32], index: 1, kind: input, shape index: {}]
  %s2 = inlined_call_operand.vmem [shape: f32[1,32], index: 2, kind: input, shape index: {}]
  %s3 = inlined_call_operand.vmem [shape: bf16[32,16], index: 3, kind: input, shape index: {}]
  %s4 = inlined_call_operand.vmem [shape: bf16[16,32], index: 4, kind: input, shape index: {}]
  %s5 = inlined_call_operand.vmem [shape: f32[1,32], index: 5, kind: input, shape index: {}]
  %s6 = inlined_call_operand.vmem [shape: bf16[32,32], index: 6, kind: output, shape index: {}]
  %s7 = sld [smem:[#allocation0]]
  $region57: #{avenet_forward.30} parent=0
    _
  %s9 = ssub.s32 1, %s7
  %s10 = scalar_select 0, %s9, %s7
  loop: start=0, step=1, limit=4
  $region2: #{avenet_forward.30} parent=0 // loop_pre_header
    _
  $region3: #{avenet_forward.30} parent=0 // loop_header
    %s12 = sphi 0, %s16
    %p13 = scmp.ge.s32.totalorder %s12, 4
    %s22 = sphi 0, %s24
    %s25 = sphi 0, %s22
    %s26 = sphi 0, %s25
    %s42 = sphi 0, %s26
    %s46 = sphi 0, %s46
    %s48 = sphi 0, %s46
    %s49 = sphi 0, %s48
    %s63 = sphi 0, %s49
    %s67 = sphi 0, %s67
    %s69 = sphi 0, %s67
    %s70 = sphi 0, %s69
    %s84 = sphi 0, %s70
    %s90 = sphi 0, %s92
    %s93 = sphi 0, %s90
    %s94 = sphi 0, %s93
    %s110 = sphi 0, %s94
    %s114 = sphi 0, %s114
    %s116 = sphi 0, %s114
    %s117 = sphi 0, %s116
    %s131 = sphi 0, %s117
    %s135 = sphi 0, %s135
    %s137 = sphi 0, %s135
    %s138 = sphi 0, %s137
    %s152 = sphi 0, %s138
    %s158 = sphi 0, %s160
    %s161 = sphi 0, %s158
    %s162 = sphi 0, %s161
    %s178 = sphi 0, %s162
  $region4: #{avenet_forward.30} parent=0 // loop_header_branch
    %15 = sbr.rel (%p13) target = $region8
  $region5: #{avenet_forward.30} parent=0 // loop_body
    %s17 = ssub.s32 %s12, 1
    %s18 = ssub.s32 %s12, 2
    %s19 = sadd.s32 %s12, 1
    %s20 = ssub.s32 %s12, %s19
    %p21 = scmp.eq.s32.totalorder %s20, 0
    %s23 = sadd.s32 %s22, 1
    %s24 = scalar_select %p21, %s22, %s23
    %p27 = pneg %p21
    %p28 = scmp.eq.s32.totalorder %s12, 1
    %p29 = por %p27, %p28
    %p30 = scmp.ne.s32.totalorder %s22, %s25
    %p31 = scmp.eq.s32.totalorder %s12, 0
    %p32 = por %p30, %p31
    %p33 = scmp.ne.s32.totalorder %s22, %s25
    %p34 = scmp.eq.s32.totalorder %s17, 1
    %p35 = por %p33, %p34
    %p36 = scmp.ne.s32.totalorder %s25, %s26
    %p37 = scmp.eq.s32.totalorder %s17, 0
    %p38 = por %p36, %p37
    %p39 = scmp.ne.s32.totalorder %s25, %s26
    %p40 = scmp.eq.s32.totalorder %s18, 1
    %p41 = por %p39, %p40
    %p43 = scmp.ne.s32.totalorder %s26, %s42
    %p44 = scmp.eq.s32.totalorder %s18, 0
    %p45 = por %p43, %p44
    %s47 = sadd.s32 %s46, 1
    %p50 = scmp.eq.s32.totalorder %s12, 1
    %p51 = scmp.ne.s32.totalorder %s46, %s48
    %p52 = scmp.eq.s32.totalorder %s12, 0
    %p53 = por %p51, %p52
    %p54 = scmp.ne.s32.totalorder %s46, %s48
    %p55 = scmp.eq.s32.totalorder %s17, 1
    %p56 = por %p54, %p55
    %p57 = scmp.ne.s32.totalorder %s48, %s49
    %p58 = scmp.eq.s32.totalorder %s17, 0
    %p59 = por %p57, %p58
    %p60 = scmp.ne.s32.totalorder %s48, %s49
    %p61 = scmp.eq.s32.totalorder %s18, 1
    %p62 = por %p60, %p61
    %p64 = scmp.ne.s32.totalorder %s49, %s63
    %p65 = scmp.eq.s32.totalorder %s18, 0
    %p66 = por %p64, %p65
    %s68 = sadd.s32 %s67, 1
    %p71 = scmp.eq.s32.totalorder %s12, 1
    %p72 = scmp.ne.s32.totalorder %s67, %s69
    %p73 = scmp.eq.s32.totalorder %s12, 0
    %p74 = por %p72, %p73
    %p75 = scmp.ne.s32.totalorder %s67, %s69
    %p76 = scmp.eq.s32.totalorder %s17, 1
    %p77 = por %p75, %p76
    %p78 = scmp.ne.s32.totalorder %s69, %s70
    %p79 = scmp.eq.s32.totalorder %s17, 0
    %p80 = por %p78, %p79
    %p81 = scmp.ne.s32.totalorder %s69, %s70
    %p82 = scmp.eq.s32.totalorder %s18, 1
    %p83 = por %p81, %p82
    %p85 = scmp.ne.s32.totalorder %s70, %s84
    %p86 = scmp.eq.s32.totalorder %s18, 0
    %p87 = por %p85, %p86
    %s88 = ssub.s32 %s12, %s19
    %p89 = scmp.eq.s32.totalorder %s88, 0
    %s91 = sadd.s32 %s90, 1
    %s92 = scalar_select %p89, %s90, %s91
    %p95 = pneg %p89
    %p96 = scmp.eq.s32.totalorder %s12, 1
    %p97 = por %p95, %p96
    %p98 = scmp.ne.s32.totalorder %s90, %s93
    %p99 = scmp.eq.s32.totalorder %s12, 0
    %p100 = por %p98, %p99
    %p101 = scmp.ne.s32.totalorder %s90, %s93
    %p102 = scmp.eq.s32.totalorder %s17, 1
    %p103 = por %p101, %p102
    %p104 = scmp.ne.s32.totalorder %s93, %s94
    %p105 = scmp.eq.s32.totalorder %s17, 0
    %p106 = por %p104, %p105
    %p107 = scmp.ne.s32.totalorder %s93, %s94
    %p108 = scmp.eq.s32.totalorder %s18, 1
    %p109 = por %p107, %p108
    %p111 = scmp.ne.s32.totalorder %s94, %s110
    %p112 = scmp.eq.s32.totalorder %s18, 0
    %p113 = por %p111, %p112
    %s115 = sadd.s32 %s114, 1
    %p118 = scmp.eq.s32.totalorder %s12, 1
    %p119 = scmp.ne.s32.totalorder %s114, %s116
    %p120 = scmp.eq.s32.totalorder %s12, 0
    %p121 = por %p119, %p120
    %p122 = scmp.ne.s32.totalorder %s114, %s116
    %p123 = scmp.eq.s32.totalorder %s17, 1
    %p124 = por %p122, %p123
    %p125 = scmp.ne.s32.totalorder %s116, %s117
    %p126 = scmp.eq.s32.totalorder %s17, 0
    %p127 = por %p125, %p126
    %p128 = scmp.ne.s32.totalorder %s116, %s117
    %p129 = scmp.eq.s32.totalorder %s18, 1
    %p130 = por %p128, %p129
    %p132 = scmp.ne.s32.totalorder %s117, %s131
    %p133 = scmp.eq.s32.totalorder %s18, 0
    %p134 = por %p132, %p133
    %s136 = sadd.s32 %s135, 1
    %p139 = scmp.eq.s32.totalorder %s12, 1
    %p140 = scmp.ne.s32.totalorder %s135, %s137
    %p141 = scmp.eq.s32.totalorder %s12, 0
    %p142 = por %p140, %p141
    %p143 = scmp.ne.s32.totalorder %s135, %s137
    %p144 = scmp.eq.s32.totalorder %s17, 1
    %p145 = por %p143, %p144
    %p146 = scmp.ne.s32.totalorder %s137, %s138
    %p147 = scmp.eq.s32.totalorder %s17, 0
    %p148 = por %p146, %p147
    %p149 = scmp.ne.s32.totalorder %s137, %s138
    %p150 = scmp.eq.s32.totalorder %s18, 1
    %p151 = por %p149, %p150
    %p153 = scmp.ne.s32.totalorder %s138, %s152
    %p154 = scmp.eq.s32.totalorder %s18, 0
    %p155 = por %p153, %p154
    %s156 = ssub.s32 %s12, %s19
    %p157 = scmp.eq.s32.totalorder %s156, 0
    %s159 = sadd.s32 %s158, 1
    %s160 = scalar_select %p157, %s158, %s159
    %p163 = pneg %p157
    %p164 = scmp.eq.s32.totalorder %s12, 1
    %p165 = por %p163, %p164
    %p166 = scmp.ne.s32.totalorder %s158, %s161
    %p167 = scmp.eq.s32.totalorder %s12, 0
    %p168 = por %p166, %p167
    %p169 = scmp.ne.s32.totalorder %s158, %s161
    %p170 = scmp.eq.s32.totalorder %s17, 1
    %p171 = por %p169, %p170
    %p172 = scmp.ne.s32.totalorder %s161, %s162
    %p173 = scmp.eq.s32.totalorder %s17, 0
    %p174 = por %p172, %p173
    %p175 = scmp.ne.s32.totalorder %s161, %s162
    %p176 = scmp.eq.s32.totalorder %s18, 1
    %p177 = por %p175, %p176
    %p179 = scmp.ne.s32.totalorder %s162, %s178
    %p180 = scmp.eq.s32.totalorder %s18, 0
    %p181 = por %p179, %p180
    %p182 = scmp.le.s32.totalorder 1, %s12
    %p183 = scmp.lt.s32.totalorder %s12, 3
    %p184 = pnand %p182, %p183
    %p185 = pneg %p184
    // Predicated region
    $region9: #{avenet_forward.30} parent=5 // pred_check
      _
    $region10: #{avenet_forward.30} parent=5 // pred_check_branch
      %187 = sbr.rel (%p184) target = $region12
    $region11: #{avenet_forward.30} parent=5 // pred_region
      %s188 = ssub.s32 %s12, 1
      // Predicated region
      $region13: #{avenet_forward.30} parent=11 // pred_check
        %p189 = pneg %p59
      $region14: #{avenet_forward.30} parent=11 // pred_check_branch
        %191 = sbr.rel (%p189) target = $region16
      $region15: #{avenet_forward.30} parent=11 // pred_region
        _
      $region16: #{avenet_forward.30} parent=11 // pred_fallthru
        _
      // Predicated region
      $region17: #{avenet_forward.30} parent=11 // pred_check
        %p192 = pneg %p80
      $region18: #{avenet_forward.30} parent=11 // pred_check_branch
        %194 = sbr.rel (%p192) target = $region20
      $region19: #{avenet_forward.30} parent=11 // pred_region
        _
      $region20: #{avenet_forward.30} parent=11 // pred_fallthru
        _
      // Predicated region
      $region21: #{avenet_forward.30} parent=11 // pred_check
        %p195 = pneg %p127
      $region22: #{avenet_forward.30} parent=11 // pred_check_branch
        %197 = sbr.rel (%p195) target = $region24
      $region23: #{avenet_forward.30} parent=11 // pred_region
        _
      $region24: #{avenet_forward.30} parent=11 // pred_fallthru
        _
      // Predicated region
      $region25: #{avenet_forward.30} parent=11 // pred_check
        %p198 = pneg %p148
      $region26: #{avenet_forward.30} parent=11 // pred_check_branch
        %200 = sbr.rel (%p198) target = $region28
      $region27: #{avenet_forward.30} parent=11 // pred_region
        _
      $region28: #{avenet_forward.30} parent=11 // pred_fallthru
        _
    $region12: #{avenet_forward.30} parent=5 // pred_fallthru
      _
    %p201 = scmp.lt.s32.totalorder %s12, 2
    // Predicated region
    $region29: #{avenet_forward.30} parent=5 // pred_check
      %p202 = pneg %p201
    $region30: #{avenet_forward.30} parent=5 // pred_check_branch
      %204 = sbr.rel (%p202) target = $region32
    $region31: #{avenet_forward.30} parent=5 // pred_region
      // Predicated region
      $region33: #{avenet_forward.30} parent=31 // pred_check
        %p205 = pneg %p32
      $region34: #{avenet_forward.30} parent=31 // pred_check_branch
        %207 = sbr.rel (%p205) target = $region36
      $region35: #{avenet_forward.30} parent=31 // pred_region
        %s208 = smul.u32 2, %s12
        %p209 = scmp.lt.s32.totalorder %s208, 3
        %s210 = scalar_select %p209, %s208, 3
        %s211 = smul.addr %s210, 3
        %s212 = smul.addr %s211, 4
        %s213 = scalar_lea.vmem %s0, %s212
        %s214 = smul.u32 2, %s12
      $region36: #{avenet_forward.30} parent=31 // pred_fallthru
        _
      // Predicated region
      $region37: #{avenet_forward.30} parent=31 // pred_check
        %p215 = pneg %p100
      $region38: #{avenet_forward.30} parent=31 // pred_check_branch
        %217 = sbr.rel (%p215) target = $region40
      $region39: #{avenet_forward.30} parent=31 // pred_region
        %s218 = smul.u32 2, %s12
        %p219 = scmp.lt.s32.totalorder %s218, 3
        %s220 = scalar_select %p219, %s218, 3
        %s221 = smul.addr %s220, 4
        %s222 = scalar_lea.vmem %s3, %s221
        %s223 = smul.u32 2, %s12
      $region40: #{avenet_forward.30} parent=31 // pred_fallthru
        _
    $region32: #{avenet_forward.30} parent=5 // pred_fallthru
      _
    %p224 = scmp.le.s32.totalorder 1, %s12
    %p225 = scmp.lt.s32.totalorder %s12, 3
    %p226 = pnand %p224, %p225
    %p227 = pneg %p226
    // Predicated region
    $region41: #{avenet_forward.30} parent=5 // pred_check
      _
    $region42: #{avenet_forward.30} parent=5 // pred_check_branch
      %229 = sbr.rel (%p226) target = $region44
    $region43: #{avenet_forward.30} parent=5 // pred_region
      %s230 = ssub.s32 %s12, 1
      %s231 = smul.u32 2, %s17
      %p232 = scmp.lt.s32.totalorder %s231, 3
      %s233 = scalar_select %p232, %s231, 3
      %s234 = smul.addr %s233, 3
      %s235 = smul.addr %s234, 4
      %s236 = scalar_lea.vmem %s0, %s235
      %p237 = pneg %p38
      %p238 = pneg %p35
      %p239 = pneg %p59
      %p240 = pneg %p56
      %p241 = pneg %p80
      %p242 = pneg %p77
      %s243 = smul.u32 2, %s17
      %p244 = scmp.lt.s32.totalorder %s243, 3
      %s245 = scalar_select %p244, %s243, 3
      %s246 = smul.addr %s245, 4
      %s247 = scalar_lea.vmem %s3, %s246
      %p248 = pneg %p106
      %p249 = pneg %p103
      %p250 = pneg %p127
      %p251 = pneg %p124
      %p252 = pneg %p148
      %p253 = pneg %p145
      %p254 = pneg %p174
      %p255 = pneg %p171
      %s256 = smul.u32 2, %s17
      %p257 = scmp.lt.s32.totalorder %s256, 3
      %s258 = scalar_select %p257, %s256, 3
      %s259 = smul.addr %s258, 4
      %s260 = scalar_lea.vmem %s6, %s259
      %s261 = smul.u32 2, %s17
      %p262 = scmp.lt.s32.totalorder %s261, 3
      %s263 = scalar_select %p262, %s261, 3
      %s264 = smul.addr %s263, 3
      %s265 = smul.addr %s264, 4
      %s266 = scalar_lea.vmem %s0, %s265
      %s267 = smul.u32 2, %s17
      %s268 = smul.u32 2, %s17
      %p269 = scmp.lt.s32.totalorder %s268, 3
      %s270 = scalar_select %p269, %s268, 3
      %s271 = smul.addr %s270, 4
      %s272 = scalar_lea.vmem %s3, %s271
      %s273 = smul.u32 2, %s17
      %s274 = smul.u32 2, %s17
      %p275 = scmp.lt.s32.totalorder %s274, 3
      %s276 = scalar_select %p275, %s274, 3
      %s277 = smul.addr %s276, 4
      %s278 = scalar_lea.vmem %s6, %s277
      %s279 = smul.u32 2, %s17
      %v281 = vld [vmem:[%s266] sm:$0xff]
      %v282 = vld [vmem:[%s266 + $0x8] sm:$0xf]
      %v283 = vld [vmem:[%s266 + $0xc] sm:$0xff]
      %v284 = vld [vmem:[%s266 + $0x14] sm:$0xf]
      %v285 = vld [vmem:[%s1] sm:$0xf]
      %v286 = vld [vmem:[%s1 + $0x4] sm:$0xf]
      %v287 = vld [vmem:[%s1 + $0x8] sm:$0xf]
      %v288 = vld [vmem:[%s1 + $0xc] sm:$0xf]
      %v289 = vld [vmem:[%s1 + $0x10] sm:$0xf]
      %v290 = vld [vmem:[%s1 + $0x14] sm:$0xf]
      %v291 = vld [vmem:[%s1 + $0x18] sm:$0xf]
      %v292 = vld [vmem:[%s1 + $0x1c] sm:$0xf]
      %v293 = vld [vmem:[%s1 + $0x20] sm:$0xf]
      %v294 = vld [vmem:[%s1 + $0x24] sm:$0xf]
      %v295 = vld [vmem:[%s1 + $0x28] sm:$0xf]
      %v296 = vld [vmem:[%s1 + $0x2c] sm:$0xf]
      %v297 = vld [vmem:[%s1 + $0x30] sm:$0xf]
      %v298 = vld [vmem:[%s1 + $0x34] sm:$0xf]
      %v299 = vld [vmem:[%s1 + $0x38] sm:$0xf]
      %v300 = vld [vmem:[%s1 + $0x3c] sm:$0xf]
      %v301 = vld [vmem:[%s1 + $0x40] sm:$0xf]
      %v302 = vld [vmem:[%s1 + $0x44] sm:$0xf]
      %v303 = vld [vmem:[%s1 + $0x48] sm:$0xf]
      %v304 = vld [vmem:[%s1 + $0x4c] sm:$0xf]
      %v305 = vld [vmem:[%s1 + $0x50] sm:$0xf]
      %v306 = vld [vmem:[%s1 + $0x54] sm:$0xf]
      %v307 = vld [vmem:[%s1 + $0x58] sm:$0xf]
      %v308 = vld [vmem:[%s1 + $0x5c] sm:$0xf]
      %v309 = vld [vmem:[%s1 + $0x60] sm:$0xf]
      %v310 = vld [vmem:[%s1 + $0x64] sm:$0xf]
      %v311 = vld [vmem:[%s1 + $0x68] sm:$0xf]
      %v312 = vld [vmem:[%s1 + $0x6c] sm:$0xf]
      %v313 = vld [vmem:[%s1 + $0x70] sm:$0xf]
      %v314 = vld [vmem:[%s1 + $0x74] sm:$0xf]
      %v315 = vld [vmem:[%s1 + $0x78] sm:$0xf]
      %v316 = vld [vmem:[%s1 + $0x7c] sm:$0xf]
      %v317 = vld [vmem:[%s1 + $0x80] sm:$0xf]
      %v318 = vld [vmem:[%s1 + $0x84] sm:$0xf]
      %v319 = vld [vmem:[%s1 + $0x88] sm:$0xf]
      %v320 = vld [vmem:[%s1 + $0x8c] sm:$0xf]
      %v321 = vld [vmem:[%s272] sm:$0xf]
      %v322 = vld [vmem:[%s272 + $0x4] sm:$0xf]
      %v323 = vld [vmem:[%s4] sm:$0xf]
      %v324 = vld [vmem:[%s4 + $0x4] sm:$0xf]
      %v325 = vld [vmem:[%s5] sm:$0x1]
      %v327 = vlaneseq
      %v328 = vshrl.u32 %v327, 7
      %v329 = vsub.s32 0, %v328
      %v330 = vrot.slane %v325, %v329
      %v334 = vunpack.c.l.b16 %v321
      %v335 = vunpack.c.l.b16 %v322
      %v336 = vpack.c.b16 %v335, %v334
      %v339 = vunpack.c.l.b16 %v323
      %v340 = vunpack.c.l.b16 %v324
      %v341 = vpack.c.b16 %v340, %v339
      %vm343 = vcmask 130048
      %v345 = vsel %vm343, %v336, 0
      %347 = vmatprep.subr.bf16.mxu0 0
      %348 = vmatpush1.bf16.msra.mxu0 %v341
      %349 = vmatprep.subr.bf16.mxu0 0
      %350 = vmatpush1.bf16.msra.mxu0 0
      %351 = vmatprep.subr.bf16.mxu0 0
      %352 = vmatpush1.bf16.msra.mxu0 0
      %353 = vmatprep.subr.bf16.mxu0 0
      %354 = vmatpush1.bf16.msra.mxu0 0
      %355 = vmatprep.subr.bf16.mxu0 0
      %356 = vmatpush1.bf16.msra.mxu0 0
      %357 = vmatprep.subr.bf16.mxu0 0
      %358 = vmatpush1.bf16.msra.mxu0 0
      %359 = vmatprep.subr.bf16.mxu0 0
      %360 = vmatpush1.bf16.msra.mxu0 0
      %361 = vmatprep.subr.bf16.mxu0 0
      %362 = vmatpush1.bf16.msra.mxu0 0
      %363 = vmatprep.subr.bf16.mxu0 0
      %364 = vmatpush1.bf16.msra.mxu0 0
      %365 = vmatprep.subr.bf16.mxu0 0
      %366 = vmatpush1.bf16.msra.mxu0 0
      %367 = vmatprep.subr.bf16.mxu0 0
      %368 = vmatpush1.bf16.msra.mxu0 0
      %369 = vmatprep.subr.bf16.mxu0 0
      %370 = vmatpush1.bf16.msra.mxu0 0
      %371 = vmatprep.subr.bf16.mxu0 0
      %372 = vmatpush1.bf16.msra.mxu0 0
      %373 = vmatprep.subr.bf16.mxu0 0
      %374 = vmatpush1.bf16.msra.mxu0 0
      %375 = vmatprep.subr.bf16.mxu0 0
      %376 = vmatpush1.bf16.msra.mxu0 0
      %377 = vmatprep.subr.bf16.mxu0 0
      %378 = vmatpush1.bf16.msra.mxu0 0
      %379 = vmatprep.mubr.bf16.mxu0 0
      %380 = vmatmul.mubr.bf16.gmra.mrb[0].mxu0 %v345
      %v381 = vpop.f32.mrb[0].mxu0
      %v382 = vadd.f32 %v330, %v381
      %v383 = vpop.f32.mrb[0].mxu0
      %v384 = vpop.f32.mrb[0].mxu0
      %v385 = vadd.f32 %v330, %v384
      %v386 = vpop.f32.mrb[0].mxu0
      %387 = vdwg.mxu0
      %v388 = vld [vmem:[%s2] sm:$0x1]
      %v390 = vlaneseq
      %v391 = vshrl.u32 %v390, 7
      %v392 = vsub.s32 0, %v391
      %v393 = vrot.slane %v388, %v392
      %v399 = vunpack.c.l.b16 %v281
      %v400 = vunpack.c.h.b16 %v281
      %v401 = vunpack.c.l.b16 %v282
      %v402 = vunpack.c.l.b16 %v283
      %v403 = vunpack.c.h.b16 %v283
      %v404 = vunpack.c.l.b16 %v284
      %v405 = vpack.c.b16 %v402, %v399
      %v406 = vpack.c.b16 %v403, %v400
      %v407 = vpack.c.b16 %v404, %v401
      %v446 = vunpack.c.l.b16 %v285
      %v447 = vunpack.c.l.b16 %v286
      %v448 = vunpack.c.l.b16 %v287
      %v449 = vunpack.c.l.b16 %v288
      %v450 = vunpack.c.l.b16 %v289
      %v451 = vunpack.c.l.b16 %v290
      %v452 = vunpack.c.l.b16 %v291
      %v453 = vunpack.c.l.b16 %v292
      %v454 = vunpack.c.l.b16 %v293
      %v455 = vunpack.c.l.b16 %v294
      %v456 = vunpack.c.l.b16 %v295
      %v457 = vunpack.c.l.b16 %v296
      %v458 = vunpack.c.l.b16 %v297
      %v459 = vunpack.c.l.b16 %v298
      %v460 = vunpack.c.l.b16 %v299
      %v461 = vunpack.c.l.b16 %v300
      %v462 = vunpack.c.l.b16 %v301
      %v463 = vunpack.c.l.b16 %v302
      %v464 = vunpack.c.l.b16 %v303
      %v465 = vunpack.c.l.b16 %v304
      %v466 = vunpack.c.l.b16 %v305
      %v467 = vunpack.c.l.b16 %v306
      %v468 = vunpack.c.l.b16 %v307
      %v469 = vunpack.c.l.b16 %v308
      %v470 = vunpack.c.l.b16 %v309
      %v471 = vunpack.c.l.b16 %v310
      %v472 = vunpack.c.l.b16 %v311
      %v473 = vunpack.c.l.b16 %v312
      %v474 = vunpack.c.l.b16 %v313
      %v475 = vunpack.c.l.b16 %v314
      %v476 = vunpack.c.l.b16 %v315
      %v477 = vunpack.c.l.b16 %v316
      %v478 = vunpack.c.l.b16 %v317
      %v479 = vunpack.c.l.b16 %v318
      %v480 = vunpack.c.l.b16 %v319
      %v481 = vunpack.c.l.b16 %v320
      %v482 = vpack.c.b16 %v447, %v446
      %v483 = vpack.c.b16 %v449, %v448
      %v484 = vpack.c.b16 %v451, %v450
      %v485 = vpack.c.b16 %v453, %v452
      %v486 = vpack.c.b16 %v455, %v454
      %v487 = vpack.c.b16 %v457, %v456
      %v488 = vpack.c.b16 %v459, %v458
      %v489 = vpack.c.b16 %v461, %v460
      %v490 = vpack.c.b16 %v463, %v462
      %v491 = vpack.c.b16 %v465, %v464
      %v492 = vpack.c.b16 %v467, %v466
      %v493 = vpack.c.b16 %v469, %v468
      %v494 = vpack.c.b16 %v471, %v470
      %v495 = vpack.c.b16 %v473, %v472
      %v496 = vpack.c.b16 %v475, %v474
      %v497 = vpack.c.b16 %v477, %v476
      %v498 = vpack.c.b16 %v479, %v478
      %v499 = vpack.c.b16 %v481, %v480
      %vm518 = vcmask 261120
      %v520 = vsel %vm518, %v407, 0
      %522 = vmatprep.subr.bf16.mxu0 0
      %523 = vmatpush1.bf16.msra.mxu0 %v482
      %524 = vmatprep.subr.bf16.mxu0 0
      %525 = vmatpush1.bf16.msra.mxu0 %v483
      %526 = vmatprep.subr.bf16.mxu0 0
      %527 = vmatpush1.bf16.msra.mxu0 %v484
      %528 = vmatprep.subr.bf16.mxu0 0
      %529 = vmatpush1.bf16.msra.mxu0 %v485
      %530 = vmatprep.subr.bf16.mxu0 0
      %531 = vmatpush1.bf16.msra.mxu0 %v486
      %532 = vmatprep.subr.bf16.mxu0 0
      %533 = vmatpush1.bf16.msra.mxu0 %v487
      %534 = vmatprep.subr.bf16.mxu0 0
      %535 = vmatpush1.bf16.msra.mxu0 %v488
      %536 = vmatprep.subr.bf16.mxu0 0
      %537 = vmatpush1.bf16.msra.mxu0 %v489
      %538 = vmatprep.subr.bf16.mxu0 0
      %539 = vmatpush1.bf16.msra.mxu0 %v490
      %540 = vmatprep.subr.bf16.mxu0 0
      %541 = vmatpush1.bf16.msra.mxu0 %v491
      %542 = vmatprep.subr.bf16.mxu0 0
      %543 = vmatpush1.bf16.msra.mxu0 %v492
      %544 = vmatprep.subr.bf16.mxu0 0
      %545 = vmatpush1.bf16.msra.mxu0 %v493
      %546 = vmatprep.subr.bf16.mxu0 0
      %547 = vmatpush1.bf16.msra.mxu0 %v494
      %548 = vmatprep.subr.bf16.mxu0 0
      %549 = vmatpush1.bf16.msra.mxu0 %v495
      %550 = vmatprep.subr.bf16.mxu0 0
      %551 = vmatpush1.bf16.msra.mxu0 %v496
      %552 = vmatprep.subr.bf16.mxu0 0
      %553 = vmatpush1.bf16.msra.mxu0 %v497
      %554 = vmatprep.mubr.bf16.mxu0 %v406
      %555 = vmatmul.mubr.bf16.gmra.mrb[0].mxu0 %v405
      %v556 = vpop.f32.mrb[0].mxu0
      %v557 = vadd.f32 %v393, %v556
      %v558 = vpop.f32.mrb[0].mxu0
      %v559 = vpop.f32.mrb[0].mxu0
      %v560 = vadd.f32 %v393, %v559
      %v561 = vpop.f32.mrb[0].mxu0
      %562 = vdwg.mxu0
      %563 = vmatprep.subr.bf16.mxu0 0
      %564 = vmatpush1.bf16.msra.mxu0 %v498
      %565 = vmatprep.subr.bf16.mxu0 0
      %566 = vmatpush1.bf16.msra.mxu0 %v499
      %567 = vmatprep.subr.bf16.mxu0 0
      %568 = vmatpush1.bf16.msra.mxu0 0
      %569 = vmatprep.subr.bf16.mxu0 0
      %570 = vmatpush1.bf16.msra.mxu0 0
      %571 = vmatprep.subr.bf16.mxu0 0
      %572 = vmatpush1.bf16.msra.mxu0 0
      %573 = vmatprep.subr.bf16.mxu0 0
      %574 = vmatpush1.bf16.msra.mxu0 0
      %575 = vmatprep.subr.bf16.mxu0 0
      %576 = vmatpush1.bf16.msra.mxu0 0
      %577 = vmatprep.subr.bf16.mxu0 0
      %578 = vmatpush1.bf16.msra.mxu0 0
      %579 = vmatprep.subr.bf16.mxu0 0
      %580 = vmatpush1.bf16.msra.mxu0 0
      %581 = vmatprep.subr.bf16.mxu0 0
      %582 = vmatpush1.bf16.msra.mxu0 0
      %583 = vmatprep.subr.bf16.mxu0 0
      %584 = vmatpush1.bf16.msra.mxu0 0
      %585 = vmatprep.subr.bf16.mxu0 0
      %586 = vmatpush1.bf16.msra.mxu0 0
      %587 = vmatprep.subr.bf16.mxu0 0
      %588 = vmatpush1.bf16.msra.mxu0 0
      %589 = vmatprep.subr.bf16.mxu0 0
      %590 = vmatpush1.bf16.msra.mxu0 0
      %591 = vmatprep.subr.bf16.mxu0 0
      %592 = vmatpush1.bf16.msra.mxu0 0
      %593 = vmatprep.subr.bf16.mxu0 0
      %594 = vmatpush1.bf16.msra.mxu0 0
      %595 = vmatprep.mubr.bf16.mxu0 0
      %596 = vmatmul.mubr.bf16.gmra.mrb[0].mxu0 %v520
      %v597 = vpop.f32.mrb[0].mxu0
      %v598 = vadd.f32 %v557, %v597
      %v599 = vpop.f32.mrb[0].mxu0
      %v600 = vpop.f32.mrb[0].mxu0
      %v601 = vadd.f32 %v560, %v600
      %v602 = vpop.f32.mrb[0].mxu0
      %603 = vdwg.mxu0
      %v604 = vadd.f32 %v598, %v382
      %v605 = vadd.f32 %v601, %v385
      %v606 = vmax.f32 %v604, 0.0
      %v607 = vmax.f32 %v605, 0.0
      %v608 = vpack.c.bf16 %v607, %v606
      %v610 = vunpack.c.l.b16 %v608
      %v611 = vunpack.c.h.b16 %v608
      %v612 = vpack.c.b16 %v610, %v610
      %v613 = vpack.c.b16 %v611, %v611
      %vm616 = vcmask 257024
      %617 = vst.msk [vmem:[%s278] sm:$0xf] %vm616, %v612
      %618 = vst.msk [vmem:[%s278 + $0x4] sm:$0xf] %vm616, %v613
      %s619 = smul.u32 2, %s17
      %p620 = scmp.lt.s32.totalorder %s619, 3
      %s621 = scalar_select %p620, %s619, 3
      %s622 = smul.addr %s621, 4
      %s623 = scalar_lea.vmem %s6, %s622
      // Predicated region
      $region45: #{avenet_forward.30} parent=43 // pred_check
        %p624 = pneg %p171
      $region46: #{avenet_forward.30} parent=43 // pred_check_branch
        %626 = sbr.rel (%p624) target = $region48
      $region47: #{avenet_forward.30} parent=43 // pred_region
        %s627 = smul.u32 2, %s17
      $region48: #{avenet_forward.30} parent=43 // pred_fallthru
        _
    $region44: #{avenet_forward.30} parent=5 // pred_fallthru
      _
    %p628 = scmp.le.s32.totalorder 2, %s12
    // Predicated region
    $region49: #{avenet_forward.30} parent=5 // pred_check
      %p629 = pneg %p628
    $region50: #{avenet_forward.30} parent=5 // pred_check_branch
      %631 = sbr.rel (%p629) target = $region52
    $region51: #{avenet_forward.30} parent=5 // pred_region
      %s632 = ssub.s32 %s12, 2
      // Predicated region
      $region53: #{avenet_forward.30} parent=51 // pred_check
        %p633 = pneg %p177
      $region54: #{avenet_forward.30} parent=51 // pred_check_branch
        %635 = sbr.rel (%p633) target = $region56
      $region55: #{avenet_forward.30} parent=51 // pred_region
        %s636 = smul.u32 2, %s18
        %p637 = scmp.lt.s32.totalorder %s636, 3
        %s638 = scalar_select %p637, %s636, 3
        %s639 = smul.addr %s638, 4
        %s640 = scalar_lea.vmem %s6, %s639
      $region56: #{avenet_forward.30} parent=51 // pred_fallthru
        _
    $region52: #{avenet_forward.30} parent=5 // pred_fallthru
      _
  $region6: #{avenet_forward.30} parent=0 // loop_footer
    %s16 = sadd.s32 1, %s12
  $region7: #{avenet_forward.30} parent=0 // loop_footer_branch
    %11 = sbr.rel target = $region3
  $region8: #{avenet_forward.30} parent=0 // loop_exit
    _

// kernel: avenet_forward.32
$region0: #{avenet_forward.32}
  #allocation0 [shape = 'u32[]', space=smem, size = 0x4, offset = 0x4, fixed_abs, tag = 'smem constant byte address 0x4 - core index']
  #allocation1 [shape = 'u32[144,128]{1,0:T(1,128)}', space=vmem, size = 0x12000, scoped, tag = 'internal scratch']
  %s0 = inlined_call_operand.vmem [shape: bf16[32,288], index: 0, kind: input, shape index: {}]
  %s1 = inlined_call_operand.vmem [shape: bf16[288,32], index: 1, kind: input, shape index: {}]
  %s2 = inlined_call_operand.vmem [shape: f32[1,32], index: 2, kind: input, shape index: {}]
  %s3 = inlined_call_operand.vmem [shape: bf16[32,32], index: 3, kind: input, shape index: {}]
  %s4 = inlined_call_operand.vmem [shape: bf16[32,32], index: 4, kind: output, shape index: {}]
  %s5 = sld [smem:[#allocation0]]
  $region49: #{avenet_forward.32} parent=0
    _
  %s7 = ssub.s32 1, %s5
  %s8 = scalar_select 0, %s7, %s5
  loop: start=0, step=1, limit=4
  $region2: #{avenet_forward.32} parent=0 // loop_pre_header
    _
  $region3: #{avenet_forward.32} parent=0 // loop_header
    %s10 = sphi 0, %s14
    %p11 = scmp.ge.s32.totalorder %s10, 4
    %s20 = sphi 0, %s22
    %s23 = sphi 0, %s20
    %s24 = sphi 0, %s23
    %s40 = sphi 0, %s24
    %s44 = sphi 0, %s44
    %s46 = sphi 0, %s44
    %s47 = sphi 0, %s46
    %s61 = sphi 0, %s47
    %s65 = sphi 0, %s65
    %s67 = sphi 0, %s65
    %s68 = sphi 0, %s67
    %s82 = sphi 0, %s68
    %s88 = sphi 0, %s90
    %s91 = sphi 0, %s88
    %s92 = sphi 0, %s91
    %s108 = sphi 0, %s92
    %s114 = sphi 0, %s116
    %s117 = sphi 0, %s114
    %s118 = sphi 0, %s117
    %s134 = sphi 0, %s118
  $region4: #{avenet_forward.32} parent=0 // loop_header_branch
    %13 = sbr.rel (%p11) target = $region8
  $region5: #{avenet_forward.32} parent=0 // loop_body
    %s15 = ssub.s32 %s10, 1
    %s16 = ssub.s32 %s10, 2
    %s17 = sadd.s32 %s10, 1
    %s18 = ssub.s32 %s10, %s17
    %p19 = scmp.eq.s32.totalorder %s18, 0
    %s21 = sadd.s32 %s20, 1
    %s22 = scalar_select %p19, %s20, %s21
    %p25 = pneg %p19
    %p26 = scmp.eq.s32.totalorder %s10, 1
    %p27 = por %p25, %p26
    %p28 = scmp.ne.s32.totalorder %s20, %s23
    %p29 = scmp.eq.s32.totalorder %s10, 0
    %p30 = por %p28, %p29
    %p31 = scmp.ne.s32.totalorder %s20, %s23
    %p32 = scmp.eq.s32.totalorder %s15, 1
    %p33 = por %p31, %p32
    %p34 = scmp.ne.s32.totalorder %s23, %s24
    %p35 = scmp.eq.s32.totalorder %s15, 0
    %p36 = por %p34, %p35
    %p37 = scmp.ne.s32.totalorder %s23, %s24
    %p38 = scmp.eq.s32.totalorder %s16, 1
    %p39 = por %p37, %p38
    %p41 = scmp.ne.s32.totalorder %s24, %s40
    %p42 = scmp.eq.s32.totalorder %s16, 0
    %p43 = por %p41, %p42
    %s45 = sadd.s32 %s44, 1
    %p48 = scmp.eq.s32.totalorder %s10, 1
    %p49 = scmp.ne.s32.totalorder %s44, %s46
    %p50 = scmp.eq.s32.totalorder %s10, 0
    %p51 = por %p49, %p50
    %p52 = scmp.ne.s32.totalorder %s44, %s46
    %p53 = scmp.eq.s32.totalorder %s15, 1
    %p54 = por %p52, %p53
    %p55 = scmp.ne.s32.totalorder %s46, %s47
    %p56 = scmp.eq.s32.totalorder %s15, 0
    %p57 = por %p55, %p56
    %p58 = scmp.ne.s32.totalorder %s46, %s47
    %p59 = scmp.eq.s32.totalorder %s16, 1
    %p60 = por %p58, %p59
    %p62 = scmp.ne.s32.totalorder %s47, %s61
    %p63 = scmp.eq.s32.totalorder %s16, 0
    %p64 = por %p62, %p63
    %s66 = sadd.s32 %s65, 1
    %p69 = scmp.eq.s32.totalorder %s10, 1
    %p70 = scmp.ne.s32.totalorder %s65, %s67
    %p71 = scmp.eq.s32.totalorder %s10, 0
    %p72 = por %p70, %p71
    %p73 = scmp.ne.s32.totalorder %s65, %s67
    %p74 = scmp.eq.s32.totalorder %s15, 1
    %p75 = por %p73, %p74
    %p76 = scmp.ne.s32.totalorder %s67, %s68
    %p77 = scmp.eq.s32.totalorder %s15, 0
    %p78 = por %p76, %p77
    %p79 = scmp.ne.s32.totalorder %s67, %s68
    %p80 = scmp.eq.s32.totalorder %s16, 1
    %p81 = por %p79, %p80
    %p83 = scmp.ne.s32.totalorder %s68, %s82
    %p84 = scmp.eq.s32.totalorder %s16, 0
    %p85 = por %p83, %p84
    %s86 = ssub.s32 %s10, %s17
    %p87 = scmp.eq.s32.totalorder %s86, 0
    %s89 = sadd.s32 %s88, 1
    %s90 = scalar_select %p87, %s88, %s89
    %p93 = pneg %p87
    %p94 = scmp.eq.s32.totalorder %s10, 1
    %p95 = por %p93, %p94
    %p96 = scmp.ne.s32.totalorder %s88, %s91
    %p97 = scmp.eq.s32.totalorder %s10, 0
    %p98 = por %p96, %p97
    %p99 = scmp.ne.s32.totalorder %s88, %s91
    %p100 = scmp.eq.s32.totalorder %s15, 1
    %p101 = por %p99, %p100
    %p102 = scmp.ne.s32.totalorder %s91, %s92
    %p103 = scmp.eq.s32.totalorder %s15, 0
    %p104 = por %p102, %p103
    %p105 = scmp.ne.s32.totalorder %s91, %s92
    %p106 = scmp.eq.s32.totalorder %s16, 1
    %p107 = por %p105, %p106
    %p109 = scmp.ne.s32.totalorder %s92, %s108
    %p110 = scmp.eq.s32.totalorder %s16, 0
    %p111 = por %p109, %p110
    %s112 = ssub.s32 %s10, %s17
    %p113 = scmp.eq.s32.totalorder %s112, 0
    %s115 = sadd.s32 %s114, 1
    %s116 = scalar_select %p113, %s114, %s115
    %p119 = pneg %p113
    %p120 = scmp.eq.s32.totalorder %s10, 1
    %p121 = por %p119, %p120
    %p122 = scmp.ne.s32.totalorder %s114, %s117
    %p123 = scmp.eq.s32.totalorder %s10, 0
    %p124 = por %p122, %p123
    %p125 = scmp.ne.s32.totalorder %s114, %s117
    %p126 = scmp.eq.s32.totalorder %s15, 1
    %p127 = por %p125, %p126
    %p128 = scmp.ne.s32.totalorder %s117, %s118
    %p129 = scmp.eq.s32.totalorder %s15, 0
    %p130 = por %p128, %p129
    %p131 = scmp.ne.s32.totalorder %s117, %s118
    %p132 = scmp.eq.s32.totalorder %s16, 1
    %p133 = por %p131, %p132
    %p135 = scmp.ne.s32.totalorder %s118, %s134
    %p136 = scmp.eq.s32.totalorder %s16, 0
    %p137 = por %p135, %p136
    %p138 = scmp.le.s32.totalorder 1, %s10
    %p139 = scmp.lt.s32.totalorder %s10, 3
    %p140 = pnand %p138, %p139
    %p141 = pneg %p140
    // Predicated region
    $region9: #{avenet_forward.32} parent=5 // pred_check
      _
    $region10: #{avenet_forward.32} parent=5 // pred_check_branch
      %143 = sbr.rel (%p140) target = $region12
    $region11: #{avenet_forward.32} parent=5 // pred_region
      %s144 = ssub.s32 %s10, 1
      // Predicated region
      $region13: #{avenet_forward.32} parent=11 // pred_check
        %p145 = pneg %p57
      $region14: #{avenet_forward.32} parent=11 // pred_check_branch
        %147 = sbr.rel (%p145) target = $region16
      $region15: #{avenet_forward.32} parent=11 // pred_region
        _
      $region16: #{avenet_forward.32} parent=11 // pred_fallthru
        _
      // Predicated region
      $region17: #{avenet_forward.32} parent=11 // pred_check
        %p148 = pneg %p78
      $region18: #{avenet_forward.32} parent=11 // pred_check_branch
        %150 = sbr.rel (%p148) target = $region20
      $region19: #{avenet_forward.32} parent=11 // pred_region
        _
      $region20: #{avenet_forward.32} parent=11 // pred_fallthru
        _
    $region12: #{avenet_forward.32} parent=5 // pred_fallthru
      _
    %p151 = scmp.lt.s32.totalorder %s10, 2
    // Predicated region
    $region21: #{avenet_forward.32} parent=5 // pred_check
      %p152 = pneg %p151
    $region22: #{avenet_forward.32} parent=5 // pred_check_branch
      %154 = sbr.rel (%p152) target = $region24
    $region23: #{avenet_forward.32} parent=5 // pred_region
      // Predicated region
      $region25: #{avenet_forward.32} parent=23 // pred_check
        %p155 = pneg %p30
      $region26: #{avenet_forward.32} parent=23 // pred_check_branch
        %157 = sbr.rel (%p155) target = $region28
      $region27: #{avenet_forward.32} parent=23 // pred_region
        %s158 = smul.u32 2, %s10
        %p159 = scmp.lt.s32.totalorder %s158, 3
        %s160 = scalar_select %p159, %s158, 3
        %s161 = smul.addr %s160, 3
        %s162 = smul.addr %s161, 4
        %s163 = scalar_lea.vmem %s0, %s162
        %s164 = smul.u32 2, %s10
      $region28: #{avenet_forward.32} parent=23 // pred_fallthru
        _
      // Predicated region
      $region29: #{avenet_forward.32} parent=23 // pred_check
        %p165 = pneg %p98
      $region30: #{avenet_forward.32} parent=23 // pred_check_branch
        %167 = sbr.rel (%p165) target = $region32
      $region31: #{avenet_forward.32} parent=23 // pred_region
        %s168 = smul.u32 2, %s10
        %p169 = scmp.lt.s32.totalorder %s168, 3
        %s170 = scalar_select %p169, %s168, 3
        %s171 = smul.addr %s170, 4
        %s172 = scalar_lea.vmem %s3, %s171
        %s173 = smul.u32 2, %s10
      $region32: #{avenet_forward.32} parent=23 // pred_fallthru
        _
    $region24: #{avenet_forward.32} parent=5 // pred_fallthru
      _
    %p174 = scmp.le.s32.totalorder 1, %s10
    %p175 = scmp.lt.s32.totalorder %s10, 3
    %p176 = pnand %p174, %p175
    %p177 = pneg %p176
    // Predicated region
    $region33: #{avenet_forward.32} parent=5 // pred_check
      _
    $region34: #{avenet_forward.32} parent=5 // pred_check_branch
      %179 = sbr.rel (%p176) target = $region36
    $region35: #{avenet_forward.32} parent=5 // pred_region
      %s180 = ssub.s32 %s10, 1
      %s181 = smul.u32 2, %s15
      %p182 = scmp.lt.s32.totalorder %s181, 3
      %s183 = scalar_select %p182, %s181, 3
      %s184 = smul.addr %s183, 3
      %s185 = smul.addr %s184, 4
      %s186 = scalar_lea.vmem %s0, %s185
      %p187 = pneg %p36
      %p188 = pneg %p33
      %p189 = pneg %p57
      %p190 = pneg %p54
      %p191 = pneg %p78
      %p192 = pneg %p75
      %s193 = smul.u32 2, %s15
      %p194 = scmp.lt.s32.totalorder %s193, 3
      %s195 = scalar_select %p194, %s193, 3
      %s196 = smul.addr %s195, 4
      %s197 = scalar_lea.vmem %s3, %s196
      %p198 = pneg %p104
      %p199 = pneg %p101
      %p200 = pneg %p130
      %p201 = pneg %p127
      %s202 = smul.u32 2, %s15
      %p203 = scmp.lt.s32.totalorder %s202, 3
      %s204 = scalar_select %p203, %s202, 3
      %s205 = smul.addr %s204, 4
      %s206 = scalar_lea.vmem %s4, %s205
      %s207 = smul.u32 2, %s15
      %p208 = scmp.lt.s32.totalorder %s207, 3
      %s209 = scalar_select %p208, %s207, 3
      %s210 = smul.addr %s209, 3
      %s211 = smul.addr %s210, 4
      %s212 = scalar_lea.vmem %s0, %s211
      %s213 = smul.u32 2, %s15
      %s214 = smul.u32 2, %s15
      %p215 = scmp.lt.s32.totalorder %s214, 3
      %s216 = scalar_select %p215, %s214, 3
      %s217 = smul.addr %s216, 4
      %s218 = scalar_lea.vmem %s3, %s217
      %s219 = smul.u32 2, %s15
      %s220 = smul.u32 2, %s15
      %p221 = scmp.lt.s32.totalorder %s220, 3
      %s222 = scalar_select %p221, %s220, 3
      %s223 = smul.addr %s222, 4
      %s224 = scalar_lea.vmem %s4, %s223
      %s225 = smul.u32 2, %s15
      %v227 = vld [vmem:[%s212] sm:$0xff]
      %v228 = vld [vmem:[%s212 + $0x8] sm:$0xf]
      %v229 = vld [vmem:[%s212 + $0xc] sm:$0xff]
      %v230 = vld [vmem:[%s212 + $0x14] sm:$0xf]
      %v231 = vld [vmem:[%s1] sm:$0xf]
      %v232 = vld [vmem:[%s1 + $0x4] sm:$0xf]
      %v233 = vld [vmem:[%s1 + $0x8] sm:$0xf]
      %v234 = vld [vmem:[%s1 + $0xc] sm:$0xf]
      %v235 = vld [vmem:[%s1 + $0x10] sm:$0xf]
      %v236 = vld [vmem:[%s1 + $0x14] sm:$0xf]
      %v237 = vld [vmem:[%s1 + $0x18] sm:$0xf]
      %v238 = vld [vmem:[%s1 + $0x1c] sm:$0xf]
      %v239 = vld [vmem:[%s1 + $0x20] sm:$0xf]
      %v240 = vld [vmem:[%s1 + $0x24] sm:$0xf]
      %v241 = vld [vmem:[%s1 + $0x28] sm:$0xf]
      %v242 = vld [vmem:[%s1 + $0x2c] sm:$0xf]
      %v243 = vld [vmem:[%s1 + $0x30] sm:$0xf]
      %v244 = vld [vmem:[%s1 + $0x34] sm:$0xf]
      %v245 = vld [vmem:[%s1 + $0x38] sm:$0xf]
      %v246 = vld [vmem:[%s1 + $0x3c] sm:$0xf]
      %v247 = vld [vmem:[%s1 + $0x40] sm:$0xf]
      %v248 = vld [vmem:[%s1 + $0x44] sm:$0xf]
      %v249 = vld [vmem:[%s1 + $0x48] sm:$0xf]
      %v250 = vld [vmem:[%s1 + $0x4c] sm:$0xf]
      %v251 = vld [vmem:[%s1 + $0x50] sm:$0xf]
      %v252 = vld [vmem:[%s1 + $0x54] sm:$0xf]
      %v253 = vld [vmem:[%s1 + $0x58] sm:$0xf]
      %v254 = vld [vmem:[%s1 + $0x5c] sm:$0xf]
      %v255 = vld [vmem:[%s1 + $0x60] sm:$0xf]
      %v256 = vld [vmem:[%s1 + $0x64] sm:$0xf]
      %v257 = vld [vmem:[%s1 + $0x68] sm:$0xf]
      %v258 = vld [vmem:[%s1 + $0x6c] sm:$0xf]
      %v259 = vld [vmem:[%s1 + $0x70] sm:$0xf]
      %v260 = vld [vmem:[%s1 + $0x74] sm:$0xf]
      %v261 = vld [vmem:[%s1 + $0x78] sm:$0xf]
      %v262 = vld [vmem:[%s1 + $0x7c] sm:$0xf]
      %v263 = vld [vmem:[%s1 + $0x80] sm:$0xf]
      %v264 = vld [vmem:[%s1 + $0x84] sm:$0xf]
      %v265 = vld [vmem:[%s1 + $0x88] sm:$0xf]
      %v266 = vld [vmem:[%s1 + $0x8c] sm:$0xf]
      %v267 = vld [vmem:[%s2] sm:$0x1]
      %v269 = vlaneseq
      %v270 = vshrl.u32 %v269, 7
      %v271 = vsub.s32 0, %v270
      %v272 = vrot.slane %v267, %v271
      %v278 = vunpack.c.l.b16 %v227
      %v279 = vunpack.c.h.b16 %v227
      %v280 = vunpack.c.l.b16 %v228
      %v281 = vunpack.c.l.b16 %v229
      %v282 = vunpack.c.h.b16 %v229
      %v283 = vunpack.c.l.b16 %v230
      %v284 = vpack.c.b16 %v281, %v278
      %v285 = vpack.c.b16 %v282, %v279
      %v286 = vpack.c.b16 %v283, %v280
      %v325 = vunpack.c.l.b16 %v231
      %v326 = vunpack.c.l.b16 %v232
      %v327 = vunpack.c.l.b16 %v233
      %v328 = vunpack.c.l.b16 %v234
      %v329 = vunpack.c.l.b16 %v235
      %v330 = vunpack.c.l.b16 %v236
      %v331 = vunpack.c.l.b16 %v237
      %v332 = vunpack.c.l.b16 %v238
      %v333 = vunpack.c.l.b16 %v239
      %v334 = vunpack.c.l.b16 %v240
      %v335 = vunpack.c.l.b16 %v241
      %v336 = vunpack.c.l.b16 %v242
      %v337 = vunpack.c.l.b16 %v243
      %v338 = vunpack.c.l.b16 %v244
      %v339 = vunpack.c.l.b16 %v245
      %v340 = vunpack.c.l.b16 %v246
      %v341 = vunpack.c.l.b16 %v247
      %v342 = vunpack.c.l.b16 %v248
      %v343 = vunpack.c.l.b16 %v249
      %v344 = vunpack.c.l.b16 %v250
      %v345 = vunpack.c.l.b16 %v251
      %v346 = vunpack.c.l.b16 %v252
      %v347 = vunpack.c.l.b16 %v253
      %v348 = vunpack.c.l.b16 %v254
      %v349 = vunpack.c.l.b16 %v255
      %v350 = vunpack.c.l.b16 %v256
      %v351 = vunpack.c.l.b16 %v257
      %v352 = vunpack.c.l.b16 %v258
      %v353 = vunpack.c.l.b16 %v259
      %v354 = vunpack.c.l.b16 %v260
      %v355 = vunpack.c.l.b16 %v261
      %v356 = vunpack.c.l.b16 %v262
      %v357 = vunpack.c.l.b16 %v263
      %v358 = vunpack.c.l.b16 %v264
      %v359 = vunpack.c.l.b16 %v265
      %v360 = vunpack.c.l.b16 %v266
      %v361 = vpack.c.b16 %v326, %v325
      %v362 = vpack.c.b16 %v328, %v327
      %v363 = vpack.c.b16 %v330, %v329
      %v364 = vpack.c.b16 %v332, %v331
      %v365 = vpack.c.b16 %v334, %v333
      %v366 = vpack.c.b16 %v336, %v335
      %v367 = vpack.c.b16 %v338, %v337
      %v368 = vpack.c.b16 %v340, %v339
      %v369 = vpack.c.b16 %v342, %v341
      %v370 = vpack.c.b16 %v344, %v343
      %v371 = vpack.c.b16 %v346, %v345
      %v372 = vpack.c.b16 %v348, %v347
      %v373 = vpack.c.b16 %v350, %v349
      %v374 = vpack.c.b16 %v352, %v351
      %v375 = vpack.c.b16 %v354, %v353
      %v376 = vpack.c.b16 %v356, %v355
      %v377 = vpack.c.b16 %v358, %v357
      %v378 = vpack.c.b16 %v360, %v359
      %vm397 = vcmask 261120
      %v399 = vsel %vm397, %v286, 0
      %401 = vmatprep.subr.bf16.mxu0 0
      %402 = vmatpush1.bf16.msra.mxu0 %v361
      %403 = vmatprep.subr.bf16.mxu0 0
      %404 = vmatpush1.bf16.msra.mxu0 %v362
      %405 = vmatprep.subr.bf16.mxu0 0
      %406 = vmatpush1.bf16.msra.mxu0 %v363
      %407 = vmatprep.subr.bf16.mxu0 0
      %408 = vmatpush1.bf16.msra.mxu0 %v364
      %409 = vmatprep.subr.bf16.mxu0 0
      %410 = vmatpush1.bf16.msra.mxu0 %v365
      %411 = vmatprep.subr.bf16.mxu0 0
      %412 = vmatpush1.bf16.msra.mxu0 %v366
      %413 = vmatprep.subr.bf16.mxu0 0
      %414 = vmatpush1.bf16.msra.mxu0 %v367
      %415 = vmatprep.subr.bf16.mxu0 0
      %416 = vmatpush1.bf16.msra.mxu0 %v368
      %417 = vmatprep.subr.bf16.mxu0 0
      %418 = vmatpush1.bf16.msra.mxu0 %v369
      %419 = vmatprep.subr.bf16.mxu0 0
      %420 = vmatpush1.bf16.msra.mxu0 %v370
      %421 = vmatprep.subr.bf16.mxu0 0
      %422 = vmatpush1.bf16.msra.mxu0 %v371
      %423 = vmatprep.subr.bf16.mxu0 0
      %424 = vmatpush1.bf16.msra.mxu0 %v372
      %425 = vmatprep.subr.bf16.mxu0 0
      %426 = vmatpush1.bf16.msra.mxu0 %v373
      %427 = vmatprep.subr.bf16.mxu0 0
      %428 = vmatpush1.bf16.msra.mxu0 %v374
      %429 = vmatprep.subr.bf16.mxu0 0
      %430 = vmatpush1.bf16.msra.mxu0 %v375
      %431 = vmatprep.subr.bf16.mxu0 0
      %432 = vmatpush1.bf16.msra.mxu0 %v376
      %433 = vmatprep.mubr.bf16.mxu0 %v285
      %434 = vmatmul.mubr.bf16.gmra.mrb[0].mxu0 %v284
      %v435 = vpop.f32.mrb[0].mxu0
      %v436 = vadd.f32 %v272, %v435
      %v437 = vpop.f32.mrb[0].mxu0
      %v438 = vpop.f32.mrb[0].mxu0
      %v439 = vadd.f32 %v272, %v438
      %v440 = vpop.f32.mrb[0].mxu0
      %441 = vdwg.mxu0
      %442 = vmatprep.subr.bf16.mxu0 0
      %443 = vmatpush1.bf16.msra.mxu0 %v377
      %444 = vmatprep.subr.bf16.mxu0 0
      %445 = vmatpush1.bf16.msra.mxu0 %v378
      %446 = vmatprep.subr.bf16.mxu0 0
      %447 = vmatpush1.bf16.msra.mxu0 0
      %448 = vmatprep.subr.bf16.mxu0 0
      %449 = vmatpush1.bf16.msra.mxu0 0
      %450 = vmatprep.subr.bf16.mxu0 0
      %451 = vmatpush1.bf16.msra.mxu0 0
      %452 = vmatprep.subr.bf16.mxu0 0
      %453 = vmatpush1.bf16.msra.mxu0 0
      %454 = vmatprep.subr.bf16.mxu0 0
      %455 = vmatpush1.bf16.msra.mxu0 0
      %456 = vmatprep.subr.bf16.mxu0 0
      %457 = vmatpush1.bf16.msra.mxu0 0
      %458 = vmatprep.subr.bf16.mxu0 0
      %459 = vmatpush1.bf16.msra.mxu0 0
      %460 = vmatprep.subr.bf16.mxu0 0
      %461 = vmatpush1.bf16.msra.mxu0 0
      %462 = vmatprep.subr.bf16.mxu0 0
      %463 = vmatpush1.bf16.msra.mxu0 0
      %464 = vmatprep.subr.bf16.mxu0 0
      %465 = vmatpush1.bf16.msra.mxu0 0
      %466 = vmatprep.subr.bf16.mxu0 0
      %467 = vmatpush1.bf16.msra.mxu0 0
      %468 = vmatprep.subr.bf16.mxu0 0
      %469 = vmatpush1.bf16.msra.mxu0 0
      %470 = vmatprep.subr.bf16.mxu0 0
      %471 = vmatpush1.bf16.msra.mxu0 0
      %472 = vmatprep.subr.bf16.mxu0 0
      %473 = vmatpush1.bf16.msra.mxu0 0
      %474 = vmatprep.mubr.bf16.mxu0 0
      %475 = vmatmul.mubr.bf16.gmra.mrb[0].mxu0 %v399
      %v476 = vpop.f32.mrb[0].mxu0
      %v477 = vadd.f32 %v436, %v476
      %v478 = vpop.f32.mrb[0].mxu0
      %v479 = vpop.f32.mrb[0].mxu0
      %v480 = vadd.f32 %v439, %v479
      %v481 = vpop.f32.mrb[0].mxu0
      %482 = vdwg.mxu0
      %v483 = vld [vmem:[%s218] sm:$0xf]
      %v484 = vld [vmem:[%s218 + $0x4] sm:$0xf]
      %v485 = vunpack.c.l.bf16 %v483
      %v486 = vunpack.c.l.bf16 %v484
      %v487 = vadd.f32 %v477, %v485
      %v488 = vadd.f32 %v480, %v486
      %v489 = vmax.f32 %v487, 0.0
      %v490 = vmax.f32 %v488, 0.0
      %v491 = vpack.c.bf16 %v490, %v489
      %v493 = vunpack.c.l.b16 %v491
      %v494 = vunpack.c.h.b16 %v491
      %v495 = vpack.c.b16 %v493, %v493
      %v496 = vpack.c.b16 %v494, %v494
      %vm499 = vcmask 257024
      %500 = vst.msk [vmem:[%s224] sm:$0xf] %vm499, %v495
      %501 = vst.msk [vmem:[%s224 + $0x4] sm:$0xf] %vm499, %v496
      %s502 = smul.u32 2, %s15
      %p503 = scmp.lt.s32.totalorder %s502, 3
      %s504 = scalar_select %p503, %s502, 3
      %s505 = smul.addr %s504, 4
      %s506 = scalar_lea.vmem %s4, %s505
      // Predicated region
      $region37: #{avenet_forward.32} parent=35 // pred_check
        %p507 = pneg %p127
      $region38: #{avenet_forward.32} parent=35 // pred_check_branch
        %509 = sbr.rel (%p507) target = $region40
      $region39: #{avenet_forward.32} parent=35 // pred_region
        %s510 = smul.u32 2, %s15
      $region40: #{avenet_forward.32} parent=35 // pred_fallthru
        _
    $region36: #{avenet_forward.32} parent=5 // pred_fallthru
      _
    %p511 = scmp.le.s32.totalorder 2, %s10
    // Predicated region
    $region41: #{avenet_forward.32} parent=5 // pred_check
      %p512 = pneg %p511
    $region42: #{avenet_forward.32} parent=5 // pred_check_branch
      %514 = sbr.rel (%p512) target = $region44
    $region43: #{avenet_forward.32} parent=5 // pred_region
      %s515 = ssub.s32 %s10, 2
      // Predicated region
      $region45: #{avenet_forward.32} parent=43 // pred_check
        %p516 = pneg %p133
      $region46: #{avenet_forward.32} parent=43 // pred_check_branch
        %518 = sbr.rel (%p516) target = $region48
      $region47: #{avenet_forward.32} parent=43 // pred_region
        %s519 = smul.u32 2, %s16
        %p520 = scmp.lt.s32.totalorder %s519, 3
        %s521 = scalar_select %p520, %s519, 3
        %s522 = smul.addr %s521, 4
        %s523 = scalar_lea.vmem %s4, %s522
      $region48: #{avenet_forward.32} parent=43 // pred_fallthru
        _
    $region44: #{avenet_forward.32} parent=5 // pred_fallthru
      _
  $region6: #{avenet_forward.32} parent=0 // loop_footer
    %s14 = sadd.s32 1, %s10
  $region7: #{avenet_forward.32} parent=0 // loop_footer_branch
    %9 = sbr.rel target = $region3
  $region8: #{avenet_forward.32} parent=0 // loop_exit
    _

// kernel: avenet_forward.33
$region0: #{avenet_forward.33}
  #allocation0 [shape = 'u32[]', space=smem, size = 0x4, offset = 0x4, fixed_abs, tag = 'smem constant byte address 0x4 - core index']
  #allocation1 [shape = 'u32[144,128]{1,0:T(1,128)}', space=vmem, size = 0x12000, scoped, tag = 'internal scratch']
  %s0 = inlined_call_operand.vmem [shape: bf16[8,288], index: 0, kind: input, shape index: {}]
  %s1 = inlined_call_operand.vmem [shape: bf16[288,64], index: 1, kind: input, shape index: {}]
  %s2 = inlined_call_operand.vmem [shape: f32[1,64], index: 2, kind: input, shape index: {}]
  %s3 = inlined_call_operand.vmem [shape: bf16[8,64], index: 3, kind: output, shape index: {}]
  %s4 = sld [smem:[#allocation0]]
  $region22: #{avenet_forward.33} parent=0
    _
  %s6 = ssub.s32 1, %s4
  %s7 = scalar_select 0, %s6, %s4
  // Predicated region
  $region2: #{avenet_forward.33} parent=0 // pred_check
    _
  $region3: #{avenet_forward.33} parent=0 // pred_check_branch
    %9 = sbr.rel (0) target = $region5
  $region4: #{avenet_forward.33} parent=0 // pred_region
    _
  $region5: #{avenet_forward.33} parent=0 // pred_fallthru
    _
  // Predicated region
  $region6: #{avenet_forward.33} parent=0 // pred_check
    _
  $region7: #{avenet_forward.33} parent=0 // pred_check_branch
    %11 = sbr.rel (0) target = $region9
  $region8: #{avenet_forward.33} parent=0 // pred_region
    _
  $region9: #{avenet_forward.33} parent=0 // pred_fallthru
    _
  // Predicated region
  $region10: #{avenet_forward.33} parent=0 // pred_check
    _
  $region11: #{avenet_forward.33} parent=0 // pred_check_branch
    %13 = sbr.rel (0) target = $region13
  $region12: #{avenet_forward.33} parent=0 // pred_region
    _
  $region13: #{avenet_forward.33} parent=0 // pred_fallthru
    _
  %v15 = vld [vmem:[%s0] sm:$0xff]
  %v16 = vld [vmem:[%s0 + $0x8] sm:$0xf]
  %v17 = vld [vmem:[%s1] sm:$0xf]
  %v18 = vld [vmem:[%s1 + $0x4] sm:$0xf]
  %v19 = vld [vmem:[%s1 + $0x8] sm:$0xf]
  %v20 = vld [vmem:[%s1 + $0xc] sm:$0xf]
  %v21 = vld [vmem:[%s1 + $0x10] sm:$0xf]
  %v22 = vld [vmem:[%s1 + $0x14] sm:$0xf]
  %v23 = vld [vmem:[%s1 + $0x18] sm:$0xf]
  %v24 = vld [vmem:[%s1 + $0x1c] sm:$0xf]
  %v25 = vld [vmem:[%s1 + $0x20] sm:$0xf]
  %v26 = vld [vmem:[%s1 + $0x24] sm:$0xf]
  %v27 = vld [vmem:[%s1 + $0x28] sm:$0xf]
  %v28 = vld [vmem:[%s1 + $0x2c] sm:$0xf]
  %v29 = vld [vmem:[%s1 + $0x30] sm:$0xf]
  %v30 = vld [vmem:[%s1 + $0x34] sm:$0xf]
  %v31 = vld [vmem:[%s1 + $0x38] sm:$0xf]
  %v32 = vld [vmem:[%s1 + $0x3c] sm:$0xf]
  %v33 = vld [vmem:[%s1 + $0x40] sm:$0xf]
  %v34 = vld [vmem:[%s1 + $0x44] sm:$0xf]
  %v35 = vld [vmem:[%s1 + $0x48] sm:$0xf]
  %v36 = vld [vmem:[%s1 + $0x4c] sm:$0xf]
  %v37 = vld [vmem:[%s1 + $0x50] sm:$0xf]
  %v38 = vld [vmem:[%s1 + $0x54] sm:$0xf]
  %v39 = vld [vmem:[%s1 + $0x58] sm:$0xf]
  %v40 = vld [vmem:[%s1 + $0x5c] sm:$0xf]
  %v41 = vld [vmem:[%s1 + $0x60] sm:$0xf]
  %v42 = vld [vmem:[%s1 + $0x64] sm:$0xf]
  %v43 = vld [vmem:[%s1 + $0x68] sm:$0xf]
  %v44 = vld [vmem:[%s1 + $0x6c] sm:$0xf]
  %v45 = vld [vmem:[%s1 + $0x70] sm:$0xf]
  %v46 = vld [vmem:[%s1 + $0x74] sm:$0xf]
  %v47 = vld [vmem:[%s1 + $0x78] sm:$0xf]
  %v48 = vld [vmem:[%s1 + $0x7c] sm:$0xf]
  %v49 = vld [vmem:[%s1 + $0x80] sm:$0xf]
  %v50 = vld [vmem:[%s1 + $0x84] sm:$0xf]
  %v51 = vld [vmem:[%s1 + $0x88] sm:$0xf]
  %v52 = vld [vmem:[%s1 + $0x8c] sm:$0xf]
  %v53 = vld [vmem:[%s2] sm:$0x1]
  %v55 = vlaneseq
  %v56 = vshrl.u32 %v55, 7
  %v57 = vsub.s32 0, %v56
  %v58 = vrot.slane %v53, %v57
  %v62 = vunpack.c.l.b16 %v15
  %v63 = vunpack.c.h.b16 %v15
  %v64 = vunpack.c.l.b16 %v16
  %v65 = vpack.c.b16 %v62, %v62
  %v66 = vpack.c.b16 %v63, %v63
  %v67 = vpack.c.b16 %v64, %v64
  %v106 = vunpack.c.l.b16 %v17
  %v107 = vunpack.c.l.b16 %v18
  %v108 = vunpack.c.l.b16 %v19
  %v109 = vunpack.c.l.b16 %v20
  %v110 = vunpack.c.l.b16 %v21
  %v111 = vunpack.c.l.b16 %v22
  %v112 = vunpack.c.l.b16 %v23
  %v113 = vunpack.c.l.b16 %v24
  %v114 = vunpack.c.l.b16 %v25
  %v115 = vunpack.c.l.b16 %v26
  %v116 = vunpack.c.l.b16 %v27
  %v117 = vunpack.c.l.b16 %v28
  %v118 = vunpack.c.l.b16 %v29
  %v119 = vunpack.c.l.b16 %v30
  %v120 = vunpack.c.l.b16 %v31
  %v121 = vunpack.c.l.b16 %v32
  %v122 = vunpack.c.l.b16 %v33
  %v123 = vunpack.c.l.b16 %v34
  %v124 = vunpack.c.l.b16 %v35
  %v125 = vunpack.c.l.b16 %v36
  %v126 = vunpack.c.l.b16 %v37
  %v127 = vunpack.c.l.b16 %v38
  %v128 = vunpack.c.l.b16 %v39
  %v129 = vunpack.c.l.b16 %v40
  %v130 = vunpack.c.l.b16 %v41
  %v131 = vunpack.c.l.b16 %v42
  %v132 = vunpack.c.l.b16 %v43
  %v133 = vunpack.c.l.b16 %v44
  %v134 = vunpack.c.l.b16 %v45
  %v135 = vunpack.c.l.b16 %v46
  %v136 = vunpack.c.l.b16 %v47
  %v137 = vunpack.c.l.b16 %v48
  %v138 = vunpack.c.l.b16 %v49
  %v139 = vunpack.c.l.b16 %v50
  %v140 = vunpack.c.l.b16 %v51
  %v141 = vunpack.c.l.b16 %v52
  %v142 = vpack.c.b16 %v107, %v106
  %v143 = vpack.c.b16 %v109, %v108
  %v144 = vpack.c.b16 %v111, %v110
  %v145 = vpack.c.b16 %v113, %v112
  %v146 = vpack.c.b16 %v115, %v114
  %v147 = vpack.c.b16 %v117, %v116
  %v148 = vpack.c.b16 %v119, %v118
  %v149 = vpack.c.b16 %v121, %v120
  %v150 = vpack.c.b16 %v123, %v122
  %v151 = vpack.c.b16 %v125, %v124
  %v152 = vpack.c.b16 %v127, %v126
  %v153 = vpack.c.b16 %v129, %v128
  %v154 = vpack.c.b16 %v131, %v130
  %v155 = vpack.c.b16 %v133, %v132
  %v156 = vpack.c.b16 %v135, %v134
  %v157 = vpack.c.b16 %v137, %v136
  %v158 = vpack.c.b16 %v139, %v138
  %v159 = vpack.c.b16 %v141, %v140
  %vm178 = vcmask 261120
  %v180 = vsel %vm178, %v67, 0
  %182 = vmatprep.subr.bf16.mxu0 0
  %183 = vmatpush1.bf16.msra.mxu0 %v142
  %184 = vmatprep.subr.bf16.mxu0 0
  %185 = vmatpush1.bf16.msra.mxu0 %v143
  %186 = vmatprep.subr.bf16.mxu0 0
  %187 = vmatpush1.bf16.msra.mxu0 %v144
  %188 = vmatprep.subr.bf16.mxu0 0
  %189 = vmatpush1.bf16.msra.mxu0 %v145
  %190 = vmatprep.subr.bf16.mxu0 0
  %191 = vmatpush1.bf16.msra.mxu0 %v146
  %192 = vmatprep.subr.bf16.mxu0 0
  %193 = vmatpush1.bf16.msra.mxu0 %v147
  %194 = vmatprep.subr.bf16.mxu0 0
  %195 = vmatpush1.bf16.msra.mxu0 %v148
  %196 = vmatprep.subr.bf16.mxu0 0
  %197 = vmatpush1.bf16.msra.mxu0 %v149
  %198 = vmatprep.subr.bf16.mxu0 0
  %199 = vmatpush1.bf16.msra.mxu0 %v150
  %200 = vmatprep.subr.bf16.mxu0 0
  %201 = vmatpush1.bf16.msra.mxu0 %v151
  %202 = vmatprep.subr.bf16.mxu0 0
  %203 = vmatpush1.bf16.msra.mxu0 %v152
  %204 = vmatprep.subr.bf16.mxu0 0
  %205 = vmatpush1.bf16.msra.mxu0 %v153
  %206 = vmatprep.subr.bf16.mxu0 0
  %207 = vmatpush1.bf16.msra.mxu0 %v154
  %208 = vmatprep.subr.bf16.mxu0 0
  %209 = vmatpush1.bf16.msra.mxu0 %v155
  %210 = vmatprep.subr.bf16.mxu0 0
  %211 = vmatpush1.bf16.msra.mxu0 %v156
  %212 = vmatprep.subr.bf16.mxu0 0
  %213 = vmatpush1.bf16.msra.mxu0 %v157
  %214 = vmatprep.mubr.bf16.mxu0 %v66
  %215 = vmatmul.mubr.bf16.gmra.mrb[0].mxu0 %v65
  %v216 = vpop.f32.mrb[0].mxu0
  %v217 = vadd.f32 %v58, %v216
  %v218 = vpop.f32.mrb[0].mxu0
  %v219 = vpop.f32.mrb[0].mxu0
  %v220 = vpop.f32.mrb[0].mxu0
  %221 = vdwg.mxu0
  %222 = vmatprep.subr.bf16.mxu0 0
  %223 = vmatpush1.bf16.msra.mxu0 %v158
  %224 = vmatprep.subr.bf16.mxu0 0
  %225 = vmatpush1.bf16.msra.mxu0 %v159
  %226 = vmatprep.subr.bf16.mxu0 0
  %227 = vmatpush1.bf16.msra.mxu0 0
  %228 = vmatprep.subr.bf16.mxu0 0
  %229 = vmatpush1.bf16.msra.mxu0 0
  %230 = vmatprep.subr.bf16.mxu0 0
  %231 = vmatpush1.bf16.msra.mxu0 0
  %232 = vmatprep.subr.bf16.mxu0 0
  %233 = vmatpush1.bf16.msra.mxu0 0
  %234 = vmatprep.subr.bf16.mxu0 0
  %235 = vmatpush1.bf16.msra.mxu0 0
  %236 = vmatprep.subr.bf16.mxu0 0
  %237 = vmatpush1.bf16.msra.mxu0 0
  %238 = vmatprep.subr.bf16.mxu0 0
  %239 = vmatpush1.bf16.msra.mxu0 0
  %240 = vmatprep.subr.bf16.mxu0 0
  %241 = vmatpush1.bf16.msra.mxu0 0
  %242 = vmatprep.subr.bf16.mxu0 0
  %243 = vmatpush1.bf16.msra.mxu0 0
  %244 = vmatprep.subr.bf16.mxu0 0
  %245 = vmatpush1.bf16.msra.mxu0 0
  %246 = vmatprep.subr.bf16.mxu0 0
  %247 = vmatpush1.bf16.msra.mxu0 0
  %248 = vmatprep.subr.bf16.mxu0 0
  %249 = vmatpush1.bf16.msra.mxu0 0
  %250 = vmatprep.subr.bf16.mxu0 0
  %251 = vmatpush1.bf16.msra.mxu0 0
  %252 = vmatprep.subr.bf16.mxu0 0
  %253 = vmatpush1.bf16.msra.mxu0 0
  %254 = vmatprep.mubr.bf16.mxu0 0
  %255 = vmatmul.mubr.bf16.gmra.mrb[0].mxu0 %v180
  %v256 = vpop.f32.mrb[0].mxu0
  %v257 = vadd.f32 %v217, %v256
  %v258 = vpop.f32.mrb[0].mxu0
  %v259 = vpop.f32.mrb[0].mxu0
  %v260 = vpop.f32.mrb[0].mxu0
  %261 = vdwg.mxu0
  %v262 = vmax.f32 %v257, 0.0
  %v263 = vpack.c.bf16 %v262, %v262
  %vm264 = vcmask 519168
  %265 = vst.msk [vmem:[%s3] sm:$0xf] %vm264, %v263
  // Predicated region
  $region14: #{avenet_forward.33} parent=0 // pred_check
    _
  $region15: #{avenet_forward.33} parent=0 // pred_check_branch
    %267 = sbr.rel (0) target = $region17
  $region16: #{avenet_forward.33} parent=0 // pred_region
    _
  $region17: #{avenet_forward.33} parent=0 // pred_fallthru
    _
  // Predicated region
  $region18: #{avenet_forward.33} parent=0 // pred_check
    _
  $region19: #{avenet_forward.33} parent=0 // pred_check_branch
    %269 = sbr.rel (0) target = $region21
  $region20: #{avenet_forward.33} parent=0 // pred_region
    _
  $region21: #{avenet_forward.33} parent=0 // pred_fallthru
    _

// kernel: avenet_forward.35
$region0: #{avenet_forward.35}
  #allocation0 [shape = 'u32[]', space=smem, size = 0x4, offset = 0x4, fixed_abs, tag = 'smem constant byte address 0x4 - core index']
  #allocation1 [shape = 'u32[144,128]{1,0:T(1,128)}', space=vmem, size = 0x12000, scoped, tag = 'internal scratch']
  %s0 = inlined_call_operand.vmem [shape: bf16[8,576], index: 0, kind: input, shape index: {}]
  %s1 = inlined_call_operand.vmem [shape: bf16[576,64], index: 1, kind: input, shape index: {}]
  %s2 = inlined_call_operand.vmem [shape: f32[1,64], index: 2, kind: input, shape index: {}]
  %s3 = inlined_call_operand.vmem [shape: bf16[8,64], index: 3, kind: output, shape index: {}]
  %s4 = sld [smem:[#allocation0]]
  $region22: #{avenet_forward.35} parent=0
    _
  %s6 = ssub.s32 1, %s4
  %s7 = scalar_select 0, %s6, %s4
  // Predicated region
  $region2: #{avenet_forward.35} parent=0 // pred_check
    _
  $region3: #{avenet_forward.35} parent=0 // pred_check_branch
    %9 = sbr.rel (0) target = $region5
  $region4: #{avenet_forward.35} parent=0 // pred_region
    _
  $region5: #{avenet_forward.35} parent=0 // pred_fallthru
    _
  // Predicated region
  $region6: #{avenet_forward.35} parent=0 // pred_check
    _
  $region7: #{avenet_forward.35} parent=0 // pred_check_branch
    %11 = sbr.rel (0) target = $region9
  $region8: #{avenet_forward.35} parent=0 // pred_region
    _
  $region9: #{avenet_forward.35} parent=0 // pred_fallthru
    _
  // Predicated region
  $region10: #{avenet_forward.35} parent=0 // pred_check
    _
  $region11: #{avenet_forward.35} parent=0 // pred_check_branch
    %13 = sbr.rel (0) target = $region13
  $region12: #{avenet_forward.35} parent=0 // pred_region
    _
  $region13: #{avenet_forward.35} parent=0 // pred_fallthru
    _
  %v15 = vld [vmem:[%s0] sm:$0xff]
  %v16 = vld [vmem:[%s0 + $0x8] sm:$0xff]
  %v17 = vld [vmem:[%s0 + $0x10] sm:$0xf]
  %v18 = vld [vmem:[%s1] sm:$0xf]
  %v19 = vld [vmem:[%s1 + $0x4] sm:$0xf]
  %v20 = vld [vmem:[%s1 + $0x8] sm:$0xf]
  %v21 = vld [vmem:[%s1 + $0xc] sm:$0xf]
  %v22 = vld [vmem:[%s1 + $0x10] sm:$0xf]
  %v23 = vld [vmem:[%s1 + $0x14] sm:$0xf]
  %v24 = vld [vmem:[%s1 + $0x18] sm:$0xf]
  %v25 = vld [vmem:[%s1 + $0x1c] sm:$0xf]
  %v26 = vld [vmem:[%s1 + $0x20] sm:$0xf]
  %v27 = vld [vmem:[%s1 + $0x24] sm:$0xf]
  %v28 = vld [vmem:[%s1 + $0x28] sm:$0xf]
  %v29 = vld [vmem:[%s1 + $0x2c] sm:$0xf]
  %v30 = vld [vmem:[%s1 + $0x30] sm:$0xf]
  %v31 = vld [vmem:[%s1 + $0x34] sm:$0xf]
  %v32 = vld [vmem:[%s1 + $0x38] sm:$0xf]
  %v33 = vld [vmem:[%s1 + $0x3c] sm:$0xf]
  %v34 = vld [vmem:[%s1 + $0x40] sm:$0xf]
  %v35 = vld [vmem:[%s1 + $0x44] sm:$0xf]
  %v36 = vld [vmem:[%s1 + $0x48] sm:$0xf]
  %v37 = vld [vmem:[%s1 + $0x4c] sm:$0xf]
  %v38 = vld [vmem:[%s1 + $0x50] sm:$0xf]
  %v39 = vld [vmem:[%s1 + $0x54] sm:$0xf]
  %v40 = vld [vmem:[%s1 + $0x58] sm:$0xf]
  %v41 = vld [vmem:[%s1 + $0x5c] sm:$0xf]
  %v42 = vld [vmem:[%s1 + $0x60] sm:$0xf]
  %v43 = vld [vmem:[%s1 + $0x64] sm:$0xf]
  %v44 = vld [vmem:[%s1 + $0x68] sm:$0xf]
  %v45 = vld [vmem:[%s1 + $0x6c] sm:$0xf]
  %v46 = vld [vmem:[%s1 + $0x70] sm:$0xf]
  %v47 = vld [vmem:[%s1 + $0x74] sm:$0xf]
  %v48 = vld [vmem:[%s1 + $0x78] sm:$0xf]
  %v49 = vld [vmem:[%s1 + $0x7c] sm:$0xf]
  %v50 = vld [vmem:[%s1 + $0x80] sm:$0xf]
  %v51 = vld [vmem:[%s1 + $0x84] sm:$0xf]
  %v52 = vld [vmem:[%s1 + $0x88] sm:$0xf]
  %v53 = vld [vmem:[%s1 + $0x8c] sm:$0xf]
  %v54 = vld [vmem:[%s1 + $0x90] sm:$0xf]
  %v55 = vld [vmem:[%s1 + $0x94] sm:$0xf]
  %v56 = vld [vmem:[%s1 + $0x98] sm:$0xf]
  %v57 = vld [vmem:[%s1 + $0x9c] sm:$0xf]
  %v58 = vld [vmem:[%s1 + $0xa0] sm:$0xf]
  %v59 = vld [vmem:[%s1 + $0xa4] sm:$0xf]
  %v60 = vld [vmem:[%s1 + $0xa8] sm:$0xf]
  %v61 = vld [vmem:[%s1 + $0xac] sm:$0xf]
  %v62 = vld [vmem:[%s1 + $0xb0] sm:$0xf]
  %v63 = vld [vmem:[%s1 + $0xb4] sm:$0xf]
  %v64 = vld [vmem:[%s1 + $0xb8] sm:$0xf]
  %v65 = vld [vmem:[%s1 + $0xbc] sm:$0xf]
  %v66 = vld [vmem:[%s1 + $0xc0] sm:$0xf]
  %v67 = vld [vmem:[%s1 + $0xc4] sm:$0xf]
  %v68 = vld [vmem:[%s1 + $0xc8] sm:$0xf]
  %v69 = vld [vmem:[%s1 + $0xcc] sm:$0xf]
  %v70 = vld [vmem:[%s1 + $0xd0] sm:$0xf]
  %v71 = vld [vmem:[%s1 + $0xd4] sm:$0xf]
  %v72 = vld [vmem:[%s1 + $0xd8] sm:$0xf]
  %v73 = vld [vmem:[%s1 + $0xdc] sm:$0xf]
  %v74 = vld [vmem:[%s1 + $0xe0] sm:$0xf]
  %v75 = vld [vmem:[%s1 + $0xe4] sm:$0xf]
  %v76 = vld [vmem:[%s1 + $0xe8] sm:$0xf]
  %v77 = vld [vmem:[%s1 + $0xec] sm:$0xf]
  %v78 = vld [vmem:[%s1 + $0xf0] sm:$0xf]
  %v79 = vld [vmem:[%s1 + $0xf4] sm:$0xf]
  %v80 = vld [vmem:[%s1 + $0xf8] sm:$0xf]
  %v81 = vld [vmem:[%s1 + $0xfc] sm:$0xf]
  %v82 = vld [vmem:[%s1 + $0x100] sm:$0xf]
  %v83 = vld [vmem:[%s1 + $0x104] sm:$0xf]
  %v84 = vld [vmem:[%s1 + $0x108] sm:$0xf]
  %v85 = vld [vmem:[%s1 + $0x10c] sm:$0xf]
  %v86 = vld [vmem:[%s1 + $0x110] sm:$0xf]
  %v87 = vld [vmem:[%s1 + $0x114] sm:$0xf]
  %v88 = vld [vmem:[%s1 + $0x118] sm:$0xf]
  %v89 = vld [vmem:[%s1 + $0x11c] sm:$0xf]
  %v90 = vld [vmem:[%s2] sm:$0x1]
  %v92 = vlaneseq
  %v93 = vshrl.u32 %v92, 7
  %v94 = vsub.s32 0, %v93
  %v95 = vrot.slane %v90, %v94
  %v100 = vunpack.c.l.b16 %v15
  %v101 = vunpack.c.h.b16 %v15
  %v102 = vunpack.c.l.b16 %v16
  %v103 = vunpack.c.h.b16 %v16
  %v104 = vunpack.c.l.b16 %v17
  %v105 = vpack.c.b16 %v100, %v100
  %v106 = vpack.c.b16 %v101, %v101
  %v107 = vpack.c.b16 %v102, %v102
  %v108 = vpack.c.b16 %v103, %v103
  %v109 = vpack.c.b16 %v104, %v104
  %v186 = vunpack.c.l.b16 %v18
  %v187 = vunpack.c.l.b16 %v19
  %v188 = vunpack.c.l.b16 %v20
  %v189 = vunpack.c.l.b16 %v21
  %v190 = vunpack.c.l.b16 %v22
  %v191 = vunpack.c.l.b16 %v23
  %v192 = vunpack.c.l.b16 %v24
  %v193 = vunpack.c.l.b16 %v25
  %v194 = vunpack.c.l.b16 %v26
  %v195 = vunpack.c.l.b16 %v27
  %v196 = vunpack.c.l.b16 %v28
  %v197 = vunpack.c.l.b16 %v29
  %v198 = vunpack.c.l.b16 %v30
  %v199 = vunpack.c.l.b16 %v31
  %v200 = vunpack.c.l.b16 %v32
  %v201 = vunpack.c.l.b16 %v33
  %v202 = vunpack.c.l.b16 %v34
  %v203 = vunpack.c.l.b16 %v35
  %v204 = vunpack.c.l.b16 %v36
  %v205 = vunpack.c.l.b16 %v37
  %v206 = vunpack.c.l.b16 %v38
  %v207 = vunpack.c.l.b16 %v39
  %v208 = vunpack.c.l.b16 %v40
  %v209 = vunpack.c.l.b16 %v41
  %v210 = vunpack.c.l.b16 %v42
  %v211 = vunpack.c.l.b16 %v43
  %v212 = vunpack.c.l.b16 %v44
  %v213 = vunpack.c.l.b16 %v45
  %v214 = vunpack.c.l.b16 %v46
  %v215 = vunpack.c.l.b16 %v47
  %v216 = vunpack.c.l.b16 %v48
  %v217 = vunpack.c.l.b16 %v49
  %v218 = vunpack.c.l.b16 %v50
  %v219 = vunpack.c.l.b16 %v51
  %v220 = vunpack.c.l.b16 %v52
  %v221 = vunpack.c.l.b16 %v53
  %v222 = vunpack.c.l.b16 %v54
  %v223 = vunpack.c.l.b16 %v55
  %v224 = vunpack.c.l.b16 %v56
  %v225 = vunpack.c.l.b16 %v57
  %v226 = vunpack.c.l.b16 %v58
  %v227 = vunpack.c.l.b16 %v59
  %v228 = vunpack.c.l.b16 %v60
  %v229 = vunpack.c.l.b16 %v61
  %v230 = vunpack.c.l.b16 %v62
  %v231 = vunpack.c.l.b16 %v63
  %v232 = vunpack.c.l.b16 %v64
  %v233 = vunpack.c.l.b16 %v65
  %v234 = vunpack.c.l.b16 %v66
  %v235 = vunpack.c.l.b16 %v67
  %v236 = vunpack.c.l.b16 %v68
  %v237 = vunpack.c.l.b16 %v69
  %v238 = vunpack.c.l.b16 %v70
  %v239 = vunpack.c.l.b16 %v71
  %v240 = vunpack.c.l.b16 %v72
  %v241 = vunpack.c.l.b16 %v73
  %v242 = vunpack.c.l.b16 %v74
  %v243 = vunpack.c.l.b16 %v75
  %v244 = vunpack.c.l.b16 %v76
  %v245 = vunpack.c.l.b16 %v77
  %v246 = vunpack.c.l.b16 %v78
  %v247 = vunpack.c.l.b16 %v79
  %v248 = vunpack.c.l.b16 %v80
  %v249 = vunpack.c.l.b16 %v81
  %v250 = vunpack.c.l.b16 %v82
  %v251 = vunpack.c.l.b16 %v83
  %v252 = vunpack.c.l.b16 %v84
  %v253 = vunpack.c.l.b16 %v85
  %v254 = vunpack.c.l.b16 %v86
  %v255 = vunpack.c.l.b16 %v87
  %v256 = vunpack.c.l.b16 %v88
  %v257 = vunpack.c.l.b16 %v89
  %v258 = vpack.c.b16 %v187, %v186
  %v259 = vpack.c.b16 %v189, %v188
  %v260 = vpack.c.b16 %v191, %v190
  %v261 = vpack.c.b16 %v193, %v192
  %v262 = vpack.c.b16 %v195, %v194
  %v263 = vpack.c.b16 %v197, %v196
  %v264 = vpack.c.b16 %v199, %v198
  %v265 = vpack.c.b16 %v201, %v200
  %v266 = vpack.c.b16 %v203, %v202
  %v267 = vpack.c.b16 %v205, %v204
  %v268 = vpack.c.b16 %v207, %v206
  %v269 = vpack.c.b16 %v209, %v208
  %v270 = vpack.c.b16 %v211, %v210
  %v271 = vpack.c.b16 %v213, %v212
  %v272 = vpack.c.b16 %v215, %v214
  %v273 = vpack.c.b16 %v217, %v216
  %v274 = vpack.c.b16 %v219, %v218
  %v275 = vpack.c.b16 %v221, %v220
  %v276 = vpack.c.b16 %v223, %v222
  %v277 = vpack.c.b16 %v225, %v224
  %v278 = vpack.c.b16 %v227, %v226
  %v279 = vpack.c.b16 %v229, %v228
  %v280 = vpack.c.b16 %v231, %v230
  %v281 = vpack.c.b16 %v233, %v232
  %v282 = vpack.c.b16 %v235, %v234
  %v283 = vpack.c.b16 %v237, %v236
  %v284 = vpack.c.b16 %v239, %v238
  %v285 = vpack.c.b16 %v241, %v240
  %v286 = vpack.c.b16 %v243, %v242
  %v287 = vpack.c.b16 %v245, %v244
  %v288 = vpack.c.b16 %v247, %v246
  %v289 = vpack.c.b16 %v249, %v248
  %v290 = vpack.c.b16 %v251, %v250
  %v291 = vpack.c.b16 %v253, %v252
  %v292 = vpack.c.b16 %v255, %v254
  %v293 = vpack.c.b16 %v257, %v256
  %vm330 = vcmask 523264
  %v332 = vsel %vm330, %v109, 0
  %334 = vmatprep.subr.bf16.mxu0 0
  %335 = vmatpush1.bf16.msra.mxu0 %v258
  %336 = vmatprep.subr.bf16.mxu0 0
  %337 = vmatpush1.bf16.msra.mxu0 %v259
  %338 = vmatprep.subr.bf16.mxu0 0
  %339 = vmatpush1.bf16.msra.mxu0 %v260
  %340 = vmatprep.subr.bf16.mxu0 0
  %341 = vmatpush1.bf16.msra.mxu0 %v261
  %342 = vmatprep.subr.bf16.mxu0 0
  %343 = vmatpush1.bf16.msra.mxu0 %v262
  %344 = vmatprep.subr.bf16.mxu0 0
  %345 = vmatpush1.bf16.msra.mxu0 %v263
  %346 = vmatprep.subr.bf16.mxu0 0
  %347 = vmatpush1.bf16.msra.mxu0 %v264
  %348 = vmatprep.subr.bf16.mxu0 0
  %349 = vmatpush1.bf16.msra.mxu0 %v265
  %350 = vmatprep.subr.bf16.mxu0 0
  %351 = vmatpush1.bf16.msra.mxu0 %v266
  %352 = vmatprep.subr.bf16.mxu0 0
  %353 = vmatpush1.bf16.msra.mxu0 %v267
  %354 = vmatprep.subr.bf16.mxu0 0
  %355 = vmatpush1.bf16.msra.mxu0 %v268
  %356 = vmatprep.subr.bf16.mxu0 0
  %357 = vmatpush1.bf16.msra.mxu0 %v269
  %358 = vmatprep.subr.bf16.mxu0 0
  %359 = vmatpush1.bf16.msra.mxu0 %v270
  %360 = vmatprep.subr.bf16.mxu0 0
  %361 = vmatpush1.bf16.msra.mxu0 %v271
  %362 = vmatprep.subr.bf16.mxu0 0
  %363 = vmatpush1.bf16.msra.mxu0 %v272
  %364 = vmatprep.subr.bf16.mxu0 0
  %365 = vmatpush1.bf16.msra.mxu0 %v273
  %366 = vmatprep.mubr.bf16.mxu0 %v106
  %367 = vmatmul.mubr.bf16.gmra.mrb[0].mxu0 %v105
  %v368 = vpop.f32.mrb[0].mxu0
  %v369 = vadd.f32 %v95, %v368
  %v370 = vpop.f32.mrb[0].mxu0
  %v371 = vpop.f32.mrb[0].mxu0
  %v372 = vpop.f32.mrb[0].mxu0
  %373 = vdwg.mxu0
  %374 = vmatprep.subr.bf16.mxu0 0
  %375 = vmatpush1.bf16.msra.mxu0 %v274
  %376 = vmatprep.subr.bf16.mxu0 0
  %377 = vmatpush1.bf16.msra.mxu0 %v275
  %378 = vmatprep.subr.bf16.mxu0 0
  %379 = vmatpush1.bf16.msra.mxu0 %v276
  %380 = vmatprep.subr.bf16.mxu0 0
  %381 = vmatpush1.bf16.msra.mxu0 %v277
  %382 = vmatprep.subr.bf16.mxu0 0
  %383 = vmatpush1.bf16.msra.mxu0 %v278
  %384 = vmatprep.subr.bf16.mxu0 0
  %385 = vmatpush1.bf16.msra.mxu0 %v279
  %386 = vmatprep.subr.bf16.mxu0 0
  %387 = vmatpush1.bf16.msra.mxu0 %v280
  %388 = vmatprep.subr.bf16.mxu0 0
  %389 = vmatpush1.bf16.msra.mxu0 %v281
  %390 = vmatprep.subr.bf16.mxu0 0
  %391 = vmatpush1.bf16.msra.mxu0 %v282
  %392 = vmatprep.subr.bf16.mxu0 0
  %393 = vmatpush1.bf16.msra.mxu0 %v283
  %394 = vmatprep.subr.bf16.mxu0 0
  %395 = vmatpush1.bf16.msra.mxu0 %v284
  %396 = vmatprep.subr.bf16.mxu0 0
  %397 = vmatpush1.bf16.msra.mxu0 %v285
  %398 = vmatprep.subr.bf16.mxu0 0
  %399 = vmatpush1.bf16.msra.mxu0 %v286
  %400 = vmatprep.subr.bf16.mxu0 0
  %401 = vmatpush1.bf16.msra.mxu0 %v287
  %402 = vmatprep.subr.bf16.mxu0 0
  %403 = vmatpush1.bf16.msra.mxu0 %v288
  %404 = vmatprep.subr.bf16.mxu0 0
  %405 = vmatpush1.bf16.msra.mxu0 %v289
  %406 = vmatprep.mubr.bf16.mxu0 %v108
  %407 = vmatmul.mubr.bf16.gmra.mrb[0].mxu0 %v107
  %v408 = vpop.f32.mrb[0].mxu0
  %v409 = vadd.f32 %v369, %v408
  %v410 = vpop.f32.mrb[0].mxu0
  %v411 = vpop.f32.mrb[0].mxu0
  %v412 = vpop.f32.mrb[0].mxu0
  %413 = vdwg.mxu0
  %414 = vmatprep.subr.bf16.mxu0 0
  %415 = vmatpush1.bf16.msra.mxu0 %v290
  %416 = vmatprep.subr.bf16.mxu0 0
  %417 = vmatpush1.bf16.msra.mxu0 %v291
  %418 = vmatprep.subr.bf16.mxu0 0
  %419 = vmatpush1.bf16.msra.mxu0 %v292
  %420 = vmatprep.subr.bf16.mxu0 0
  %421 = vmatpush1.bf16.msra.mxu0 %v293
  %422 = vmatprep.subr.bf16.mxu0 0
  %423 = vmatpush1.bf16.msra.mxu0 0
  %424 = vmatprep.subr.bf16.mxu0 0
  %425 = vmatpush1.bf16.msra.mxu0 0
  %426 = vmatprep.subr.bf16.mxu0 0
  %427 = vmatpush1.bf16.msra.mxu0 0
  %428 = vmatprep.subr.bf16.mxu0 0
  %429 = vmatpush1.bf16.msra.mxu0 0
  %430 = vmatprep.subr.bf16.mxu0 0
  %431 = vmatpush1.bf16.msra.mxu0 0
  %432 = vmatprep.subr.bf16.mxu0 0
  %433 = vmatpush1.bf16.msra.mxu0 0
  %434 = vmatprep.subr.bf16.mxu0 0
  %435 = vmatpush1.bf16.msra.mxu0 0
  %436 = vmatprep.subr.bf16.mxu0 0
  %437 = vmatpush1.bf16.msra.mxu0 0
  %438 = vmatprep.subr.bf16.mxu0 0
  %439 = vmatpush1.bf16.msra.mxu0 0
  %440 = vmatprep.subr.bf16.mxu0 0
  %441 = vmatpush1.bf16.msra.mxu0 0
  %442 = vmatprep.subr.bf16.mxu0 0
  %443 = vmatpush1.bf16.msra.mxu0 0
  %444 = vmatprep.subr.bf16.mxu0 0
  %445 = vmatpush1.bf16.msra.mxu0 0
  %446 = vmatprep.mubr.bf16.mxu0 0
  %447 = vmatmul.mubr.bf16.gmra.mrb[0].mxu0 %v332
  %v448 = vpop.f32.mrb[0].mxu0
  %v449 = vadd.f32 %v409, %v448
  %v450 = vpop.f32.mrb[0].mxu0
  %v451 = vpop.f32.mrb[0].mxu0
  %v452 = vpop.f32.mrb[0].mxu0
  %453 = vdwg.mxu0
  %v454 = vmax.f32 %v449, 0.0
  %v455 = vpack.c.bf16 %v454, %v454
  %vm456 = vcmask 519168
  %457 = vst.msk [vmem:[%s3] sm:$0xf] %vm456, %v455
  // Predicated region
  $region14: #{avenet_forward.35} parent=0 // pred_check
    _
  $region15: #{avenet_forward.35} parent=0 // pred_check_branch
    %459 = sbr.rel (0) target = $region17
  $region16: #{avenet_forward.35} parent=0 // pred_region
    _
  $region17: #{avenet_forward.35} parent=0 // pred_fallthru
    _
  // Predicated region
  $region18: #{avenet_forward.35} parent=0 // pred_check
    _
  $region19: #{avenet_forward.35} parent=0 // pred_check_branch
    %461 = sbr.rel (0) target = $region21
  $region20: #{avenet_forward.35} parent=0 // pred_region
    _
  $region21: #{avenet_forward.35} parent=0 // pred_fallthru
    _

// kernel: avenet_forward.34
$region0: #{avenet_forward.34}
  #allocation0 [shape = 'u32[]', space=smem, size = 0x4, offset = 0x4, fixed_abs, tag = 'smem constant byte address 0x4 - core index']
  #allocation1 [shape = 'u32[144,128]{1,0:T(1,128)}', space=vmem, size = 0x12000, scoped, tag = 'internal scratch']
  %s0 = inlined_call_operand.vmem [shape: bf16[8,576], index: 0, kind: input, shape index: {}]
  %s1 = inlined_call_operand.vmem [shape: bf16[576,64], index: 1, kind: input, shape index: {}]
  %s2 = inlined_call_operand.vmem [shape: f32[1,64], index: 2, kind: input, shape index: {}]
  %s3 = inlined_call_operand.vmem [shape: bf16[8,32], index: 3, kind: input, shape index: {}]
  %s4 = inlined_call_operand.vmem [shape: bf16[32,64], index: 4, kind: input, shape index: {}]
  %s5 = inlined_call_operand.vmem [shape: f32[1,64], index: 5, kind: input, shape index: {}]
  %s6 = inlined_call_operand.vmem [shape: bf16[8,64], index: 6, kind: output, shape index: {}]
  %s7 = sld [smem:[#allocation0]]
  $region34: #{avenet_forward.34} parent=0
    _
  %s9 = ssub.s32 1, %s7
  %s10 = scalar_select 0, %s9, %s7
  // Predicated region
  $region2: #{avenet_forward.34} parent=0 // pred_check
    _
  $region3: #{avenet_forward.34} parent=0 // pred_check_branch
    %12 = sbr.rel (0) target = $region5
  $region4: #{avenet_forward.34} parent=0 // pred_region
    _
  $region5: #{avenet_forward.34} parent=0 // pred_fallthru
    _
  // Predicated region
  $region6: #{avenet_forward.34} parent=0 // pred_check
    _
  $region7: #{avenet_forward.34} parent=0 // pred_check_branch
    %14 = sbr.rel (0) target = $region9
  $region8: #{avenet_forward.34} parent=0 // pred_region
    _
  $region9: #{avenet_forward.34} parent=0 // pred_fallthru
    _
  // Predicated region
  $region10: #{avenet_forward.34} parent=0 // pred_check
    _
  $region11: #{avenet_forward.34} parent=0 // pred_check_branch
    %16 = sbr.rel (0) target = $region13
  $region12: #{avenet_forward.34} parent=0 // pred_region
    _
  $region13: #{avenet_forward.34} parent=0 // pred_fallthru
    _
  // Predicated region
  $region14: #{avenet_forward.34} parent=0 // pred_check
    _
  $region15: #{avenet_forward.34} parent=0 // pred_check_branch
    %18 = sbr.rel (0) target = $region17
  $region16: #{avenet_forward.34} parent=0 // pred_region
    _
  $region17: #{avenet_forward.34} parent=0 // pred_fallthru
    _
  // Predicated region
  $region18: #{avenet_forward.34} parent=0 // pred_check
    _
  $region19: #{avenet_forward.34} parent=0 // pred_check_branch
    %20 = sbr.rel (0) target = $region21
  $region20: #{avenet_forward.34} parent=0 // pred_region
    _
  $region21: #{avenet_forward.34} parent=0 // pred_fallthru
    _
  // Predicated region
  $region22: #{avenet_forward.34} parent=0 // pred_check
    _
  $region23: #{avenet_forward.34} parent=0 // pred_check_branch
    %22 = sbr.rel (0) target = $region25
  $region24: #{avenet_forward.34} parent=0 // pred_region
    _
  $region25: #{avenet_forward.34} parent=0 // pred_fallthru
    _
  %v24 = vld [vmem:[%s0] sm:$0xff]
  %v25 = vld [vmem:[%s0 + $0x8] sm:$0xff]
  %v26 = vld [vmem:[%s0 + $0x10] sm:$0xf]
  %v27 = vld [vmem:[%s1] sm:$0xf]
  %v28 = vld [vmem:[%s1 + $0x4] sm:$0xf]
  %v29 = vld [vmem:[%s1 + $0x8] sm:$0xf]
  %v30 = vld [vmem:[%s1 + $0xc] sm:$0xf]
  %v31 = vld [vmem:[%s1 + $0x10] sm:$0xf]
  %v32 = vld [vmem:[%s1 + $0x14] sm:$0xf]
  %v33 = vld [vmem:[%s1 + $0x18] sm:$0xf]
  %v34 = vld [vmem:[%s1 + $0x1c] sm:$0xf]
  %v35 = vld [vmem:[%s1 + $0x20] sm:$0xf]
  %v36 = vld [vmem:[%s1 + $0x24] sm:$0xf]
  %v37 = vld [vmem:[%s1 + $0x28] sm:$0xf]
  %v38 = vld [vmem:[%s1 + $0x2c] sm:$0xf]
  %v39 = vld [vmem:[%s1 + $0x30] sm:$0xf]
  %v40 = vld [vmem:[%s1 + $0x34] sm:$0xf]
  %v41 = vld [vmem:[%s1 + $0x38] sm:$0xf]
  %v42 = vld [vmem:[%s1 + $0x3c] sm:$0xf]
  %v43 = vld [vmem:[%s1 + $0x40] sm:$0xf]
  %v44 = vld [vmem:[%s1 + $0x44] sm:$0xf]
  %v45 = vld [vmem:[%s1 + $0x48] sm:$0xf]
  %v46 = vld [vmem:[%s1 + $0x4c] sm:$0xf]
  %v47 = vld [vmem:[%s1 + $0x50] sm:$0xf]
  %v48 = vld [vmem:[%s1 + $0x54] sm:$0xf]
  %v49 = vld [vmem:[%s1 + $0x58] sm:$0xf]
  %v50 = vld [vmem:[%s1 + $0x5c] sm:$0xf]
  %v51 = vld [vmem:[%s1 + $0x60] sm:$0xf]
  %v52 = vld [vmem:[%s1 + $0x64] sm:$0xf]
  %v53 = vld [vmem:[%s1 + $0x68] sm:$0xf]
  %v54 = vld [vmem:[%s1 + $0x6c] sm:$0xf]
  %v55 = vld [vmem:[%s1 + $0x70] sm:$0xf]
  %v56 = vld [vmem:[%s1 + $0x74] sm:$0xf]
  %v57 = vld [vmem:[%s1 + $0x78] sm:$0xf]
  %v58 = vld [vmem:[%s1 + $0x7c] sm:$0xf]
  %v59 = vld [vmem:[%s1 + $0x80] sm:$0xf]
  %v60 = vld [vmem:[%s1 + $0x84] sm:$0xf]
  %v61 = vld [vmem:[%s1 + $0x88] sm:$0xf]
  %v62 = vld [vmem:[%s1 + $0x8c] sm:$0xf]
  %v63 = vld [vmem:[%s1 + $0x90] sm:$0xf]
  %v64 = vld [vmem:[%s1 + $0x94] sm:$0xf]
  %v65 = vld [vmem:[%s1 + $0x98] sm:$0xf]
  %v66 = vld [vmem:[%s1 + $0x9c] sm:$0xf]
  %v67 = vld [vmem:[%s1 + $0xa0] sm:$0xf]
  %v68 = vld [vmem:[%s1 + $0xa4] sm:$0xf]
  %v69 = vld [vmem:[%s1 + $0xa8] sm:$0xf]
  %v70 = vld [vmem:[%s1 + $0xac] sm:$0xf]
  %v71 = vld [vmem:[%s1 + $0xb0] sm:$0xf]
  %v72 = vld [vmem:[%s1 + $0xb4] sm:$0xf]
  %v73 = vld [vmem:[%s1 + $0xb8] sm:$0xf]
  %v74 = vld [vmem:[%s1 + $0xbc] sm:$0xf]
  %v75 = vld [vmem:[%s1 + $0xc0] sm:$0xf]
  %v76 = vld [vmem:[%s1 + $0xc4] sm:$0xf]
  %v77 = vld [vmem:[%s1 + $0xc8] sm:$0xf]
  %v78 = vld [vmem:[%s1 + $0xcc] sm:$0xf]
  %v79 = vld [vmem:[%s1 + $0xd0] sm:$0xf]
  %v80 = vld [vmem:[%s1 + $0xd4] sm:$0xf]
  %v81 = vld [vmem:[%s1 + $0xd8] sm:$0xf]
  %v82 = vld [vmem:[%s1 + $0xdc] sm:$0xf]
  %v83 = vld [vmem:[%s1 + $0xe0] sm:$0xf]
  %v84 = vld [vmem:[%s1 + $0xe4] sm:$0xf]
  %v85 = vld [vmem:[%s1 + $0xe8] sm:$0xf]
  %v86 = vld [vmem:[%s1 + $0xec] sm:$0xf]
  %v87 = vld [vmem:[%s1 + $0xf0] sm:$0xf]
  %v88 = vld [vmem:[%s1 + $0xf4] sm:$0xf]
  %v89 = vld [vmem:[%s1 + $0xf8] sm:$0xf]
  %v90 = vld [vmem:[%s1 + $0xfc] sm:$0xf]
  %v91 = vld [vmem:[%s1 + $0x100] sm:$0xf]
  %v92 = vld [vmem:[%s1 + $0x104] sm:$0xf]
  %v93 = vld [vmem:[%s1 + $0x108] sm:$0xf]
  %v94 = vld [vmem:[%s1 + $0x10c] sm:$0xf]
  %v95 = vld [vmem:[%s1 + $0x110] sm:$0xf]
  %v96 = vld [vmem:[%s1 + $0x114] sm:$0xf]
  %v97 = vld [vmem:[%s1 + $0x118] sm:$0xf]
  %v98 = vld [vmem:[%s1 + $0x11c] sm:$0xf]
  %v99 = vld [vmem:[%s3] sm:$0xf]
  %v100 = vld [vmem:[%s4] sm:$0xf]
  %v101 = vld [vmem:[%s4 + $0x4] sm:$0xf]
  %v102 = vld [vmem:[%s4 + $0x8] sm:$0xf]
  %v103 = vld [vmem:[%s4 + $0xc] sm:$0xf]
  %v104 = vld [vmem:[%s5] sm:$0x1]
  %v106 = vlaneseq
  %v107 = vshrl.u32 %v106, 7
  %v108 = vsub.s32 0, %v107
  %v109 = vrot.slane %v104, %v108
  %v115 = vunpack.c.l.b16 %v100
  %v116 = vunpack.c.l.b16 %v101
  %v117 = vunpack.c.l.b16 %v102
  %v118 = vunpack.c.l.b16 %v103
  %v119 = vpack.c.b16 %v116, %v115
  %v120 = vpack.c.b16 %v118, %v117
  %vm123 = vcmask 261120
  %v125 = vsel %vm123, %v99, 0
  %127 = vmatprep.subr.bf16.mxu0 0
  %128 = vmatpush1.bf16.msra.mxu0 %v119
  %129 = vmatprep.subr.bf16.mxu0 0
  %130 = vmatpush1.bf16.msra.mxu0 %v120
  %131 = vmatprep.subr.bf16.mxu0 0
  %132 = vmatpush1.bf16.msra.mxu0 0
  %133 = vmatprep.subr.bf16.mxu0 0
  %134 = vmatpush1.bf16.msra.mxu0 0
  %135 = vmatprep.subr.bf16.mxu0 0
  %136 = vmatpush1.bf16.msra.mxu0 0
  %137 = vmatprep.subr.bf16.mxu0 0
  %138 = vmatpush1.bf16.msra.mxu0 0
  %139 = vmatprep.subr.bf16.mxu0 0
  %140 = vmatpush1.bf16.msra.mxu0 0
  %141 = vmatprep.subr.bf16.mxu0 0
  %142 = vmatpush1.bf16.msra.mxu0 0
  %143 = vmatprep.subr.bf16.mxu0 0
  %144 = vmatpush1.bf16.msra.mxu0 0
  %145 = vmatprep.subr.bf16.mxu0 0
  %146 = vmatpush1.bf16.msra.mxu0 0
  %147 = vmatprep.subr.bf16.mxu0 0
  %148 = vmatpush1.bf16.msra.mxu0 0
  %149 = vmatprep.subr.bf16.mxu0 0
  %150 = vmatpush1.bf16.msra.mxu0 0
  %151 = vmatprep.subr.bf16.mxu0 0
  %152 = vmatpush1.bf16.msra.mxu0 0
  %153 = vmatprep.subr.bf16.mxu0 0
  %154 = vmatpush1.bf16.msra.mxu0 0
  %155 = vmatprep.subr.bf16.mxu0 0
  %156 = vmatpush1.bf16.msra.mxu0 0
  %157 = vmatprep.subr.bf16.mxu0 0
  %158 = vmatpush1.bf16.msra.mxu0 0
  %159 = vmatprep.mubr.bf16.mxu0 0
  %160 = vmatmul.mubr.bf16.gmra.mrb[0].mxu0 %v125
  %v161 = vpop.f32.mrb[0].mxu0
  %v162 = vadd.f32 %v109, %v161
  %v163 = vpop.f32.mrb[0].mxu0
  %v164 = vpop.f32.mrb[0].mxu0
  %v165 = vpop.f32.mrb[0].mxu0
  %166 = vdwg.mxu0
  %v167 = vld [vmem:[%s2] sm:$0x1]
  %v169 = vlaneseq
  %v170 = vshrl.u32 %v169, 7
  %v171 = vsub.s32 0, %v170
  %v172 = vrot.slane %v167, %v171
  %v177 = vunpack.c.l.b16 %v24
  %v178 = vunpack.c.h.b16 %v24
  %v179 = vunpack.c.l.b16 %v25
  %v180 = vunpack.c.h.b16 %v25
  %v181 = vunpack.c.l.b16 %v26
  %v182 = vpack.c.b16 %v177, %v177
  %v183 = vpack.c.b16 %v178, %v178
  %v184 = vpack.c.b16 %v179, %v179
  %v185 = vpack.c.b16 %v180, %v180
  %v186 = vpack.c.b16 %v181, %v181
  %v263 = vunpack.c.l.b16 %v27
  %v264 = vunpack.c.l.b16 %v28
  %v265 = vunpack.c.l.b16 %v29
  %v266 = vunpack.c.l.b16 %v30
  %v267 = vunpack.c.l.b16 %v31
  %v268 = vunpack.c.l.b16 %v32
  %v269 = vunpack.c.l.b16 %v33
  %v270 = vunpack.c.l.b16 %v34
  %v271 = vunpack.c.l.b16 %v35
  %v272 = vunpack.c.l.b16 %v36
  %v273 = vunpack.c.l.b16 %v37
  %v274 = vunpack.c.l.b16 %v38
  %v275 = vunpack.c.l.b16 %v39
  %v276 = vunpack.c.l.b16 %v40
  %v277 = vunpack.c.l.b16 %v41
  %v278 = vunpack.c.l.b16 %v42
  %v279 = vunpack.c.l.b16 %v43
  %v280 = vunpack.c.l.b16 %v44
  %v281 = vunpack.c.l.b16 %v45
  %v282 = vunpack.c.l.b16 %v46
  %v283 = vunpack.c.l.b16 %v47
  %v284 = vunpack.c.l.b16 %v48
  %v285 = vunpack.c.l.b16 %v49
  %v286 = vunpack.c.l.b16 %v50
  %v287 = vunpack.c.l.b16 %v51
  %v288 = vunpack.c.l.b16 %v52
  %v289 = vunpack.c.l.b16 %v53
  %v290 = vunpack.c.l.b16 %v54
  %v291 = vunpack.c.l.b16 %v55
  %v292 = vunpack.c.l.b16 %v56
  %v293 = vunpack.c.l.b16 %v57
  %v294 = vunpack.c.l.b16 %v58
  %v295 = vunpack.c.l.b16 %v59
  %v296 = vunpack.c.l.b16 %v60
  %v297 = vunpack.c.l.b16 %v61
  %v298 = vunpack.c.l.b16 %v62
  %v299 = vunpack.c.l.b16 %v63
  %v300 = vunpack.c.l.b16 %v64
  %v301 = vunpack.c.l.b16 %v65
  %v302 = vunpack.c.l.b16 %v66
  %v303 = vunpack.c.l.b16 %v67
  %v304 = vunpack.c.l.b16 %v68
  %v305 = vunpack.c.l.b16 %v69
  %v306 = vunpack.c.l.b16 %v70
  %v307 = vunpack.c.l.b16 %v71
  %v308 = vunpack.c.l.b16 %v72
  %v309 = vunpack.c.l.b16 %v73
  %v310 = vunpack.c.l.b16 %v74
  %v311 = vunpack.c.l.b16 %v75
  %v312 = vunpack.c.l.b16 %v76
  %v313 = vunpack.c.l.b16 %v77
  %v314 = vunpack.c.l.b16 %v78
  %v315 = vunpack.c.l.b16 %v79
  %v316 = vunpack.c.l.b16 %v80
  %v317 = vunpack.c.l.b16 %v81
  %v318 = vunpack.c.l.b16 %v82
  %v319 = vunpack.c.l.b16 %v83
  %v320 = vunpack.c.l.b16 %v84
  %v321 = vunpack.c.l.b16 %v85
  %v322 = vunpack.c.l.b16 %v86
  %v323 = vunpack.c.l.b16 %v87
  %v324 = vunpack.c.l.b16 %v88
  %v325 = vunpack.c.l.b16 %v89
  %v326 = vunpack.c.l.b16 %v90
  %v327 = vunpack.c.l.b16 %v91
  %v328 = vunpack.c.l.b16 %v92
  %v329 = vunpack.c.l.b16 %v93
  %v330 = vunpack.c.l.b16 %v94
  %v331 = vunpack.c.l.b16 %v95
  %v332 = vunpack.c.l.b16 %v96
  %v333 = vunpack.c.l.b16 %v97
  %v334 = vunpack.c.l.b16 %v98
  %v335 = vpack.c.b16 %v264, %v263
  %v336 = vpack.c.b16 %v266, %v265
  %v337 = vpack.c.b16 %v268, %v267
  %v338 = vpack.c.b16 %v270, %v269
  %v339 = vpack.c.b16 %v272, %v271
  %v340 = vpack.c.b16 %v274, %v273
  %v341 = vpack.c.b16 %v276, %v275
  %v342 = vpack.c.b16 %v278, %v277
  %v343 = vpack.c.b16 %v280, %v279
  %v344 = vpack.c.b16 %v282, %v281
  %v345 = vpack.c.b16 %v284, %v283
  %v346 = vpack.c.b16 %v286, %v285
  %v347 = vpack.c.b16 %v288, %v287
  %v348 = vpack.c.b16 %v290, %v289
  %v349 = vpack.c.b16 %v292, %v291
  %v350 = vpack.c.b16 %v294, %v293
  %v351 = vpack.c.b16 %v296, %v295
  %v352 = vpack.c.b16 %v298, %v297
  %v353 = vpack.c.b16 %v300, %v299
  %v354 = vpack.c.b16 %v302, %v301
  %v355 = vpack.c.b16 %v304, %v303
  %v356 = vpack.c.b16 %v306, %v305
  %v357 = vpack.c.b16 %v308, %v307
  %v358 = vpack.c.b16 %v310, %v309
  %v359 = vpack.c.b16 %v312, %v311
  %v360 = vpack.c.b16 %v314, %v313
  %v361 = vpack.c.b16 %v316, %v315
  %v362 = vpack.c.b16 %v318, %v317
  %v363 = vpack.c.b16 %v320, %v319
  %v364 = vpack.c.b16 %v322, %v321
  %v365 = vpack.c.b16 %v324, %v323
  %v366 = vpack.c.b16 %v326, %v325
  %v367 = vpack.c.b16 %v328, %v327
  %v368 = vpack.c.b16 %v330, %v329
  %v369 = vpack.c.b16 %v332, %v331
  %v370 = vpack.c.b16 %v334, %v333
  %vm407 = vcmask 523264
  %v409 = vsel %vm407, %v186, 0
  %411 = vmatprep.subr.bf16.mxu0 0
  %412 = vmatpush1.bf16.msra.mxu0 %v335
  %413 = vmatprep.subr.bf16.mxu0 0
  %414 = vmatpush1.bf16.msra.mxu0 %v336
  %415 = vmatprep.subr.bf16.mxu0 0
  %416 = vmatpush1.bf16.msra.mxu0 %v337
  %417 = vmatprep.subr.bf16.mxu0 0
  %418 = vmatpush1.bf16.msra.mxu0 %v338
  %419 = vmatprep.subr.bf16.mxu0 0
  %420 = vmatpush1.bf16.msra.mxu0 %v339
  %421 = vmatprep.subr.bf16.mxu0 0
  %422 = vmatpush1.bf16.msra.mxu0 %v340
  %423 = vmatprep.subr.bf16.mxu0 0
  %424 = vmatpush1.bf16.msra.mxu0 %v341
  %425 = vmatprep.subr.bf16.mxu0 0
  %426 = vmatpush1.bf16.msra.mxu0 %v342
  %427 = vmatprep.subr.bf16.mxu0 0
  %428 = vmatpush1.bf16.msra.mxu0 %v343
  %429 = vmatprep.subr.bf16.mxu0 0
  %430 = vmatpush1.bf16.msra.mxu0 %v344
  %431 = vmatprep.subr.bf16.mxu0 0
  %432 = vmatpush1.bf16.msra.mxu0 %v345
  %433 = vmatprep.subr.bf16.mxu0 0
  %434 = vmatpush1.bf16.msra.mxu0 %v346
  %435 = vmatprep.subr.bf16.mxu0 0
  %436 = vmatpush1.bf16.msra.mxu0 %v347
  %437 = vmatprep.subr.bf16.mxu0 0
  %438 = vmatpush1.bf16.msra.mxu0 %v348
  %439 = vmatprep.subr.bf16.mxu0 0
  %440 = vmatpush1.bf16.msra.mxu0 %v349
  %441 = vmatprep.subr.bf16.mxu0 0
  %442 = vmatpush1.bf16.msra.mxu0 %v350
  %443 = vmatprep.mubr.bf16.mxu0 %v183
  %444 = vmatmul.mubr.bf16.gmra.mrb[0].mxu0 %v182
  %v445 = vpop.f32.mrb[0].mxu0
  %v446 = vadd.f32 %v172, %v445
  %v447 = vpop.f32.mrb[0].mxu0
  %v448 = vpop.f32.mrb[0].mxu0
  %v449 = vpop.f32.mrb[0].mxu0
  %450 = vdwg.mxu0
  %451 = vmatprep.subr.bf16.mxu0 0
  %452 = vmatpush1.bf16.msra.mxu0 %v351
  %453 = vmatprep.subr.bf16.mxu0 0
  %454 = vmatpush1.bf16.msra.mxu0 %v352
  %455 = vmatprep.subr.bf16.mxu0 0
  %456 = vmatpush1.bf16.msra.mxu0 %v353
  %457 = vmatprep.subr.bf16.mxu0 0
  %458 = vmatpush1.bf16.msra.mxu0 %v354
  %459 = vmatprep.subr.bf16.mxu0 0
  %460 = vmatpush1.bf16.msra.mxu0 %v355
  %461 = vmatprep.subr.bf16.mxu0 0
  %462 = vmatpush1.bf16.msra.mxu0 %v356
  %463 = vmatprep.subr.bf16.mxu0 0
  %464 = vmatpush1.bf16.msra.mxu0 %v357
  %465 = vmatprep.subr.bf16.mxu0 0
  %466 = vmatpush1.bf16.msra.mxu0 %v358
  %467 = vmatprep.subr.bf16.mxu0 0
  %468 = vmatpush1.bf16.msra.mxu0 %v359
  %469 = vmatprep.subr.bf16.mxu0 0
  %470 = vmatpush1.bf16.msra.mxu0 %v360
  %471 = vmatprep.subr.bf16.mxu0 0
  %472 = vmatpush1.bf16.msra.mxu0 %v361
  %473 = vmatprep.subr.bf16.mxu0 0
  %474 = vmatpush1.bf16.msra.mxu0 %v362
  %475 = vmatprep.subr.bf16.mxu0 0
  %476 = vmatpush1.bf16.msra.mxu0 %v363
  %477 = vmatprep.subr.bf16.mxu0 0
  %478 = vmatpush1.bf16.msra.mxu0 %v364
  %479 = vmatprep.subr.bf16.mxu0 0
  %480 = vmatpush1.bf16.msra.mxu0 %v365
  %481 = vmatprep.subr.bf16.mxu0 0
  %482 = vmatpush1.bf16.msra.mxu0 %v366
  %483 = vmatprep.mubr.bf16.mxu0 %v185
  %484 = vmatmul.mubr.bf16.gmra.mrb[0].mxu0 %v184
  %v485 = vpop.f32.mrb[0].mxu0
  %v486 = vadd.f32 %v446, %v485
  %v487 = vpop.f32.mrb[0].mxu0
  %v488 = vpop.f32.mrb[0].mxu0
  %v489 = vpop.f32.mrb[0].mxu0
  %490 = vdwg.mxu0
  %491 = vmatprep.subr.bf16.mxu0 0
  %492 = vmatpush1.bf16.msra.mxu0 %v367
  %493 = vmatprep.subr.bf16.mxu0 0
  %494 = vmatpush1.bf16.msra.mxu0 %v368
  %495 = vmatprep.subr.bf16.mxu0 0
  %496 = vmatpush1.bf16.msra.mxu0 %v369
  %497 = vmatprep.subr.bf16.mxu0 0
  %498 = vmatpush1.bf16.msra.mxu0 %v370
  %499 = vmatprep.subr.bf16.mxu0 0
  %500 = vmatpush1.bf16.msra.mxu0 0
  %501 = vmatprep.subr.bf16.mxu0 0
  %502 = vmatpush1.bf16.msra.mxu0 0
  %503 = vmatprep.subr.bf16.mxu0 0
  %504 = vmatpush1.bf16.msra.mxu0 0
  %505 = vmatprep.subr.bf16.mxu0 0
  %506 = vmatpush1.bf16.msra.mxu0 0
  %507 = vmatprep.subr.bf16.mxu0 0
  %508 = vmatpush1.bf16.msra.mxu0 0
  %509 = vmatprep.subr.bf16.mxu0 0
  %510 = vmatpush1.bf16.msra.mxu0 0
  %511 = vmatprep.subr.bf16.mxu0 0
  %512 = vmatpush1.bf16.msra.mxu0 0
  %513 = vmatprep.subr.bf16.mxu0 0
  %514 = vmatpush1.bf16.msra.mxu0 0
  %515 = vmatprep.subr.bf16.mxu0 0
  %516 = vmatpush1.bf16.msra.mxu0 0
  %517 = vmatprep.subr.bf16.mxu0 0
  %518 = vmatpush1.bf16.msra.mxu0 0
  %519 = vmatprep.subr.bf16.mxu0 0
  %520 = vmatpush1.bf16.msra.mxu0 0
  %521 = vmatprep.subr.bf16.mxu0 0
  %522 = vmatpush1.bf16.msra.mxu0 0
  %523 = vmatprep.mubr.bf16.mxu0 0
  %524 = vmatmul.mubr.bf16.gmra.mrb[0].mxu0 %v409
  %v525 = vpop.f32.mrb[0].mxu0
  %v526 = vadd.f32 %v486, %v525
  %v527 = vpop.f32.mrb[0].mxu0
  %v528 = vpop.f32.mrb[0].mxu0
  %v529 = vpop.f32.mrb[0].mxu0
  %530 = vdwg.mxu0
  %v531 = vadd.f32 %v526, %v162
  %v532 = vmax.f32 %v531, 0.0
  %v533 = vpack.c.bf16 %v532, %v532
  %vm534 = vcmask 519168
  %535 = vst.msk [vmem:[%s6] sm:$0xf] %vm534, %v533
  // Predicated region
  $region26: #{avenet_forward.34} parent=0 // pred_check
    _
  $region27: #{avenet_forward.34} parent=0 // pred_check_branch
    %537 = sbr.rel (0) target = $region29
  $region28: #{avenet_forward.34} parent=0 // pred_region
    _
  $region29: #{avenet_forward.34} parent=0 // pred_fallthru
    _
  // Predicated region
  $region30: #{avenet_forward.34} parent=0 // pred_check
    _
  $region31: #{avenet_forward.34} parent=0 // pred_check_branch
    %539 = sbr.rel (0) target = $region33
  $region32: #{avenet_forward.34} parent=0 // pred_region
    _
  $region33: #{avenet_forward.34} parent=0 // pred_fallthru
    _

// kernel: avenet_forward.36
$region0: #{avenet_forward.36}
  #allocation0 [shape = 'u32[]', space=smem, size = 0x4, offset = 0x4, fixed_abs, tag = 'smem constant byte address 0x4 - core index']
  #allocation1 [shape = 'u32[144,128]{1,0:T(1,128)}', space=vmem, size = 0x12000, scoped, tag = 'internal scratch']
  %s0 = inlined_call_operand.vmem [shape: bf16[8,576], index: 0, kind: input, shape index: {}]
  %s1 = inlined_call_operand.vmem [shape: bf16[576,64], index: 1, kind: input, shape index: {}]
  %s2 = inlined_call_operand.vmem [shape: f32[1,64], index: 2, kind: input, shape index: {}]
  %s3 = inlined_call_operand.vmem [shape: bf16[8,64], index: 3, kind: input, shape index: {}]
  %s4 = inlined_call_operand.vmem [shape: bf16[8,64], index: 4, kind: output, shape index: {}]
  %s5 = sld [smem:[#allocation0]]
  $region26: #{avenet_forward.36} parent=0
    _
  %s7 = ssub.s32 1, %s5
  %s8 = scalar_select 0, %s7, %s5
  // Predicated region
  $region2: #{avenet_forward.36} parent=0 // pred_check
    _
  $region3: #{avenet_forward.36} parent=0 // pred_check_branch
    %10 = sbr.rel (0) target = $region5
  $region4: #{avenet_forward.36} parent=0 // pred_region
    _
  $region5: #{avenet_forward.36} parent=0 // pred_fallthru
    _
  // Predicated region
  $region6: #{avenet_forward.36} parent=0 // pred_check
    _
  $region7: #{avenet_forward.36} parent=0 // pred_check_branch
    %12 = sbr.rel (0) target = $region9
  $region8: #{avenet_forward.36} parent=0 // pred_region
    _
  $region9: #{avenet_forward.36} parent=0 // pred_fallthru
    _
  // Predicated region
  $region10: #{avenet_forward.36} parent=0 // pred_check
    _
  $region11: #{avenet_forward.36} parent=0 // pred_check_branch
    %14 = sbr.rel (0) target = $region13
  $region12: #{avenet_forward.36} parent=0 // pred_region
    _
  $region13: #{avenet_forward.36} parent=0 // pred_fallthru
    _
  // Predicated region
  $region14: #{avenet_forward.36} parent=0 // pred_check
    _
  $region15: #{avenet_forward.36} parent=0 // pred_check_branch
    %16 = sbr.rel (0) target = $region17
  $region16: #{avenet_forward.36} parent=0 // pred_region
    _
  $region17: #{avenet_forward.36} parent=0 // pred_fallthru
    _
  %v18 = vld [vmem:[%s0] sm:$0xff]
  %v19 = vld [vmem:[%s0 + $0x8] sm:$0xff]
  %v20 = vld [vmem:[%s0 + $0x10] sm:$0xf]
  %v21 = vld [vmem:[%s1] sm:$0xf]
  %v22 = vld [vmem:[%s1 + $0x4] sm:$0xf]
  %v23 = vld [vmem:[%s1 + $0x8] sm:$0xf]
  %v24 = vld [vmem:[%s1 + $0xc] sm:$0xf]
  %v25 = vld [vmem:[%s1 + $0x10] sm:$0xf]
  %v26 = vld [vmem:[%s1 + $0x14] sm:$0xf]
  %v27 = vld [vmem:[%s1 + $0x18] sm:$0xf]
  %v28 = vld [vmem:[%s1 + $0x1c] sm:$0xf]
  %v29 = vld [vmem:[%s1 + $0x20] sm:$0xf]
  %v30 = vld [vmem:[%s1 + $0x24] sm:$0xf]
  %v31 = vld [vmem:[%s1 + $0x28] sm:$0xf]
  %v32 = vld [vmem:[%s1 + $0x2c] sm:$0xf]
  %v33 = vld [vmem:[%s1 + $0x30] sm:$0xf]
  %v34 = vld [vmem:[%s1 + $0x34] sm:$0xf]
  %v35 = vld [vmem:[%s1 + $0x38] sm:$0xf]
  %v36 = vld [vmem:[%s1 + $0x3c] sm:$0xf]
  %v37 = vld [vmem:[%s1 + $0x40] sm:$0xf]
  %v38 = vld [vmem:[%s1 + $0x44] sm:$0xf]
  %v39 = vld [vmem:[%s1 + $0x48] sm:$0xf]
  %v40 = vld [vmem:[%s1 + $0x4c] sm:$0xf]
  %v41 = vld [vmem:[%s1 + $0x50] sm:$0xf]
  %v42 = vld [vmem:[%s1 + $0x54] sm:$0xf]
  %v43 = vld [vmem:[%s1 + $0x58] sm:$0xf]
  %v44 = vld [vmem:[%s1 + $0x5c] sm:$0xf]
  %v45 = vld [vmem:[%s1 + $0x60] sm:$0xf]
  %v46 = vld [vmem:[%s1 + $0x64] sm:$0xf]
  %v47 = vld [vmem:[%s1 + $0x68] sm:$0xf]
  %v48 = vld [vmem:[%s1 + $0x6c] sm:$0xf]
  %v49 = vld [vmem:[%s1 + $0x70] sm:$0xf]
  %v50 = vld [vmem:[%s1 + $0x74] sm:$0xf]
  %v51 = vld [vmem:[%s1 + $0x78] sm:$0xf]
  %v52 = vld [vmem:[%s1 + $0x7c] sm:$0xf]
  %v53 = vld [vmem:[%s1 + $0x80] sm:$0xf]
  %v54 = vld [vmem:[%s1 + $0x84] sm:$0xf]
  %v55 = vld [vmem:[%s1 + $0x88] sm:$0xf]
  %v56 = vld [vmem:[%s1 + $0x8c] sm:$0xf]
  %v57 = vld [vmem:[%s1 + $0x90] sm:$0xf]
  %v58 = vld [vmem:[%s1 + $0x94] sm:$0xf]
  %v59 = vld [vmem:[%s1 + $0x98] sm:$0xf]
  %v60 = vld [vmem:[%s1 + $0x9c] sm:$0xf]
  %v61 = vld [vmem:[%s1 + $0xa0] sm:$0xf]
  %v62 = vld [vmem:[%s1 + $0xa4] sm:$0xf]
  %v63 = vld [vmem:[%s1 + $0xa8] sm:$0xf]
  %v64 = vld [vmem:[%s1 + $0xac] sm:$0xf]
  %v65 = vld [vmem:[%s1 + $0xb0] sm:$0xf]
  %v66 = vld [vmem:[%s1 + $0xb4] sm:$0xf]
  %v67 = vld [vmem:[%s1 + $0xb8] sm:$0xf]
  %v68 = vld [vmem:[%s1 + $0xbc] sm:$0xf]
  %v69 = vld [vmem:[%s1 + $0xc0] sm:$0xf]
  %v70 = vld [vmem:[%s1 + $0xc4] sm:$0xf]
  %v71 = vld [vmem:[%s1 + $0xc8] sm:$0xf]
  %v72 = vld [vmem:[%s1 + $0xcc] sm:$0xf]
  %v73 = vld [vmem:[%s1 + $0xd0] sm:$0xf]
  %v74 = vld [vmem:[%s1 + $0xd4] sm:$0xf]
  %v75 = vld [vmem:[%s1 + $0xd8] sm:$0xf]
  %v76 = vld [vmem:[%s1 + $0xdc] sm:$0xf]
  %v77 = vld [vmem:[%s1 + $0xe0] sm:$0xf]
  %v78 = vld [vmem:[%s1 + $0xe4] sm:$0xf]
  %v79 = vld [vmem:[%s1 + $0xe8] sm:$0xf]
  %v80 = vld [vmem:[%s1 + $0xec] sm:$0xf]
  %v81 = vld [vmem:[%s1 + $0xf0] sm:$0xf]
  %v82 = vld [vmem:[%s1 + $0xf4] sm:$0xf]
  %v83 = vld [vmem:[%s1 + $0xf8] sm:$0xf]
  %v84 = vld [vmem:[%s1 + $0xfc] sm:$0xf]
  %v85 = vld [vmem:[%s1 + $0x100] sm:$0xf]
  %v86 = vld [vmem:[%s1 + $0x104] sm:$0xf]
  %v87 = vld [vmem:[%s1 + $0x108] sm:$0xf]
  %v88 = vld [vmem:[%s1 + $0x10c] sm:$0xf]
  %v89 = vld [vmem:[%s1 + $0x110] sm:$0xf]
  %v90 = vld [vmem:[%s1 + $0x114] sm:$0xf]
  %v91 = vld [vmem:[%s1 + $0x118] sm:$0xf]
  %v92 = vld [vmem:[%s1 + $0x11c] sm:$0xf]
  %v93 = vld [vmem:[%s2] sm:$0x1]
  %v95 = vlaneseq
  %v96 = vshrl.u32 %v95, 7
  %v97 = vsub.s32 0, %v96
  %v98 = vrot.slane %v93, %v97
  %v103 = vunpack.c.l.b16 %v18
  %v104 = vunpack.c.h.b16 %v18
  %v105 = vunpack.c.l.b16 %v19
  %v106 = vunpack.c.h.b16 %v19
  %v107 = vunpack.c.l.b16 %v20
  %v108 = vpack.c.b16 %v103, %v103
  %v109 = vpack.c.b16 %v104, %v104
  %v110 = vpack.c.b16 %v105, %v105
  %v111 = vpack.c.b16 %v106, %v106
  %v112 = vpack.c.b16 %v107, %v107
  %v189 = vunpack.c.l.b16 %v21
  %v190 = vunpack.c.l.b16 %v22
  %v191 = vunpack.c.l.b16 %v23
  %v192 = vunpack.c.l.b16 %v24
  %v193 = vunpack.c.l.b16 %v25
  %v194 = vunpack.c.l.b16 %v26
  %v195 = vunpack.c.l.b16 %v27
  %v196 = vunpack.c.l.b16 %v28
  %v197 = vunpack.c.l.b16 %v29
  %v198 = vunpack.c.l.b16 %v30
  %v199 = vunpack.c.l.b16 %v31
  %v200 = vunpack.c.l.b16 %v32
  %v201 = vunpack.c.l.b16 %v33
  %v202 = vunpack.c.l.b16 %v34
  %v203 = vunpack.c.l.b16 %v35
  %v204 = vunpack.c.l.b16 %v36
  %v205 = vunpack.c.l.b16 %v37
  %v206 = vunpack.c.l.b16 %v38
  %v207 = vunpack.c.l.b16 %v39
  %v208 = vunpack.c.l.b16 %v40
  %v209 = vunpack.c.l.b16 %v41
  %v210 = vunpack.c.l.b16 %v42
  %v211 = vunpack.c.l.b16 %v43
  %v212 = vunpack.c.l.b16 %v44
  %v213 = vunpack.c.l.b16 %v45
  %v214 = vunpack.c.l.b16 %v46
  %v215 = vunpack.c.l.b16 %v47
  %v216 = vunpack.c.l.b16 %v48
  %v217 = vunpack.c.l.b16 %v49
  %v218 = vunpack.c.l.b16 %v50
  %v219 = vunpack.c.l.b16 %v51
  %v220 = vunpack.c.l.b16 %v52
  %v221 = vunpack.c.l.b16 %v53
  %v222 = vunpack.c.l.b16 %v54
  %v223 = vunpack.c.l.b16 %v55
  %v224 = vunpack.c.l.b16 %v56
  %v225 = vunpack.c.l.b16 %v57
  %v226 = vunpack.c.l.b16 %v58
  %v227 = vunpack.c.l.b16 %v59
  %v228 = vunpack.c.l.b16 %v60
  %v229 = vunpack.c.l.b16 %v61
  %v230 = vunpack.c.l.b16 %v62
  %v231 = vunpack.c.l.b16 %v63
  %v232 = vunpack.c.l.b16 %v64
  %v233 = vunpack.c.l.b16 %v65
  %v234 = vunpack.c.l.b16 %v66
  %v235 = vunpack.c.l.b16 %v67
  %v236 = vunpack.c.l.b16 %v68
  %v237 = vunpack.c.l.b16 %v69
  %v238 = vunpack.c.l.b16 %v70
  %v239 = vunpack.c.l.b16 %v71
  %v240 = vunpack.c.l.b16 %v72
  %v241 = vunpack.c.l.b16 %v73
  %v242 = vunpack.c.l.b16 %v74
  %v243 = vunpack.c.l.b16 %v75
  %v244 = vunpack.c.l.b16 %v76
  %v245 = vunpack.c.l.b16 %v77
  %v246 = vunpack.c.l.b16 %v78
  %v247 = vunpack.c.l.b16 %v79
  %v248 = vunpack.c.l.b16 %v80
  %v249 = vunpack.c.l.b16 %v81
  %v250 = vunpack.c.l.b16 %v82
  %v251 = vunpack.c.l.b16 %v83
  %v252 = vunpack.c.l.b16 %v84
  %v253 = vunpack.c.l.b16 %v85
  %v254 = vunpack.c.l.b16 %v86
  %v255 = vunpack.c.l.b16 %v87
  %v256 = vunpack.c.l.b16 %v88
  %v257 = vunpack.c.l.b16 %v89
  %v258 = vunpack.c.l.b16 %v90
  %v259 = vunpack.c.l.b16 %v91
  %v260 = vunpack.c.l.b16 %v92
  %v261 = vpack.c.b16 %v190, %v189
  %v262 = vpack.c.b16 %v192, %v191
  %v263 = vpack.c.b16 %v194, %v193
  %v264 = vpack.c.b16 %v196, %v195
  %v265 = vpack.c.b16 %v198, %v197
  %v266 = vpack.c.b16 %v200, %v199
  %v267 = vpack.c.b16 %v202, %v201
  %v268 = vpack.c.b16 %v204, %v203
  %v269 = vpack.c.b16 %v206, %v205
  %v270 = vpack.c.b16 %v208, %v207
  %v271 = vpack.c.b16 %v210, %v209
  %v272 = vpack.c.b16 %v212, %v211
  %v273 = vpack.c.b16 %v214, %v213
  %v274 = vpack.c.b16 %v216, %v215
  %v275 = vpack.c.b16 %v218, %v217
  %v276 = vpack.c.b16 %v220, %v219
  %v277 = vpack.c.b16 %v222, %v221
  %v278 = vpack.c.b16 %v224, %v223
  %v279 = vpack.c.b16 %v226, %v225
  %v280 = vpack.c.b16 %v228, %v227
  %v281 = vpack.c.b16 %v230, %v229
  %v282 = vpack.c.b16 %v232, %v231
  %v283 = vpack.c.b16 %v234, %v233
  %v284 = vpack.c.b16 %v236, %v235
  %v285 = vpack.c.b16 %v238, %v237
  %v286 = vpack.c.b16 %v240, %v239
  %v287 = vpack.c.b16 %v242, %v241
  %v288 = vpack.c.b16 %v244, %v243
  %v289 = vpack.c.b16 %v246, %v245
  %v290 = vpack.c.b16 %v248, %v247
  %v291 = vpack.c.b16 %v250, %v249
  %v292 = vpack.c.b16 %v252, %v251
  %v293 = vpack.c.b16 %v254, %v253
  %v294 = vpack.c.b16 %v256, %v255
  %v295 = vpack.c.b16 %v258, %v257
  %v296 = vpack.c.b16 %v260, %v259
  %vm333 = vcmask 523264
  %v335 = vsel %vm333, %v112, 0
  %337 = vmatprep.subr.bf16.mxu0 0
  %338 = vmatpush1.bf16.msra.mxu0 %v261
  %339 = vmatprep.subr.bf16.mxu0 0
  %340 = vmatpush1.bf16.msra.mxu0 %v262
  %341 = vmatprep.subr.bf16.mxu0 0
  %342 = vmatpush1.bf16.msra.mxu0 %v263
  %343 = vmatprep.subr.bf16.mxu0 0
  %344 = vmatpush1.bf16.msra.mxu0 %v264
  %345 = vmatprep.subr.bf16.mxu0 0
  %346 = vmatpush1.bf16.msra.mxu0 %v265
  %347 = vmatprep.subr.bf16.mxu0 0
  %348 = vmatpush1.bf16.msra.mxu0 %v266
  %349 = vmatprep.subr.bf16.mxu0 0
  %350 = vmatpush1.bf16.msra.mxu0 %v267
  %351 = vmatprep.subr.bf16.mxu0 0
  %352 = vmatpush1.bf16.msra.mxu0 %v268
  %353 = vmatprep.subr.bf16.mxu0 0
  %354 = vmatpush1.bf16.msra.mxu0 %v269
  %355 = vmatprep.subr.bf16.mxu0 0
  %356 = vmatpush1.bf16.msra.mxu0 %v270
  %357 = vmatprep.subr.bf16.mxu0 0
  %358 = vmatpush1.bf16.msra.mxu0 %v271
  %359 = vmatprep.subr.bf16.mxu0 0
  %360 = vmatpush1.bf16.msra.mxu0 %v272
  %361 = vmatprep.subr.bf16.mxu0 0
  %362 = vmatpush1.bf16.msra.mxu0 %v273
  %363 = vmatprep.subr.bf16.mxu0 0
  %364 = vmatpush1.bf16.msra.mxu0 %v274
  %365 = vmatprep.subr.bf16.mxu0 0
  %366 = vmatpush1.bf16.msra.mxu0 %v275
  %367 = vmatprep.subr.bf16.mxu0 0
  %368 = vmatpush1.bf16.msra.mxu0 %v276
  %369 = vmatprep.mubr.bf16.mxu0 %v109
  %370 = vmatmul.mubr.bf16.gmra.mrb[0].mxu0 %v108
  %v371 = vpop.f32.mrb[0].mxu0
  %v372 = vadd.f32 %v98, %v371
  %v373 = vpop.f32.mrb[0].mxu0
  %v374 = vpop.f32.mrb[0].mxu0
  %v375 = vpop.f32.mrb[0].mxu0
  %376 = vdwg.mxu0
  %377 = vmatprep.subr.bf16.mxu0 0
  %378 = vmatpush1.bf16.msra.mxu0 %v277
  %379 = vmatprep.subr.bf16.mxu0 0
  %380 = vmatpush1.bf16.msra.mxu0 %v278
  %381 = vmatprep.subr.bf16.mxu0 0
  %382 = vmatpush1.bf16.msra.mxu0 %v279
  %383 = vmatprep.subr.bf16.mxu0 0
  %384 = vmatpush1.bf16.msra.mxu0 %v280
  %385 = vmatprep.subr.bf16.mxu0 0
  %386 = vmatpush1.bf16.msra.mxu0 %v281
  %387 = vmatprep.subr.bf16.mxu0 0
  %388 = vmatpush1.bf16.msra.mxu0 %v282
  %389 = vmatprep.subr.bf16.mxu0 0
  %390 = vmatpush1.bf16.msra.mxu0 %v283
  %391 = vmatprep.subr.bf16.mxu0 0
  %392 = vmatpush1.bf16.msra.mxu0 %v284
  %393 = vmatprep.subr.bf16.mxu0 0
  %394 = vmatpush1.bf16.msra.mxu0 %v285
  %395 = vmatprep.subr.bf16.mxu0 0
  %396 = vmatpush1.bf16.msra.mxu0 %v286
  %397 = vmatprep.subr.bf16.mxu0 0
  %398 = vmatpush1.bf16.msra.mxu0 %v287
  %399 = vmatprep.subr.bf16.mxu0 0
  %400 = vmatpush1.bf16.msra.mxu0 %v288
  %401 = vmatprep.subr.bf16.mxu0 0
  %402 = vmatpush1.bf16.msra.mxu0 %v289
  %403 = vmatprep.subr.bf16.mxu0 0
  %404 = vmatpush1.bf16.msra.mxu0 %v290
  %405 = vmatprep.subr.bf16.mxu0 0
  %406 = vmatpush1.bf16.msra.mxu0 %v291
  %407 = vmatprep.subr.bf16.mxu0 0
  %408 = vmatpush1.bf16.msra.mxu0 %v292
  %409 = vmatprep.mubr.bf16.mxu0 %v111
  %410 = vmatmul.mubr.bf16.gmra.mrb[0].mxu0 %v110
  %v411 = vpop.f32.mrb[0].mxu0
  %v412 = vadd.f32 %v372, %v411
  %v413 = vpop.f32.mrb[0].mxu0
  %v414 = vpop.f32.mrb[0].mxu0
  %v415 = vpop.f32.mrb[0].mxu0
  %416 = vdwg.mxu0
  %417 = vmatprep.subr.bf16.mxu0 0
  %418 = vmatpush1.bf16.msra.mxu0 %v293
  %419 = vmatprep.subr.bf16.mxu0 0
  %420 = vmatpush1.bf16.msra.mxu0 %v294
  %421 = vmatprep.subr.bf16.mxu0 0
  %422 = vmatpush1.bf16.msra.mxu0 %v295
  %423 = vmatprep.subr.bf16.mxu0 0
  %424 = vmatpush1.bf16.msra.mxu0 %v296
  %425 = vmatprep.subr.bf16.mxu0 0
  %426 = vmatpush1.bf16.msra.mxu0 0
  %427 = vmatprep.subr.bf16.mxu0 0
  %428 = vmatpush1.bf16.msra.mxu0 0
  %429 = vmatprep.subr.bf16.mxu0 0
  %430 = vmatpush1.bf16.msra.mxu0 0
  %431 = vmatprep.subr.bf16.mxu0 0
  %432 = vmatpush1.bf16.msra.mxu0 0
  %433 = vmatprep.subr.bf16.mxu0 0
  %434 = vmatpush1.bf16.msra.mxu0 0
  %435 = vmatprep.subr.bf16.mxu0 0
  %436 = vmatpush1.bf16.msra.mxu0 0
  %437 = vmatprep.subr.bf16.mxu0 0
  %438 = vmatpush1.bf16.msra.mxu0 0
  %439 = vmatprep.subr.bf16.mxu0 0
  %440 = vmatpush1.bf16.msra.mxu0 0
  %441 = vmatprep.subr.bf16.mxu0 0
  %442 = vmatpush1.bf16.msra.mxu0 0
  %443 = vmatprep.subr.bf16.mxu0 0
  %444 = vmatpush1.bf16.msra.mxu0 0
  %445 = vmatprep.subr.bf16.mxu0 0
  %446 = vmatpush1.bf16.msra.mxu0 0
  %447 = vmatprep.subr.bf16.mxu0 0
  %448 = vmatpush1.bf16.msra.mxu0 0
  %449 = vmatprep.mubr.bf16.mxu0 0
  %450 = vmatmul.mubr.bf16.gmra.mrb[0].mxu0 %v335
  %v451 = vpop.f32.mrb[0].mxu0
  %v452 = vadd.f32 %v412, %v451
  %v453 = vpop.f32.mrb[0].mxu0
  %v454 = vpop.f32.mrb[0].mxu0
  %v455 = vpop.f32.mrb[0].mxu0
  %456 = vdwg.mxu0
  %v457 = vld [vmem:[%s3] sm:$0xf]
  %v458 = vunpack.c.l.bf16 %v457
  %v459 = vadd.f32 %v452, %v458
  %v460 = vmax.f32 %v459, 0.0
  %v461 = vpack.c.bf16 %v460, %v460
  %vm462 = vcmask 519168
  %463 = vst.msk [vmem:[%s4] sm:$0xf] %vm462, %v461
  // Predicated region
  $region18: #{avenet_forward.36} parent=0 // pred_check
    _
  $region19: #{avenet_forward.36} parent=0 // pred_check_branch
    %465 = sbr.rel (0) target = $region21
  $region20: #{avenet_forward.36} parent=0 // pred_region
    _
  $region21: #{avenet_forward.36} parent=0 // pred_fallthru
    _
  // Predicated region
  $region22: #{avenet_forward.36} parent=0 // pred_check
    _
  $region23: #{avenet_forward.36} parent=0 // pred_check_branch
    %467 = sbr.rel (0) target = $region25
  $region24: #{avenet_forward.36} parent=0 // pred_region
    _
  $region25: #{avenet_forward.36} parent=0 // pred_fallthru
    _

// kernel: avenet_forward.37
$region0: #{avenet_forward.37}
  #allocation0 [shape = 'u32[]', space=smem, size = 0x4, offset = 0x4, fixed_abs, tag = 'smem constant byte address 0x4 - core index']
  #allocation1 [shape = 'u32[144,128]{1,0:T(1,128)}', space=vmem, size = 0x12000, scoped, tag = 'internal scratch']
  %s0 = inlined_call_operand.vmem [shape: bf16[2,256], index: 0, kind: input, shape index: {}]
  %s1 = inlined_call_operand.vmem [shape: bf16[256,20], index: 1, kind: input, shape index: {}]
  %s2 = inlined_call_operand.vmem [shape: f32[1,20], index: 2, kind: input, shape index: {}]
  %s3 = inlined_call_operand.vmem [shape: f32[2,20], index: 3, kind: output, shape index: {}]
  %s4 = sld [smem:[#allocation0]]
  $region22: #{avenet_forward.37} parent=0
    _
  %s6 = ssub.s32 1, %s4
  %s7 = scalar_select 0, %s6, %s4
  // Predicated region
  $region2: #{avenet_forward.37} parent=0 // pred_check
    _
  $region3: #{avenet_forward.37} parent=0 // pred_check_branch
    %9 = sbr.rel (0) target = $region5
  $region4: #{avenet_forward.37} parent=0 // pred_region
    _
  $region5: #{avenet_forward.37} parent=0 // pred_fallthru
    _
  // Predicated region
  $region6: #{avenet_forward.37} parent=0 // pred_check
    _
  $region7: #{avenet_forward.37} parent=0 // pred_check_branch
    %11 = sbr.rel (0) target = $region9
  $region8: #{avenet_forward.37} parent=0 // pred_region
    _
  $region9: #{avenet_forward.37} parent=0 // pred_fallthru
    _
  // Predicated region
  $region10: #{avenet_forward.37} parent=0 // pred_check
    _
  $region11: #{avenet_forward.37} parent=0 // pred_check_branch
    %13 = sbr.rel (0) target = $region13
  $region12: #{avenet_forward.37} parent=0 // pred_region
    _
  $region13: #{avenet_forward.37} parent=0 // pred_fallthru
    _
  %v15 = vld [vmem:[%s0] sm:$0x3]
  %v16 = vld [vmem:[%s1] sm:$0xf]
  %v17 = vld [vmem:[%s1 + $0x4] sm:$0xf]
  %v18 = vld [vmem:[%s1 + $0x8] sm:$0xf]
  %v19 = vld [vmem:[%s1 + $0xc] sm:$0xf]
  %v20 = vld [vmem:[%s1 + $0x10] sm:$0xf]
  %v21 = vld [vmem:[%s1 + $0x14] sm:$0xf]
  %v22 = vld [vmem:[%s1 + $0x18] sm:$0xf]
  %v23 = vld [vmem:[%s1 + $0x1c] sm:$0xf]
  %v24 = vld [vmem:[%s1 + $0x20] sm:$0xf]
  %v25 = vld [vmem:[%s1 + $0x24] sm:$0xf]
  %v26 = vld [vmem:[%s1 + $0x28] sm:$0xf]
  %v27 = vld [vmem:[%s1 + $0x2c] sm:$0xf]
  %v28 = vld [vmem:[%s1 + $0x30] sm:$0xf]
  %v29 = vld [vmem:[%s1 + $0x34] sm:$0xf]
  %v30 = vld [vmem:[%s1 + $0x38] sm:$0xf]
  %v31 = vld [vmem:[%s1 + $0x3c] sm:$0xf]
  %v32 = vld [vmem:[%s1 + $0x40] sm:$0xf]
  %v33 = vld [vmem:[%s1 + $0x44] sm:$0xf]
  %v34 = vld [vmem:[%s1 + $0x48] sm:$0xf]
  %v35 = vld [vmem:[%s1 + $0x4c] sm:$0xf]
  %v36 = vld [vmem:[%s1 + $0x50] sm:$0xf]
  %v37 = vld [vmem:[%s1 + $0x54] sm:$0xf]
  %v38 = vld [vmem:[%s1 + $0x58] sm:$0xf]
  %v39 = vld [vmem:[%s1 + $0x5c] sm:$0xf]
  %v40 = vld [vmem:[%s1 + $0x60] sm:$0xf]
  %v41 = vld [vmem:[%s1 + $0x64] sm:$0xf]
  %v42 = vld [vmem:[%s1 + $0x68] sm:$0xf]
  %v43 = vld [vmem:[%s1 + $0x6c] sm:$0xf]
  %v44 = vld [vmem:[%s1 + $0x70] sm:$0xf]
  %v45 = vld [vmem:[%s1 + $0x74] sm:$0xf]
  %v46 = vld [vmem:[%s1 + $0x78] sm:$0xf]
  %v47 = vld [vmem:[%s1 + $0x7c] sm:$0xf]
  %v48 = vld [vmem:[%s2] sm:$0x1]
  %v50 = vlaneseq
  %v51 = vshrl.u32 %v50, 7
  %v52 = vsub.s32 0, %v51
  %v53 = vrot.slane %v48, %v52
  %v57 = vunpack.c.l.s4 1966171168
  %v58 = vunpack.c.0.s8 %v57
  %v59 = vlaneseq
  %v60 = vshrl.u32 %v59, 7
  %v61 = vsub.s32 %v58, %v60
  %v62 = vrot.slane %v15, %v61
  %v63 = vcombine.high %v62, %v62
  %v65 = vunpack.c.l.s4 1966171168
  %v66 = vunpack.c.0.s8 %v65
  %v67 = vlaneseq
  %v68 = vshrl.u32 %v67, 7
  %v69 = vsub.s32 %v66, %v68
  %v70 = vrot.slane %v62, %v69
  %v72 = vunpack.c.l.s4 1966171168
  %v73 = vunpack.c.0.s8 %v72
  %v74 = vlaneseq
  %v75 = vshrl.u32 %v74, 7
  %v76 = vsub.s32 %v73, %v75
  %v77 = vrot.slane %v63, %v76
  %v112 = vunpack.c.l.b16 %v16
  %v113 = vunpack.c.l.b16 %v17
  %v114 = vunpack.c.l.b16 %v18
  %v115 = vunpack.c.l.b16 %v19
  %v116 = vunpack.c.l.b16 %v20
  %v117 = vunpack.c.l.b16 %v21
  %v118 = vunpack.c.l.b16 %v22
  %v119 = vunpack.c.l.b16 %v23
  %v120 = vunpack.c.l.b16 %v24
  %v121 = vunpack.c.l.b16 %v25
  %v122 = vunpack.c.l.b16 %v26
  %v123 = vunpack.c.l.b16 %v27
  %v124 = vunpack.c.l.b16 %v28
  %v125 = vunpack.c.l.b16 %v29
  %v126 = vunpack.c.l.b16 %v30
  %v127 = vunpack.c.l.b16 %v31
  %v128 = vunpack.c.l.b16 %v32
  %v129 = vunpack.c.l.b16 %v33
  %v130 = vunpack.c.l.b16 %v34
  %v131 = vunpack.c.l.b16 %v35
  %v132 = vunpack.c.l.b16 %v36
  %v133 = vunpack.c.l.b16 %v37
  %v134 = vunpack.c.l.b16 %v38
  %v135 = vunpack.c.l.b16 %v39
  %v136 = vunpack.c.l.b16 %v40
  %v137 = vunpack.c.l.b16 %v41
  %v138 = vunpack.c.l.b16 %v42
  %v139 = vunpack.c.l.b16 %v43
  %v140 = vunpack.c.l.b16 %v44
  %v141 = vunpack.c.l.b16 %v45
  %v142 = vunpack.c.l.b16 %v46
  %v143 = vunpack.c.l.b16 %v47
  %v144 = vpack.c.b16 %v113, %v112
  %v145 = vpack.c.b16 %v115, %v114
  %v146 = vpack.c.b16 %v117, %v116
  %v147 = vpack.c.b16 %v119, %v118
  %v148 = vpack.c.b16 %v121, %v120
  %v149 = vpack.c.b16 %v123, %v122
  %v150 = vpack.c.b16 %v125, %v124
  %v151 = vpack.c.b16 %v127, %v126
  %v152 = vpack.c.b16 %v129, %v128
  %v153 = vpack.c.b16 %v131, %v130
  %v154 = vpack.c.b16 %v133, %v132
  %v155 = vpack.c.b16 %v135, %v134
  %v156 = vpack.c.b16 %v137, %v136
  %v157 = vpack.c.b16 %v139, %v138
  %v158 = vpack.c.b16 %v141, %v140
  %v159 = vpack.c.b16 %v143, %v142
  %176 = vmatprep.subr.bf16.mxu0 0
  %177 = vmatpush1.bf16.msra.mxu0 %v144
  %178 = vmatprep.subr.bf16.mxu0 0
  %179 = vmatpush1.bf16.msra.mxu0 %v145
  %180 = vmatprep.subr.bf16.mxu0 0
  %181 = vmatpush1.bf16.msra.mxu0 %v146
  %182 = vmatprep.subr.bf16.mxu0 0
  %183 = vmatpush1.bf16.msra.mxu0 %v147
  %184 = vmatprep.subr.bf16.mxu0 0
  %185 = vmatpush1.bf16.msra.mxu0 %v148
  %186 = vmatprep.subr.bf16.mxu0 0
  %187 = vmatpush1.bf16.msra.mxu0 %v149
  %188 = vmatprep.subr.bf16.mxu0 0
  %189 = vmatpush1.bf16.msra.mxu0 %v150
  %190 = vmatprep.subr.bf16.mxu0 0
  %191 = vmatpush1.bf16.msra.mxu0 %v151
  %192 = vmatprep.subr.bf16.mxu0 0
  %193 = vmatpush1.bf16.msra.mxu0 %v152
  %194 = vmatprep.subr.bf16.mxu0 0
  %195 = vmatpush1.bf16.msra.mxu0 %v153
  %196 = vmatprep.subr.bf16.mxu0 0
  %197 = vmatpush1.bf16.msra.mxu0 %v154
  %198 = vmatprep.subr.bf16.mxu0 0
  %199 = vmatpush1.bf16.msra.mxu0 %v155
  %200 = vmatprep.subr.bf16.mxu0 0
  %201 = vmatpush1.bf16.msra.mxu0 %v156
  %202 = vmatprep.subr.bf16.mxu0 0
  %203 = vmatpush1.bf16.msra.mxu0 %v157
  %204 = vmatprep.subr.bf16.mxu0 0
  %205 = vmatpush1.bf16.msra.mxu0 %v158
  %206 = vmatprep.subr.bf16.mxu0 0
  %207 = vmatpush1.bf16.msra.mxu0 %v159
  %208 = vmatprep.mubr.bf16.mxu0 %v77
  %209 = vmatmul.mubr.bf16.gmra.mrb[0].mxu0 %v70
  %v210 = vpop.f32.mrb[0].mxu0
  %v211 = vadd.f32 %v53, %v210
  %v212 = vpop.f32.mrb[0].mxu0
  %v213 = vpop.f32.mrb[0].mxu0
  %v214 = vpop.f32.mrb[0].mxu0
  %215 = vdwg.mxu0
  %vm216 = vcmask 156672
  %217 = vst.msk [vmem:[%s3] sm:$0x3] %vm216, %v211
  // Predicated region
  $region14: #{avenet_forward.37} parent=0 // pred_check
    _
  $region15: #{avenet_forward.37} parent=0 // pred_check_branch
    %219 = sbr.rel (0) target = $region17
  $region16: #{avenet_forward.37} parent=0 // pred_region
    _
  $region17: #{avenet_forward.37} parent=0 // pred_fallthru
    _
  // Predicated region
  $region18: #{avenet_forward.37} parent=0 // pred_check
    _
  $region19: #{avenet_forward.37} parent=0 // pred_check_branch
    %221 = sbr.rel (0) target = $region21
  $region20: #{avenet_forward.37} parent=0 // pred_region
    _
  $region21: #{avenet_forward.37} parent=0 // pred_fallthru
    _

</llo_original>
